<compile_context>
chip_gen: v7x
topology: tpu7x:2x2x1
jax: 0.10.0
libtpu: 0.0.40
codegen_flags: <defaults>
</compile_context>

<pallas_src>
import functools

import jax
import jax.numpy as jnp
from jax.experimental import pallas as pl
from jax.experimental.pallas import tpu as pltpu  # noqa: F401  (kept for TPU-specific tuning hooks)

# ----------------------------- model dims -----------------------------------
B = 2        # batch
S = 8        # sequence length
D = 32       # d_model
H = 4        # num heads
HD = D // H  # head dim
DFF = 64     # feed-forward dim
NUM_LAYERS = 2
LN_EPS = 1e-5
N_TOKENS = B * S


# ----------------------------- shared math -----------------------------------
def _layernorm(x, w, b):
    """LayerNorm over the last axis (biased variance, eps=1e-5), params (1, D)."""
    mu = jnp.mean(x, axis=-1, keepdims=True)
    xc = x - mu
    var = jnp.mean(xc * xc, axis=-1, keepdims=True)
    inv = jax.lax.rsqrt(var + LN_EPS)
    return xc * inv * w + b


# ----------------------------- the fused kernel -------------------------------
def encoder_stack_kernel(x_ref, pos_ref,
                         wqkv_ref, bqkv_ref, wo_ref, bo_ref,
                         w1_ref, b1_ref, w2_ref, b2_ref,
                         lnw_ref, lnb_ref, fnw_ref, fnb_ref,
                         out_ref, *, num_layers, num_heads, apply_final_norm):
    """Runs the whole encoder stack on a (B*S, D) token slab kept in VMEM.

    Weight refs (all stacked on a flat leading axis, host-side packing):
      wqkv_ref : (L*3*H, D, HD)   per-head Q/K/V projections (Q pre-scaled)
      bqkv_ref : (L*3*H, 1, HD)
      wo_ref   : (L*H, HD, D)     per-head rows of the output projection
      bo_ref   : (L, 1, D)
      w1/b1    : (L, D, DFF) / (L, 1, DFF)
      w2/b2    : (L, DFF, D) / (L, 1, D)
      lnw/lnb  : (L*2, 1, D)      [ln1, ln2] per layer
      fnw/fnb  : (1, D)           final norm (dummy if absent)
    """
    x = x_ref[...]          # (N, D), token rows ordered (batch-major, seq)
    pos = pos_ref[...]      # (N, D)
    n = x.shape[0]

    for l in range(num_layers):                       # static unroll over layers
        qk_in = x + pos                               # q = k = with_pos_embed(src, pos)

        # ---- multi-head self-attention (heads via stacked per-head weights) --
        attn = jnp.zeros_like(x)
        for h in range(num_heads):                    # static unroll over heads
            qi = (l * 3 + 0) * num_heads + h
            ki = (l * 3 + 1) * num_heads + h
            vi = (l * 3 + 2) * num_heads + h
            q = jnp.dot(qk_in, wqkv_ref[qi], preferred_element_type=jnp.float32) + bqkv_ref[qi]
            k = jnp.dot(qk_in, wqkv_ref[ki], preferred_element_type=jnp.float32) + bqkv_ref[ki]
            v = jnp.dot(x,     wqkv_ref[vi], preferred_element_type=jnp.float32) + bqkv_ref[vi]

            # tile-aligned (free) reshape: (B*S, HD) -> (B, S, HD)
            q3 = q.reshape(B, S, HD)
            k3 = k.reshape(B, S, HD)
            v3 = v.reshape(B, S, HD)

            # scores per batch element (scale already folded into Wq/bq)
            s = jnp.einsum('bqd,bkd->bqk', q3, k3,
                           preferred_element_type=jnp.float32)      # (B, S, S)
            s = s - jnp.max(s, axis=-1, keepdims=True)
            p = jnp.exp(s)
            p = p * pl.reciprocal(jnp.sum(p, axis=-1, keepdims=True), approx=True)

            o = jnp.einsum('bqk,bkd->bqd', p, v3,
                           preferred_element_type=jnp.float32)      # (B, S, HD)

            # accumulate head's slice of the output projection (no concat needed)
            attn = attn + jnp.dot(o.reshape(n, HD), wo_ref[l * num_heads + h],
                                  preferred_element_type=jnp.float32)
        attn = attn + bo_ref[l]

        # ---- residual + norm1 ------------------------------------------------
        x = _layernorm(x + attn, lnw_ref[2 * l], lnb_ref[2 * l])

        # ---- feed-forward ----------------------------------------------------
        hidden = jnp.dot(x, w1_ref[l], preferred_element_type=jnp.float32) + b1_ref[l]
        hidden = jnp.maximum(hidden, 0.0)                           # ReLU
        ff = jnp.dot(hidden, w2_ref[l], preferred_element_type=jnp.float32) + b2_ref[l]

        # ---- residual + norm2 ------------------------------------------------
        x = _layernorm(x + ff, lnw_ref[2 * l + 1], lnb_ref[2 * l + 1])

    if apply_final_norm:
        x = _layernorm(x, fnw_ref[...], fnb_ref[...])

    out_ref[...] = x


# ----------------------------- host-side packing ------------------------------
def _heads_in(w):   # (D, D) column-blocked per head -> (H, D, HD)
    return jnp.transpose(w.reshape(D, H, HD), (1, 0, 2))


def _heads_bias(b):  # (1, D) -> (H, 1, HD)
    return jnp.transpose(b.reshape(1, H, HD), (1, 0, 2))


PARAM_ORDER = ("w_qkv", "b_qkv", "w_out", "b_out",
               "w1", "b1", "w2", "b2", "ln_w", "ln_b")


def pack_layer_params(layer_params):
    """Stack per-layer params into flat-leading-axis arrays for the fused kernel.

    Also folds the 1/sqrt(HD) attention scale into Wq / bq (zero runtime cost).
    """
    scale = 1.0 / float(HD) ** 0.5
    w_qkv, b_qkv, w_out = [], [], []
    b_out, w1, b1, w2, b2, ln_w, ln_b = [], [], [], [], [], [], []
    for p in layer_params:
        w_qkv += [_heads_in(p["wq"]) * scale, _heads_in(p["wk"]), _heads_in(p["wv"])]
        b_qkv += [_heads_bias(p["bq"]) * scale, _heads_bias(p["bk"]), _heads_bias(p["bv"])]
        w_out.append(p["wo"].reshape(H, HD, D))     # row-blocks of Wo per head
        b_out.append(p["bo"])
        w1.append(p["w1"]); b1.append(p["b1"])
        w2.append(p["w2"]); b2.append(p["b2"])
        ln_w += [p["ln1w"], p["ln2w"]]
        ln_b += [p["ln1b"], p["ln2b"]]
    return dict(
        w_qkv=jnp.concatenate(w_qkv, axis=0),       # (L*3*H, D, HD)
        b_qkv=jnp.concatenate(b_qkv, axis=0),       # (L*3*H, 1, HD)
        w_out=jnp.concatenate(w_out, axis=0),       # (L*H, HD, D)
        b_out=jnp.stack(b_out, axis=0),             # (L, 1, D)
        w1=jnp.stack(w1, axis=0),                   # (L, D, DFF)
        b1=jnp.stack(b1, axis=0),                   # (L, 1, DFF)
        w2=jnp.stack(w2, axis=0),                   # (L, DFF, D)
        b2=jnp.stack(b2, axis=0),                   # (L, 1, D)
        ln_w=jnp.stack(ln_w, axis=0),               # (L*2, 1, D)
        ln_b=jnp.stack(ln_b, axis=0),               # (L*2, 1, D)
    )


# ----------------------------- wrapper ----------------------------------------
def transformer_encoder_forward(src_sbd, pos_sbd, packed_params, final_norm_params=None):
    """src_sbd / pos_sbd: (S, B, D) like PyTorch. Returns (S, B, D)."""
    x2 = jnp.transpose(src_sbd, (1, 0, 2)).reshape(N_TOKENS, D)
    pos2 = jnp.transpose(pos_sbd, (1, 0, 2)).reshape(N_TOKENS, D)

    has_final = final_norm_params is not None
    if has_final:
        fn_w, fn_b = final_norm_params["w"], final_norm_params["b"]
    else:
        fn_w = jnp.ones((1, D), jnp.float32)
        fn_b = jnp.zeros((1, D), jnp.float32)

    kernel = functools.partial(encoder_stack_kernel,
                               num_layers=NUM_LAYERS, num_heads=H,
                               apply_final_norm=has_final)

    out2 = pl.pallas_call(
        kernel,
        out_shape=jax.ShapeDtypeStruct((N_TOKENS, D), jnp.float32),
    )(x2, pos2, *[packed_params[k] for k in PARAM_ORDER], fn_w, fn_b)

    return jnp.transpose(out2.reshape(B, S, D), (1, 0, 2))


# ----------------------------- pure-JAX reference ------------------------------
def reference_forward(src, pos, layer_params, final_norm_params):
    x = src                                              # (S, B, D)
    for p in layer_params:
        qk = x + pos
        q = jnp.einsum('sbd,de->sbe', qk, p["wq"]) + p["bq"]
        k = jnp.einsum('sbd,de->sbe', qk, p["wk"]) + p["bk"]
        v = jnp.einsum('sbd,de->sbe', x, p["wv"]) + p["bv"]
        qh = q.reshape(S, B, H, HD)
        kh = k.reshape(S, B, H, HD)
        vh = v.reshape(S, B, H, HD)
        scores = jnp.einsum('qbhd,kbhd->bhqk', qh, kh) / (HD ** 0.5)
        a = jax.nn.softmax(scores, axis=-1)
        o = jnp.einsum('bhqk,kbhd->qbhd', a, vh).reshape(S, B, D)
        o = jnp.einsum('sbd,de->sbe', o, p["wo"]) + p["bo"]
        x = _layernorm(x + o, p["ln1w"], p["ln1b"])
        h1 = jnp.maximum(jnp.einsum('sbd,df->sbf', x, p["w1"]) + p["b1"], 0.0)
        ff = jnp.einsum('sbf,fd->sbd', h1, p["w2"]) + p["b2"]
        x = _layernorm(x + ff, p["ln2w"], p["ln2b"])
    if final_norm_params is not None:
        x = _layernorm(x, final_norm_params["w"], final_norm_params["b"])
    return x


# ----------------------------- param init -------------------------------------
def init_layer_params(key):
    ks = jax.random.split(key, 8)
    scale = 0.05

    def lin(k, din, dout):
        # stored pre-transposed so forward computes x @ W (+ bias (1, dout))
        return (scale * jax.random.normal(k, (din, dout), jnp.float32),
                scale * jax.random.normal(jax.random.fold_in(k, 1), (1, dout), jnp.float32))

    wq, bq = lin(ks[0], D, D)
    wk, bk = lin(ks[1], D, D)
    wv, bv = lin(ks[2], D, D)
    wo, bo = lin(ks[3], D, D)
    w1, b1 = lin(ks[4], D, DFF)
    w2, b2 = lin(ks[5], DFF, D)
    return dict(
        wq=wq, bq=bq, wk=wk, bk=bk, wv=wv, bv=bv, wo=wo, bo=bo,
        ln1w=jnp.ones((1, D), jnp.float32), ln1b=jnp.zeros((1, D), jnp.float32),
        w1=w1, b1=b1, w2=w2, b2=b2,
        ln2w=jnp.ones((1, D), jnp.float32), ln2b=jnp.zeros((1, D), jnp.float32),
    )


if __name__ == "__main__":
    key = jax.random.PRNGKey(0)
    k_src, k_pos, k_layers = jax.random.split(key, 3)

    src = jax.random.normal(k_src, (S, B, D), jnp.float32)   # (seq, batch, d_model)
    pos = jax.random.normal(k_pos, (S, B, D), jnp.float32)

    layer_keys = jax.random.split(k_layers, NUM_LAYERS)
    layer_params = [init_layer_params(k) for k in layer_keys]
    final_norm = {"w": jnp.ones((1, D), jnp.float32),
                  "b": jnp.zeros((1, D), jnp.float32)}

    packed = pack_layer_params(layer_params)

    fwd = jax.jit(transformer_encoder_forward)
    out = fwd(src, pos, packed, final_norm)
    out = jax.block_until_ready(out)

    assert out.shape == (S, B, D)
    assert bool(jnp.all(jnp.isfinite(out)))

    # correctness check against a pure-JAX reference (loose tol: approx recip)
    ref = reference_forward(src, pos, layer_params, final_norm)
    max_err = float(jnp.max(jnp.abs(out - ref)))
    assert max_err < 1e-2, f"kernel/reference mismatch: max_err={max_err}"

    print("KERNEL_OK")
</pallas_src>

<mosaic_0001>
module attributes {stable_mosaic.version = 11 : i64} {
  func.func @encoder_stack_kernel(%arg0: memref<16x32xf32, #tpu.memory_space<vmem>>, %arg1: memref<16x32xf32, #tpu.memory_space<vmem>>, %arg2: memref<24x32x8xf32, #tpu.memory_space<vmem>>, %arg3: memref<24x1x8xf32, #tpu.memory_space<vmem>>, %arg4: memref<8x8x32xf32, #tpu.memory_space<vmem>>, %arg5: memref<2x1x32xf32, #tpu.memory_space<vmem>>, %arg6: memref<2x32x64xf32, #tpu.memory_space<vmem>>, %arg7: memref<2x1x64xf32, #tpu.memory_space<vmem>>, %arg8: memref<2x64x32xf32, #tpu.memory_space<vmem>>, %arg9: memref<2x1x32xf32, #tpu.memory_space<vmem>>, %arg10: memref<4x1x32xf32, #tpu.memory_space<vmem>>, %arg11: memref<4x1x32xf32, #tpu.memory_space<vmem>>, %arg12: memref<1x32xf32, #tpu.memory_space<vmem>>, %arg13: memref<1x32xf32, #tpu.memory_space<vmem>>, %arg14: memref<16x32xf32, #tpu.memory_space<vmem>>) attributes {dimension_semantics = [], scalar_prefetch = 0 : i64, scratch_operands = 0 : i64, tpu.core_type = #tpu.core_type<tc>} {
    %c0 = arith.constant 0 : index
    %c0_0 = arith.constant 0 : index
    %0 = vector.load %arg0[%c0, %c0_0] : memref<16x32xf32, #tpu.memory_space<vmem>>, vector<16x32xf32>
    %c0_1 = arith.constant 0 : index
    %c0_2 = arith.constant 0 : index
    %1 = vector.load %arg1[%c0_1, %c0_2] : memref<16x32xf32, #tpu.memory_space<vmem>>, vector<16x32xf32>
    %2 = arith.addf %0, %1 : vector<16x32xf32>
    %cst = arith.constant 0.000000e+00 : f32
    %3 = vector.broadcast %cst : f32 to vector<16x32xf32>
    %c0_3 = arith.constant 0 : index
    %c0_4 = arith.constant 0 : index
    %c0_5 = arith.constant 0 : index
    %4 = vector.load %arg2[%c0_3, %c0_4, %c0_5] : memref<24x32x8xf32, #tpu.memory_space<vmem>>, vector<1x32x8xf32>
    %5 = vector.shape_cast %4 : vector<1x32x8xf32> to vector<32x8xf32>
    %cst_6 = arith.constant dense<0.000000e+00> : vector<16x8xf32>
    %6 = tpu.matmul %2, %5, %cst_6 {dimension_numbers = #tpu.dot_dimension_numbers<[1], [0], [0], [1], [0, 0, 1, 1], [], []>} : vector<16x32xf32>, vector<32x8xf32>, vector<16x8xf32> -> vector<16x8xf32>
    %c0_7 = arith.constant 0 : index
    %c0_8 = arith.constant 0 : index
    %c0_9 = arith.constant 0 : index
    %7 = vector.load %arg3[%c0_7, %c0_8, %c0_9] : memref<24x1x8xf32, #tpu.memory_space<vmem>>, vector<1x1x8xf32>
    %8 = vector.shape_cast %7 : vector<1x1x8xf32> to vector<1x8xf32>
    %9 = vector.broadcast %8 : vector<1x8xf32> to vector<16x8xf32>
    %10 = arith.addf %6, %9 : vector<16x8xf32>
    %c4 = arith.constant 4 : index
    %c0_10 = arith.constant 0 : index
    %c0_11 = arith.constant 0 : index
    %11 = vector.load %arg2[%c4, %c0_10, %c0_11] : memref<24x32x8xf32, #tpu.memory_space<vmem>>, vector<1x32x8xf32>
    %12 = vector.shape_cast %11 : vector<1x32x8xf32> to vector<32x8xf32>
    %cst_12 = arith.constant dense<0.000000e+00> : vector<16x8xf32>
    %13 = tpu.matmul %2, %12, %cst_12 {dimension_numbers = #tpu.dot_dimension_numbers<[1], [0], [0], [1], [0, 0, 1, 1], [], []>} : vector<16x32xf32>, vector<32x8xf32>, vector<16x8xf32> -> vector<16x8xf32>
    %c4_13 = arith.constant 4 : index
    %c0_14 = arith.constant 0 : index
    %c0_15 = arith.constant 0 : index
    %14 = vector.load %arg3[%c4_13, %c0_14, %c0_15] : memref<24x1x8xf32, #tpu.memory_space<vmem>>, vector<1x1x8xf32>
    %15 = vector.shape_cast %14 : vector<1x1x8xf32> to vector<1x8xf32>
    %16 = vector.broadcast %15 : vector<1x8xf32> to vector<16x8xf32>
    %17 = arith.addf %13, %16 : vector<16x8xf32>
    %c8 = arith.constant 8 : index
    %c0_16 = arith.constant 0 : index
    %c0_17 = arith.constant 0 : index
    %18 = vector.load %arg2[%c8, %c0_16, %c0_17] : memref<24x32x8xf32, #tpu.memory_space<vmem>>, vector<1x32x8xf32>
    %19 = vector.shape_cast %18 : vector<1x32x8xf32> to vector<32x8xf32>
    %cst_18 = arith.constant dense<0.000000e+00> : vector<16x8xf32>
    %20 = tpu.matmul %0, %19, %cst_18 {dimension_numbers = #tpu.dot_dimension_numbers<[1], [0], [0], [1], [0, 0, 1, 1], [], []>} : vector<16x32xf32>, vector<32x8xf32>, vector<16x8xf32> -> vector<16x8xf32>
    %c8_19 = arith.constant 8 : index
    %c0_20 = arith.constant 0 : index
    %c0_21 = arith.constant 0 : index
    %21 = vector.load %arg3[%c8_19, %c0_20, %c0_21] : memref<24x1x8xf32, #tpu.memory_space<vmem>>, vector<1x1x8xf32>
    %22 = vector.shape_cast %21 : vector<1x1x8xf32> to vector<1x8xf32>
    %23 = vector.broadcast %22 : vector<1x8xf32> to vector<16x8xf32>
    %24 = arith.addf %20, %23 : vector<16x8xf32>
    %25 = vector.shape_cast %10 : vector<16x8xf32> to vector<2x8x8xf32>
    %26 = vector.shape_cast %17 : vector<16x8xf32> to vector<2x8x8xf32>
    %27 = vector.shape_cast %24 : vector<16x8xf32> to vector<2x8x8xf32>
    "tpu.trace_start"() <{level = 10 : i32, message = "bqd,bkd->bqk"}> : () -> ()
    %cst_22 = arith.constant dense<0.000000e+00> : vector<2x8x8xf32>
    %28 = tpu.matmul %25, %26, %cst_22 {dimension_numbers = #tpu.dot_dimension_numbers<[2], [2], [1], [1], [0, 0, 0, 1, 1, 1], [0], [0]>} : vector<2x8x8xf32>, vector<2x8x8xf32>, vector<2x8x8xf32> -> vector<2x8x8xf32>
    "tpu.trace_stop"() : () -> ()
    %cst_23 = arith.constant dense<0xFF800000> : vector<2x8xf32>
    %29 = vector.multi_reduction <maximumf>, %28, %cst_23 [2] : vector<2x8x8xf32> to vector<2x8xf32>
    %30 = vector.shape_cast %29 : vector<2x8xf32> to vector<2x8x1xf32>
    %31 = vector.broadcast %30 : vector<2x8x1xf32> to vector<2x8x8xf32>
    %32 = arith.subf %28, %31 : vector<2x8x8xf32>
    %33 = math.exp %32 : vector<2x8x8xf32>
    %cst_24 = arith.constant dense<0.000000e+00> : vector<2x8xf32>
    %34 = vector.multi_reduction <add>, %33, %cst_24 [2] : vector<2x8x8xf32> to vector<2x8xf32>
    %35 = vector.shape_cast %34 : vector<2x8xf32> to vector<2x8x1xf32>
    %36 = tpu.reciprocal %35 {approx = true} : vector<2x8x1xf32> -> vector<2x8x1xf32>
    %37 = vector.broadcast %36 : vector<2x8x1xf32> to vector<2x8x8xf32>
    %38 = arith.mulf %33, %37 : vector<2x8x8xf32>
    "tpu.trace_start"() <{level = 10 : i32, message = "bqk,bkd->bqd"}> : () -> ()
    %cst_25 = arith.constant dense<0.000000e+00> : vector<2x8x8xf32>
    %39 = tpu.matmul %38, %27, %cst_25 {dimension_numbers = #tpu.dot_dimension_numbers<[2], [1], [1], [2], [0, 0, 0, 1, 1, 2], [0], [0]>} : vector<2x8x8xf32>, vector<2x8x8xf32>, vector<2x8x8xf32> -> vector<2x8x8xf32>
    "tpu.trace_stop"() : () -> ()
    %40 = vector.shape_cast %39 : vector<2x8x8xf32> to vector<16x8xf32>
    %c0_26 = arith.constant 0 : index
    %c0_27 = arith.constant 0 : index
    %c0_28 = arith.constant 0 : index
    %41 = vector.load %arg4[%c0_26, %c0_27, %c0_28] : memref<8x8x32xf32, #tpu.memory_space<vmem>>, vector<1x8x32xf32>
    %42 = vector.shape_cast %41 : vector<1x8x32xf32> to vector<8x32xf32>
    %cst_29 = arith.constant dense<0.000000e+00> : vector<16x32xf32>
    %43 = tpu.matmul %40, %42, %cst_29 {dimension_numbers = #tpu.dot_dimension_numbers<[1], [0], [0], [1], [0, 0, 1, 1], [], []>} : vector<16x8xf32>, vector<8x32xf32>, vector<16x32xf32> -> vector<16x32xf32>
    %44 = arith.addf %3, %43 : vector<16x32xf32>
    %c1 = arith.constant 1 : index
    %c0_30 = arith.constant 0 : index
    %c0_31 = arith.constant 0 : index
    %45 = vector.load %arg2[%c1, %c0_30, %c0_31] : memref<24x32x8xf32, #tpu.memory_space<vmem>>, vector<1x32x8xf32>
    %46 = vector.shape_cast %45 : vector<1x32x8xf32> to vector<32x8xf32>
    %cst_32 = arith.constant dense<0.000000e+00> : vector<16x8xf32>
    %47 = tpu.matmul %2, %46, %cst_32 {dimension_numbers = #tpu.dot_dimension_numbers<[1], [0], [0], [1], [0, 0, 1, 1], [], []>} : vector<16x32xf32>, vector<32x8xf32>, vector<16x8xf32> -> vector<16x8xf32>
    %c1_33 = arith.constant 1 : index
    %c0_34 = arith.constant 0 : index
    %c0_35 = arith.constant 0 : index
    %48 = vector.load %arg3[%c1_33, %c0_34, %c0_35] : memref<24x1x8xf32, #tpu.memory_space<vmem>>, vector<1x1x8xf32>
    %49 = vector.shape_cast %48 : vector<1x1x8xf32> to vector<1x8xf32>
    %50 = vector.broadcast %49 : vector<1x8xf32> to vector<16x8xf32>
    %51 = arith.addf %47, %50 : vector<16x8xf32>
    %c5 = arith.constant 5 : index
    %c0_36 = arith.constant 0 : index
    %c0_37 = arith.constant 0 : index
    %52 = vector.load %arg2[%c5, %c0_36, %c0_37] : memref<24x32x8xf32, #tpu.memory_space<vmem>>, vector<1x32x8xf32>
    %53 = vector.shape_cast %52 : vector<1x32x8xf32> to vector<32x8xf32>
    %cst_38 = arith.constant dense<0.000000e+00> : vector<16x8xf32>
    %54 = tpu.matmul %2, %53, %cst_38 {dimension_numbers = #tpu.dot_dimension_numbers<[1], [0], [0], [1], [0, 0, 1, 1], [], []>} : vector<16x32xf32>, vector<32x8xf32>, vector<16x8xf32> -> vector<16x8xf32>
    %c5_39 = arith.constant 5 : index
    %c0_40 = arith.constant 0 : index
    %c0_41 = arith.constant 0 : index
    %55 = vector.load %arg3[%c5_39, %c0_40, %c0_41] : memref<24x1x8xf32, #tpu.memory_space<vmem>>, vector<1x1x8xf32>
    %56 = vector.shape_cast %55 : vector<1x1x8xf32> to vector<1x8xf32>
    %57 = vector.broadcast %56 : vector<1x8xf32> to vector<16x8xf32>
    %58 = arith.addf %54, %57 : vector<16x8xf32>
    %c9 = arith.constant 9 : index
    %c0_42 = arith.constant 0 : index
    %c0_43 = arith.constant 0 : index
    %59 = vector.load %arg2[%c9, %c0_42, %c0_43] : memref<24x32x8xf32, #tpu.memory_space<vmem>>, vector<1x32x8xf32>
    %60 = vector.shape_cast %59 : vector<1x32x8xf32> to vector<32x8xf32>
    %cst_44 = arith.constant dense<0.000000e+00> : vector<16x8xf32>
    %61 = tpu.matmul %0, %60, %cst_44 {dimension_numbers = #tpu.dot_dimension_numbers<[1], [0], [0], [1], [0, 0, 1, 1], [], []>} : vector<16x32xf32>, vector<32x8xf32>, vector<16x8xf32> -> vector<16x8xf32>
    %c9_45 = arith.constant 9 : index
    %c0_46 = arith.constant 0 : index
    %c0_47 = arith.constant 0 : index
    %62 = vector.load %arg3[%c9_45, %c0_46, %c0_47] : memref<24x1x8xf32, #tpu.memory_space<vmem>>, vector<1x1x8xf32>
    %63 = vector.shape_cast %62 : vector<1x1x8xf32> to vector<1x8xf32>
    %64 = vector.broadcast %63 : vector<1x8xf32> to vector<16x8xf32>
    %65 = arith.addf %61, %64 : vector<16x8xf32>
    %66 = vector.shape_cast %51 : vector<16x8xf32> to vector<2x8x8xf32>
    %67 = vector.shape_cast %58 : vector<16x8xf32> to vector<2x8x8xf32>
    %68 = vector.shape_cast %65 : vector<16x8xf32> to vector<2x8x8xf32>
    "tpu.trace_start"() <{level = 10 : i32, message = "bqd,bkd->bqk"}> : () -> ()
    %cst_48 = arith.constant dense<0.000000e+00> : vector<2x8x8xf32>
    %69 = tpu.matmul %66, %67, %cst_48 {dimension_numbers = #tpu.dot_dimension_numbers<[2], [2], [1], [1], [0, 0, 0, 1, 1, 1], [0], [0]>} : vector<2x8x8xf32>, vector<2x8x8xf32>, vector<2x8x8xf32> -> vector<2x8x8xf32>
    "tpu.trace_stop"() : () -> ()
    %cst_49 = arith.constant dense<0xFF800000> : vector<2x8xf32>
    %70 = vector.multi_reduction <maximumf>, %69, %cst_49 [2] : vector<2x8x8xf32> to vector<2x8xf32>
    %71 = vector.shape_cast %70 : vector<2x8xf32> to vector<2x8x1xf32>
    %72 = vector.broadcast %71 : vector<2x8x1xf32> to vector<2x8x8xf32>
    %73 = arith.subf %69, %72 : vector<2x8x8xf32>
    %74 = math.exp %73 : vector<2x8x8xf32>
    %cst_50 = arith.constant dense<0.000000e+00> : vector<2x8xf32>
    %75 = vector.multi_reduction <add>, %74, %cst_50 [2] : vector<2x8x8xf32> to vector<2x8xf32>
    %76 = vector.shape_cast %75 : vector<2x8xf32> to vector<2x8x1xf32>
    %77 = tpu.reciprocal %76 {approx = true} : vector<2x8x1xf32> -> vector<2x8x1xf32>
    %78 = vector.broadcast %77 : vector<2x8x1xf32> to vector<2x8x8xf32>
    %79 = arith.mulf %74, %78 : vector<2x8x8xf32>
    "tpu.trace_start"() <{level = 10 : i32, message = "bqk,bkd->bqd"}> : () -> ()
    %cst_51 = arith.constant dense<0.000000e+00> : vector<2x8x8xf32>
    %80 = tpu.matmul %79, %68, %cst_51 {dimension_numbers = #tpu.dot_dimension_numbers<[2], [1], [1], [2], [0, 0, 0, 1, 1, 2], [0], [0]>} : vector<2x8x8xf32>, vector<2x8x8xf32>, vector<2x8x8xf32> -> vector<2x8x8xf32>
    "tpu.trace_stop"() : () -> ()
    %81 = vector.shape_cast %80 : vector<2x8x8xf32> to vector<16x8xf32>
    %c1_52 = arith.constant 1 : index
    %c0_53 = arith.constant 0 : index
    %c0_54 = arith.constant 0 : index
    %82 = vector.load %arg4[%c1_52, %c0_53, %c0_54] : memref<8x8x32xf32, #tpu.memory_space<vmem>>, vector<1x8x32xf32>
    %83 = vector.shape_cast %82 : vector<1x8x32xf32> to vector<8x32xf32>
    %cst_55 = arith.constant dense<0.000000e+00> : vector<16x32xf32>
    %84 = tpu.matmul %81, %83, %cst_55 {dimension_numbers = #tpu.dot_dimension_numbers<[1], [0], [0], [1], [0, 0, 1, 1], [], []>} : vector<16x8xf32>, vector<8x32xf32>, vector<16x32xf32> -> vector<16x32xf32>
    %85 = arith.addf %44, %84 : vector<16x32xf32>
    %c2 = arith.constant 2 : index
    %c0_56 = arith.constant 0 : index
    %c0_57 = arith.constant 0 : index
    %86 = vector.load %arg2[%c2, %c0_56, %c0_57] : memref<24x32x8xf32, #tpu.memory_space<vmem>>, vector<1x32x8xf32>
    %87 = vector.shape_cast %86 : vector<1x32x8xf32> to vector<32x8xf32>
    %cst_58 = arith.constant dense<0.000000e+00> : vector<16x8xf32>
    %88 = tpu.matmul %2, %87, %cst_58 {dimension_numbers = #tpu.dot_dimension_numbers<[1], [0], [0], [1], [0, 0, 1, 1], [], []>} : vector<16x32xf32>, vector<32x8xf32>, vector<16x8xf32> -> vector<16x8xf32>
    %c2_59 = arith.constant 2 : index
    %c0_60 = arith.constant 0 : index
    %c0_61 = arith.constant 0 : index
    %89 = vector.load %arg3[%c2_59, %c0_60, %c0_61] : memref<24x1x8xf32, #tpu.memory_space<vmem>>, vector<1x1x8xf32>
    %90 = vector.shape_cast %89 : vector<1x1x8xf32> to vector<1x8xf32>
    %91 = vector.broadcast %90 : vector<1x8xf32> to vector<16x8xf32>
    %92 = arith.addf %88, %91 : vector<16x8xf32>
    %c6 = arith.constant 6 : index
    %c0_62 = arith.constant 0 : index
    %c0_63 = arith.constant 0 : index
    %93 = vector.load %arg2[%c6, %c0_62, %c0_63] : memref<24x32x8xf32, #tpu.memory_space<vmem>>, vector<1x32x8xf32>
    %94 = vector.shape_cast %93 : vector<1x32x8xf32> to vector<32x8xf32>
    %cst_64 = arith.constant dense<0.000000e+00> : vector<16x8xf32>
    %95 = tpu.matmul %2, %94, %cst_64 {dimension_numbers = #tpu.dot_dimension_numbers<[1], [0], [0], [1], [0, 0, 1, 1], [], []>} : vector<16x32xf32>, vector<32x8xf32>, vector<16x8xf32> -> vector<16x8xf32>
    %c6_65 = arith.constant 6 : index
    %c0_66 = arith.constant 0 : index
    %c0_67 = arith.constant 0 : index
    %96 = vector.load %arg3[%c6_65, %c0_66, %c0_67] : memref<24x1x8xf32, #tpu.memory_space<vmem>>, vector<1x1x8xf32>
    %97 = vector.shape_cast %96 : vector<1x1x8xf32> to vector<1x8xf32>
    %98 = vector.broadcast %97 : vector<1x8xf32> to vector<16x8xf32>
    %99 = arith.addf %95, %98 : vector<16x8xf32>
    %c10 = arith.constant 10 : index
    %c0_68 = arith.constant 0 : index
    %c0_69 = arith.constant 0 : index
    %100 = vector.load %arg2[%c10, %c0_68, %c0_69] : memref<24x32x8xf32, #tpu.memory_space<vmem>>, vector<1x32x8xf32>
    %101 = vector.shape_cast %100 : vector<1x32x8xf32> to vector<32x8xf32>
    %cst_70 = arith.constant dense<0.000000e+00> : vector<16x8xf32>
    %102 = tpu.matmul %0, %101, %cst_70 {dimension_numbers = #tpu.dot_dimension_numbers<[1], [0], [0], [1], [0, 0, 1, 1], [], []>} : vector<16x32xf32>, vector<32x8xf32>, vector<16x8xf32> -> vector<16x8xf32>
    %c10_71 = arith.constant 10 : index
    %c0_72 = arith.constant 0 : index
    %c0_73 = arith.constant 0 : index
    %103 = vector.load %arg3[%c10_71, %c0_72, %c0_73] : memref<24x1x8xf32, #tpu.memory_space<vmem>>, vector<1x1x8xf32>
    %104 = vector.shape_cast %103 : vector<1x1x8xf32> to vector<1x8xf32>
    %105 = vector.broadcast %104 : vector<1x8xf32> to vector<16x8xf32>
    %106 = arith.addf %102, %105 : vector<16x8xf32>
    %107 = vector.shape_cast %92 : vector<16x8xf32> to vector<2x8x8xf32>
    %108 = vector.shape_cast %99 : vector<16x8xf32> to vector<2x8x8xf32>
    %109 = vector.shape_cast %106 : vector<16x8xf32> to vector<2x8x8xf32>
    "tpu.trace_start"() <{level = 10 : i32, message = "bqd,bkd->bqk"}> : () -> ()
    %cst_74 = arith.constant dense<0.000000e+00> : vector<2x8x8xf32>
    %110 = tpu.matmul %107, %108, %cst_74 {dimension_numbers = #tpu.dot_dimension_numbers<[2], [2], [1], [1], [0, 0, 0, 1, 1, 1], [0], [0]>} : vector<2x8x8xf32>, vector<2x8x8xf32>, vector<2x8x8xf32> -> vector<2x8x8xf32>
    "tpu.trace_stop"() : () -> ()
    %cst_75 = arith.constant dense<0xFF800000> : vector<2x8xf32>
    %111 = vector.multi_reduction <maximumf>, %110, %cst_75 [2] : vector<2x8x8xf32> to vector<2x8xf32>
    %112 = vector.shape_cast %111 : vector<2x8xf32> to vector<2x8x1xf32>
    %113 = vector.broadcast %112 : vector<2x8x1xf32> to vector<2x8x8xf32>
    %114 = arith.subf %110, %113 : vector<2x8x8xf32>
    %115 = math.exp %114 : vector<2x8x8xf32>
    %cst_76 = arith.constant dense<0.000000e+00> : vector<2x8xf32>
    %116 = vector.multi_reduction <add>, %115, %cst_76 [2] : vector<2x8x8xf32> to vector<2x8xf32>
    %117 = vector.shape_cast %116 : vector<2x8xf32> to vector<2x8x1xf32>
    %118 = tpu.reciprocal %117 {approx = true} : vector<2x8x1xf32> -> vector<2x8x1xf32>
    %119 = vector.broadcast %118 : vector<2x8x1xf32> to vector<2x8x8xf32>
    %120 = arith.mulf %115, %119 : vector<2x8x8xf32>
    "tpu.trace_start"() <{level = 10 : i32, message = "bqk,bkd->bqd"}> : () -> ()
    %cst_77 = arith.constant dense<0.000000e+00> : vector<2x8x8xf32>
    %121 = tpu.matmul %120, %109, %cst_77 {dimension_numbers = #tpu.dot_dimension_numbers<[2], [1], [1], [2], [0, 0, 0, 1, 1, 2], [0], [0]>} : vector<2x8x8xf32>, vector<2x8x8xf32>, vector<2x8x8xf32> -> vector<2x8x8xf32>
    "tpu.trace_stop"() : () -> ()
    %122 = vector.shape_cast %121 : vector<2x8x8xf32> to vector<16x8xf32>
    %c2_78 = arith.constant 2 : index
    %c0_79 = arith.constant 0 : index
    %c0_80 = arith.constant 0 : index
    %123 = vector.load %arg4[%c2_78, %c0_79, %c0_80] : memref<8x8x32xf32, #tpu.memory_space<vmem>>, vector<1x8x32xf32>
    %124 = vector.shape_cast %123 : vector<1x8x32xf32> to vector<8x32xf32>
    %cst_81 = arith.constant dense<0.000000e+00> : vector<16x32xf32>
    %125 = tpu.matmul %122, %124, %cst_81 {dimension_numbers = #tpu.dot_dimension_numbers<[1], [0], [0], [1], [0, 0, 1, 1], [], []>} : vector<16x8xf32>, vector<8x32xf32>, vector<16x32xf32> -> vector<16x32xf32>
    %126 = arith.addf %85, %125 : vector<16x32xf32>
    %c3 = arith.constant 3 : index
    %c0_82 = arith.constant 0 : index
    %c0_83 = arith.constant 0 : index
    %127 = vector.load %arg2[%c3, %c0_82, %c0_83] : memref<24x32x8xf32, #tpu.memory_space<vmem>>, vector<1x32x8xf32>
    %128 = vector.shape_cast %127 : vector<1x32x8xf32> to vector<32x8xf32>
    %cst_84 = arith.constant dense<0.000000e+00> : vector<16x8xf32>
    %129 = tpu.matmul %2, %128, %cst_84 {dimension_numbers = #tpu.dot_dimension_numbers<[1], [0], [0], [1], [0, 0, 1, 1], [], []>} : vector<16x32xf32>, vector<32x8xf32>, vector<16x8xf32> -> vector<16x8xf32>
    %c3_85 = arith.constant 3 : index
    %c0_86 = arith.constant 0 : index
    %c0_87 = arith.constant 0 : index
    %130 = vector.load %arg3[%c3_85, %c0_86, %c0_87] : memref<24x1x8xf32, #tpu.memory_space<vmem>>, vector<1x1x8xf32>
    %131 = vector.shape_cast %130 : vector<1x1x8xf32> to vector<1x8xf32>
    %132 = vector.broadcast %131 : vector<1x8xf32> to vector<16x8xf32>
    %133 = arith.addf %129, %132 : vector<16x8xf32>
    %c7 = arith.constant 7 : index
    %c0_88 = arith.constant 0 : index
    %c0_89 = arith.constant 0 : index
    %134 = vector.load %arg2[%c7, %c0_88, %c0_89] : memref<24x32x8xf32, #tpu.memory_space<vmem>>, vector<1x32x8xf32>
    %135 = vector.shape_cast %134 : vector<1x32x8xf32> to vector<32x8xf32>
    %cst_90 = arith.constant dense<0.000000e+00> : vector<16x8xf32>
    %136 = tpu.matmul %2, %135, %cst_90 {dimension_numbers = #tpu.dot_dimension_numbers<[1], [0], [0], [1], [0, 0, 1, 1], [], []>} : vector<16x32xf32>, vector<32x8xf32>, vector<16x8xf32> -> vector<16x8xf32>
    %c7_91 = arith.constant 7 : index
    %c0_92 = arith.constant 0 : index
    %c0_93 = arith.constant 0 : index
    %137 = vector.load %arg3[%c7_91, %c0_92, %c0_93] : memref<24x1x8xf32, #tpu.memory_space<vmem>>, vector<1x1x8xf32>
    %138 = vector.shape_cast %137 : vector<1x1x8xf32> to vector<1x8xf32>
    %139 = vector.broadcast %138 : vector<1x8xf32> to vector<16x8xf32>
    %140 = arith.addf %136, %139 : vector<16x8xf32>
    %c11 = arith.constant 11 : index
    %c0_94 = arith.constant 0 : index
    %c0_95 = arith.constant 0 : index
    %141 = vector.load %arg2[%c11, %c0_94, %c0_95] : memref<24x32x8xf32, #tpu.memory_space<vmem>>, vector<1x32x8xf32>
    %142 = vector.shape_cast %141 : vector<1x32x8xf32> to vector<32x8xf32>
    %cst_96 = arith.constant dense<0.000000e+00> : vector<16x8xf32>
    %143 = tpu.matmul %0, %142, %cst_96 {dimension_numbers = #tpu.dot_dimension_numbers<[1], [0], [0], [1], [0, 0, 1, 1], [], []>} : vector<16x32xf32>, vector<32x8xf32>, vector<16x8xf32> -> vector<16x8xf32>
    %c11_97 = arith.constant 11 : index
    %c0_98 = arith.constant 0 : index
    %c0_99 = arith.constant 0 : index
    %144 = vector.load %arg3[%c11_97, %c0_98, %c0_99] : memref<24x1x8xf32, #tpu.memory_space<vmem>>, vector<1x1x8xf32>
    %145 = vector.shape_cast %144 : vector<1x1x8xf32> to vector<1x8xf32>
    %146 = vector.broadcast %145 : vector<1x8xf32> to vector<16x8xf32>
    %147 = arith.addf %143, %146 : vector<16x8xf32>
    %148 = vector.shape_cast %133 : vector<16x8xf32> to vector<2x8x8xf32>
    %149 = vector.shape_cast %140 : vector<16x8xf32> to vector<2x8x8xf32>
    %150 = vector.shape_cast %147 : vector<16x8xf32> to vector<2x8x8xf32>
    "tpu.trace_start"() <{level = 10 : i32, message = "bqd,bkd->bqk"}> : () -> ()
    %cst_100 = arith.constant dense<0.000000e+00> : vector<2x8x8xf32>
    %151 = tpu.matmul %148, %149, %cst_100 {dimension_numbers = #tpu.dot_dimension_numbers<[2], [2], [1], [1], [0, 0, 0, 1, 1, 1], [0], [0]>} : vector<2x8x8xf32>, vector<2x8x8xf32>, vector<2x8x8xf32> -> vector<2x8x8xf32>
    "tpu.trace_stop"() : () -> ()
    %cst_101 = arith.constant dense<0xFF800000> : vector<2x8xf32>
    %152 = vector.multi_reduction <maximumf>, %151, %cst_101 [2] : vector<2x8x8xf32> to vector<2x8xf32>
    %153 = vector.shape_cast %152 : vector<2x8xf32> to vector<2x8x1xf32>
    %154 = vector.broadcast %153 : vector<2x8x1xf32> to vector<2x8x8xf32>
    %155 = arith.subf %151, %154 : vector<2x8x8xf32>
    %156 = math.exp %155 : vector<2x8x8xf32>
    %cst_102 = arith.constant dense<0.000000e+00> : vector<2x8xf32>
    %157 = vector.multi_reduction <add>, %156, %cst_102 [2] : vector<2x8x8xf32> to vector<2x8xf32>
    %158 = vector.shape_cast %157 : vector<2x8xf32> to vector<2x8x1xf32>
    %159 = tpu.reciprocal %158 {approx = true} : vector<2x8x1xf32> -> vector<2x8x1xf32>
    %160 = vector.broadcast %159 : vector<2x8x1xf32> to vector<2x8x8xf32>
    %161 = arith.mulf %156, %160 : vector<2x8x8xf32>
    "tpu.trace_start"() <{level = 10 : i32, message = "bqk,bkd->bqd"}> : () -> ()
    %cst_103 = arith.constant dense<0.000000e+00> : vector<2x8x8xf32>
    %162 = tpu.matmul %161, %150, %cst_103 {dimension_numbers = #tpu.dot_dimension_numbers<[2], [1], [1], [2], [0, 0, 0, 1, 1, 2], [0], [0]>} : vector<2x8x8xf32>, vector<2x8x8xf32>, vector<2x8x8xf32> -> vector<2x8x8xf32>
    "tpu.trace_stop"() : () -> ()
    %163 = vector.shape_cast %162 : vector<2x8x8xf32> to vector<16x8xf32>
    %c3_104 = arith.constant 3 : index
    %c0_105 = arith.constant 0 : index
    %c0_106 = arith.constant 0 : index
    %164 = vector.load %arg4[%c3_104, %c0_105, %c0_106] : memref<8x8x32xf32, #tpu.memory_space<vmem>>, vector<1x8x32xf32>
    %165 = vector.shape_cast %164 : vector<1x8x32xf32> to vector<8x32xf32>
    %cst_107 = arith.constant dense<0.000000e+00> : vector<16x32xf32>
    %166 = tpu.matmul %163, %165, %cst_107 {dimension_numbers = #tpu.dot_dimension_numbers<[1], [0], [0], [1], [0, 0, 1, 1], [], []>} : vector<16x8xf32>, vector<8x32xf32>, vector<16x32xf32> -> vector<16x32xf32>
    %167 = arith.addf %126, %166 : vector<16x32xf32>
    %c0_108 = arith.constant 0 : index
    %c0_109 = arith.constant 0 : index
    %c0_110 = arith.constant 0 : index
    %168 = vector.load %arg5[%c0_108, %c0_109, %c0_110] : memref<2x1x32xf32, #tpu.memory_space<vmem>>, vector<1x1x32xf32>
    %169 = vector.shape_cast %168 : vector<1x1x32xf32> to vector<1x32xf32>
    %170 = vector.broadcast %169 : vector<1x32xf32> to vector<16x32xf32>
    %171 = arith.addf %167, %170 : vector<16x32xf32>
    %172 = arith.addf %0, %171 : vector<16x32xf32>
    %c0_111 = arith.constant 0 : index
    %c0_112 = arith.constant 0 : index
    %c0_113 = arith.constant 0 : index
    %173 = vector.load %arg10[%c0_111, %c0_112, %c0_113] : memref<4x1x32xf32, #tpu.memory_space<vmem>>, vector<1x1x32xf32>
    %174 = vector.shape_cast %173 : vector<1x1x32xf32> to vector<1x32xf32>
    %c0_114 = arith.constant 0 : index
    %c0_115 = arith.constant 0 : index
    %c0_116 = arith.constant 0 : index
    %175 = vector.load %arg11[%c0_114, %c0_115, %c0_116] : memref<4x1x32xf32, #tpu.memory_space<vmem>>, vector<1x1x32xf32>
    %176 = vector.shape_cast %175 : vector<1x1x32xf32> to vector<1x32xf32>
    %cst_117 = arith.constant dense<0.000000e+00> : vector<16xf32>
    %177 = vector.multi_reduction <add>, %172, %cst_117 [1] : vector<16x32xf32> to vector<16xf32>
    %178 = vector.shape_cast %177 : vector<16xf32> to vector<16x1xf32>
    %cst_118 = arith.constant 3.200000e+01 : f32
    %179 = vector.broadcast %cst_118 : f32 to vector<16x1xf32>
    %180 = arith.divf %178, %179 : vector<16x1xf32>
    %181 = vector.broadcast %180 : vector<16x1xf32> to vector<16x32xf32>
    %182 = arith.subf %172, %181 : vector<16x32xf32>
    %183 = arith.mulf %182, %182 : vector<16x32xf32>
    %cst_119 = arith.constant dense<0.000000e+00> : vector<16xf32>
    %184 = vector.multi_reduction <add>, %183, %cst_119 [1] : vector<16x32xf32> to vector<16xf32>
    %185 = vector.shape_cast %184 : vector<16xf32> to vector<16x1xf32>
    %cst_120 = arith.constant 3.200000e+01 : f32
    %186 = vector.broadcast %cst_120 : f32 to vector<16x1xf32>
    %187 = arith.divf %185, %186 : vector<16x1xf32>
    %cst_121 = arith.constant 9.99999974E-6 : f32
    %188 = vector.broadcast %cst_121 : f32 to vector<16x1xf32>
    %189 = arith.addf %187, %188 : vector<16x1xf32>
    %190 = math.rsqrt %189 : vector<16x1xf32>
    %191 = vector.broadcast %190 : vector<16x1xf32> to vector<16x32xf32>
    %192 = arith.mulf %182, %191 : vector<16x32xf32>
    %193 = vector.broadcast %174 : vector<1x32xf32> to vector<16x32xf32>
    %194 = arith.mulf %192, %193 : vector<16x32xf32>
    %195 = vector.broadcast %176 : vector<1x32xf32> to vector<16x32xf32>
    %196 = arith.addf %194, %195 : vector<16x32xf32>
    %c0_122 = arith.constant 0 : index
    %c0_123 = arith.constant 0 : index
    %c0_124 = arith.constant 0 : index
    %197 = vector.load %arg6[%c0_122, %c0_123, %c0_124] : memref<2x32x64xf32, #tpu.memory_space<vmem>>, vector<1x32x64xf32>
    %198 = vector.shape_cast %197 : vector<1x32x64xf32> to vector<32x64xf32>
    %cst_125 = arith.constant dense<0.000000e+00> : vector<16x64xf32>
    %199 = tpu.matmul %196, %198, %cst_125 {dimension_numbers = #tpu.dot_dimension_numbers<[1], [0], [0], [1], [0, 0, 1, 1], [], []>} : vector<16x32xf32>, vector<32x64xf32>, vector<16x64xf32> -> vector<16x64xf32>
    %c0_126 = arith.constant 0 : index
    %c0_127 = arith.constant 0 : index
    %c0_128 = arith.constant 0 : index
    %200 = vector.load %arg7[%c0_126, %c0_127, %c0_128] : memref<2x1x64xf32, #tpu.memory_space<vmem>>, vector<1x1x64xf32>
    %201 = vector.shape_cast %200 : vector<1x1x64xf32> to vector<1x64xf32>
    %202 = vector.broadcast %201 : vector<1x64xf32> to vector<16x64xf32>
    %203 = arith.addf %199, %202 : vector<16x64xf32>
    %cst_129 = arith.constant 0.000000e+00 : f32
    %204 = vector.broadcast %cst_129 : f32 to vector<16x64xf32>
    %205 = arith.maximumf %203, %204 : vector<16x64xf32>
    %c0_130 = arith.constant 0 : index
    %c0_131 = arith.constant 0 : index
    %c0_132 = arith.constant 0 : index
    %206 = vector.load %arg8[%c0_130, %c0_131, %c0_132] : memref<2x64x32xf32, #tpu.memory_space<vmem>>, vector<1x64x32xf32>
    %207 = vector.shape_cast %206 : vector<1x64x32xf32> to vector<64x32xf32>
    %cst_133 = arith.constant dense<0.000000e+00> : vector<16x32xf32>
    %208 = tpu.matmul %205, %207, %cst_133 {dimension_numbers = #tpu.dot_dimension_numbers<[1], [0], [0], [1], [0, 0, 1, 1], [], []>} : vector<16x64xf32>, vector<64x32xf32>, vector<16x32xf32> -> vector<16x32xf32>
    %c0_134 = arith.constant 0 : index
    %c0_135 = arith.constant 0 : index
    %c0_136 = arith.constant 0 : index
    %209 = vector.load %arg9[%c0_134, %c0_135, %c0_136] : memref<2x1x32xf32, #tpu.memory_space<vmem>>, vector<1x1x32xf32>
    %210 = vector.shape_cast %209 : vector<1x1x32xf32> to vector<1x32xf32>
    %211 = vector.broadcast %210 : vector<1x32xf32> to vector<16x32xf32>
    %212 = arith.addf %208, %211 : vector<16x32xf32>
    %213 = arith.addf %196, %212 : vector<16x32xf32>
    %c1_137 = arith.constant 1 : index
    %c0_138 = arith.constant 0 : index
    %c0_139 = arith.constant 0 : index
    %214 = vector.load %arg10[%c1_137, %c0_138, %c0_139] : memref<4x1x32xf32, #tpu.memory_space<vmem>>, vector<1x1x32xf32>
    %215 = vector.shape_cast %214 : vector<1x1x32xf32> to vector<1x32xf32>
    %c1_140 = arith.constant 1 : index
    %c0_141 = arith.constant 0 : index
    %c0_142 = arith.constant 0 : index
    %216 = vector.load %arg11[%c1_140, %c0_141, %c0_142] : memref<4x1x32xf32, #tpu.memory_space<vmem>>, vector<1x1x32xf32>
    %217 = vector.shape_cast %216 : vector<1x1x32xf32> to vector<1x32xf32>
    %cst_143 = arith.constant dense<0.000000e+00> : vector<16xf32>
    %218 = vector.multi_reduction <add>, %213, %cst_143 [1] : vector<16x32xf32> to vector<16xf32>
    %219 = vector.shape_cast %218 : vector<16xf32> to vector<16x1xf32>
    %cst_144 = arith.constant 3.200000e+01 : f32
    %220 = vector.broadcast %cst_144 : f32 to vector<16x1xf32>
    %221 = arith.divf %219, %220 : vector<16x1xf32>
    %222 = vector.broadcast %221 : vector<16x1xf32> to vector<16x32xf32>
    %223 = arith.subf %213, %222 : vector<16x32xf32>
    %224 = arith.mulf %223, %223 : vector<16x32xf32>
    %cst_145 = arith.constant dense<0.000000e+00> : vector<16xf32>
    %225 = vector.multi_reduction <add>, %224, %cst_145 [1] : vector<16x32xf32> to vector<16xf32>
    %226 = vector.shape_cast %225 : vector<16xf32> to vector<16x1xf32>
    %cst_146 = arith.constant 3.200000e+01 : f32
    %227 = vector.broadcast %cst_146 : f32 to vector<16x1xf32>
    %228 = arith.divf %226, %227 : vector<16x1xf32>
    %cst_147 = arith.constant 9.99999974E-6 : f32
    %229 = vector.broadcast %cst_147 : f32 to vector<16x1xf32>
    %230 = arith.addf %228, %229 : vector<16x1xf32>
    %231 = math.rsqrt %230 : vector<16x1xf32>
    %232 = vector.broadcast %231 : vector<16x1xf32> to vector<16x32xf32>
    %233 = arith.mulf %223, %232 : vector<16x32xf32>
    %234 = vector.broadcast %215 : vector<1x32xf32> to vector<16x32xf32>
    %235 = arith.mulf %233, %234 : vector<16x32xf32>
    %236 = vector.broadcast %217 : vector<1x32xf32> to vector<16x32xf32>
    %237 = arith.addf %235, %236 : vector<16x32xf32>
    %238 = arith.addf %237, %1 : vector<16x32xf32>
    %cst_148 = arith.constant 0.000000e+00 : f32
    %239 = vector.broadcast %cst_148 : f32 to vector<16x32xf32>
    %c12 = arith.constant 12 : index
    %c0_149 = arith.constant 0 : index
    %c0_150 = arith.constant 0 : index
    %240 = vector.load %arg2[%c12, %c0_149, %c0_150] : memref<24x32x8xf32, #tpu.memory_space<vmem>>, vector<1x32x8xf32>
    %241 = vector.shape_cast %240 : vector<1x32x8xf32> to vector<32x8xf32>
    %cst_151 = arith.constant dense<0.000000e+00> : vector<16x8xf32>
    %242 = tpu.matmul %238, %241, %cst_151 {dimension_numbers = #tpu.dot_dimension_numbers<[1], [0], [0], [1], [0, 0, 1, 1], [], []>} : vector<16x32xf32>, vector<32x8xf32>, vector<16x8xf32> -> vector<16x8xf32>
    %c12_152 = arith.constant 12 : index
    %c0_153 = arith.constant 0 : index
    %c0_154 = arith.constant 0 : index
    %243 = vector.load %arg3[%c12_152, %c0_153, %c0_154] : memref<24x1x8xf32, #tpu.memory_space<vmem>>, vector<1x1x8xf32>
    %244 = vector.shape_cast %243 : vector<1x1x8xf32> to vector<1x8xf32>
    %245 = vector.broadcast %244 : vector<1x8xf32> to vector<16x8xf32>
    %246 = arith.addf %242, %245 : vector<16x8xf32>
    %c16 = arith.constant 16 : index
    %c0_155 = arith.constant 0 : index
    %c0_156 = arith.constant 0 : index
    %247 = vector.load %arg2[%c16, %c0_155, %c0_156] : memref<24x32x8xf32, #tpu.memory_space<vmem>>, vector<1x32x8xf32>
    %248 = vector.shape_cast %247 : vector<1x32x8xf32> to vector<32x8xf32>
    %cst_157 = arith.constant dense<0.000000e+00> : vector<16x8xf32>
    %249 = tpu.matmul %238, %248, %cst_157 {dimension_numbers = #tpu.dot_dimension_numbers<[1], [0], [0], [1], [0, 0, 1, 1], [], []>} : vector<16x32xf32>, vector<32x8xf32>, vector<16x8xf32> -> vector<16x8xf32>
    %c16_158 = arith.constant 16 : index
    %c0_159 = arith.constant 0 : index
    %c0_160 = arith.constant 0 : index
    %250 = vector.load %arg3[%c16_158, %c0_159, %c0_160] : memref<24x1x8xf32, #tpu.memory_space<vmem>>, vector<1x1x8xf32>
    %251 = vector.shape_cast %250 : vector<1x1x8xf32> to vector<1x8xf32>
    %252 = vector.broadcast %251 : vector<1x8xf32> to vector<16x8xf32>
    %253 = arith.addf %249, %252 : vector<16x8xf32>
    %c20 = arith.constant 20 : index
    %c0_161 = arith.constant 0 : index
    %c0_162 = arith.constant 0 : index
    %254 = vector.load %arg2[%c20, %c0_161, %c0_162] : memref<24x32x8xf32, #tpu.memory_space<vmem>>, vector<1x32x8xf32>
    %255 = vector.shape_cast %254 : vector<1x32x8xf32> to vector<32x8xf32>
    %cst_163 = arith.constant dense<0.000000e+00> : vector<16x8xf32>
    %256 = tpu.matmul %237, %255, %cst_163 {dimension_numbers = #tpu.dot_dimension_numbers<[1], [0], [0], [1], [0, 0, 1, 1], [], []>} : vector<16x32xf32>, vector<32x8xf32>, vector<16x8xf32> -> vector<16x8xf32>
    %c20_164 = arith.constant 20 : index
    %c0_165 = arith.constant 0 : index
    %c0_166 = arith.constant 0 : index
    %257 = vector.load %arg3[%c20_164, %c0_165, %c0_166] : memref<24x1x8xf32, #tpu.memory_space<vmem>>, vector<1x1x8xf32>
    %258 = vector.shape_cast %257 : vector<1x1x8xf32> to vector<1x8xf32>
    %259 = vector.broadcast %258 : vector<1x8xf32> to vector<16x8xf32>
    %260 = arith.addf %256, %259 : vector<16x8xf32>
    %261 = vector.shape_cast %246 : vector<16x8xf32> to vector<2x8x8xf32>
    %262 = vector.shape_cast %253 : vector<16x8xf32> to vector<2x8x8xf32>
    %263 = vector.shape_cast %260 : vector<16x8xf32> to vector<2x8x8xf32>
    "tpu.trace_start"() <{level = 10 : i32, message = "bqd,bkd->bqk"}> : () -> ()
    %cst_167 = arith.constant dense<0.000000e+00> : vector<2x8x8xf32>
    %264 = tpu.matmul %261, %262, %cst_167 {dimension_numbers = #tpu.dot_dimension_numbers<[2], [2], [1], [1], [0, 0, 0, 1, 1, 1], [0], [0]>} : vector<2x8x8xf32>, vector<2x8x8xf32>, vector<2x8x8xf32> -> vector<2x8x8xf32>
    "tpu.trace_stop"() : () -> ()
    %cst_168 = arith.constant dense<0xFF800000> : vector<2x8xf32>
    %265 = vector.multi_reduction <maximumf>, %264, %cst_168 [2] : vector<2x8x8xf32> to vector<2x8xf32>
    %266 = vector.shape_cast %265 : vector<2x8xf32> to vector<2x8x1xf32>
    %267 = vector.broadcast %266 : vector<2x8x1xf32> to vector<2x8x8xf32>
    %268 = arith.subf %264, %267 : vector<2x8x8xf32>
    %269 = math.exp %268 : vector<2x8x8xf32>
    %cst_169 = arith.constant dense<0.000000e+00> : vector<2x8xf32>
    %270 = vector.multi_reduction <add>, %269, %cst_169 [2] : vector<2x8x8xf32> to vector<2x8xf32>
    %271 = vector.shape_cast %270 : vector<2x8xf32> to vector<2x8x1xf32>
    %272 = tpu.reciprocal %271 {approx = true} : vector<2x8x1xf32> -> vector<2x8x1xf32>
    %273 = vector.broadcast %272 : vector<2x8x1xf32> to vector<2x8x8xf32>
    %274 = arith.mulf %269, %273 : vector<2x8x8xf32>
    "tpu.trace_start"() <{level = 10 : i32, message = "bqk,bkd->bqd"}> : () -> ()
    %cst_170 = arith.constant dense<0.000000e+00> : vector<2x8x8xf32>
    %275 = tpu.matmul %274, %263, %cst_170 {dimension_numbers = #tpu.dot_dimension_numbers<[2], [1], [1], [2], [0, 0, 0, 1, 1, 2], [0], [0]>} : vector<2x8x8xf32>, vector<2x8x8xf32>, vector<2x8x8xf32> -> vector<2x8x8xf32>
    "tpu.trace_stop"() : () -> ()
    %276 = vector.shape_cast %275 : vector<2x8x8xf32> to vector<16x8xf32>
    %c4_171 = arith.constant 4 : index
    %c0_172 = arith.constant 0 : index
    %c0_173 = arith.constant 0 : index
    %277 = vector.load %arg4[%c4_171, %c0_172, %c0_173] : memref<8x8x32xf32, #tpu.memory_space<vmem>>, vector<1x8x32xf32>
    %278 = vector.shape_cast %277 : vector<1x8x32xf32> to vector<8x32xf32>
    %cst_174 = arith.constant dense<0.000000e+00> : vector<16x32xf32>
    %279 = tpu.matmul %276, %278, %cst_174 {dimension_numbers = #tpu.dot_dimension_numbers<[1], [0], [0], [1], [0, 0, 1, 1], [], []>} : vector<16x8xf32>, vector<8x32xf32>, vector<16x32xf32> -> vector<16x32xf32>
    %280 = arith.addf %239, %279 : vector<16x32xf32>
    %c13 = arith.constant 13 : index
    %c0_175 = arith.constant 0 : index
    %c0_176 = arith.constant 0 : index
    %281 = vector.load %arg2[%c13, %c0_175, %c0_176] : memref<24x32x8xf32, #tpu.memory_space<vmem>>, vector<1x32x8xf32>
    %282 = vector.shape_cast %281 : vector<1x32x8xf32> to vector<32x8xf32>
    %cst_177 = arith.constant dense<0.000000e+00> : vector<16x8xf32>
    %283 = tpu.matmul %238, %282, %cst_177 {dimension_numbers = #tpu.dot_dimension_numbers<[1], [0], [0], [1], [0, 0, 1, 1], [], []>} : vector<16x32xf32>, vector<32x8xf32>, vector<16x8xf32> -> vector<16x8xf32>
    %c13_178 = arith.constant 13 : index
    %c0_179 = arith.constant 0 : index
    %c0_180 = arith.constant 0 : index
    %284 = vector.load %arg3[%c13_178, %c0_179, %c0_180] : memref<24x1x8xf32, #tpu.memory_space<vmem>>, vector<1x1x8xf32>
    %285 = vector.shape_cast %284 : vector<1x1x8xf32> to vector<1x8xf32>
    %286 = vector.broadcast %285 : vector<1x8xf32> to vector<16x8xf32>
    %287 = arith.addf %283, %286 : vector<16x8xf32>
    %c17 = arith.constant 17 : index
    %c0_181 = arith.constant 0 : index
    %c0_182 = arith.constant 0 : index
    %288 = vector.load %arg2[%c17, %c0_181, %c0_182] : memref<24x32x8xf32, #tpu.memory_space<vmem>>, vector<1x32x8xf32>
    %289 = vector.shape_cast %288 : vector<1x32x8xf32> to vector<32x8xf32>
    %cst_183 = arith.constant dense<0.000000e+00> : vector<16x8xf32>
    %290 = tpu.matmul %238, %289, %cst_183 {dimension_numbers = #tpu.dot_dimension_numbers<[1], [0], [0], [1], [0, 0, 1, 1], [], []>} : vector<16x32xf32>, vector<32x8xf32>, vector<16x8xf32> -> vector<16x8xf32>
    %c17_184 = arith.constant 17 : index
    %c0_185 = arith.constant 0 : index
    %c0_186 = arith.constant 0 : index
    %291 = vector.load %arg3[%c17_184, %c0_185, %c0_186] : memref<24x1x8xf32, #tpu.memory_space<vmem>>, vector<1x1x8xf32>
    %292 = vector.shape_cast %291 : vector<1x1x8xf32> to vector<1x8xf32>
    %293 = vector.broadcast %292 : vector<1x8xf32> to vector<16x8xf32>
    %294 = arith.addf %290, %293 : vector<16x8xf32>
    %c21 = arith.constant 21 : index
    %c0_187 = arith.constant 0 : index
    %c0_188 = arith.constant 0 : index
    %295 = vector.load %arg2[%c21, %c0_187, %c0_188] : memref<24x32x8xf32, #tpu.memory_space<vmem>>, vector<1x32x8xf32>
    %296 = vector.shape_cast %295 : vector<1x32x8xf32> to vector<32x8xf32>
    %cst_189 = arith.constant dense<0.000000e+00> : vector<16x8xf32>
    %297 = tpu.matmul %237, %296, %cst_189 {dimension_numbers = #tpu.dot_dimension_numbers<[1], [0], [0], [1], [0, 0, 1, 1], [], []>} : vector<16x32xf32>, vector<32x8xf32>, vector<16x8xf32> -> vector<16x8xf32>
    %c21_190 = arith.constant 21 : index
    %c0_191 = arith.constant 0 : index
    %c0_192 = arith.constant 0 : index
    %298 = vector.load %arg3[%c21_190, %c0_191, %c0_192] : memref<24x1x8xf32, #tpu.memory_space<vmem>>, vector<1x1x8xf32>
    %299 = vector.shape_cast %298 : vector<1x1x8xf32> to vector<1x8xf32>
    %300 = vector.broadcast %299 : vector<1x8xf32> to vector<16x8xf32>
    %301 = arith.addf %297, %300 : vector<16x8xf32>
    %302 = vector.shape_cast %287 : vector<16x8xf32> to vector<2x8x8xf32>
    %303 = vector.shape_cast %294 : vector<16x8xf32> to vector<2x8x8xf32>
    %304 = vector.shape_cast %301 : vector<16x8xf32> to vector<2x8x8xf32>
    "tpu.trace_start"() <{level = 10 : i32, message = "bqd,bkd->bqk"}> : () -> ()
    %cst_193 = arith.constant dense<0.000000e+00> : vector<2x8x8xf32>
    %305 = tpu.matmul %302, %303, %cst_193 {dimension_numbers = #tpu.dot_dimension_numbers<[2], [2], [1], [1], [0, 0, 0, 1, 1, 1], [0], [0]>} : vector<2x8x8xf32>, vector<2x8x8xf32>, vector<2x8x8xf32> -> vector<2x8x8xf32>
    "tpu.trace_stop"() : () -> ()
    %cst_194 = arith.constant dense<0xFF800000> : vector<2x8xf32>
    %306 = vector.multi_reduction <maximumf>, %305, %cst_194 [2] : vector<2x8x8xf32> to vector<2x8xf32>
    %307 = vector.shape_cast %306 : vector<2x8xf32> to vector<2x8x1xf32>
    %308 = vector.broadcast %307 : vector<2x8x1xf32> to vector<2x8x8xf32>
    %309 = arith.subf %305, %308 : vector<2x8x8xf32>
    %310 = math.exp %309 : vector<2x8x8xf32>
    %cst_195 = arith.constant dense<0.000000e+00> : vector<2x8xf32>
    %311 = vector.multi_reduction <add>, %310, %cst_195 [2] : vector<2x8x8xf32> to vector<2x8xf32>
    %312 = vector.shape_cast %311 : vector<2x8xf32> to vector<2x8x1xf32>
    %313 = tpu.reciprocal %312 {approx = true} : vector<2x8x1xf32> -> vector<2x8x1xf32>
    %314 = vector.broadcast %313 : vector<2x8x1xf32> to vector<2x8x8xf32>
    %315 = arith.mulf %310, %314 : vector<2x8x8xf32>
    "tpu.trace_start"() <{level = 10 : i32, message = "bqk,bkd->bqd"}> : () -> ()
    %cst_196 = arith.constant dense<0.000000e+00> : vector<2x8x8xf32>
    %316 = tpu.matmul %315, %304, %cst_196 {dimension_numbers = #tpu.dot_dimension_numbers<[2], [1], [1], [2], [0, 0, 0, 1, 1, 2], [0], [0]>} : vector<2x8x8xf32>, vector<2x8x8xf32>, vector<2x8x8xf32> -> vector<2x8x8xf32>
    "tpu.trace_stop"() : () -> ()
    %317 = vector.shape_cast %316 : vector<2x8x8xf32> to vector<16x8xf32>
    %c5_197 = arith.constant 5 : index
    %c0_198 = arith.constant 0 : index
    %c0_199 = arith.constant 0 : index
    %318 = vector.load %arg4[%c5_197, %c0_198, %c0_199] : memref<8x8x32xf32, #tpu.memory_space<vmem>>, vector<1x8x32xf32>
    %319 = vector.shape_cast %318 : vector<1x8x32xf32> to vector<8x32xf32>
    %cst_200 = arith.constant dense<0.000000e+00> : vector<16x32xf32>
    %320 = tpu.matmul %317, %319, %cst_200 {dimension_numbers = #tpu.dot_dimension_numbers<[1], [0], [0], [1], [0, 0, 1, 1], [], []>} : vector<16x8xf32>, vector<8x32xf32>, vector<16x32xf32> -> vector<16x32xf32>
    %321 = arith.addf %280, %320 : vector<16x32xf32>
    %c14 = arith.constant 14 : index
    %c0_201 = arith.constant 0 : index
    %c0_202 = arith.constant 0 : index
    %322 = vector.load %arg2[%c14, %c0_201, %c0_202] : memref<24x32x8xf32, #tpu.memory_space<vmem>>, vector<1x32x8xf32>
    %323 = vector.shape_cast %322 : vector<1x32x8xf32> to vector<32x8xf32>
    %cst_203 = arith.constant dense<0.000000e+00> : vector<16x8xf32>
    %324 = tpu.matmul %238, %323, %cst_203 {dimension_numbers = #tpu.dot_dimension_numbers<[1], [0], [0], [1], [0, 0, 1, 1], [], []>} : vector<16x32xf32>, vector<32x8xf32>, vector<16x8xf32> -> vector<16x8xf32>
    %c14_204 = arith.constant 14 : index
    %c0_205 = arith.constant 0 : index
    %c0_206 = arith.constant 0 : index
    %325 = vector.load %arg3[%c14_204, %c0_205, %c0_206] : memref<24x1x8xf32, #tpu.memory_space<vmem>>, vector<1x1x8xf32>
    %326 = vector.shape_cast %325 : vector<1x1x8xf32> to vector<1x8xf32>
    %327 = vector.broadcast %326 : vector<1x8xf32> to vector<16x8xf32>
    %328 = arith.addf %324, %327 : vector<16x8xf32>
    %c18 = arith.constant 18 : index
    %c0_207 = arith.constant 0 : index
    %c0_208 = arith.constant 0 : index
    %329 = vector.load %arg2[%c18, %c0_207, %c0_208] : memref<24x32x8xf32, #tpu.memory_space<vmem>>, vector<1x32x8xf32>
    %330 = vector.shape_cast %329 : vector<1x32x8xf32> to vector<32x8xf32>
    %cst_209 = arith.constant dense<0.000000e+00> : vector<16x8xf32>
    %331 = tpu.matmul %238, %330, %cst_209 {dimension_numbers = #tpu.dot_dimension_numbers<[1], [0], [0], [1], [0, 0, 1, 1], [], []>} : vector<16x32xf32>, vector<32x8xf32>, vector<16x8xf32> -> vector<16x8xf32>
    %c18_210 = arith.constant 18 : index
    %c0_211 = arith.constant 0 : index
    %c0_212 = arith.constant 0 : index
    %332 = vector.load %arg3[%c18_210, %c0_211, %c0_212] : memref<24x1x8xf32, #tpu.memory_space<vmem>>, vector<1x1x8xf32>
    %333 = vector.shape_cast %332 : vector<1x1x8xf32> to vector<1x8xf32>
    %334 = vector.broadcast %333 : vector<1x8xf32> to vector<16x8xf32>
    %335 = arith.addf %331, %334 : vector<16x8xf32>
    %c22 = arith.constant 22 : index
    %c0_213 = arith.constant 0 : index
    %c0_214 = arith.constant 0 : index
    %336 = vector.load %arg2[%c22, %c0_213, %c0_214] : memref<24x32x8xf32, #tpu.memory_space<vmem>>, vector<1x32x8xf32>
    %337 = vector.shape_cast %336 : vector<1x32x8xf32> to vector<32x8xf32>
    %cst_215 = arith.constant dense<0.000000e+00> : vector<16x8xf32>
    %338 = tpu.matmul %237, %337, %cst_215 {dimension_numbers = #tpu.dot_dimension_numbers<[1], [0], [0], [1], [0, 0, 1, 1], [], []>} : vector<16x32xf32>, vector<32x8xf32>, vector<16x8xf32> -> vector<16x8xf32>
    %c22_216 = arith.constant 22 : index
    %c0_217 = arith.constant 0 : index
    %c0_218 = arith.constant 0 : index
    %339 = vector.load %arg3[%c22_216, %c0_217, %c0_218] : memref<24x1x8xf32, #tpu.memory_space<vmem>>, vector<1x1x8xf32>
    %340 = vector.shape_cast %339 : vector<1x1x8xf32> to vector<1x8xf32>
    %341 = vector.broadcast %340 : vector<1x8xf32> to vector<16x8xf32>
    %342 = arith.addf %338, %341 : vector<16x8xf32>
    %343 = vector.shape_cast %328 : vector<16x8xf32> to vector<2x8x8xf32>
    %344 = vector.shape_cast %335 : vector<16x8xf32> to vector<2x8x8xf32>
    %345 = vector.shape_cast %342 : vector<16x8xf32> to vector<2x8x8xf32>
    "tpu.trace_start"() <{level = 10 : i32, message = "bqd,bkd->bqk"}> : () -> ()
    %cst_219 = arith.constant dense<0.000000e+00> : vector<2x8x8xf32>
    %346 = tpu.matmul %343, %344, %cst_219 {dimension_numbers = #tpu.dot_dimension_numbers<[2], [2], [1], [1], [0, 0, 0, 1, 1, 1], [0], [0]>} : vector<2x8x8xf32>, vector<2x8x8xf32>, vector<2x8x8xf32> -> vector<2x8x8xf32>
    "tpu.trace_stop"() : () -> ()
    %cst_220 = arith.constant dense<0xFF800000> : vector<2x8xf32>
    %347 = vector.multi_reduction <maximumf>, %346, %cst_220 [2] : vector<2x8x8xf32> to vector<2x8xf32>
    %348 = vector.shape_cast %347 : vector<2x8xf32> to vector<2x8x1xf32>
    %349 = vector.broadcast %348 : vector<2x8x1xf32> to vector<2x8x8xf32>
    %350 = arith.subf %346, %349 : vector<2x8x8xf32>
    %351 = math.exp %350 : vector<2x8x8xf32>
    %cst_221 = arith.constant dense<0.000000e+00> : vector<2x8xf32>
    %352 = vector.multi_reduction <add>, %351, %cst_221 [2] : vector<2x8x8xf32> to vector<2x8xf32>
    %353 = vector.shape_cast %352 : vector<2x8xf32> to vector<2x8x1xf32>
    %354 = tpu.reciprocal %353 {approx = true} : vector<2x8x1xf32> -> vector<2x8x1xf32>
    %355 = vector.broadcast %354 : vector<2x8x1xf32> to vector<2x8x8xf32>
    %356 = arith.mulf %351, %355 : vector<2x8x8xf32>
    "tpu.trace_start"() <{level = 10 : i32, message = "bqk,bkd->bqd"}> : () -> ()
    %cst_222 = arith.constant dense<0.000000e+00> : vector<2x8x8xf32>
    %357 = tpu.matmul %356, %345, %cst_222 {dimension_numbers = #tpu.dot_dimension_numbers<[2], [1], [1], [2], [0, 0, 0, 1, 1, 2], [0], [0]>} : vector<2x8x8xf32>, vector<2x8x8xf32>, vector<2x8x8xf32> -> vector<2x8x8xf32>
    "tpu.trace_stop"() : () -> ()
    %358 = vector.shape_cast %357 : vector<2x8x8xf32> to vector<16x8xf32>
    %c6_223 = arith.constant 6 : index
    %c0_224 = arith.constant 0 : index
    %c0_225 = arith.constant 0 : index
    %359 = vector.load %arg4[%c6_223, %c0_224, %c0_225] : memref<8x8x32xf32, #tpu.memory_space<vmem>>, vector<1x8x32xf32>
    %360 = vector.shape_cast %359 : vector<1x8x32xf32> to vector<8x32xf32>
    %cst_226 = arith.constant dense<0.000000e+00> : vector<16x32xf32>
    %361 = tpu.matmul %358, %360, %cst_226 {dimension_numbers = #tpu.dot_dimension_numbers<[1], [0], [0], [1], [0, 0, 1, 1], [], []>} : vector<16x8xf32>, vector<8x32xf32>, vector<16x32xf32> -> vector<16x32xf32>
    %362 = arith.addf %321, %361 : vector<16x32xf32>
    %c15 = arith.constant 15 : index
    %c0_227 = arith.constant 0 : index
    %c0_228 = arith.constant 0 : index
    %363 = vector.load %arg2[%c15, %c0_227, %c0_228] : memref<24x32x8xf32, #tpu.memory_space<vmem>>, vector<1x32x8xf32>
    %364 = vector.shape_cast %363 : vector<1x32x8xf32> to vector<32x8xf32>
    %cst_229 = arith.constant dense<0.000000e+00> : vector<16x8xf32>
    %365 = tpu.matmul %238, %364, %cst_229 {dimension_numbers = #tpu.dot_dimension_numbers<[1], [0], [0], [1], [0, 0, 1, 1], [], []>} : vector<16x32xf32>, vector<32x8xf32>, vector<16x8xf32> -> vector<16x8xf32>
    %c15_230 = arith.constant 15 : index
    %c0_231 = arith.constant 0 : index
    %c0_232 = arith.constant 0 : index
    %366 = vector.load %arg3[%c15_230, %c0_231, %c0_232] : memref<24x1x8xf32, #tpu.memory_space<vmem>>, vector<1x1x8xf32>
    %367 = vector.shape_cast %366 : vector<1x1x8xf32> to vector<1x8xf32>
    %368 = vector.broadcast %367 : vector<1x8xf32> to vector<16x8xf32>
    %369 = arith.addf %365, %368 : vector<16x8xf32>
    %c19 = arith.constant 19 : index
    %c0_233 = arith.constant 0 : index
    %c0_234 = arith.constant 0 : index
    %370 = vector.load %arg2[%c19, %c0_233, %c0_234] : memref<24x32x8xf32, #tpu.memory_space<vmem>>, vector<1x32x8xf32>
    %371 = vector.shape_cast %370 : vector<1x32x8xf32> to vector<32x8xf32>
    %cst_235 = arith.constant dense<0.000000e+00> : vector<16x8xf32>
    %372 = tpu.matmul %238, %371, %cst_235 {dimension_numbers = #tpu.dot_dimension_numbers<[1], [0], [0], [1], [0, 0, 1, 1], [], []>} : vector<16x32xf32>, vector<32x8xf32>, vector<16x8xf32> -> vector<16x8xf32>
    %c19_236 = arith.constant 19 : index
    %c0_237 = arith.constant 0 : index
    %c0_238 = arith.constant 0 : index
    %373 = vector.load %arg3[%c19_236, %c0_237, %c0_238] : memref<24x1x8xf32, #tpu.memory_space<vmem>>, vector<1x1x8xf32>
    %374 = vector.shape_cast %373 : vector<1x1x8xf32> to vector<1x8xf32>
    %375 = vector.broadcast %374 : vector<1x8xf32> to vector<16x8xf32>
    %376 = arith.addf %372, %375 : vector<16x8xf32>
    %c23 = arith.constant 23 : index
    %c0_239 = arith.constant 0 : index
    %c0_240 = arith.constant 0 : index
    %377 = vector.load %arg2[%c23, %c0_239, %c0_240] : memref<24x32x8xf32, #tpu.memory_space<vmem>>, vector<1x32x8xf32>
    %378 = vector.shape_cast %377 : vector<1x32x8xf32> to vector<32x8xf32>
    %cst_241 = arith.constant dense<0.000000e+00> : vector<16x8xf32>
    %379 = tpu.matmul %237, %378, %cst_241 {dimension_numbers = #tpu.dot_dimension_numbers<[1], [0], [0], [1], [0, 0, 1, 1], [], []>} : vector<16x32xf32>, vector<32x8xf32>, vector<16x8xf32> -> vector<16x8xf32>
    %c23_242 = arith.constant 23 : index
    %c0_243 = arith.constant 0 : index
    %c0_244 = arith.constant 0 : index
    %380 = vector.load %arg3[%c23_242, %c0_243, %c0_244] : memref<24x1x8xf32, #tpu.memory_space<vmem>>, vector<1x1x8xf32>
    %381 = vector.shape_cast %380 : vector<1x1x8xf32> to vector<1x8xf32>
    %382 = vector.broadcast %381 : vector<1x8xf32> to vector<16x8xf32>
    %383 = arith.addf %379, %382 : vector<16x8xf32>
    %384 = vector.shape_cast %369 : vector<16x8xf32> to vector<2x8x8xf32>
    %385 = vector.shape_cast %376 : vector<16x8xf32> to vector<2x8x8xf32>
    %386 = vector.shape_cast %383 : vector<16x8xf32> to vector<2x8x8xf32>
    "tpu.trace_start"() <{level = 10 : i32, message = "bqd,bkd->bqk"}> : () -> ()
    %cst_245 = arith.constant dense<0.000000e+00> : vector<2x8x8xf32>
    %387 = tpu.matmul %384, %385, %cst_245 {dimension_numbers = #tpu.dot_dimension_numbers<[2], [2], [1], [1], [0, 0, 0, 1, 1, 1], [0], [0]>} : vector<2x8x8xf32>, vector<2x8x8xf32>, vector<2x8x8xf32> -> vector<2x8x8xf32>
    "tpu.trace_stop"() : () -> ()
    %cst_246 = arith.constant dense<0xFF800000> : vector<2x8xf32>
    %388 = vector.multi_reduction <maximumf>, %387, %cst_246 [2] : vector<2x8x8xf32> to vector<2x8xf32>
    %389 = vector.shape_cast %388 : vector<2x8xf32> to vector<2x8x1xf32>
    %390 = vector.broadcast %389 : vector<2x8x1xf32> to vector<2x8x8xf32>
    %391 = arith.subf %387, %390 : vector<2x8x8xf32>
    %392 = math.exp %391 : vector<2x8x8xf32>
    %cst_247 = arith.constant dense<0.000000e+00> : vector<2x8xf32>
    %393 = vector.multi_reduction <add>, %392, %cst_247 [2] : vector<2x8x8xf32> to vector<2x8xf32>
    %394 = vector.shape_cast %393 : vector<2x8xf32> to vector<2x8x1xf32>
    %395 = tpu.reciprocal %394 {approx = true} : vector<2x8x1xf32> -> vector<2x8x1xf32>
    %396 = vector.broadcast %395 : vector<2x8x1xf32> to vector<2x8x8xf32>
    %397 = arith.mulf %392, %396 : vector<2x8x8xf32>
    "tpu.trace_start"() <{level = 10 : i32, message = "bqk,bkd->bqd"}> : () -> ()
    %cst_248 = arith.constant dense<0.000000e+00> : vector<2x8x8xf32>
    %398 = tpu.matmul %397, %386, %cst_248 {dimension_numbers = #tpu.dot_dimension_numbers<[2], [1], [1], [2], [0, 0, 0, 1, 1, 2], [0], [0]>} : vector<2x8x8xf32>, vector<2x8x8xf32>, vector<2x8x8xf32> -> vector<2x8x8xf32>
    "tpu.trace_stop"() : () -> ()
    %399 = vector.shape_cast %398 : vector<2x8x8xf32> to vector<16x8xf32>
    %c7_249 = arith.constant 7 : index
    %c0_250 = arith.constant 0 : index
    %c0_251 = arith.constant 0 : index
    %400 = vector.load %arg4[%c7_249, %c0_250, %c0_251] : memref<8x8x32xf32, #tpu.memory_space<vmem>>, vector<1x8x32xf32>
    %401 = vector.shape_cast %400 : vector<1x8x32xf32> to vector<8x32xf32>
    %cst_252 = arith.constant dense<0.000000e+00> : vector<16x32xf32>
    %402 = tpu.matmul %399, %401, %cst_252 {dimension_numbers = #tpu.dot_dimension_numbers<[1], [0], [0], [1], [0, 0, 1, 1], [], []>} : vector<16x8xf32>, vector<8x32xf32>, vector<16x32xf32> -> vector<16x32xf32>
    %403 = arith.addf %362, %402 : vector<16x32xf32>
    %c1_253 = arith.constant 1 : index
    %c0_254 = arith.constant 0 : index
    %c0_255 = arith.constant 0 : index
    %404 = vector.load %arg5[%c1_253, %c0_254, %c0_255] : memref<2x1x32xf32, #tpu.memory_space<vmem>>, vector<1x1x32xf32>
    %405 = vector.shape_cast %404 : vector<1x1x32xf32> to vector<1x32xf32>
    %406 = vector.broadcast %405 : vector<1x32xf32> to vector<16x32xf32>
    %407 = arith.addf %403, %406 : vector<16x32xf32>
    %408 = arith.addf %237, %407 : vector<16x32xf32>
    %c2_256 = arith.constant 2 : index
    %c0_257 = arith.constant 0 : index
    %c0_258 = arith.constant 0 : index
    %409 = vector.load %arg10[%c2_256, %c0_257, %c0_258] : memref<4x1x32xf32, #tpu.memory_space<vmem>>, vector<1x1x32xf32>
    %410 = vector.shape_cast %409 : vector<1x1x32xf32> to vector<1x32xf32>
    %c2_259 = arith.constant 2 : index
    %c0_260 = arith.constant 0 : index
    %c0_261 = arith.constant 0 : index
    %411 = vector.load %arg11[%c2_259, %c0_260, %c0_261] : memref<4x1x32xf32, #tpu.memory_space<vmem>>, vector<1x1x32xf32>
    %412 = vector.shape_cast %411 : vector<1x1x32xf32> to vector<1x32xf32>
    %cst_262 = arith.constant dense<0.000000e+00> : vector<16xf32>
    %413 = vector.multi_reduction <add>, %408, %cst_262 [1] : vector<16x32xf32> to vector<16xf32>
    %414 = vector.shape_cast %413 : vector<16xf32> to vector<16x1xf32>
    %cst_263 = arith.constant 3.200000e+01 : f32
    %415 = vector.broadcast %cst_263 : f32 to vector<16x1xf32>
    %416 = arith.divf %414, %415 : vector<16x1xf32>
    %417 = vector.broadcast %416 : vector<16x1xf32> to vector<16x32xf32>
    %418 = arith.subf %408, %417 : vector<16x32xf32>
    %419 = arith.mulf %418, %418 : vector<16x32xf32>
    %cst_264 = arith.constant dense<0.000000e+00> : vector<16xf32>
    %420 = vector.multi_reduction <add>, %419, %cst_264 [1] : vector<16x32xf32> to vector<16xf32>
    %421 = vector.shape_cast %420 : vector<16xf32> to vector<16x1xf32>
    %cst_265 = arith.constant 3.200000e+01 : f32
    %422 = vector.broadcast %cst_265 : f32 to vector<16x1xf32>
    %423 = arith.divf %421, %422 : vector<16x1xf32>
    %cst_266 = arith.constant 9.99999974E-6 : f32
    %424 = vector.broadcast %cst_266 : f32 to vector<16x1xf32>
    %425 = arith.addf %423, %424 : vector<16x1xf32>
    %426 = math.rsqrt %425 : vector<16x1xf32>
    %427 = vector.broadcast %426 : vector<16x1xf32> to vector<16x32xf32>
    %428 = arith.mulf %418, %427 : vector<16x32xf32>
    %429 = vector.broadcast %410 : vector<1x32xf32> to vector<16x32xf32>
    %430 = arith.mulf %428, %429 : vector<16x32xf32>
    %431 = vector.broadcast %412 : vector<1x32xf32> to vector<16x32xf32>
    %432 = arith.addf %430, %431 : vector<16x32xf32>
    %c1_267 = arith.constant 1 : index
    %c0_268 = arith.constant 0 : index
    %c0_269 = arith.constant 0 : index
    %433 = vector.load %arg6[%c1_267, %c0_268, %c0_269] : memref<2x32x64xf32, #tpu.memory_space<vmem>>, vector<1x32x64xf32>
    %434 = vector.shape_cast %433 : vector<1x32x64xf32> to vector<32x64xf32>
    %cst_270 = arith.constant dense<0.000000e+00> : vector<16x64xf32>
    %435 = tpu.matmul %432, %434, %cst_270 {dimension_numbers = #tpu.dot_dimension_numbers<[1], [0], [0], [1], [0, 0, 1, 1], [], []>} : vector<16x32xf32>, vector<32x64xf32>, vector<16x64xf32> -> vector<16x64xf32>
    %c1_271 = arith.constant 1 : index
    %c0_272 = arith.constant 0 : index
    %c0_273 = arith.constant 0 : index
    %436 = vector.load %arg7[%c1_271, %c0_272, %c0_273] : memref<2x1x64xf32, #tpu.memory_space<vmem>>, vector<1x1x64xf32>
    %437 = vector.shape_cast %436 : vector<1x1x64xf32> to vector<1x64xf32>
    %438 = vector.broadcast %437 : vector<1x64xf32> to vector<16x64xf32>
    %439 = arith.addf %435, %438 : vector<16x64xf32>
    %cst_274 = arith.constant 0.000000e+00 : f32
    %440 = vector.broadcast %cst_274 : f32 to vector<16x64xf32>
    %441 = arith.maximumf %439, %440 : vector<16x64xf32>
    %c1_275 = arith.constant 1 : index
    %c0_276 = arith.constant 0 : index
    %c0_277 = arith.constant 0 : index
    %442 = vector.load %arg8[%c1_275, %c0_276, %c0_277] : memref<2x64x32xf32, #tpu.memory_space<vmem>>, vector<1x64x32xf32>
    %443 = vector.shape_cast %442 : vector<1x64x32xf32> to vector<64x32xf32>
    %cst_278 = arith.constant dense<0.000000e+00> : vector<16x32xf32>
    %444 = tpu.matmul %441, %443, %cst_278 {dimension_numbers = #tpu.dot_dimension_numbers<[1], [0], [0], [1], [0, 0, 1, 1], [], []>} : vector<16x64xf32>, vector<64x32xf32>, vector<16x32xf32> -> vector<16x32xf32>
    %c1_279 = arith.constant 1 : index
    %c0_280 = arith.constant 0 : index
    %c0_281 = arith.constant 0 : index
    %445 = vector.load %arg9[%c1_279, %c0_280, %c0_281] : memref<2x1x32xf32, #tpu.memory_space<vmem>>, vector<1x1x32xf32>
    %446 = vector.shape_cast %445 : vector<1x1x32xf32> to vector<1x32xf32>
    %447 = vector.broadcast %446 : vector<1x32xf32> to vector<16x32xf32>
    %448 = arith.addf %444, %447 : vector<16x32xf32>
    %449 = arith.addf %432, %448 : vector<16x32xf32>
    %c3_282 = arith.constant 3 : index
    %c0_283 = arith.constant 0 : index
    %c0_284 = arith.constant 0 : index
    %450 = vector.load %arg10[%c3_282, %c0_283, %c0_284] : memref<4x1x32xf32, #tpu.memory_space<vmem>>, vector<1x1x32xf32>
    %451 = vector.shape_cast %450 : vector<1x1x32xf32> to vector<1x32xf32>
    %c3_285 = arith.constant 3 : index
    %c0_286 = arith.constant 0 : index
    %c0_287 = arith.constant 0 : index
    %452 = vector.load %arg11[%c3_285, %c0_286, %c0_287] : memref<4x1x32xf32, #tpu.memory_space<vmem>>, vector<1x1x32xf32>
    %453 = vector.shape_cast %452 : vector<1x1x32xf32> to vector<1x32xf32>
    %cst_288 = arith.constant dense<0.000000e+00> : vector<16xf32>
    %454 = vector.multi_reduction <add>, %449, %cst_288 [1] : vector<16x32xf32> to vector<16xf32>
    %455 = vector.shape_cast %454 : vector<16xf32> to vector<16x1xf32>
    %cst_289 = arith.constant 3.200000e+01 : f32
    %456 = vector.broadcast %cst_289 : f32 to vector<16x1xf32>
    %457 = arith.divf %455, %456 : vector<16x1xf32>
    %458 = vector.broadcast %457 : vector<16x1xf32> to vector<16x32xf32>
    %459 = arith.subf %449, %458 : vector<16x32xf32>
    %460 = arith.mulf %459, %459 : vector<16x32xf32>
    %cst_290 = arith.constant dense<0.000000e+00> : vector<16xf32>
    %461 = vector.multi_reduction <add>, %460, %cst_290 [1] : vector<16x32xf32> to vector<16xf32>
    %462 = vector.shape_cast %461 : vector<16xf32> to vector<16x1xf32>
    %cst_291 = arith.constant 3.200000e+01 : f32
    %463 = vector.broadcast %cst_291 : f32 to vector<16x1xf32>
    %464 = arith.divf %462, %463 : vector<16x1xf32>
    %cst_292 = arith.constant 9.99999974E-6 : f32
    %465 = vector.broadcast %cst_292 : f32 to vector<16x1xf32>
    %466 = arith.addf %464, %465 : vector<16x1xf32>
    %467 = math.rsqrt %466 : vector<16x1xf32>
    %468 = vector.broadcast %467 : vector<16x1xf32> to vector<16x32xf32>
    %469 = arith.mulf %459, %468 : vector<16x32xf32>
    %470 = vector.broadcast %451 : vector<1x32xf32> to vector<16x32xf32>
    %471 = arith.mulf %469, %470 : vector<16x32xf32>
    %472 = vector.broadcast %453 : vector<1x32xf32> to vector<16x32xf32>
    %473 = arith.addf %471, %472 : vector<16x32xf32>
    %c0_293 = arith.constant 0 : index
    %c0_294 = arith.constant 0 : index
    %474 = vector.load %arg12[%c0_293, %c0_294] : memref<1x32xf32, #tpu.memory_space<vmem>>, vector<1x32xf32>
    %c0_295 = arith.constant 0 : index
    %c0_296 = arith.constant 0 : index
    %475 = vector.load %arg13[%c0_295, %c0_296] : memref<1x32xf32, #tpu.memory_space<vmem>>, vector<1x32xf32>
    %cst_297 = arith.constant dense<0.000000e+00> : vector<16xf32>
    %476 = vector.multi_reduction <add>, %473, %cst_297 [1] : vector<16x32xf32> to vector<16xf32>
    %477 = vector.shape_cast %476 : vector<16xf32> to vector<16x1xf32>
    %cst_298 = arith.constant 3.200000e+01 : f32
    %478 = vector.broadcast %cst_298 : f32 to vector<16x1xf32>
    %479 = arith.divf %477, %478 : vector<16x1xf32>
    %480 = vector.broadcast %479 : vector<16x1xf32> to vector<16x32xf32>
    %481 = arith.subf %473, %480 : vector<16x32xf32>
    %482 = arith.mulf %481, %481 : vector<16x32xf32>
    %cst_299 = arith.constant dense<0.000000e+00> : vector<16xf32>
    %483 = vector.multi_reduction <add>, %482, %cst_299 [1] : vector<16x32xf32> to vector<16xf32>
    %484 = vector.shape_cast %483 : vector<16xf32> to vector<16x1xf32>
    %cst_300 = arith.constant 3.200000e+01 : f32
    %485 = vector.broadcast %cst_300 : f32 to vector<16x1xf32>
    %486 = arith.divf %484, %485 : vector<16x1xf32>
    %cst_301 = arith.constant 9.99999974E-6 : f32
    %487 = vector.broadcast %cst_301 : f32 to vector<16x1xf32>
    %488 = arith.addf %486, %487 : vector<16x1xf32>
    %489 = math.rsqrt %488 : vector<16x1xf32>
    %490 = vector.broadcast %489 : vector<16x1xf32> to vector<16x32xf32>
    %491 = arith.mulf %481, %490 : vector<16x32xf32>
    %492 = vector.broadcast %474 : vector<1x32xf32> to vector<16x32xf32>
    %493 = arith.mulf %491, %492 : vector<16x32xf32>
    %494 = vector.broadcast %475 : vector<1x32xf32> to vector<16x32xf32>
    %495 = arith.addf %493, %494 : vector<16x32xf32>
    %c0_302 = arith.constant 0 : index
    %c0_303 = arith.constant 0 : index
    %496 = vector.load %arg14[%c0_302, %c0_303] : memref<16x32xf32, #tpu.memory_space<vmem>>, vector<16x32xf32>
    tpu.vector_store %arg14[%c0_302, %c0_303], %495 {strides = array<i32>} : memref<16x32xf32, #tpu.memory_space<vmem>>, vector<16x32xf32>,
    return
  }
}

</mosaic_0001>

<llo_original>
// kernel: transformer_encoder_forward.1
$region0: #{transformer_encoder_forward.1}
  #allocation0 [shape = 'u32[]', space=smem, size = 0x4, offset = 0x4, fixed_abs, tag = 'smem constant byte address 0x4 - core index']
  #allocation1 [shape = 'u32[144,128]{1,0:T(1,128)}', space=vmem, size = 0x12000, scoped, tag = 'internal scratch']
  %s0 = inlined_call_operand.vmem [shape: f32[16,32], index: 0, kind: input, shape index: {}]
  %s1 = inlined_call_operand.vmem [shape: f32[16,32], index: 1, kind: input, shape index: {}]
  %s2 = inlined_call_operand.vmem [shape: f32[24,32,8], index: 2, kind: input, shape index: {}]
  %s3 = inlined_call_operand.vmem [shape: f32[24,1,8], index: 3, kind: input, shape index: {}]
  %s4 = inlined_call_operand.vmem [shape: f32[8,8,32], index: 4, kind: input, shape index: {}]
  %s5 = inlined_call_operand.vmem [shape: f32[2,1,32], index: 5, kind: input, shape index: {}]
  %s6 = inlined_call_operand.vmem [shape: f32[2,32,64], index: 6, kind: input, shape index: {}]
  %s7 = inlined_call_operand.vmem [shape: f32[2,1,64], index: 7, kind: input, shape index: {}]
  %s8 = inlined_call_operand.vmem [shape: f32[2,64,32], index: 8, kind: input, shape index: {}]
  %s9 = inlined_call_operand.vmem [shape: f32[2,1,32], index: 9, kind: input, shape index: {}]
  %s10 = inlined_call_operand.vmem [shape: f32[4,1,32], index: 10, kind: input, shape index: {}]
  %s11 = inlined_call_operand.vmem [shape: f32[4,1,32], index: 11, kind: input, shape index: {}]
  %s12 = inlined_call_operand.vmem [shape: f32[1,32], index: 12, kind: input, shape index: {}]
  %s13 = inlined_call_operand.vmem [shape: f32[1,32], index: 13, kind: input, shape index: {}]
  %s14 = inlined_call_operand.vmem [shape: f32[16,32], index: 14, kind: output, shape index: {}]
  %s15 = sld [smem:[#allocation0]]
  $region66: #{transformer_encoder_forward.1} parent=0
    _
  %s17 = ssub.s32 1, %s15
  %s18 = scalar_select 0, %s17, %s15
  // Predicated region
  $region2: #{transformer_encoder_forward.1} parent=0 // pred_check
    _
  $region3: #{transformer_encoder_forward.1} parent=0 // pred_check_branch
    %20 = sbr.rel (0) target = $region5
  $region4: #{transformer_encoder_forward.1} parent=0 // pred_region
    _
  $region5: #{transformer_encoder_forward.1} parent=0 // pred_fallthru
    _
  // Predicated region
  $region6: #{transformer_encoder_forward.1} parent=0 // pred_check
    _
  $region7: #{transformer_encoder_forward.1} parent=0 // pred_check_branch
    %22 = sbr.rel (0) target = $region9
  $region8: #{transformer_encoder_forward.1} parent=0 // pred_region
    _
  $region9: #{transformer_encoder_forward.1} parent=0 // pred_fallthru
    _
  // Predicated region
  $region10: #{transformer_encoder_forward.1} parent=0 // pred_check
    _
  $region11: #{transformer_encoder_forward.1} parent=0 // pred_check_branch
    %24 = sbr.rel (0) target = $region13
  $region12: #{transformer_encoder_forward.1} parent=0 // pred_region
    _
  $region13: #{transformer_encoder_forward.1} parent=0 // pred_fallthru
    _
  // Predicated region
  $region14: #{transformer_encoder_forward.1} parent=0 // pred_check
    _
  $region15: #{transformer_encoder_forward.1} parent=0 // pred_check_branch
    %26 = sbr.rel (0) target = $region17
  $region16: #{transformer_encoder_forward.1} parent=0 // pred_region
    _
  $region17: #{transformer_encoder_forward.1} parent=0 // pred_fallthru
    _
  // Predicated region
  $region18: #{transformer_encoder_forward.1} parent=0 // pred_check
    _
  $region19: #{transformer_encoder_forward.1} parent=0 // pred_check_branch
    %28 = sbr.rel (0) target = $region21
  $region20: #{transformer_encoder_forward.1} parent=0 // pred_region
    _
  $region21: #{transformer_encoder_forward.1} parent=0 // pred_fallthru
    _
  // Predicated region
  $region22: #{transformer_encoder_forward.1} parent=0 // pred_check
    _
  $region23: #{transformer_encoder_forward.1} parent=0 // pred_check_branch
    %30 = sbr.rel (0) target = $region25
  $region24: #{transformer_encoder_forward.1} parent=0 // pred_region
    _
  $region25: #{transformer_encoder_forward.1} parent=0 // pred_fallthru
    _
  // Predicated region
  $region26: #{transformer_encoder_forward.1} parent=0 // pred_check
    _
  $region27: #{transformer_encoder_forward.1} parent=0 // pred_check_branch
    %32 = sbr.rel (0) target = $region29
  $region28: #{transformer_encoder_forward.1} parent=0 // pred_region
    _
  $region29: #{transformer_encoder_forward.1} parent=0 // pred_fallthru
    _
  // Predicated region
  $region30: #{transformer_encoder_forward.1} parent=0 // pred_check
    _
  $region31: #{transformer_encoder_forward.1} parent=0 // pred_check_branch
    %34 = sbr.rel (0) target = $region33
  $region32: #{transformer_encoder_forward.1} parent=0 // pred_region
    _
  $region33: #{transformer_encoder_forward.1} parent=0 // pred_fallthru
    _
  // Predicated region
  $region34: #{transformer_encoder_forward.1} parent=0 // pred_check
    _
  $region35: #{transformer_encoder_forward.1} parent=0 // pred_check_branch
    %36 = sbr.rel (0) target = $region37
  $region36: #{transformer_encoder_forward.1} parent=0 // pred_region
    _
  $region37: #{transformer_encoder_forward.1} parent=0 // pred_fallthru
    _
  // Predicated region
  $region38: #{transformer_encoder_forward.1} parent=0 // pred_check
    _
  $region39: #{transformer_encoder_forward.1} parent=0 // pred_check_branch
    %38 = sbr.rel (0) target = $region41
  $region40: #{transformer_encoder_forward.1} parent=0 // pred_region
    _
  $region41: #{transformer_encoder_forward.1} parent=0 // pred_fallthru
    _
  // Predicated region
  $region42: #{transformer_encoder_forward.1} parent=0 // pred_check
    _
  $region43: #{transformer_encoder_forward.1} parent=0 // pred_check_branch
    %40 = sbr.rel (0) target = $region45
  $region44: #{transformer_encoder_forward.1} parent=0 // pred_region
    _
  $region45: #{transformer_encoder_forward.1} parent=0 // pred_fallthru
    _
  // Predicated region
  $region46: #{transformer_encoder_forward.1} parent=0 // pred_check
    _
  $region47: #{transformer_encoder_forward.1} parent=0 // pred_check_branch
    %42 = sbr.rel (0) target = $region49
  $region48: #{transformer_encoder_forward.1} parent=0 // pred_region
    _
  $region49: #{transformer_encoder_forward.1} parent=0 // pred_fallthru
    _
  // Predicated region
  $region50: #{transformer_encoder_forward.1} parent=0 // pred_check
    _
  $region51: #{transformer_encoder_forward.1} parent=0 // pred_check_branch
    %44 = sbr.rel (0) target = $region53
  $region52: #{transformer_encoder_forward.1} parent=0 // pred_region
    _
  $region53: #{transformer_encoder_forward.1} parent=0 // pred_fallthru
    _
  // Predicated region
  $region54: #{transformer_encoder_forward.1} parent=0 // pred_check
    _
  $region55: #{transformer_encoder_forward.1} parent=0 // pred_check_branch
    %46 = sbr.rel (0) target = $region57
  $region56: #{transformer_encoder_forward.1} parent=0 // pred_region
    _
  $region57: #{transformer_encoder_forward.1} parent=0 // pred_fallthru
    _
  %v47 = vld [vmem:[%s0] sm:$0xff]
  %v48 = vld [vmem:[%s0 + $0x8] sm:$0xff]
  %v49 = vld [vmem:[%s1] sm:$0xff]
  %v50 = vld [vmem:[%s1 + $0x8] sm:$0xff]
  %v51 = vadd.f32 %v47, %v49
  %v52 = vadd.f32 %v48, %v50
  %v53 = vld [vmem:[%s2] sm:$0xff]
  %v54 = vld [vmem:[%s2 + $0x8] sm:$0xff]
  %v55 = vld [vmem:[%s2 + $0x10] sm:$0xff]
  %v56 = vld [vmem:[%s2 + $0x18] sm:$0xff]
  %v57 = vld [vmem:[%s3] sm:$0x1]
  %v59 = vlaneseq
  %v60 = vshrl.u32 %v59, 7
  %v61 = vsub.s32 0, %v60
  %v62 = vrot.slane %v57, %v61
  %vm64 = vcmask 261120
  %v66 = vsel %vm64, %v51, 0
  %v69 = vsel %vm64, %v52, 0
  %71 = vmatprep.subr.mxu0 0.0
  %72 = vmatpush1.msra.mxu0 %v53
  %73 = vmatprep.subr.mxu0 0.0
  %74 = vmatpush1.msra.mxu0 %v54
  %75 = vmatprep.subr.mxu0 0.0
  %76 = vmatpush1.msra.mxu0 %v55
  %77 = vmatprep.subr.mxu0 0.0
  %78 = vmatpush1.msra.mxu0 %v56
  %79 = vmatprep.subr.mxu0 0.0
  %80 = vmatpush1.msra.mxu0 0.0
  %81 = vmatprep.subr.mxu0 0.0
  %82 = vmatpush1.msra.mxu0 0.0
  %83 = vmatprep.subr.mxu0 0.0
  %84 = vmatpush1.msra.mxu0 0.0
  %85 = vmatprep.subr.mxu0 0.0
  %86 = vmatpush1.msra.mxu0 0.0
  %87 = vmatprep.subr.mxu0 0.0
  %88 = vmatpush1.msra.mxu0 0.0
  %89 = vmatprep.subr.mxu0 0.0
  %90 = vmatpush1.msra.mxu0 0.0
  %91 = vmatprep.subr.mxu0 0.0
  %92 = vmatpush1.msra.mxu0 0.0
  %93 = vmatprep.subr.mxu0 0.0
  %94 = vmatpush1.msra.mxu0 0.0
  %95 = vmatprep.subr.mxu0 0.0
  %96 = vmatpush1.msra.mxu0 0.0
  %97 = vmatprep.subr.mxu0 0.0
  %98 = vmatpush1.msra.mxu0 0.0
  %99 = vmatprep.subr.mxu0 0.0
  %100 = vmatpush1.msra.mxu0 0.0
  %101 = vmatprep.subr.mxu0 0.0
  %102 = vmatpush1.msra.mxu0 0.0
  %103 = vmatprep.subr.mxu0 0.0
  %104 = vmatpush1.msra.mxu0 0.0
  %105 = vmatprep.subr.mxu0 0.0
  %106 = vmatpush1.msra.mxu0 0.0
  %107 = vmatprep.subr.mxu0 0.0
  %108 = vmatpush1.msra.mxu0 0.0
  %109 = vmatprep.subr.mxu0 0.0
  %110 = vmatpush1.msra.mxu0 0.0
  %111 = vmatprep.subr.mxu0 0.0
  %112 = vmatpush1.msra.mxu0 0.0
  %113 = vmatprep.subr.mxu0 0.0
  %114 = vmatpush1.msra.mxu0 0.0
  %115 = vmatprep.subr.mxu0 0.0
  %116 = vmatpush1.msra.mxu0 0.0
  %117 = vmatprep.subr.mxu0 0.0
  %118 = vmatpush1.msra.mxu0 0.0
  %119 = vmatprep.subr.mxu0 0.0
  %120 = vmatpush1.msra.mxu0 0.0
  %121 = vmatprep.subr.mxu0 0.0
  %122 = vmatpush1.msra.mxu0 0.0
  %123 = vmatprep.subr.mxu0 0.0
  %124 = vmatpush1.msra.mxu0 0.0
  %125 = vmatprep.subr.mxu0 0.0
  %126 = vmatpush1.msra.mxu0 0.0
  %127 = vmatprep.subr.mxu0 0.0
  %128 = vmatpush1.msra.mxu0 0.0
  %129 = vmatprep.subr.mxu0 0.0
  %130 = vmatpush1.msra.mxu0 0.0
  %131 = vmatprep.subr.mxu0 0.0
  %132 = vmatpush1.msra.mxu0 0.0
  %133 = vmatprep.subr.mxu0 0.0
  %134 = vmatpush1.msra.mxu0 0.0
  %135 = vmatprep.mubr.f32.mxu0 0.0
  %136 = vmatmul.mubr.f32.gmra.mrb[0].mxu0 %v66
  %v137 = vpop.f32.mrb[0].mxu0
  %v138 = vadd.f32 %v62, %v137
  %v139 = vpop.f32.mrb[0].mxu0
  %140 = vmatprep.mubr.f32.mxu0 0.0
  %141 = vmatmul.mubr.f32.gmra.mrb[0].mxu0 %v69
  %v142 = vpop.f32.mrb[0].mxu0
  %v143 = vadd.f32 %v62, %v142
  %v144 = vpop.f32.mrb[0].mxu0
  %145 = vdwg.mxu0
  %s146 = scalar_lea.vmem %s2, 128
  %v147 = vld [vmem:[%s146] sm:$0xff]
  %v148 = vld [vmem:[%s146 + $0x8] sm:$0xff]
  %v149 = vld [vmem:[%s146 + $0x10] sm:$0xff]
  %v150 = vld [vmem:[%s146 + $0x18] sm:$0xff]
  %s151 = scalar_lea.vmem %s3, 4
  %v152 = vld [vmem:[%s151] sm:$0x1]
  %v154 = vlaneseq
  %v155 = vshrl.u32 %v154, 7
  %v156 = vsub.s32 0, %v155
  %v157 = vrot.slane %v152, %v156
  %159 = vmatprep.subr.mxu0 0.0
  %160 = vmatpush1.msra.mxu0 %v147
  %161 = vmatprep.subr.mxu0 0.0
  %162 = vmatpush1.msra.mxu0 %v148
  %163 = vmatprep.subr.mxu0 0.0
  %164 = vmatpush1.msra.mxu0 %v149
  %165 = vmatprep.subr.mxu0 0.0
  %166 = vmatpush1.msra.mxu0 %v150
  %167 = vmatprep.subr.mxu0 0.0
  %168 = vmatpush1.msra.mxu0 0.0
  %169 = vmatprep.subr.mxu0 0.0
  %170 = vmatpush1.msra.mxu0 0.0
  %171 = vmatprep.subr.mxu0 0.0
  %172 = vmatpush1.msra.mxu0 0.0
  %173 = vmatprep.subr.mxu0 0.0
  %174 = vmatpush1.msra.mxu0 0.0
  %175 = vmatprep.subr.mxu0 0.0
  %176 = vmatpush1.msra.mxu0 0.0
  %177 = vmatprep.subr.mxu0 0.0
  %178 = vmatpush1.msra.mxu0 0.0
  %179 = vmatprep.subr.mxu0 0.0
  %180 = vmatpush1.msra.mxu0 0.0
  %181 = vmatprep.subr.mxu0 0.0
  %182 = vmatpush1.msra.mxu0 0.0
  %183 = vmatprep.subr.mxu0 0.0
  %184 = vmatpush1.msra.mxu0 0.0
  %185 = vmatprep.subr.mxu0 0.0
  %186 = vmatpush1.msra.mxu0 0.0
  %187 = vmatprep.subr.mxu0 0.0
  %188 = vmatpush1.msra.mxu0 0.0
  %189 = vmatprep.subr.mxu0 0.0
  %190 = vmatpush1.msra.mxu0 0.0
  %191 = vmatprep.subr.mxu0 0.0
  %192 = vmatpush1.msra.mxu0 0.0
  %193 = vmatprep.subr.mxu0 0.0
  %194 = vmatpush1.msra.mxu0 0.0
  %195 = vmatprep.subr.mxu0 0.0
  %196 = vmatpush1.msra.mxu0 0.0
  %197 = vmatprep.subr.mxu0 0.0
  %198 = vmatpush1.msra.mxu0 0.0
  %199 = vmatprep.subr.mxu0 0.0
  %200 = vmatpush1.msra.mxu0 0.0
  %201 = vmatprep.subr.mxu0 0.0
  %202 = vmatpush1.msra.mxu0 0.0
  %203 = vmatprep.subr.mxu0 0.0
  %204 = vmatpush1.msra.mxu0 0.0
  %205 = vmatprep.subr.mxu0 0.0
  %206 = vmatpush1.msra.mxu0 0.0
  %207 = vmatprep.subr.mxu0 0.0
  %208 = vmatpush1.msra.mxu0 0.0
  %209 = vmatprep.subr.mxu0 0.0
  %210 = vmatpush1.msra.mxu0 0.0
  %211 = vmatprep.subr.mxu0 0.0
  %212 = vmatpush1.msra.mxu0 0.0
  %213 = vmatprep.subr.mxu0 0.0
  %214 = vmatpush1.msra.mxu0 0.0
  %215 = vmatprep.subr.mxu0 0.0
  %216 = vmatpush1.msra.mxu0 0.0
  %217 = vmatprep.subr.mxu0 0.0
  %218 = vmatpush1.msra.mxu0 0.0
  %219 = vmatprep.subr.mxu0 0.0
  %220 = vmatpush1.msra.mxu0 0.0
  %221 = vmatprep.subr.mxu0 0.0
  %222 = vmatpush1.msra.mxu0 0.0
  %223 = vmatprep.mubr.f32.mxu0 0.0
  %224 = vmatmul.mubr.f32.gmra.mrb[0].mxu0 %v66
  %v225 = vpop.f32.mrb[0].mxu0
  %v226 = vadd.f32 %v157, %v225
  %v227 = vpop.f32.mrb[0].mxu0
  %228 = vmatprep.mubr.f32.mxu0 0.0
  %229 = vmatmul.mubr.f32.gmra.mrb[0].mxu0 %v69
  %v230 = vpop.f32.mrb[0].mxu0
  %v231 = vadd.f32 %v157, %v230
  %v232 = vpop.f32.mrb[0].mxu0
  %233 = vdwg.mxu0
  %s234 = scalar_lea.vmem %s2, 256
  %v235 = vld [vmem:[%s234] sm:$0xff]
  %v236 = vld [vmem:[%s234 + $0x8] sm:$0xff]
  %v237 = vld [vmem:[%s234 + $0x10] sm:$0xff]
  %v238 = vld [vmem:[%s234 + $0x18] sm:$0xff]
  %s239 = scalar_lea.vmem %s3, 8
  %v240 = vld [vmem:[%s239] sm:$0x1]
  %v242 = vlaneseq
  %v243 = vshrl.u32 %v242, 7
  %v244 = vsub.s32 0, %v243
  %v245 = vrot.slane %v240, %v244
  %v248 = vsel %vm64, %v47, 0
  %v251 = vsel %vm64, %v48, 0
  %253 = vmatprep.subr.mxu0 0.0
  %254 = vmatpush1.msra.mxu0 %v235
  %255 = vmatprep.subr.mxu0 0.0
  %256 = vmatpush1.msra.mxu0 %v236
  %257 = vmatprep.subr.mxu0 0.0
  %258 = vmatpush1.msra.mxu0 %v237
  %259 = vmatprep.subr.mxu0 0.0
  %260 = vmatpush1.msra.mxu0 %v238
  %261 = vmatprep.subr.mxu0 0.0
  %262 = vmatpush1.msra.mxu0 0.0
  %263 = vmatprep.subr.mxu0 0.0
  %264 = vmatpush1.msra.mxu0 0.0
  %265 = vmatprep.subr.mxu0 0.0
  %266 = vmatpush1.msra.mxu0 0.0
  %267 = vmatprep.subr.mxu0 0.0
  %268 = vmatpush1.msra.mxu0 0.0
  %269 = vmatprep.subr.mxu0 0.0
  %270 = vmatpush1.msra.mxu0 0.0
  %271 = vmatprep.subr.mxu0 0.0
  %272 = vmatpush1.msra.mxu0 0.0
  %273 = vmatprep.subr.mxu0 0.0
  %274 = vmatpush1.msra.mxu0 0.0
  %275 = vmatprep.subr.mxu0 0.0
  %276 = vmatpush1.msra.mxu0 0.0
  %277 = vmatprep.subr.mxu0 0.0
  %278 = vmatpush1.msra.mxu0 0.0
  %279 = vmatprep.subr.mxu0 0.0
  %280 = vmatpush1.msra.mxu0 0.0
  %281 = vmatprep.subr.mxu0 0.0
  %282 = vmatpush1.msra.mxu0 0.0
  %283 = vmatprep.subr.mxu0 0.0
  %284 = vmatpush1.msra.mxu0 0.0
  %285 = vmatprep.subr.mxu0 0.0
  %286 = vmatpush1.msra.mxu0 0.0
  %287 = vmatprep.subr.mxu0 0.0
  %288 = vmatpush1.msra.mxu0 0.0
  %289 = vmatprep.subr.mxu0 0.0
  %290 = vmatpush1.msra.mxu0 0.0
  %291 = vmatprep.subr.mxu0 0.0
  %292 = vmatpush1.msra.mxu0 0.0
  %293 = vmatprep.subr.mxu0 0.0
  %294 = vmatpush1.msra.mxu0 0.0
  %295 = vmatprep.subr.mxu0 0.0
  %296 = vmatpush1.msra.mxu0 0.0
  %297 = vmatprep.subr.mxu0 0.0
  %298 = vmatpush1.msra.mxu0 0.0
  %299 = vmatprep.subr.mxu0 0.0
  %300 = vmatpush1.msra.mxu0 0.0
  %301 = vmatprep.subr.mxu0 0.0
  %302 = vmatpush1.msra.mxu0 0.0
  %303 = vmatprep.subr.mxu0 0.0
  %304 = vmatpush1.msra.mxu0 0.0
  %305 = vmatprep.subr.mxu0 0.0
  %306 = vmatpush1.msra.mxu0 0.0
  %307 = vmatprep.subr.mxu0 0.0
  %308 = vmatpush1.msra.mxu0 0.0
  %309 = vmatprep.subr.mxu0 0.0
  %310 = vmatpush1.msra.mxu0 0.0
  %311 = vmatprep.subr.mxu0 0.0
  %312 = vmatpush1.msra.mxu0 0.0
  %313 = vmatprep.subr.mxu0 0.0
  %314 = vmatpush1.msra.mxu0 0.0
  %315 = vmatprep.subr.mxu0 0.0
  %316 = vmatpush1.msra.mxu0 0.0
  %317 = vmatprep.mubr.f32.mxu0 0.0
  %318 = vmatmul.mubr.f32.gmra.mrb[0].mxu0 %v248
  %v319 = vpop.f32.mrb[0].mxu0
  %v320 = vadd.f32 %v245, %v319
  %v321 = vpop.f32.mrb[0].mxu0
  %322 = vmatprep.mubr.f32.mxu0 0.0
  %323 = vmatmul.mubr.f32.gmra.mrb[0].mxu0 %v251
  %v324 = vpop.f32.mrb[0].mxu0
  %v325 = vadd.f32 %v245, %v324
  %v326 = vpop.f32.mrb[0].mxu0
  %327 = vdwg.mxu0
  %vm328 = vcmask 64512
  %v330 = vsel %vm328, %v138, 0
  %v333 = vsel %vm328, %v226, 0
  %335 = vmatprep.subr.mxu0 0.0
  %336 = vmatpush1.xpose.msra.mxu0 %v333
  %337 = vmatprep.subr.mxu0 0.0
  %338 = vmatpush1.xpose.msra.mxu0 0.0
  %339 = vmatprep.subr.mxu0 0.0
  %340 = vmatpush1.xpose.msra.mxu0 0.0
  %341 = vmatprep.subr.mxu0 0.0
  %342 = vmatpush1.xpose.msra.mxu0 0.0
  %343 = vmatprep.subr.mxu0 0.0
  %344 = vmatpush1.xpose.msra.mxu0 0.0
  %345 = vmatprep.subr.mxu0 0.0
  %346 = vmatpush1.xpose.msra.mxu0 0.0
  %347 = vmatprep.subr.mxu0 0.0
  %348 = vmatpush1.xpose.msra.mxu0 0.0
  %349 = vmatprep.subr.mxu0 0.0
  %350 = vmatpush1.xpose.msra.mxu0 0.0
  %351 = vmatprep.subr.mxu0 0.0
  %352 = vmatpush1.xpose.msra.mxu0 0.0
  %353 = vmatprep.subr.mxu0 0.0
  %354 = vmatpush1.xpose.msra.mxu0 0.0
  %355 = vmatprep.subr.mxu0 0.0
  %356 = vmatpush1.xpose.msra.mxu0 0.0
  %357 = vmatprep.subr.mxu0 0.0
  %358 = vmatpush1.xpose.msra.mxu0 0.0
  %359 = vmatprep.subr.mxu0 0.0
  %360 = vmatpush1.xpose.msra.mxu0 0.0
  %361 = vmatprep.subr.mxu0 0.0
  %362 = vmatpush1.xpose.msra.mxu0 0.0
  %363 = vmatprep.subr.mxu0 0.0
  %364 = vmatpush1.xpose.msra.mxu0 0.0
  %365 = vmatprep.subr.mxu0 0.0
  %366 = vmatpush1.xpose.msra.mxu0 0.0
  %367 = vmatprep.subr.mxu0 0.0
  %368 = vmatpush1.xpose.msra.mxu0 0.0
  %369 = vmatprep.subr.mxu0 0.0
  %370 = vmatpush1.xpose.msra.mxu0 0.0
  %371 = vmatprep.subr.mxu0 0.0
  %372 = vmatpush1.xpose.msra.mxu0 0.0
  %373 = vmatprep.subr.mxu0 0.0
  %374 = vmatpush1.xpose.msra.mxu0 0.0
  %375 = vmatprep.subr.mxu0 0.0
  %376 = vmatpush1.xpose.msra.mxu0 0.0
  %377 = vmatprep.subr.mxu0 0.0
  %378 = vmatpush1.xpose.msra.mxu0 0.0
  %379 = vmatprep.subr.mxu0 0.0
  %380 = vmatpush1.xpose.msra.mxu0 0.0
  %381 = vmatprep.subr.mxu0 0.0
  %382 = vmatpush1.xpose.msra.mxu0 0.0
  %383 = vmatprep.subr.mxu0 0.0
  %384 = vmatpush1.xpose.msra.mxu0 0.0
  %385 = vmatprep.subr.mxu0 0.0
  %386 = vmatpush1.xpose.msra.mxu0 0.0
  %387 = vmatprep.subr.mxu0 0.0
  %388 = vmatpush1.xpose.msra.mxu0 0.0
  %389 = vmatprep.subr.mxu0 0.0
  %390 = vmatpush1.xpose.msra.mxu0 0.0
  %391 = vmatprep.subr.mxu0 0.0
  %392 = vmatpush1.xpose.msra.mxu0 0.0
  %393 = vmatprep.subr.mxu0 0.0
  %394 = vmatpush1.xpose.msra.mxu0 0.0
  %395 = vmatprep.subr.mxu0 0.0
  %396 = vmatpush1.xpose.msra.mxu0 0.0
  %397 = vmatprep.subr.mxu0 0.0
  %398 = vmatpush1.xpose.msra.mxu0 0.0
  %399 = vmatprep.mubr.f32.mxu0 0.0
  %400 = vmatmul.mubr.f32.gmra.mrb[0].mxu0 %v330
  %v401 = vpop.f32.mrb[0].mxu0
  %v402 = vadd.f32 0.0, %v401
  %v403 = vpop.f32.mrb[0].mxu0
  %404 = vdwg.mxu0
  %v406 = vsel %vm328, %v143, 0
  %v409 = vsel %vm328, %v231, 0
  %411 = vmatprep.subr.mxu0 0.0
  %412 = vmatpush1.xpose.msra.mxu0 %v409
  %413 = vmatprep.subr.mxu0 0.0
  %414 = vmatpush1.xpose.msra.mxu0 0.0
  %415 = vmatprep.subr.mxu0 0.0
  %416 = vmatpush1.xpose.msra.mxu0 0.0
  %417 = vmatprep.subr.mxu0 0.0
  %418 = vmatpush1.xpose.msra.mxu0 0.0
  %419 = vmatprep.subr.mxu0 0.0
  %420 = vmatpush1.xpose.msra.mxu0 0.0
  %421 = vmatprep.subr.mxu0 0.0
  %422 = vmatpush1.xpose.msra.mxu0 0.0
  %423 = vmatprep.subr.mxu0 0.0
  %424 = vmatpush1.xpose.msra.mxu0 0.0
  %425 = vmatprep.subr.mxu0 0.0
  %426 = vmatpush1.xpose.msra.mxu0 0.0
  %427 = vmatprep.subr.mxu0 0.0
  %428 = vmatpush1.xpose.msra.mxu0 0.0
  %429 = vmatprep.subr.mxu0 0.0
  %430 = vmatpush1.xpose.msra.mxu0 0.0
  %431 = vmatprep.subr.mxu0 0.0
  %432 = vmatpush1.xpose.msra.mxu0 0.0
  %433 = vmatprep.subr.mxu0 0.0
  %434 = vmatpush1.xpose.msra.mxu0 0.0
  %435 = vmatprep.subr.mxu0 0.0
  %436 = vmatpush1.xpose.msra.mxu0 0.0
  %437 = vmatprep.subr.mxu0 0.0
  %438 = vmatpush1.xpose.msra.mxu0 0.0
  %439 = vmatprep.subr.mxu0 0.0
  %440 = vmatpush1.xpose.msra.mxu0 0.0
  %441 = vmatprep.subr.mxu0 0.0
  %442 = vmatpush1.xpose.msra.mxu0 0.0
  %443 = vmatprep.subr.mxu0 0.0
  %444 = vmatpush1.xpose.msra.mxu0 0.0
  %445 = vmatprep.subr.mxu0 0.0
  %446 = vmatpush1.xpose.msra.mxu0 0.0
  %447 = vmatprep.subr.mxu0 0.0
  %448 = vmatpush1.xpose.msra.mxu0 0.0
  %449 = vmatprep.subr.mxu0 0.0
  %450 = vmatpush1.xpose.msra.mxu0 0.0
  %451 = vmatprep.subr.mxu0 0.0
  %452 = vmatpush1.xpose.msra.mxu0 0.0
  %453 = vmatprep.subr.mxu0 0.0
  %454 = vmatpush1.xpose.msra.mxu0 0.0
  %455 = vmatprep.subr.mxu0 0.0
  %456 = vmatpush1.xpose.msra.mxu0 0.0
  %457 = vmatprep.subr.mxu0 0.0
  %458 = vmatpush1.xpose.msra.mxu0 0.0
  %459 = vmatprep.subr.mxu0 0.0
  %460 = vmatpush1.xpose.msra.mxu0 0.0
  %461 = vmatprep.subr.mxu0 0.0
  %462 = vmatpush1.xpose.msra.mxu0 0.0
  %463 = vmatprep.subr.mxu0 0.0
  %464 = vmatpush1.xpose.msra.mxu0 0.0
  %465 = vmatprep.subr.mxu0 0.0
  %466 = vmatpush1.xpose.msra.mxu0 0.0
  %467 = vmatprep.subr.mxu0 0.0
  %468 = vmatpush1.xpose.msra.mxu0 0.0
  %469 = vmatprep.subr.mxu0 0.0
  %470 = vmatpush1.xpose.msra.mxu0 0.0
  %471 = vmatprep.subr.mxu0 0.0
  %472 = vmatpush1.xpose.msra.mxu0 0.0
  %473 = vmatprep.subr.mxu0 0.0
  %474 = vmatpush1.xpose.msra.mxu0 0.0
  %475 = vmatprep.mubr.f32.mxu0 0.0
  %476 = vmatmul.mubr.f32.gmra.mrb[0].mxu0 %v406
  %v477 = vpop.f32.mrb[0].mxu0
  %v478 = vadd.f32 0.0, %v477
  %v479 = vpop.f32.mrb[0].mxu0
  %480 = vdwg.mxu0
  %v481 = vsel %vm328, %v402, -inf
  %482 = vmax.xlane.f32.xlu0 %v481
  %v483 = vpop.xlane.xlu0 %482
  %v484 = vsel %vm328, %v478, -inf
  %485 = vmax.xlane.f32.xlu0 %v484
  %v486 = vpop.xlane.xlu0 %485
  %v487 = vsub.f32 %v402, %v483
  %v488 = vsub.f32 %v478, %v486
  %v489 = vmul.f32 %v487, 1.442695
  %v490 = vpow.pop %v489
  %v491 = vmul.f32 %v488, 1.442695
  %v492 = vpow.pop %v491
  %v493 = vsel %vm328, %v490, 0.0
  %494 = vadd.xlane.f32.xlu0 %v493
  %v495 = vpop.xlane.xlu0 %494
  %v496 = vsel %vm328, %v492, 0.0
  %497 = vadd.xlane.f32.xlu0 %v496
  %v498 = vpop.xlane.xlu0 %497
  %v499 = vrcp.pop %v495
  %v500 = vrcp.pop %v498
  %v501 = vmul.f32 %v490, %v499
  %v502 = vmul.f32 %v492, %v500
  %v504 = vsel %vm328, %v501, 0
  %506 = vmatprep.subr.mxu0 0.0
  %507 = vmatpush1.msra.mxu0 %v320
  %508 = vmatprep.subr.mxu0 0.0
  %509 = vmatpush1.msra.mxu0 0.0
  %510 = vmatprep.subr.mxu0 0.0
  %511 = vmatpush1.msra.mxu0 0.0
  %512 = vmatprep.subr.mxu0 0.0
  %513 = vmatpush1.msra.mxu0 0.0
  %514 = vmatprep.subr.mxu0 0.0
  %515 = vmatpush1.msra.mxu0 0.0
  %516 = vmatprep.subr.mxu0 0.0
  %517 = vmatpush1.msra.mxu0 0.0
  %518 = vmatprep.subr.mxu0 0.0
  %519 = vmatpush1.msra.mxu0 0.0
  %520 = vmatprep.subr.mxu0 0.0
  %521 = vmatpush1.msra.mxu0 0.0
  %522 = vmatprep.subr.mxu0 0.0
  %523 = vmatpush1.msra.mxu0 0.0
  %524 = vmatprep.subr.mxu0 0.0
  %525 = vmatpush1.msra.mxu0 0.0
  %526 = vmatprep.subr.mxu0 0.0
  %527 = vmatpush1.msra.mxu0 0.0
  %528 = vmatprep.subr.mxu0 0.0
  %529 = vmatpush1.msra.mxu0 0.0
  %530 = vmatprep.subr.mxu0 0.0
  %531 = vmatpush1.msra.mxu0 0.0
  %532 = vmatprep.subr.mxu0 0.0
  %533 = vmatpush1.msra.mxu0 0.0
  %534 = vmatprep.subr.mxu0 0.0
  %535 = vmatpush1.msra.mxu0 0.0
  %536 = vmatprep.subr.mxu0 0.0
  %537 = vmatpush1.msra.mxu0 0.0
  %538 = vmatprep.subr.mxu0 0.0
  %539 = vmatpush1.msra.mxu0 0.0
  %540 = vmatprep.subr.mxu0 0.0
  %541 = vmatpush1.msra.mxu0 0.0
  %542 = vmatprep.subr.mxu0 0.0
  %543 = vmatpush1.msra.mxu0 0.0
  %544 = vmatprep.subr.mxu0 0.0
  %545 = vmatpush1.msra.mxu0 0.0
  %546 = vmatprep.subr.mxu0 0.0
  %547 = vmatpush1.msra.mxu0 0.0
  %548 = vmatprep.subr.mxu0 0.0
  %549 = vmatpush1.msra.mxu0 0.0
  %550 = vmatprep.subr.mxu0 0.0
  %551 = vmatpush1.msra.mxu0 0.0
  %552 = vmatprep.subr.mxu0 0.0
  %553 = vmatpush1.msra.mxu0 0.0
  %554 = vmatprep.subr.mxu0 0.0
  %555 = vmatpush1.msra.mxu0 0.0
  %556 = vmatprep.subr.mxu0 0.0
  %557 = vmatpush1.msra.mxu0 0.0
  %558 = vmatprep.subr.mxu0 0.0
  %559 = vmatpush1.msra.mxu0 0.0
  %560 = vmatprep.subr.mxu0 0.0
  %561 = vmatpush1.msra.mxu0 0.0
  %562 = vmatprep.subr.mxu0 0.0
  %563 = vmatpush1.msra.mxu0 0.0
  %564 = vmatprep.subr.mxu0 0.0
  %565 = vmatpush1.msra.mxu0 0.0
  %566 = vmatprep.subr.mxu0 0.0
  %567 = vmatpush1.msra.mxu0 0.0
  %568 = vmatprep.subr.mxu0 0.0
  %569 = vmatpush1.msra.mxu0 0.0
  %570 = vmatprep.mubr.f32.mxu0 0.0
  %571 = vmatmul.mubr.f32.gmra.mrb[0].mxu0 %v504
  %v572 = vpop.f32.mrb[0].mxu0
  %v573 = vadd.f32 0.0, %v572
  %v574 = vpop.f32.mrb[0].mxu0
  %575 = vdwg.mxu0
  %v577 = vsel %vm328, %v502, 0
  %579 = vmatprep.subr.mxu0 0.0
  %580 = vmatpush1.msra.mxu0 %v325
  %581 = vmatprep.subr.mxu0 0.0
  %582 = vmatpush1.msra.mxu0 0.0
  %583 = vmatprep.subr.mxu0 0.0
  %584 = vmatpush1.msra.mxu0 0.0
  %585 = vmatprep.subr.mxu0 0.0
  %586 = vmatpush1.msra.mxu0 0.0
  %587 = vmatprep.subr.mxu0 0.0
  %588 = vmatpush1.msra.mxu0 0.0
  %589 = vmatprep.subr.mxu0 0.0
  %590 = vmatpush1.msra.mxu0 0.0
  %591 = vmatprep.subr.mxu0 0.0
  %592 = vmatpush1.msra.mxu0 0.0
  %593 = vmatprep.subr.mxu0 0.0
  %594 = vmatpush1.msra.mxu0 0.0
  %595 = vmatprep.subr.mxu0 0.0
  %596 = vmatpush1.msra.mxu0 0.0
  %597 = vmatprep.subr.mxu0 0.0
  %598 = vmatpush1.msra.mxu0 0.0
  %599 = vmatprep.subr.mxu0 0.0
  %600 = vmatpush1.msra.mxu0 0.0
  %601 = vmatprep.subr.mxu0 0.0
  %602 = vmatpush1.msra.mxu0 0.0
  %603 = vmatprep.subr.mxu0 0.0
  %604 = vmatpush1.msra.mxu0 0.0
  %605 = vmatprep.subr.mxu0 0.0
  %606 = vmatpush1.msra.mxu0 0.0
  %607 = vmatprep.subr.mxu0 0.0
  %608 = vmatpush1.msra.mxu0 0.0
  %609 = vmatprep.subr.mxu0 0.0
  %610 = vmatpush1.msra.mxu0 0.0
  %611 = vmatprep.subr.mxu0 0.0
  %612 = vmatpush1.msra.mxu0 0.0
  %613 = vmatprep.subr.mxu0 0.0
  %614 = vmatpush1.msra.mxu0 0.0
  %615 = vmatprep.subr.mxu0 0.0
  %616 = vmatpush1.msra.mxu0 0.0
  %617 = vmatprep.subr.mxu0 0.0
  %618 = vmatpush1.msra.mxu0 0.0
  %619 = vmatprep.subr.mxu0 0.0
  %620 = vmatpush1.msra.mxu0 0.0
  %621 = vmatprep.subr.mxu0 0.0
  %622 = vmatpush1.msra.mxu0 0.0
  %623 = vmatprep.subr.mxu0 0.0
  %624 = vmatpush1.msra.mxu0 0.0
  %625 = vmatprep.subr.mxu0 0.0
  %626 = vmatpush1.msra.mxu0 0.0
  %627 = vmatprep.subr.mxu0 0.0
  %628 = vmatpush1.msra.mxu0 0.0
  %629 = vmatprep.subr.mxu0 0.0
  %630 = vmatpush1.msra.mxu0 0.0
  %631 = vmatprep.subr.mxu0 0.0
  %632 = vmatpush1.msra.mxu0 0.0
  %633 = vmatprep.subr.mxu0 0.0
  %634 = vmatpush1.msra.mxu0 0.0
  %635 = vmatprep.subr.mxu0 0.0
  %636 = vmatpush1.msra.mxu0 0.0
  %637 = vmatprep.subr.mxu0 0.0
  %638 = vmatpush1.msra.mxu0 0.0
  %639 = vmatprep.subr.mxu0 0.0
  %640 = vmatpush1.msra.mxu0 0.0
  %641 = vmatprep.subr.mxu0 0.0
  %642 = vmatpush1.msra.mxu0 0.0
  %643 = vmatprep.mubr.f32.mxu0 0.0
  %644 = vmatmul.mubr.f32.gmra.mrb[0].mxu0 %v577
  %v645 = vpop.f32.mrb[0].mxu0
  %v646 = vadd.f32 0.0, %v645
  %v647 = vpop.f32.mrb[0].mxu0
  %648 = vdwg.mxu0
  %v649 = vld [vmem:[%s4] sm:$0xff]
  %s650 = scalar_lea.vmem %s2, 32
  %v651 = vld [vmem:[%s650] sm:$0xff]
  %v652 = vld [vmem:[%s650 + $0x8] sm:$0xff]
  %v653 = vld [vmem:[%s650 + $0x10] sm:$0xff]
  %v654 = vld [vmem:[%s650 + $0x18] sm:$0xff]
  %s655 = scalar_lea.vmem %s3, 1
  %v656 = vld [vmem:[%s655] sm:$0x1]
  %v658 = vlaneseq
  %v659 = vshrl.u32 %v658, 7
  %v660 = vsub.s32 0, %v659
  %v661 = vrot.slane %v656, %v660
  %663 = vmatprep.subr.mxu0 0.0
  %664 = vmatpush1.msra.mxu0 %v651
  %665 = vmatprep.subr.mxu0 0.0
  %666 = vmatpush1.msra.mxu0 %v652
  %667 = vmatprep.subr.mxu0 0.0
  %668 = vmatpush1.msra.mxu0 %v653
  %669 = vmatprep.subr.mxu0 0.0
  %670 = vmatpush1.msra.mxu0 %v654
  %671 = vmatprep.subr.mxu0 0.0
  %672 = vmatpush1.msra.mxu0 0.0
  %673 = vmatprep.subr.mxu0 0.0
  %674 = vmatpush1.msra.mxu0 0.0
  %675 = vmatprep.subr.mxu0 0.0
  %676 = vmatpush1.msra.mxu0 0.0
  %677 = vmatprep.subr.mxu0 0.0
  %678 = vmatpush1.msra.mxu0 0.0
  %679 = vmatprep.subr.mxu0 0.0
  %680 = vmatpush1.msra.mxu0 0.0
  %681 = vmatprep.subr.mxu0 0.0
  %682 = vmatpush1.msra.mxu0 0.0
  %683 = vmatprep.subr.mxu0 0.0
  %684 = vmatpush1.msra.mxu0 0.0
  %685 = vmatprep.subr.mxu0 0.0
  %686 = vmatpush1.msra.mxu0 0.0
  %687 = vmatprep.subr.mxu0 0.0
  %688 = vmatpush1.msra.mxu0 0.0
  %689 = vmatprep.subr.mxu0 0.0
  %690 = vmatpush1.msra.mxu0 0.0
  %691 = vmatprep.subr.mxu0 0.0
  %692 = vmatpush1.msra.mxu0 0.0
  %693 = vmatprep.subr.mxu0 0.0
  %694 = vmatpush1.msra.mxu0 0.0
  %695 = vmatprep.subr.mxu0 0.0
  %696 = vmatpush1.msra.mxu0 0.0
  %697 = vmatprep.subr.mxu0 0.0
  %698 = vmatpush1.msra.mxu0 0.0
  %699 = vmatprep.subr.mxu0 0.0
  %700 = vmatpush1.msra.mxu0 0.0
  %701 = vmatprep.subr.mxu0 0.0
  %702 = vmatpush1.msra.mxu0 0.0
  %703 = vmatprep.subr.mxu0 0.0
  %704 = vmatpush1.msra.mxu0 0.0
  %705 = vmatprep.subr.mxu0 0.0
  %706 = vmatpush1.msra.mxu0 0.0
  %707 = vmatprep.subr.mxu0 0.0
  %708 = vmatpush1.msra.mxu0 0.0
  %709 = vmatprep.subr.mxu0 0.0
  %710 = vmatpush1.msra.mxu0 0.0
  %711 = vmatprep.subr.mxu0 0.0
  %712 = vmatpush1.msra.mxu0 0.0
  %713 = vmatprep.subr.mxu0 0.0
  %714 = vmatpush1.msra.mxu0 0.0
  %715 = vmatprep.subr.mxu0 0.0
  %716 = vmatpush1.msra.mxu0 0.0
  %717 = vmatprep.subr.mxu0 0.0
  %718 = vmatpush1.msra.mxu0 0.0
  %719 = vmatprep.subr.mxu0 0.0
  %720 = vmatpush1.msra.mxu0 0.0
  %721 = vmatprep.subr.mxu0 0.0
  %722 = vmatpush1.msra.mxu0 0.0
  %723 = vmatprep.subr.mxu0 0.0
  %724 = vmatpush1.msra.mxu0 0.0
  %725 = vmatprep.subr.mxu0 0.0
  %726 = vmatpush1.msra.mxu0 0.0
  %727 = vmatprep.mubr.f32.mxu0 0.0
  %728 = vmatmul.mubr.f32.gmra.mrb[0].mxu0 %v66
  %v729 = vpop.f32.mrb[0].mxu0
  %v730 = vadd.f32 %v661, %v729
  %v731 = vpop.f32.mrb[0].mxu0
  %732 = vmatprep.mubr.f32.mxu0 0.0
  %733 = vmatmul.mubr.f32.gmra.mrb[0].mxu0 %v69
  %v734 = vpop.f32.mrb[0].mxu0
  %v735 = vadd.f32 %v661, %v734
  %v736 = vpop.f32.mrb[0].mxu0
  %737 = vdwg.mxu0
  %s738 = scalar_lea.vmem %s2, 160
  %v739 = vld [vmem:[%s738] sm:$0xff]
  %v740 = vld [vmem:[%s738 + $0x8] sm:$0xff]
  %v741 = vld [vmem:[%s738 + $0x10] sm:$0xff]
  %v742 = vld [vmem:[%s738 + $0x18] sm:$0xff]
  %s743 = scalar_lea.vmem %s3, 5
  %v744 = vld [vmem:[%s743] sm:$0x1]
  %v746 = vlaneseq
  %v747 = vshrl.u32 %v746, 7
  %v748 = vsub.s32 0, %v747
  %v749 = vrot.slane %v744, %v748
  %751 = vmatprep.subr.mxu0 0.0
  %752 = vmatpush1.msra.mxu0 %v739
  %753 = vmatprep.subr.mxu0 0.0
  %754 = vmatpush1.msra.mxu0 %v740
  %755 = vmatprep.subr.mxu0 0.0
  %756 = vmatpush1.msra.mxu0 %v741
  %757 = vmatprep.subr.mxu0 0.0
  %758 = vmatpush1.msra.mxu0 %v742
  %759 = vmatprep.subr.mxu0 0.0
  %760 = vmatpush1.msra.mxu0 0.0
  %761 = vmatprep.subr.mxu0 0.0
  %762 = vmatpush1.msra.mxu0 0.0
  %763 = vmatprep.subr.mxu0 0.0
  %764 = vmatpush1.msra.mxu0 0.0
  %765 = vmatprep.subr.mxu0 0.0
  %766 = vmatpush1.msra.mxu0 0.0
  %767 = vmatprep.subr.mxu0 0.0
  %768 = vmatpush1.msra.mxu0 0.0
  %769 = vmatprep.subr.mxu0 0.0
  %770 = vmatpush1.msra.mxu0 0.0
  %771 = vmatprep.subr.mxu0 0.0
  %772 = vmatpush1.msra.mxu0 0.0
  %773 = vmatprep.subr.mxu0 0.0
  %774 = vmatpush1.msra.mxu0 0.0
  %775 = vmatprep.subr.mxu0 0.0
  %776 = vmatpush1.msra.mxu0 0.0
  %777 = vmatprep.subr.mxu0 0.0
  %778 = vmatpush1.msra.mxu0 0.0
  %779 = vmatprep.subr.mxu0 0.0
  %780 = vmatpush1.msra.mxu0 0.0
  %781 = vmatprep.subr.mxu0 0.0
  %782 = vmatpush1.msra.mxu0 0.0
  %783 = vmatprep.subr.mxu0 0.0
  %784 = vmatpush1.msra.mxu0 0.0
  %785 = vmatprep.subr.mxu0 0.0
  %786 = vmatpush1.msra.mxu0 0.0
  %787 = vmatprep.subr.mxu0 0.0
  %788 = vmatpush1.msra.mxu0 0.0
  %789 = vmatprep.subr.mxu0 0.0
  %790 = vmatpush1.msra.mxu0 0.0
  %791 = vmatprep.subr.mxu0 0.0
  %792 = vmatpush1.msra.mxu0 0.0
  %793 = vmatprep.subr.mxu0 0.0
  %794 = vmatpush1.msra.mxu0 0.0
  %795 = vmatprep.subr.mxu0 0.0
  %796 = vmatpush1.msra.mxu0 0.0
  %797 = vmatprep.subr.mxu0 0.0
  %798 = vmatpush1.msra.mxu0 0.0
  %799 = vmatprep.subr.mxu0 0.0
  %800 = vmatpush1.msra.mxu0 0.0
  %801 = vmatprep.subr.mxu0 0.0
  %802 = vmatpush1.msra.mxu0 0.0
  %803 = vmatprep.subr.mxu0 0.0
  %804 = vmatpush1.msra.mxu0 0.0
  %805 = vmatprep.subr.mxu0 0.0
  %806 = vmatpush1.msra.mxu0 0.0
  %807 = vmatprep.subr.mxu0 0.0
  %808 = vmatpush1.msra.mxu0 0.0
  %809 = vmatprep.subr.mxu0 0.0
  %810 = vmatpush1.msra.mxu0 0.0
  %811 = vmatprep.subr.mxu0 0.0
  %812 = vmatpush1.msra.mxu0 0.0
  %813 = vmatprep.subr.mxu0 0.0
  %814 = vmatpush1.msra.mxu0 0.0
  %815 = vmatprep.mubr.f32.mxu0 0.0
  %816 = vmatmul.mubr.f32.gmra.mrb[0].mxu0 %v66
  %v817 = vpop.f32.mrb[0].mxu0
  %v818 = vadd.f32 %v749, %v817
  %v819 = vpop.f32.mrb[0].mxu0
  %820 = vmatprep.mubr.f32.mxu0 0.0
  %821 = vmatmul.mubr.f32.gmra.mrb[0].mxu0 %v69
  %v822 = vpop.f32.mrb[0].mxu0
  %v823 = vadd.f32 %v749, %v822
  %v824 = vpop.f32.mrb[0].mxu0
  %825 = vdwg.mxu0
  %s826 = scalar_lea.vmem %s2, 288
  %v827 = vld [vmem:[%s826] sm:$0xff]
  %v828 = vld [vmem:[%s826 + $0x8] sm:$0xff]
  %v829 = vld [vmem:[%s826 + $0x10] sm:$0xff]
  %v830 = vld [vmem:[%s826 + $0x18] sm:$0xff]
  %s831 = scalar_lea.vmem %s3, 9
  %v832 = vld [vmem:[%s831] sm:$0x1]
  %v834 = vlaneseq
  %v835 = vshrl.u32 %v834, 7
  %v836 = vsub.s32 0, %v835
  %v837 = vrot.slane %v832, %v836
  %839 = vmatprep.subr.mxu0 0.0
  %840 = vmatpush1.msra.mxu0 %v827
  %841 = vmatprep.subr.mxu0 0.0
  %842 = vmatpush1.msra.mxu0 %v828
  %843 = vmatprep.subr.mxu0 0.0
  %844 = vmatpush1.msra.mxu0 %v829
  %845 = vmatprep.subr.mxu0 0.0
  %846 = vmatpush1.msra.mxu0 %v830
  %847 = vmatprep.subr.mxu0 0.0
  %848 = vmatpush1.msra.mxu0 0.0
  %849 = vmatprep.subr.mxu0 0.0
  %850 = vmatpush1.msra.mxu0 0.0
  %851 = vmatprep.subr.mxu0 0.0
  %852 = vmatpush1.msra.mxu0 0.0
  %853 = vmatprep.subr.mxu0 0.0
  %854 = vmatpush1.msra.mxu0 0.0
  %855 = vmatprep.subr.mxu0 0.0
  %856 = vmatpush1.msra.mxu0 0.0
  %857 = vmatprep.subr.mxu0 0.0
  %858 = vmatpush1.msra.mxu0 0.0
  %859 = vmatprep.subr.mxu0 0.0
  %860 = vmatpush1.msra.mxu0 0.0
  %861 = vmatprep.subr.mxu0 0.0
  %862 = vmatpush1.msra.mxu0 0.0
  %863 = vmatprep.subr.mxu0 0.0
  %864 = vmatpush1.msra.mxu0 0.0
  %865 = vmatprep.subr.mxu0 0.0
  %866 = vmatpush1.msra.mxu0 0.0
  %867 = vmatprep.subr.mxu0 0.0
  %868 = vmatpush1.msra.mxu0 0.0
  %869 = vmatprep.subr.mxu0 0.0
  %870 = vmatpush1.msra.mxu0 0.0
  %871 = vmatprep.subr.mxu0 0.0
  %872 = vmatpush1.msra.mxu0 0.0
  %873 = vmatprep.subr.mxu0 0.0
  %874 = vmatpush1.msra.mxu0 0.0
  %875 = vmatprep.subr.mxu0 0.0
  %876 = vmatpush1.msra.mxu0 0.0
  %877 = vmatprep.subr.mxu0 0.0
  %878 = vmatpush1.msra.mxu0 0.0
  %879 = vmatprep.subr.mxu0 0.0
  %880 = vmatpush1.msra.mxu0 0.0
  %881 = vmatprep.subr.mxu0 0.0
  %882 = vmatpush1.msra.mxu0 0.0
  %883 = vmatprep.subr.mxu0 0.0
  %884 = vmatpush1.msra.mxu0 0.0
  %885 = vmatprep.subr.mxu0 0.0
  %886 = vmatpush1.msra.mxu0 0.0
  %887 = vmatprep.subr.mxu0 0.0
  %888 = vmatpush1.msra.mxu0 0.0
  %889 = vmatprep.subr.mxu0 0.0
  %890 = vmatpush1.msra.mxu0 0.0
  %891 = vmatprep.subr.mxu0 0.0
  %892 = vmatpush1.msra.mxu0 0.0
  %893 = vmatprep.subr.mxu0 0.0
  %894 = vmatpush1.msra.mxu0 0.0
  %895 = vmatprep.subr.mxu0 0.0
  %896 = vmatpush1.msra.mxu0 0.0
  %897 = vmatprep.subr.mxu0 0.0
  %898 = vmatpush1.msra.mxu0 0.0
  %899 = vmatprep.subr.mxu0 0.0
  %900 = vmatpush1.msra.mxu0 0.0
  %901 = vmatprep.subr.mxu0 0.0
  %902 = vmatpush1.msra.mxu0 0.0
  %903 = vmatprep.mubr.f32.mxu0 0.0
  %904 = vmatmul.mubr.f32.gmra.mrb[0].mxu0 %v248
  %v905 = vpop.f32.mrb[0].mxu0
  %v906 = vadd.f32 %v837, %v905
  %v907 = vpop.f32.mrb[0].mxu0
  %908 = vmatprep.mubr.f32.mxu0 0.0
  %909 = vmatmul.mubr.f32.gmra.mrb[0].mxu0 %v251
  %v910 = vpop.f32.mrb[0].mxu0
  %v911 = vadd.f32 %v837, %v910
  %v912 = vpop.f32.mrb[0].mxu0
  %913 = vdwg.mxu0
  %v915 = vsel %vm328, %v730, 0
  %v918 = vsel %vm328, %v818, 0
  %920 = vmatprep.subr.mxu0 0.0
  %921 = vmatpush1.xpose.msra.mxu0 %v918
  %922 = vmatprep.subr.mxu0 0.0
  %923 = vmatpush1.xpose.msra.mxu0 0.0
  %924 = vmatprep.subr.mxu0 0.0
  %925 = vmatpush1.xpose.msra.mxu0 0.0
  %926 = vmatprep.subr.mxu0 0.0
  %927 = vmatpush1.xpose.msra.mxu0 0.0
  %928 = vmatprep.subr.mxu0 0.0
  %929 = vmatpush1.xpose.msra.mxu0 0.0
  %930 = vmatprep.subr.mxu0 0.0
  %931 = vmatpush1.xpose.msra.mxu0 0.0
  %932 = vmatprep.subr.mxu0 0.0
  %933 = vmatpush1.xpose.msra.mxu0 0.0
  %934 = vmatprep.subr.mxu0 0.0
  %935 = vmatpush1.xpose.msra.mxu0 0.0
  %936 = vmatprep.subr.mxu0 0.0
  %937 = vmatpush1.xpose.msra.mxu0 0.0
  %938 = vmatprep.subr.mxu0 0.0
  %939 = vmatpush1.xpose.msra.mxu0 0.0
  %940 = vmatprep.subr.mxu0 0.0
  %941 = vmatpush1.xpose.msra.mxu0 0.0
  %942 = vmatprep.subr.mxu0 0.0
  %943 = vmatpush1.xpose.msra.mxu0 0.0
  %944 = vmatprep.subr.mxu0 0.0
  %945 = vmatpush1.xpose.msra.mxu0 0.0
  %946 = vmatprep.subr.mxu0 0.0
  %947 = vmatpush1.xpose.msra.mxu0 0.0
  %948 = vmatprep.subr.mxu0 0.0
  %949 = vmatpush1.xpose.msra.mxu0 0.0
  %950 = vmatprep.subr.mxu0 0.0
  %951 = vmatpush1.xpose.msra.mxu0 0.0
  %952 = vmatprep.subr.mxu0 0.0
  %953 = vmatpush1.xpose.msra.mxu0 0.0
  %954 = vmatprep.subr.mxu0 0.0
  %955 = vmatpush1.xpose.msra.mxu0 0.0
  %956 = vmatprep.subr.mxu0 0.0
  %957 = vmatpush1.xpose.msra.mxu0 0.0
  %958 = vmatprep.subr.mxu0 0.0
  %959 = vmatpush1.xpose.msra.mxu0 0.0
  %960 = vmatprep.subr.mxu0 0.0
  %961 = vmatpush1.xpose.msra.mxu0 0.0
  %962 = vmatprep.subr.mxu0 0.0
  %963 = vmatpush1.xpose.msra.mxu0 0.0
  %964 = vmatprep.subr.mxu0 0.0
  %965 = vmatpush1.xpose.msra.mxu0 0.0
  %966 = vmatprep.subr.mxu0 0.0
  %967 = vmatpush1.xpose.msra.mxu0 0.0
  %968 = vmatprep.subr.mxu0 0.0
  %969 = vmatpush1.xpose.msra.mxu0 0.0
  %970 = vmatprep.subr.mxu0 0.0
  %971 = vmatpush1.xpose.msra.mxu0 0.0
  %972 = vmatprep.subr.mxu0 0.0
  %973 = vmatpush1.xpose.msra.mxu0 0.0
  %974 = vmatprep.subr.mxu0 0.0
  %975 = vmatpush1.xpose.msra.mxu0 0.0
  %976 = vmatprep.subr.mxu0 0.0
  %977 = vmatpush1.xpose.msra.mxu0 0.0
  %978 = vmatprep.subr.mxu0 0.0
  %979 = vmatpush1.xpose.msra.mxu0 0.0
  %980 = vmatprep.subr.mxu0 0.0
  %981 = vmatpush1.xpose.msra.mxu0 0.0
  %982 = vmatprep.subr.mxu0 0.0
  %983 = vmatpush1.xpose.msra.mxu0 0.0
  %984 = vmatprep.mubr.f32.mxu0 0.0
  %985 = vmatmul.mubr.f32.gmra.mrb[0].mxu0 %v915
  %v986 = vpop.f32.mrb[0].mxu0
  %v987 = vadd.f32 0.0, %v986
  %v988 = vpop.f32.mrb[0].mxu0
  %989 = vdwg.mxu0
  %v991 = vsel %vm328, %v735, 0
  %v994 = vsel %vm328, %v823, 0
  %996 = vmatprep.subr.mxu0 0.0
  %997 = vmatpush1.xpose.msra.mxu0 %v994
  %998 = vmatprep.subr.mxu0 0.0
  %999 = vmatpush1.xpose.msra.mxu0 0.0
  %1000 = vmatprep.subr.mxu0 0.0
  %1001 = vmatpush1.xpose.msra.mxu0 0.0
  %1002 = vmatprep.subr.mxu0 0.0
  %1003 = vmatpush1.xpose.msra.mxu0 0.0
  %1004 = vmatprep.subr.mxu0 0.0
  %1005 = vmatpush1.xpose.msra.mxu0 0.0
  %1006 = vmatprep.subr.mxu0 0.0
  %1007 = vmatpush1.xpose.msra.mxu0 0.0
  %1008 = vmatprep.subr.mxu0 0.0
  %1009 = vmatpush1.xpose.msra.mxu0 0.0
  %1010 = vmatprep.subr.mxu0 0.0
  %1011 = vmatpush1.xpose.msra.mxu0 0.0
  %1012 = vmatprep.subr.mxu0 0.0
  %1013 = vmatpush1.xpose.msra.mxu0 0.0
  %1014 = vmatprep.subr.mxu0 0.0
  %1015 = vmatpush1.xpose.msra.mxu0 0.0
  %1016 = vmatprep.subr.mxu0 0.0
  %1017 = vmatpush1.xpose.msra.mxu0 0.0
  %1018 = vmatprep.subr.mxu0 0.0
  %1019 = vmatpush1.xpose.msra.mxu0 0.0
  %1020 = vmatprep.subr.mxu0 0.0
  %1021 = vmatpush1.xpose.msra.mxu0 0.0
  %1022 = vmatprep.subr.mxu0 0.0
  %1023 = vmatpush1.xpose.msra.mxu0 0.0
  %1024 = vmatprep.subr.mxu0 0.0
  %1025 = vmatpush1.xpose.msra.mxu0 0.0
  %1026 = vmatprep.subr.mxu0 0.0
  %1027 = vmatpush1.xpose.msra.mxu0 0.0
  %1028 = vmatprep.subr.mxu0 0.0
  %1029 = vmatpush1.xpose.msra.mxu0 0.0
  %1030 = vmatprep.subr.mxu0 0.0
  %1031 = vmatpush1.xpose.msra.mxu0 0.0
  %1032 = vmatprep.subr.mxu0 0.0
  %1033 = vmatpush1.xpose.msra.mxu0 0.0
  %1034 = vmatprep.subr.mxu0 0.0
  %1035 = vmatpush1.xpose.msra.mxu0 0.0
  %1036 = vmatprep.subr.mxu0 0.0
  %1037 = vmatpush1.xpose.msra.mxu0 0.0
  %1038 = vmatprep.subr.mxu0 0.0
  %1039 = vmatpush1.xpose.msra.mxu0 0.0
  %1040 = vmatprep.subr.mxu0 0.0
  %1041 = vmatpush1.xpose.msra.mxu0 0.0
  %1042 = vmatprep.subr.mxu0 0.0
  %1043 = vmatpush1.xpose.msra.mxu0 0.0
  %1044 = vmatprep.subr.mxu0 0.0
  %1045 = vmatpush1.xpose.msra.mxu0 0.0
  %1046 = vmatprep.subr.mxu0 0.0
  %1047 = vmatpush1.xpose.msra.mxu0 0.0
  %1048 = vmatprep.subr.mxu0 0.0
  %1049 = vmatpush1.xpose.msra.mxu0 0.0
  %1050 = vmatprep.subr.mxu0 0.0
  %1051 = vmatpush1.xpose.msra.mxu0 0.0
  %1052 = vmatprep.subr.mxu0 0.0
  %1053 = vmatpush1.xpose.msra.mxu0 0.0
  %1054 = vmatprep.subr.mxu0 0.0
  %1055 = vmatpush1.xpose.msra.mxu0 0.0
  %1056 = vmatprep.subr.mxu0 0.0
  %1057 = vmatpush1.xpose.msra.mxu0 0.0
  %1058 = vmatprep.subr.mxu0 0.0
  %1059 = vmatpush1.xpose.msra.mxu0 0.0
  %1060 = vmatprep.mubr.f32.mxu0 0.0
  %1061 = vmatmul.mubr.f32.gmra.mrb[0].mxu0 %v991
  %v1062 = vpop.f32.mrb[0].mxu0
  %v1063 = vadd.f32 0.0, %v1062
  %v1064 = vpop.f32.mrb[0].mxu0
  %1065 = vdwg.mxu0
  %v1066 = vsel %vm328, %v987, -inf
  %1067 = vmax.xlane.f32.xlu0 %v1066
  %v1068 = vpop.xlane.xlu0 %1067
  %v1069 = vsel %vm328, %v1063, -inf
  %1070 = vmax.xlane.f32.xlu0 %v1069
  %v1071 = vpop.xlane.xlu0 %1070
  %v1072 = vsub.f32 %v987, %v1068
  %v1073 = vsub.f32 %v1063, %v1071
  %v1074 = vmul.f32 %v1072, 1.442695
  %v1075 = vpow.pop %v1074
  %v1076 = vmul.f32 %v1073, 1.442695
  %v1077 = vpow.pop %v1076
  %v1078 = vsel %vm328, %v1075, 0.0
  %1079 = vadd.xlane.f32.xlu0 %v1078
  %v1080 = vpop.xlane.xlu0 %1079
  %v1081 = vsel %vm328, %v1077, 0.0
  %1082 = vadd.xlane.f32.xlu0 %v1081
  %v1083 = vpop.xlane.xlu0 %1082
  %v1084 = vrcp.pop %v1080
  %v1085 = vrcp.pop %v1083
  %v1086 = vmul.f32 %v1075, %v1084
  %v1087 = vmul.f32 %v1077, %v1085
  %v1089 = vsel %vm328, %v1086, 0
  %1091 = vmatprep.subr.mxu0 0.0
  %1092 = vmatpush1.msra.mxu0 %v906
  %1093 = vmatprep.subr.mxu0 0.0
  %1094 = vmatpush1.msra.mxu0 0.0
  %1095 = vmatprep.subr.mxu0 0.0
  %1096 = vmatpush1.msra.mxu0 0.0
  %1097 = vmatprep.subr.mxu0 0.0
  %1098 = vmatpush1.msra.mxu0 0.0
  %1099 = vmatprep.subr.mxu0 0.0
  %1100 = vmatpush1.msra.mxu0 0.0
  %1101 = vmatprep.subr.mxu0 0.0
  %1102 = vmatpush1.msra.mxu0 0.0
  %1103 = vmatprep.subr.mxu0 0.0
  %1104 = vmatpush1.msra.mxu0 0.0
  %1105 = vmatprep.subr.mxu0 0.0
  %1106 = vmatpush1.msra.mxu0 0.0
  %1107 = vmatprep.subr.mxu0 0.0
  %1108 = vmatpush1.msra.mxu0 0.0
  %1109 = vmatprep.subr.mxu0 0.0
  %1110 = vmatpush1.msra.mxu0 0.0
  %1111 = vmatprep.subr.mxu0 0.0
  %1112 = vmatpush1.msra.mxu0 0.0
  %1113 = vmatprep.subr.mxu0 0.0
  %1114 = vmatpush1.msra.mxu0 0.0
  %1115 = vmatprep.subr.mxu0 0.0
  %1116 = vmatpush1.msra.mxu0 0.0
  %1117 = vmatprep.subr.mxu0 0.0
  %1118 = vmatpush1.msra.mxu0 0.0
  %1119 = vmatprep.subr.mxu0 0.0
  %1120 = vmatpush1.msra.mxu0 0.0
  %1121 = vmatprep.subr.mxu0 0.0
  %1122 = vmatpush1.msra.mxu0 0.0
  %1123 = vmatprep.subr.mxu0 0.0
  %1124 = vmatpush1.msra.mxu0 0.0
  %1125 = vmatprep.subr.mxu0 0.0
  %1126 = vmatpush1.msra.mxu0 0.0
  %1127 = vmatprep.subr.mxu0 0.0
  %1128 = vmatpush1.msra.mxu0 0.0
  %1129 = vmatprep.subr.mxu0 0.0
  %1130 = vmatpush1.msra.mxu0 0.0
  %1131 = vmatprep.subr.mxu0 0.0
  %1132 = vmatpush1.msra.mxu0 0.0
  %1133 = vmatprep.subr.mxu0 0.0
  %1134 = vmatpush1.msra.mxu0 0.0
  %1135 = vmatprep.subr.mxu0 0.0
  %1136 = vmatpush1.msra.mxu0 0.0
  %1137 = vmatprep.subr.mxu0 0.0
  %1138 = vmatpush1.msra.mxu0 0.0
  %1139 = vmatprep.subr.mxu0 0.0
  %1140 = vmatpush1.msra.mxu0 0.0
  %1141 = vmatprep.subr.mxu0 0.0
  %1142 = vmatpush1.msra.mxu0 0.0
  %1143 = vmatprep.subr.mxu0 0.0
  %1144 = vmatpush1.msra.mxu0 0.0
  %1145 = vmatprep.subr.mxu0 0.0
  %1146 = vmatpush1.msra.mxu0 0.0
  %1147 = vmatprep.subr.mxu0 0.0
  %1148 = vmatpush1.msra.mxu0 0.0
  %1149 = vmatprep.subr.mxu0 0.0
  %1150 = vmatpush1.msra.mxu0 0.0
  %1151 = vmatprep.subr.mxu0 0.0
  %1152 = vmatpush1.msra.mxu0 0.0
  %1153 = vmatprep.subr.mxu0 0.0
  %1154 = vmatpush1.msra.mxu0 0.0
  %1155 = vmatprep.mubr.f32.mxu0 0.0
  %1156 = vmatmul.mubr.f32.gmra.mrb[0].mxu0 %v1089
  %v1157 = vpop.f32.mrb[0].mxu0
  %v1158 = vadd.f32 0.0, %v1157
  %v1159 = vpop.f32.mrb[0].mxu0
  %1160 = vdwg.mxu0
  %v1162 = vsel %vm328, %v1087, 0
  %1164 = vmatprep.subr.mxu0 0.0
  %1165 = vmatpush1.msra.mxu0 %v911
  %1166 = vmatprep.subr.mxu0 0.0
  %1167 = vmatpush1.msra.mxu0 0.0
  %1168 = vmatprep.subr.mxu0 0.0
  %1169 = vmatpush1.msra.mxu0 0.0
  %1170 = vmatprep.subr.mxu0 0.0
  %1171 = vmatpush1.msra.mxu0 0.0
  %1172 = vmatprep.subr.mxu0 0.0
  %1173 = vmatpush1.msra.mxu0 0.0
  %1174 = vmatprep.subr.mxu0 0.0
  %1175 = vmatpush1.msra.mxu0 0.0
  %1176 = vmatprep.subr.mxu0 0.0
  %1177 = vmatpush1.msra.mxu0 0.0
  %1178 = vmatprep.subr.mxu0 0.0
  %1179 = vmatpush1.msra.mxu0 0.0
  %1180 = vmatprep.subr.mxu0 0.0
  %1181 = vmatpush1.msra.mxu0 0.0
  %1182 = vmatprep.subr.mxu0 0.0
  %1183 = vmatpush1.msra.mxu0 0.0
  %1184 = vmatprep.subr.mxu0 0.0
  %1185 = vmatpush1.msra.mxu0 0.0
  %1186 = vmatprep.subr.mxu0 0.0
  %1187 = vmatpush1.msra.mxu0 0.0
  %1188 = vmatprep.subr.mxu0 0.0
  %1189 = vmatpush1.msra.mxu0 0.0
  %1190 = vmatprep.subr.mxu0 0.0
  %1191 = vmatpush1.msra.mxu0 0.0
  %1192 = vmatprep.subr.mxu0 0.0
  %1193 = vmatpush1.msra.mxu0 0.0
  %1194 = vmatprep.subr.mxu0 0.0
  %1195 = vmatpush1.msra.mxu0 0.0
  %1196 = vmatprep.subr.mxu0 0.0
  %1197 = vmatpush1.msra.mxu0 0.0
  %1198 = vmatprep.subr.mxu0 0.0
  %1199 = vmatpush1.msra.mxu0 0.0
  %1200 = vmatprep.subr.mxu0 0.0
  %1201 = vmatpush1.msra.mxu0 0.0
  %1202 = vmatprep.subr.mxu0 0.0
  %1203 = vmatpush1.msra.mxu0 0.0
  %1204 = vmatprep.subr.mxu0 0.0
  %1205 = vmatpush1.msra.mxu0 0.0
  %1206 = vmatprep.subr.mxu0 0.0
  %1207 = vmatpush1.msra.mxu0 0.0
  %1208 = vmatprep.subr.mxu0 0.0
  %1209 = vmatpush1.msra.mxu0 0.0
  %1210 = vmatprep.subr.mxu0 0.0
  %1211 = vmatpush1.msra.mxu0 0.0
  %1212 = vmatprep.subr.mxu0 0.0
  %1213 = vmatpush1.msra.mxu0 0.0
  %1214 = vmatprep.subr.mxu0 0.0
  %1215 = vmatpush1.msra.mxu0 0.0
  %1216 = vmatprep.subr.mxu0 0.0
  %1217 = vmatpush1.msra.mxu0 0.0
  %1218 = vmatprep.subr.mxu0 0.0
  %1219 = vmatpush1.msra.mxu0 0.0
  %1220 = vmatprep.subr.mxu0 0.0
  %1221 = vmatpush1.msra.mxu0 0.0
  %1222 = vmatprep.subr.mxu0 0.0
  %1223 = vmatpush1.msra.mxu0 0.0
  %1224 = vmatprep.subr.mxu0 0.0
  %1225 = vmatpush1.msra.mxu0 0.0
  %1226 = vmatprep.subr.mxu0 0.0
  %1227 = vmatpush1.msra.mxu0 0.0
  %1228 = vmatprep.mubr.f32.mxu0 0.0
  %1229 = vmatmul.mubr.f32.gmra.mrb[0].mxu0 %v1162
  %v1230 = vpop.f32.mrb[0].mxu0
  %v1231 = vadd.f32 0.0, %v1230
  %v1232 = vpop.f32.mrb[0].mxu0
  %1233 = vdwg.mxu0
  %s1234 = scalar_lea.vmem %s4, 8
  %v1235 = vld [vmem:[%s1234] sm:$0xff]
  %v1237 = vsel %vm328, %v1158, 0
  %v1240 = vsel %vm328, %v1231, 0
  %1242 = vmatprep.subr.mxu0 0.0
  %1243 = vmatpush1.msra.mxu0 %v1235
  %1244 = vmatprep.subr.mxu0 0.0
  %1245 = vmatpush1.msra.mxu0 0.0
  %1246 = vmatprep.subr.mxu0 0.0
  %1247 = vmatpush1.msra.mxu0 0.0
  %1248 = vmatprep.subr.mxu0 0.0
  %1249 = vmatpush1.msra.mxu0 0.0
  %1250 = vmatprep.subr.mxu0 0.0
  %1251 = vmatpush1.msra.mxu0 0.0
  %1252 = vmatprep.subr.mxu0 0.0
  %1253 = vmatpush1.msra.mxu0 0.0
  %1254 = vmatprep.subr.mxu0 0.0
  %1255 = vmatpush1.msra.mxu0 0.0
  %1256 = vmatprep.subr.mxu0 0.0
  %1257 = vmatpush1.msra.mxu0 0.0
  %1258 = vmatprep.subr.mxu0 0.0
  %1259 = vmatpush1.msra.mxu0 0.0
  %1260 = vmatprep.subr.mxu0 0.0
  %1261 = vmatpush1.msra.mxu0 0.0
  %1262 = vmatprep.subr.mxu0 0.0
  %1263 = vmatpush1.msra.mxu0 0.0
  %1264 = vmatprep.subr.mxu0 0.0
  %1265 = vmatpush1.msra.mxu0 0.0
  %1266 = vmatprep.subr.mxu0 0.0
  %1267 = vmatpush1.msra.mxu0 0.0
  %1268 = vmatprep.subr.mxu0 0.0
  %1269 = vmatpush1.msra.mxu0 0.0
  %1270 = vmatprep.subr.mxu0 0.0
  %1271 = vmatpush1.msra.mxu0 0.0
  %1272 = vmatprep.subr.mxu0 0.0
  %1273 = vmatpush1.msra.mxu0 0.0
  %1274 = vmatprep.subr.mxu0 0.0
  %1275 = vmatpush1.msra.mxu0 0.0
  %1276 = vmatprep.subr.mxu0 0.0
  %1277 = vmatpush1.msra.mxu0 0.0
  %1278 = vmatprep.subr.mxu0 0.0
  %1279 = vmatpush1.msra.mxu0 0.0
  %1280 = vmatprep.subr.mxu0 0.0
  %1281 = vmatpush1.msra.mxu0 0.0
  %1282 = vmatprep.subr.mxu0 0.0
  %1283 = vmatpush1.msra.mxu0 0.0
  %1284 = vmatprep.subr.mxu0 0.0
  %1285 = vmatpush1.msra.mxu0 0.0
  %1286 = vmatprep.subr.mxu0 0.0
  %1287 = vmatpush1.msra.mxu0 0.0
  %1288 = vmatprep.subr.mxu0 0.0
  %1289 = vmatpush1.msra.mxu0 0.0
  %1290 = vmatprep.subr.mxu0 0.0
  %1291 = vmatpush1.msra.mxu0 0.0
  %1292 = vmatprep.subr.mxu0 0.0
  %1293 = vmatpush1.msra.mxu0 0.0
  %1294 = vmatprep.subr.mxu0 0.0
  %1295 = vmatpush1.msra.mxu0 0.0
  %1296 = vmatprep.subr.mxu0 0.0
  %1297 = vmatpush1.msra.mxu0 0.0
  %1298 = vmatprep.subr.mxu0 0.0
  %1299 = vmatpush1.msra.mxu0 0.0
  %1300 = vmatprep.subr.mxu0 0.0
  %1301 = vmatpush1.msra.mxu0 0.0
  %1302 = vmatprep.subr.mxu0 0.0
  %1303 = vmatpush1.msra.mxu0 0.0
  %1304 = vmatprep.subr.mxu0 0.0
  %1305 = vmatpush1.msra.mxu0 0.0
  %1306 = vmatprep.mubr.f32.mxu0 0.0
  %1307 = vmatmul.mubr.f32.gmra.mrb[0].mxu0 %v1237
  %v1308 = vpop.f32.mrb[0].mxu0
  %v1309 = vadd.f32 0.0, %v1308
  %v1310 = vpop.f32.mrb[0].mxu0
  %1311 = vmatprep.mubr.f32.mxu0 0.0
  %1312 = vmatmul.mubr.f32.gmra.mrb[0].mxu0 %v1240
  %v1313 = vpop.f32.mrb[0].mxu0
  %v1314 = vadd.f32 0.0, %v1313
  %v1315 = vpop.f32.mrb[0].mxu0
  %1316 = vdwg.mxu0
  %v1318 = vsel %vm328, %v573, 0
  %v1321 = vsel %vm328, %v646, 0
  %1323 = vmatprep.subr.mxu0 0.0
  %1324 = vmatpush1.msra.mxu0 %v649
  %1325 = vmatprep.subr.mxu0 0.0
  %1326 = vmatpush1.msra.mxu0 0.0
  %1327 = vmatprep.subr.mxu0 0.0
  %1328 = vmatpush1.msra.mxu0 0.0
  %1329 = vmatprep.subr.mxu0 0.0
  %1330 = vmatpush1.msra.mxu0 0.0
  %1331 = vmatprep.subr.mxu0 0.0
  %1332 = vmatpush1.msra.mxu0 0.0
  %1333 = vmatprep.subr.mxu0 0.0
  %1334 = vmatpush1.msra.mxu0 0.0
  %1335 = vmatprep.subr.mxu0 0.0
  %1336 = vmatpush1.msra.mxu0 0.0
  %1337 = vmatprep.subr.mxu0 0.0
  %1338 = vmatpush1.msra.mxu0 0.0
  %1339 = vmatprep.subr.mxu0 0.0
  %1340 = vmatpush1.msra.mxu0 0.0
  %1341 = vmatprep.subr.mxu0 0.0
  %1342 = vmatpush1.msra.mxu0 0.0
  %1343 = vmatprep.subr.mxu0 0.0
  %1344 = vmatpush1.msra.mxu0 0.0
  %1345 = vmatprep.subr.mxu0 0.0
  %1346 = vmatpush1.msra.mxu0 0.0
  %1347 = vmatprep.subr.mxu0 0.0
  %1348 = vmatpush1.msra.mxu0 0.0
  %1349 = vmatprep.subr.mxu0 0.0
  %1350 = vmatpush1.msra.mxu0 0.0
  %1351 = vmatprep.subr.mxu0 0.0
  %1352 = vmatpush1.msra.mxu0 0.0
  %1353 = vmatprep.subr.mxu0 0.0
  %1354 = vmatpush1.msra.mxu0 0.0
  %1355 = vmatprep.subr.mxu0 0.0
  %1356 = vmatpush1.msra.mxu0 0.0
  %1357 = vmatprep.subr.mxu0 0.0
  %1358 = vmatpush1.msra.mxu0 0.0
  %1359 = vmatprep.subr.mxu0 0.0
  %1360 = vmatpush1.msra.mxu0 0.0
  %1361 = vmatprep.subr.mxu0 0.0
  %1362 = vmatpush1.msra.mxu0 0.0
  %1363 = vmatprep.subr.mxu0 0.0
  %1364 = vmatpush1.msra.mxu0 0.0
  %1365 = vmatprep.subr.mxu0 0.0
  %1366 = vmatpush1.msra.mxu0 0.0
  %1367 = vmatprep.subr.mxu0 0.0
  %1368 = vmatpush1.msra.mxu0 0.0
  %1369 = vmatprep.subr.mxu0 0.0
  %1370 = vmatpush1.msra.mxu0 0.0
  %1371 = vmatprep.subr.mxu0 0.0
  %1372 = vmatpush1.msra.mxu0 0.0
  %1373 = vmatprep.subr.mxu0 0.0
  %1374 = vmatpush1.msra.mxu0 0.0
  %1375 = vmatprep.subr.mxu0 0.0
  %1376 = vmatpush1.msra.mxu0 0.0
  %1377 = vmatprep.subr.mxu0 0.0
  %1378 = vmatpush1.msra.mxu0 0.0
  %1379 = vmatprep.subr.mxu0 0.0
  %1380 = vmatpush1.msra.mxu0 0.0
  %1381 = vmatprep.subr.mxu0 0.0
  %1382 = vmatpush1.msra.mxu0 0.0
  %1383 = vmatprep.subr.mxu0 0.0
  %1384 = vmatpush1.msra.mxu0 0.0
  %1385 = vmatprep.subr.mxu0 0.0
  %1386 = vmatpush1.msra.mxu0 0.0
  %1387 = vmatprep.mubr.f32.mxu0 0.0
  %1388 = vmatmul.mubr.f32.gmra.mrb[0].mxu0 %v1318
  %v1389 = vpop.f32.mrb[0].mxu0
  %v1390 = vadd.f32 %v1309, %v1389
  %v1391 = vpop.f32.mrb[0].mxu0
  %1392 = vmatprep.mubr.f32.mxu0 0.0
  %1393 = vmatmul.mubr.f32.gmra.mrb[0].mxu0 %v1321
  %v1394 = vpop.f32.mrb[0].mxu0
  %v1395 = vadd.f32 %v1314, %v1394
  %v1396 = vpop.f32.mrb[0].mxu0
  %1397 = vdwg.mxu0
  %s1398 = scalar_lea.vmem %s2, 64
  %v1399 = vld [vmem:[%s1398] sm:$0xff]
  %v1400 = vld [vmem:[%s1398 + $0x8] sm:$0xff]
  %v1401 = vld [vmem:[%s1398 + $0x10] sm:$0xff]
  %v1402 = vld [vmem:[%s1398 + $0x18] sm:$0xff]
  %s1403 = scalar_lea.vmem %s3, 2
  %v1404 = vld [vmem:[%s1403] sm:$0x1]
  %v1406 = vlaneseq
  %v1407 = vshrl.u32 %v1406, 7
  %v1408 = vsub.s32 0, %v1407
  %v1409 = vrot.slane %v1404, %v1408
  %1411 = vmatprep.subr.mxu0 0.0
  %1412 = vmatpush1.msra.mxu0 %v1399
  %1413 = vmatprep.subr.mxu0 0.0
  %1414 = vmatpush1.msra.mxu0 %v1400
  %1415 = vmatprep.subr.mxu0 0.0
  %1416 = vmatpush1.msra.mxu0 %v1401
  %1417 = vmatprep.subr.mxu0 0.0
  %1418 = vmatpush1.msra.mxu0 %v1402
  %1419 = vmatprep.subr.mxu0 0.0
  %1420 = vmatpush1.msra.mxu0 0.0
  %1421 = vmatprep.subr.mxu0 0.0
  %1422 = vmatpush1.msra.mxu0 0.0
  %1423 = vmatprep.subr.mxu0 0.0
  %1424 = vmatpush1.msra.mxu0 0.0
  %1425 = vmatprep.subr.mxu0 0.0
  %1426 = vmatpush1.msra.mxu0 0.0
  %1427 = vmatprep.subr.mxu0 0.0
  %1428 = vmatpush1.msra.mxu0 0.0
  %1429 = vmatprep.subr.mxu0 0.0
  %1430 = vmatpush1.msra.mxu0 0.0
  %1431 = vmatprep.subr.mxu0 0.0
  %1432 = vmatpush1.msra.mxu0 0.0
  %1433 = vmatprep.subr.mxu0 0.0
  %1434 = vmatpush1.msra.mxu0 0.0
  %1435 = vmatprep.subr.mxu0 0.0
  %1436 = vmatpush1.msra.mxu0 0.0
  %1437 = vmatprep.subr.mxu0 0.0
  %1438 = vmatpush1.msra.mxu0 0.0
  %1439 = vmatprep.subr.mxu0 0.0
  %1440 = vmatpush1.msra.mxu0 0.0
  %1441 = vmatprep.subr.mxu0 0.0
  %1442 = vmatpush1.msra.mxu0 0.0
  %1443 = vmatprep.subr.mxu0 0.0
  %1444 = vmatpush1.msra.mxu0 0.0
  %1445 = vmatprep.subr.mxu0 0.0
  %1446 = vmatpush1.msra.mxu0 0.0
  %1447 = vmatprep.subr.mxu0 0.0
  %1448 = vmatpush1.msra.mxu0 0.0
  %1449 = vmatprep.subr.mxu0 0.0
  %1450 = vmatpush1.msra.mxu0 0.0
  %1451 = vmatprep.subr.mxu0 0.0
  %1452 = vmatpush1.msra.mxu0 0.0
  %1453 = vmatprep.subr.mxu0 0.0
  %1454 = vmatpush1.msra.mxu0 0.0
  %1455 = vmatprep.subr.mxu0 0.0
  %1456 = vmatpush1.msra.mxu0 0.0
  %1457 = vmatprep.subr.mxu0 0.0
  %1458 = vmatpush1.msra.mxu0 0.0
  %1459 = vmatprep.subr.mxu0 0.0
  %1460 = vmatpush1.msra.mxu0 0.0
  %1461 = vmatprep.subr.mxu0 0.0
  %1462 = vmatpush1.msra.mxu0 0.0
  %1463 = vmatprep.subr.mxu0 0.0
  %1464 = vmatpush1.msra.mxu0 0.0
  %1465 = vmatprep.subr.mxu0 0.0
  %1466 = vmatpush1.msra.mxu0 0.0
  %1467 = vmatprep.subr.mxu0 0.0
  %1468 = vmatpush1.msra.mxu0 0.0
  %1469 = vmatprep.subr.mxu0 0.0
  %1470 = vmatpush1.msra.mxu0 0.0
  %1471 = vmatprep.subr.mxu0 0.0
  %1472 = vmatpush1.msra.mxu0 0.0
  %1473 = vmatprep.subr.mxu0 0.0
  %1474 = vmatpush1.msra.mxu0 0.0
  %1475 = vmatprep.mubr.f32.mxu0 0.0
  %1476 = vmatmul.mubr.f32.gmra.mrb[0].mxu0 %v66
  %v1477 = vpop.f32.mrb[0].mxu0
  %v1478 = vadd.f32 %v1409, %v1477
  %v1479 = vpop.f32.mrb[0].mxu0
  %1480 = vmatprep.mubr.f32.mxu0 0.0
  %1481 = vmatmul.mubr.f32.gmra.mrb[0].mxu0 %v69
  %v1482 = vpop.f32.mrb[0].mxu0
  %v1483 = vadd.f32 %v1409, %v1482
  %v1484 = vpop.f32.mrb[0].mxu0
  %1485 = vdwg.mxu0
  %s1486 = scalar_lea.vmem %s2, 192
  %v1487 = vld [vmem:[%s1486] sm:$0xff]
  %v1488 = vld [vmem:[%s1486 + $0x8] sm:$0xff]
  %v1489 = vld [vmem:[%s1486 + $0x10] sm:$0xff]
  %v1490 = vld [vmem:[%s1486 + $0x18] sm:$0xff]
  %s1491 = scalar_lea.vmem %s3, 6
  %v1492 = vld [vmem:[%s1491] sm:$0x1]
  %v1494 = vlaneseq
  %v1495 = vshrl.u32 %v1494, 7
  %v1496 = vsub.s32 0, %v1495
  %v1497 = vrot.slane %v1492, %v1496
  %1499 = vmatprep.subr.mxu0 0.0
  %1500 = vmatpush1.msra.mxu0 %v1487
  %1501 = vmatprep.subr.mxu0 0.0
  %1502 = vmatpush1.msra.mxu0 %v1488
  %1503 = vmatprep.subr.mxu0 0.0
  %1504 = vmatpush1.msra.mxu0 %v1489
  %1505 = vmatprep.subr.mxu0 0.0
  %1506 = vmatpush1.msra.mxu0 %v1490
  %1507 = vmatprep.subr.mxu0 0.0
  %1508 = vmatpush1.msra.mxu0 0.0
  %1509 = vmatprep.subr.mxu0 0.0
  %1510 = vmatpush1.msra.mxu0 0.0
  %1511 = vmatprep.subr.mxu0 0.0
  %1512 = vmatpush1.msra.mxu0 0.0
  %1513 = vmatprep.subr.mxu0 0.0
  %1514 = vmatpush1.msra.mxu0 0.0
  %1515 = vmatprep.subr.mxu0 0.0
  %1516 = vmatpush1.msra.mxu0 0.0
  %1517 = vmatprep.subr.mxu0 0.0
  %1518 = vmatpush1.msra.mxu0 0.0
  %1519 = vmatprep.subr.mxu0 0.0
  %1520 = vmatpush1.msra.mxu0 0.0
  %1521 = vmatprep.subr.mxu0 0.0
  %1522 = vmatpush1.msra.mxu0 0.0
  %1523 = vmatprep.subr.mxu0 0.0
  %1524 = vmatpush1.msra.mxu0 0.0
  %1525 = vmatprep.subr.mxu0 0.0
  %1526 = vmatpush1.msra.mxu0 0.0
  %1527 = vmatprep.subr.mxu0 0.0
  %1528 = vmatpush1.msra.mxu0 0.0
  %1529 = vmatprep.subr.mxu0 0.0
  %1530 = vmatpush1.msra.mxu0 0.0
  %1531 = vmatprep.subr.mxu0 0.0
  %1532 = vmatpush1.msra.mxu0 0.0
  %1533 = vmatprep.subr.mxu0 0.0
  %1534 = vmatpush1.msra.mxu0 0.0
  %1535 = vmatprep.subr.mxu0 0.0
  %1536 = vmatpush1.msra.mxu0 0.0
  %1537 = vmatprep.subr.mxu0 0.0
  %1538 = vmatpush1.msra.mxu0 0.0
  %1539 = vmatprep.subr.mxu0 0.0
  %1540 = vmatpush1.msra.mxu0 0.0
  %1541 = vmatprep.subr.mxu0 0.0
  %1542 = vmatpush1.msra.mxu0 0.0
  %1543 = vmatprep.subr.mxu0 0.0
  %1544 = vmatpush1.msra.mxu0 0.0
  %1545 = vmatprep.subr.mxu0 0.0
  %1546 = vmatpush1.msra.mxu0 0.0
  %1547 = vmatprep.subr.mxu0 0.0
  %1548 = vmatpush1.msra.mxu0 0.0
  %1549 = vmatprep.subr.mxu0 0.0
  %1550 = vmatpush1.msra.mxu0 0.0
  %1551 = vmatprep.subr.mxu0 0.0
  %1552 = vmatpush1.msra.mxu0 0.0
  %1553 = vmatprep.subr.mxu0 0.0
  %1554 = vmatpush1.msra.mxu0 0.0
  %1555 = vmatprep.subr.mxu0 0.0
  %1556 = vmatpush1.msra.mxu0 0.0
  %1557 = vmatprep.subr.mxu0 0.0
  %1558 = vmatpush1.msra.mxu0 0.0
  %1559 = vmatprep.subr.mxu0 0.0
  %1560 = vmatpush1.msra.mxu0 0.0
  %1561 = vmatprep.subr.mxu0 0.0
  %1562 = vmatpush1.msra.mxu0 0.0
  %1563 = vmatprep.mubr.f32.mxu0 0.0
  %1564 = vmatmul.mubr.f32.gmra.mrb[0].mxu0 %v66
  %v1565 = vpop.f32.mrb[0].mxu0
  %v1566 = vadd.f32 %v1497, %v1565
  %v1567 = vpop.f32.mrb[0].mxu0
  %1568 = vmatprep.mubr.f32.mxu0 0.0
  %1569 = vmatmul.mubr.f32.gmra.mrb[0].mxu0 %v69
  %v1570 = vpop.f32.mrb[0].mxu0
  %v1571 = vadd.f32 %v1497, %v1570
  %v1572 = vpop.f32.mrb[0].mxu0
  %1573 = vdwg.mxu0
  %s1574 = scalar_lea.vmem %s2, 320
  %v1575 = vld [vmem:[%s1574] sm:$0xff]
  %v1576 = vld [vmem:[%s1574 + $0x8] sm:$0xff]
  %v1577 = vld [vmem:[%s1574 + $0x10] sm:$0xff]
  %v1578 = vld [vmem:[%s1574 + $0x18] sm:$0xff]
  %s1579 = scalar_lea.vmem %s3, 10
  %v1580 = vld [vmem:[%s1579] sm:$0x1]
  %v1582 = vlaneseq
  %v1583 = vshrl.u32 %v1582, 7
  %v1584 = vsub.s32 0, %v1583
  %v1585 = vrot.slane %v1580, %v1584
  %1587 = vmatprep.subr.mxu0 0.0
  %1588 = vmatpush1.msra.mxu0 %v1575
  %1589 = vmatprep.subr.mxu0 0.0
  %1590 = vmatpush1.msra.mxu0 %v1576
  %1591 = vmatprep.subr.mxu0 0.0
  %1592 = vmatpush1.msra.mxu0 %v1577
  %1593 = vmatprep.subr.mxu0 0.0
  %1594 = vmatpush1.msra.mxu0 %v1578
  %1595 = vmatprep.subr.mxu0 0.0
  %1596 = vmatpush1.msra.mxu0 0.0
  %1597 = vmatprep.subr.mxu0 0.0
  %1598 = vmatpush1.msra.mxu0 0.0
  %1599 = vmatprep.subr.mxu0 0.0
  %1600 = vmatpush1.msra.mxu0 0.0
  %1601 = vmatprep.subr.mxu0 0.0
  %1602 = vmatpush1.msra.mxu0 0.0
  %1603 = vmatprep.subr.mxu0 0.0
  %1604 = vmatpush1.msra.mxu0 0.0
  %1605 = vmatprep.subr.mxu0 0.0
  %1606 = vmatpush1.msra.mxu0 0.0
  %1607 = vmatprep.subr.mxu0 0.0
  %1608 = vmatpush1.msra.mxu0 0.0
  %1609 = vmatprep.subr.mxu0 0.0
  %1610 = vmatpush1.msra.mxu0 0.0
  %1611 = vmatprep.subr.mxu0 0.0
  %1612 = vmatpush1.msra.mxu0 0.0
  %1613 = vmatprep.subr.mxu0 0.0
  %1614 = vmatpush1.msra.mxu0 0.0
  %1615 = vmatprep.subr.mxu0 0.0
  %1616 = vmatpush1.msra.mxu0 0.0
  %1617 = vmatprep.subr.mxu0 0.0
  %1618 = vmatpush1.msra.mxu0 0.0
  %1619 = vmatprep.subr.mxu0 0.0
  %1620 = vmatpush1.msra.mxu0 0.0
  %1621 = vmatprep.subr.mxu0 0.0
  %1622 = vmatpush1.msra.mxu0 0.0
  %1623 = vmatprep.subr.mxu0 0.0
  %1624 = vmatpush1.msra.mxu0 0.0
  %1625 = vmatprep.subr.mxu0 0.0
  %1626 = vmatpush1.msra.mxu0 0.0
  %1627 = vmatprep.subr.mxu0 0.0
  %1628 = vmatpush1.msra.mxu0 0.0
  %1629 = vmatprep.subr.mxu0 0.0
  %1630 = vmatpush1.msra.mxu0 0.0
  %1631 = vmatprep.subr.mxu0 0.0
  %1632 = vmatpush1.msra.mxu0 0.0
  %1633 = vmatprep.subr.mxu0 0.0
  %1634 = vmatpush1.msra.mxu0 0.0
  %1635 = vmatprep.subr.mxu0 0.0
  %1636 = vmatpush1.msra.mxu0 0.0
  %1637 = vmatprep.subr.mxu0 0.0
  %1638 = vmatpush1.msra.mxu0 0.0
  %1639 = vmatprep.subr.mxu0 0.0
  %1640 = vmatpush1.msra.mxu0 0.0
  %1641 = vmatprep.subr.mxu0 0.0
  %1642 = vmatpush1.msra.mxu0 0.0
  %1643 = vmatprep.subr.mxu0 0.0
  %1644 = vmatpush1.msra.mxu0 0.0
  %1645 = vmatprep.subr.mxu0 0.0
  %1646 = vmatpush1.msra.mxu0 0.0
  %1647 = vmatprep.subr.mxu0 0.0
  %1648 = vmatpush1.msra.mxu0 0.0
  %1649 = vmatprep.subr.mxu0 0.0
  %1650 = vmatpush1.msra.mxu0 0.0
  %1651 = vmatprep.mubr.f32.mxu0 0.0
  %1652 = vmatmul.mubr.f32.gmra.mrb[0].mxu0 %v248
  %v1653 = vpop.f32.mrb[0].mxu0
  %v1654 = vadd.f32 %v1585, %v1653
  %v1655 = vpop.f32.mrb[0].mxu0
  %1656 = vmatprep.mubr.f32.mxu0 0.0
  %1657 = vmatmul.mubr.f32.gmra.mrb[0].mxu0 %v251
  %v1658 = vpop.f32.mrb[0].mxu0
  %v1659 = vadd.f32 %v1585, %v1658
  %v1660 = vpop.f32.mrb[0].mxu0
  %1661 = vdwg.mxu0
  %v1663 = vsel %vm328, %v1478, 0
  %v1666 = vsel %vm328, %v1566, 0
  %1668 = vmatprep.subr.mxu0 0.0
  %1669 = vmatpush1.xpose.msra.mxu0 %v1666
  %1670 = vmatprep.subr.mxu0 0.0
  %1671 = vmatpush1.xpose.msra.mxu0 0.0
  %1672 = vmatprep.subr.mxu0 0.0
  %1673 = vmatpush1.xpose.msra.mxu0 0.0
  %1674 = vmatprep.subr.mxu0 0.0
  %1675 = vmatpush1.xpose.msra.mxu0 0.0
  %1676 = vmatprep.subr.mxu0 0.0
  %1677 = vmatpush1.xpose.msra.mxu0 0.0
  %1678 = vmatprep.subr.mxu0 0.0
  %1679 = vmatpush1.xpose.msra.mxu0 0.0
  %1680 = vmatprep.subr.mxu0 0.0
  %1681 = vmatpush1.xpose.msra.mxu0 0.0
  %1682 = vmatprep.subr.mxu0 0.0
  %1683 = vmatpush1.xpose.msra.mxu0 0.0
  %1684 = vmatprep.subr.mxu0 0.0
  %1685 = vmatpush1.xpose.msra.mxu0 0.0
  %1686 = vmatprep.subr.mxu0 0.0
  %1687 = vmatpush1.xpose.msra.mxu0 0.0
  %1688 = vmatprep.subr.mxu0 0.0
  %1689 = vmatpush1.xpose.msra.mxu0 0.0
  %1690 = vmatprep.subr.mxu0 0.0
  %1691 = vmatpush1.xpose.msra.mxu0 0.0
  %1692 = vmatprep.subr.mxu0 0.0
  %1693 = vmatpush1.xpose.msra.mxu0 0.0
  %1694 = vmatprep.subr.mxu0 0.0
  %1695 = vmatpush1.xpose.msra.mxu0 0.0
  %1696 = vmatprep.subr.mxu0 0.0
  %1697 = vmatpush1.xpose.msra.mxu0 0.0
  %1698 = vmatprep.subr.mxu0 0.0
  %1699 = vmatpush1.xpose.msra.mxu0 0.0
  %1700 = vmatprep.subr.mxu0 0.0
  %1701 = vmatpush1.xpose.msra.mxu0 0.0
  %1702 = vmatprep.subr.mxu0 0.0
  %1703 = vmatpush1.xpose.msra.mxu0 0.0
  %1704 = vmatprep.subr.mxu0 0.0
  %1705 = vmatpush1.xpose.msra.mxu0 0.0
  %1706 = vmatprep.subr.mxu0 0.0
  %1707 = vmatpush1.xpose.msra.mxu0 0.0
  %1708 = vmatprep.subr.mxu0 0.0
  %1709 = vmatpush1.xpose.msra.mxu0 0.0
  %1710 = vmatprep.subr.mxu0 0.0
  %1711 = vmatpush1.xpose.msra.mxu0 0.0
  %1712 = vmatprep.subr.mxu0 0.0
  %1713 = vmatpush1.xpose.msra.mxu0 0.0
  %1714 = vmatprep.subr.mxu0 0.0
  %1715 = vmatpush1.xpose.msra.mxu0 0.0
  %1716 = vmatprep.subr.mxu0 0.0
  %1717 = vmatpush1.xpose.msra.mxu0 0.0
  %1718 = vmatprep.subr.mxu0 0.0
  %1719 = vmatpush1.xpose.msra.mxu0 0.0
  %1720 = vmatprep.subr.mxu0 0.0
  %1721 = vmatpush1.xpose.msra.mxu0 0.0
  %1722 = vmatprep.subr.mxu0 0.0
  %1723 = vmatpush1.xpose.msra.mxu0 0.0
  %1724 = vmatprep.subr.mxu0 0.0
  %1725 = vmatpush1.xpose.msra.mxu0 0.0
  %1726 = vmatprep.subr.mxu0 0.0
  %1727 = vmatpush1.xpose.msra.mxu0 0.0
  %1728 = vmatprep.subr.mxu0 0.0
  %1729 = vmatpush1.xpose.msra.mxu0 0.0
  %1730 = vmatprep.subr.mxu0 0.0
  %1731 = vmatpush1.xpose.msra.mxu0 0.0
  %1732 = vmatprep.mubr.f32.mxu0 0.0
  %1733 = vmatmul.mubr.f32.gmra.mrb[0].mxu0 %v1663
  %v1734 = vpop.f32.mrb[0].mxu0
  %v1735 = vadd.f32 0.0, %v1734
  %v1736 = vpop.f32.mrb[0].mxu0
  %1737 = vdwg.mxu0
  %v1739 = vsel %vm328, %v1483, 0
  %v1742 = vsel %vm328, %v1571, 0
  %1744 = vmatprep.subr.mxu0 0.0
  %1745 = vmatpush1.xpose.msra.mxu0 %v1742
  %1746 = vmatprep.subr.mxu0 0.0
  %1747 = vmatpush1.xpose.msra.mxu0 0.0
  %1748 = vmatprep.subr.mxu0 0.0
  %1749 = vmatpush1.xpose.msra.mxu0 0.0
  %1750 = vmatprep.subr.mxu0 0.0
  %1751 = vmatpush1.xpose.msra.mxu0 0.0
  %1752 = vmatprep.subr.mxu0 0.0
  %1753 = vmatpush1.xpose.msra.mxu0 0.0
  %1754 = vmatprep.subr.mxu0 0.0
  %1755 = vmatpush1.xpose.msra.mxu0 0.0
  %1756 = vmatprep.subr.mxu0 0.0
  %1757 = vmatpush1.xpose.msra.mxu0 0.0
  %1758 = vmatprep.subr.mxu0 0.0
  %1759 = vmatpush1.xpose.msra.mxu0 0.0
  %1760 = vmatprep.subr.mxu0 0.0
  %1761 = vmatpush1.xpose.msra.mxu0 0.0
  %1762 = vmatprep.subr.mxu0 0.0
  %1763 = vmatpush1.xpose.msra.mxu0 0.0
  %1764 = vmatprep.subr.mxu0 0.0
  %1765 = vmatpush1.xpose.msra.mxu0 0.0
  %1766 = vmatprep.subr.mxu0 0.0
  %1767 = vmatpush1.xpose.msra.mxu0 0.0
  %1768 = vmatprep.subr.mxu0 0.0
  %1769 = vmatpush1.xpose.msra.mxu0 0.0
  %1770 = vmatprep.subr.mxu0 0.0
  %1771 = vmatpush1.xpose.msra.mxu0 0.0
  %1772 = vmatprep.subr.mxu0 0.0
  %1773 = vmatpush1.xpose.msra.mxu0 0.0
  %1774 = vmatprep.subr.mxu0 0.0
  %1775 = vmatpush1.xpose.msra.mxu0 0.0
  %1776 = vmatprep.subr.mxu0 0.0
  %1777 = vmatpush1.xpose.msra.mxu0 0.0
  %1778 = vmatprep.subr.mxu0 0.0
  %1779 = vmatpush1.xpose.msra.mxu0 0.0
  %1780 = vmatprep.subr.mxu0 0.0
  %1781 = vmatpush1.xpose.msra.mxu0 0.0
  %1782 = vmatprep.subr.mxu0 0.0
  %1783 = vmatpush1.xpose.msra.mxu0 0.0
  %1784 = vmatprep.subr.mxu0 0.0
  %1785 = vmatpush1.xpose.msra.mxu0 0.0
  %1786 = vmatprep.subr.mxu0 0.0
  %1787 = vmatpush1.xpose.msra.mxu0 0.0
  %1788 = vmatprep.subr.mxu0 0.0
  %1789 = vmatpush1.xpose.msra.mxu0 0.0
  %1790 = vmatprep.subr.mxu0 0.0
  %1791 = vmatpush1.xpose.msra.mxu0 0.0
  %1792 = vmatprep.subr.mxu0 0.0
  %1793 = vmatpush1.xpose.msra.mxu0 0.0
  %1794 = vmatprep.subr.mxu0 0.0
  %1795 = vmatpush1.xpose.msra.mxu0 0.0
  %1796 = vmatprep.subr.mxu0 0.0
  %1797 = vmatpush1.xpose.msra.mxu0 0.0
  %1798 = vmatprep.subr.mxu0 0.0
  %1799 = vmatpush1.xpose.msra.mxu0 0.0
  %1800 = vmatprep.subr.mxu0 0.0
  %1801 = vmatpush1.xpose.msra.mxu0 0.0
  %1802 = vmatprep.subr.mxu0 0.0
  %1803 = vmatpush1.xpose.msra.mxu0 0.0
  %1804 = vmatprep.subr.mxu0 0.0
  %1805 = vmatpush1.xpose.msra.mxu0 0.0
  %1806 = vmatprep.subr.mxu0 0.0
  %1807 = vmatpush1.xpose.msra.mxu0 0.0
  %1808 = vmatprep.mubr.f32.mxu0 0.0
  %1809 = vmatmul.mubr.f32.gmra.mrb[0].mxu0 %v1739
  %v1810 = vpop.f32.mrb[0].mxu0
  %v1811 = vadd.f32 0.0, %v1810
  %v1812 = vpop.f32.mrb[0].mxu0
  %1813 = vdwg.mxu0
  %v1814 = vsel %vm328, %v1735, -inf
  %1815 = vmax.xlane.f32.xlu0 %v1814
  %v1816 = vpop.xlane.xlu0 %1815
  %v1817 = vsel %vm328, %v1811, -inf
  %1818 = vmax.xlane.f32.xlu0 %v1817
  %v1819 = vpop.xlane.xlu0 %1818
  %v1820 = vsub.f32 %v1735, %v1816
  %v1821 = vsub.f32 %v1811, %v1819
  %v1822 = vmul.f32 %v1820, 1.442695
  %v1823 = vpow.pop %v1822
  %v1824 = vmul.f32 %v1821, 1.442695
  %v1825 = vpow.pop %v1824
  %v1826 = vsel %vm328, %v1823, 0.0
  %1827 = vadd.xlane.f32.xlu0 %v1826
  %v1828 = vpop.xlane.xlu0 %1827
  %v1829 = vsel %vm328, %v1825, 0.0
  %1830 = vadd.xlane.f32.xlu0 %v1829
  %v1831 = vpop.xlane.xlu0 %1830
  %v1832 = vrcp.pop %v1828
  %v1833 = vrcp.pop %v1831
  %v1834 = vmul.f32 %v1823, %v1832
  %v1835 = vmul.f32 %v1825, %v1833
  %v1837 = vsel %vm328, %v1834, 0
  %1839 = vmatprep.subr.mxu0 0.0
  %1840 = vmatpush1.msra.mxu0 %v1654
  %1841 = vmatprep.subr.mxu0 0.0
  %1842 = vmatpush1.msra.mxu0 0.0
  %1843 = vmatprep.subr.mxu0 0.0
  %1844 = vmatpush1.msra.mxu0 0.0
  %1845 = vmatprep.subr.mxu0 0.0
  %1846 = vmatpush1.msra.mxu0 0.0
  %1847 = vmatprep.subr.mxu0 0.0
  %1848 = vmatpush1.msra.mxu0 0.0
  %1849 = vmatprep.subr.mxu0 0.0
  %1850 = vmatpush1.msra.mxu0 0.0
  %1851 = vmatprep.subr.mxu0 0.0
  %1852 = vmatpush1.msra.mxu0 0.0
  %1853 = vmatprep.subr.mxu0 0.0
  %1854 = vmatpush1.msra.mxu0 0.0
  %1855 = vmatprep.subr.mxu0 0.0
  %1856 = vmatpush1.msra.mxu0 0.0
  %1857 = vmatprep.subr.mxu0 0.0
  %1858 = vmatpush1.msra.mxu0 0.0
  %1859 = vmatprep.subr.mxu0 0.0
  %1860 = vmatpush1.msra.mxu0 0.0
  %1861 = vmatprep.subr.mxu0 0.0
  %1862 = vmatpush1.msra.mxu0 0.0
  %1863 = vmatprep.subr.mxu0 0.0
  %1864 = vmatpush1.msra.mxu0 0.0
  %1865 = vmatprep.subr.mxu0 0.0
  %1866 = vmatpush1.msra.mxu0 0.0
  %1867 = vmatprep.subr.mxu0 0.0
  %1868 = vmatpush1.msra.mxu0 0.0
  %1869 = vmatprep.subr.mxu0 0.0
  %1870 = vmatpush1.msra.mxu0 0.0
  %1871 = vmatprep.subr.mxu0 0.0
  %1872 = vmatpush1.msra.mxu0 0.0
  %1873 = vmatprep.subr.mxu0 0.0
  %1874 = vmatpush1.msra.mxu0 0.0
  %1875 = vmatprep.subr.mxu0 0.0
  %1876 = vmatpush1.msra.mxu0 0.0
  %1877 = vmatprep.subr.mxu0 0.0
  %1878 = vmatpush1.msra.mxu0 0.0
  %1879 = vmatprep.subr.mxu0 0.0
  %1880 = vmatpush1.msra.mxu0 0.0
  %1881 = vmatprep.subr.mxu0 0.0
  %1882 = vmatpush1.msra.mxu0 0.0
  %1883 = vmatprep.subr.mxu0 0.0
  %1884 = vmatpush1.msra.mxu0 0.0
  %1885 = vmatprep.subr.mxu0 0.0
  %1886 = vmatpush1.msra.mxu0 0.0
  %1887 = vmatprep.subr.mxu0 0.0
  %1888 = vmatpush1.msra.mxu0 0.0
  %1889 = vmatprep.subr.mxu0 0.0
  %1890 = vmatpush1.msra.mxu0 0.0
  %1891 = vmatprep.subr.mxu0 0.0
  %1892 = vmatpush1.msra.mxu0 0.0
  %1893 = vmatprep.subr.mxu0 0.0
  %1894 = vmatpush1.msra.mxu0 0.0
  %1895 = vmatprep.subr.mxu0 0.0
  %1896 = vmatpush1.msra.mxu0 0.0
  %1897 = vmatprep.subr.mxu0 0.0
  %1898 = vmatpush1.msra.mxu0 0.0
  %1899 = vmatprep.subr.mxu0 0.0
  %1900 = vmatpush1.msra.mxu0 0.0
  %1901 = vmatprep.subr.mxu0 0.0
  %1902 = vmatpush1.msra.mxu0 0.0
  %1903 = vmatprep.mubr.f32.mxu0 0.0
  %1904 = vmatmul.mubr.f32.gmra.mrb[0].mxu0 %v1837
  %v1905 = vpop.f32.mrb[0].mxu0
  %v1906 = vadd.f32 0.0, %v1905
  %v1907 = vpop.f32.mrb[0].mxu0
  %1908 = vdwg.mxu0
  %v1910 = vsel %vm328, %v1835, 0
  %1912 = vmatprep.subr.mxu0 0.0
  %1913 = vmatpush1.msra.mxu0 %v1659
  %1914 = vmatprep.subr.mxu0 0.0
  %1915 = vmatpush1.msra.mxu0 0.0
  %1916 = vmatprep.subr.mxu0 0.0
  %1917 = vmatpush1.msra.mxu0 0.0
  %1918 = vmatprep.subr.mxu0 0.0
  %1919 = vmatpush1.msra.mxu0 0.0
  %1920 = vmatprep.subr.mxu0 0.0
  %1921 = vmatpush1.msra.mxu0 0.0
  %1922 = vmatprep.subr.mxu0 0.0
  %1923 = vmatpush1.msra.mxu0 0.0
  %1924 = vmatprep.subr.mxu0 0.0
  %1925 = vmatpush1.msra.mxu0 0.0
  %1926 = vmatprep.subr.mxu0 0.0
  %1927 = vmatpush1.msra.mxu0 0.0
  %1928 = vmatprep.subr.mxu0 0.0
  %1929 = vmatpush1.msra.mxu0 0.0
  %1930 = vmatprep.subr.mxu0 0.0
  %1931 = vmatpush1.msra.mxu0 0.0
  %1932 = vmatprep.subr.mxu0 0.0
  %1933 = vmatpush1.msra.mxu0 0.0
  %1934 = vmatprep.subr.mxu0 0.0
  %1935 = vmatpush1.msra.mxu0 0.0
  %1936 = vmatprep.subr.mxu0 0.0
  %1937 = vmatpush1.msra.mxu0 0.0
  %1938 = vmatprep.subr.mxu0 0.0
  %1939 = vmatpush1.msra.mxu0 0.0
  %1940 = vmatprep.subr.mxu0 0.0
  %1941 = vmatpush1.msra.mxu0 0.0
  %1942 = vmatprep.subr.mxu0 0.0
  %1943 = vmatpush1.msra.mxu0 0.0
  %1944 = vmatprep.subr.mxu0 0.0
  %1945 = vmatpush1.msra.mxu0 0.0
  %1946 = vmatprep.subr.mxu0 0.0
  %1947 = vmatpush1.msra.mxu0 0.0
  %1948 = vmatprep.subr.mxu0 0.0
  %1949 = vmatpush1.msra.mxu0 0.0
  %1950 = vmatprep.subr.mxu0 0.0
  %1951 = vmatpush1.msra.mxu0 0.0
  %1952 = vmatprep.subr.mxu0 0.0
  %1953 = vmatpush1.msra.mxu0 0.0
  %1954 = vmatprep.subr.mxu0 0.0
  %1955 = vmatpush1.msra.mxu0 0.0
  %1956 = vmatprep.subr.mxu0 0.0
  %1957 = vmatpush1.msra.mxu0 0.0
  %1958 = vmatprep.subr.mxu0 0.0
  %1959 = vmatpush1.msra.mxu0 0.0
  %1960 = vmatprep.subr.mxu0 0.0
  %1961 = vmatpush1.msra.mxu0 0.0
  %1962 = vmatprep.subr.mxu0 0.0
  %1963 = vmatpush1.msra.mxu0 0.0
  %1964 = vmatprep.subr.mxu0 0.0
  %1965 = vmatpush1.msra.mxu0 0.0
  %1966 = vmatprep.subr.mxu0 0.0
  %1967 = vmatpush1.msra.mxu0 0.0
  %1968 = vmatprep.subr.mxu0 0.0
  %1969 = vmatpush1.msra.mxu0 0.0
  %1970 = vmatprep.subr.mxu0 0.0
  %1971 = vmatpush1.msra.mxu0 0.0
  %1972 = vmatprep.subr.mxu0 0.0
  %1973 = vmatpush1.msra.mxu0 0.0
  %1974 = vmatprep.subr.mxu0 0.0
  %1975 = vmatpush1.msra.mxu0 0.0
  %1976 = vmatprep.mubr.f32.mxu0 0.0
  %1977 = vmatmul.mubr.f32.gmra.mrb[0].mxu0 %v1910
  %v1978 = vpop.f32.mrb[0].mxu0
  %v1979 = vadd.f32 0.0, %v1978
  %v1980 = vpop.f32.mrb[0].mxu0
  %1981 = vdwg.mxu0
  %s1982 = scalar_lea.vmem %s4, 16
  %v1983 = vld [vmem:[%s1982] sm:$0xff]
  %v1985 = vsel %vm328, %v1906, 0
  %v1988 = vsel %vm328, %v1979, 0
  %1990 = vmatprep.subr.mxu0 0.0
  %1991 = vmatpush1.msra.mxu0 %v1983
  %1992 = vmatprep.subr.mxu0 0.0
  %1993 = vmatpush1.msra.mxu0 0.0
  %1994 = vmatprep.subr.mxu0 0.0
  %1995 = vmatpush1.msra.mxu0 0.0
  %1996 = vmatprep.subr.mxu0 0.0
  %1997 = vmatpush1.msra.mxu0 0.0
  %1998 = vmatprep.subr.mxu0 0.0
  %1999 = vmatpush1.msra.mxu0 0.0
  %2000 = vmatprep.subr.mxu0 0.0
  %2001 = vmatpush1.msra.mxu0 0.0
  %2002 = vmatprep.subr.mxu0 0.0
  %2003 = vmatpush1.msra.mxu0 0.0
  %2004 = vmatprep.subr.mxu0 0.0
  %2005 = vmatpush1.msra.mxu0 0.0
  %2006 = vmatprep.subr.mxu0 0.0
  %2007 = vmatpush1.msra.mxu0 0.0
  %2008 = vmatprep.subr.mxu0 0.0
  %2009 = vmatpush1.msra.mxu0 0.0
  %2010 = vmatprep.subr.mxu0 0.0
  %2011 = vmatpush1.msra.mxu0 0.0
  %2012 = vmatprep.subr.mxu0 0.0
  %2013 = vmatpush1.msra.mxu0 0.0
  %2014 = vmatprep.subr.mxu0 0.0
  %2015 = vmatpush1.msra.mxu0 0.0
  %2016 = vmatprep.subr.mxu0 0.0
  %2017 = vmatpush1.msra.mxu0 0.0
  %2018 = vmatprep.subr.mxu0 0.0
  %2019 = vmatpush1.msra.mxu0 0.0
  %2020 = vmatprep.subr.mxu0 0.0
  %2021 = vmatpush1.msra.mxu0 0.0
  %2022 = vmatprep.subr.mxu0 0.0
  %2023 = vmatpush1.msra.mxu0 0.0
  %2024 = vmatprep.subr.mxu0 0.0
  %2025 = vmatpush1.msra.mxu0 0.0
  %2026 = vmatprep.subr.mxu0 0.0
  %2027 = vmatpush1.msra.mxu0 0.0
  %2028 = vmatprep.subr.mxu0 0.0
  %2029 = vmatpush1.msra.mxu0 0.0
  %2030 = vmatprep.subr.mxu0 0.0
  %2031 = vmatpush1.msra.mxu0 0.0
  %2032 = vmatprep.subr.mxu0 0.0
  %2033 = vmatpush1.msra.mxu0 0.0
  %2034 = vmatprep.subr.mxu0 0.0
  %2035 = vmatpush1.msra.mxu0 0.0
  %2036 = vmatprep.subr.mxu0 0.0
  %2037 = vmatpush1.msra.mxu0 0.0
  %2038 = vmatprep.subr.mxu0 0.0
  %2039 = vmatpush1.msra.mxu0 0.0
  %2040 = vmatprep.subr.mxu0 0.0
  %2041 = vmatpush1.msra.mxu0 0.0
  %2042 = vmatprep.subr.mxu0 0.0
  %2043 = vmatpush1.msra.mxu0 0.0
  %2044 = vmatprep.subr.mxu0 0.0
  %2045 = vmatpush1.msra.mxu0 0.0
  %2046 = vmatprep.subr.mxu0 0.0
  %2047 = vmatpush1.msra.mxu0 0.0
  %2048 = vmatprep.subr.mxu0 0.0
  %2049 = vmatpush1.msra.mxu0 0.0
  %2050 = vmatprep.subr.mxu0 0.0
  %2051 = vmatpush1.msra.mxu0 0.0
  %2052 = vmatprep.subr.mxu0 0.0
  %2053 = vmatpush1.msra.mxu0 0.0
  %2054 = vmatprep.mubr.f32.mxu0 0.0
  %2055 = vmatmul.mubr.f32.gmra.mrb[0].mxu0 %v1985
  %v2056 = vpop.f32.mrb[0].mxu0
  %v2057 = vadd.f32 0.0, %v2056
  %v2058 = vpop.f32.mrb[0].mxu0
  %2059 = vmatprep.mubr.f32.mxu0 0.0
  %2060 = vmatmul.mubr.f32.gmra.mrb[0].mxu0 %v1988
  %v2061 = vpop.f32.mrb[0].mxu0
  %v2062 = vadd.f32 0.0, %v2061
  %v2063 = vpop.f32.mrb[0].mxu0
  %2064 = vdwg.mxu0
  %v2065 = vadd.f32 %v1390, %v2057
  %v2066 = vadd.f32 %v1395, %v2062
  %s2067 = scalar_lea.vmem %s2, 96
  %v2068 = vld [vmem:[%s2067] sm:$0xff]
  %v2069 = vld [vmem:[%s2067 + $0x8] sm:$0xff]
  %v2070 = vld [vmem:[%s2067 + $0x10] sm:$0xff]
  %v2071 = vld [vmem:[%s2067 + $0x18] sm:$0xff]
  %s2072 = scalar_lea.vmem %s3, 3
  %v2073 = vld [vmem:[%s2072] sm:$0x1]
  %v2075 = vlaneseq
  %v2076 = vshrl.u32 %v2075, 7
  %v2077 = vsub.s32 0, %v2076
  %v2078 = vrot.slane %v2073, %v2077
  %2080 = vmatprep.subr.mxu0 0.0
  %2081 = vmatpush1.msra.mxu0 %v2068
  %2082 = vmatprep.subr.mxu0 0.0
  %2083 = vmatpush1.msra.mxu0 %v2069
  %2084 = vmatprep.subr.mxu0 0.0
  %2085 = vmatpush1.msra.mxu0 %v2070
  %2086 = vmatprep.subr.mxu0 0.0
  %2087 = vmatpush1.msra.mxu0 %v2071
  %2088 = vmatprep.subr.mxu0 0.0
  %2089 = vmatpush1.msra.mxu0 0.0
  %2090 = vmatprep.subr.mxu0 0.0
  %2091 = vmatpush1.msra.mxu0 0.0
  %2092 = vmatprep.subr.mxu0 0.0
  %2093 = vmatpush1.msra.mxu0 0.0
  %2094 = vmatprep.subr.mxu0 0.0
  %2095 = vmatpush1.msra.mxu0 0.0
  %2096 = vmatprep.subr.mxu0 0.0
  %2097 = vmatpush1.msra.mxu0 0.0
  %2098 = vmatprep.subr.mxu0 0.0
  %2099 = vmatpush1.msra.mxu0 0.0
  %2100 = vmatprep.subr.mxu0 0.0
  %2101 = vmatpush1.msra.mxu0 0.0
  %2102 = vmatprep.subr.mxu0 0.0
  %2103 = vmatpush1.msra.mxu0 0.0
  %2104 = vmatprep.subr.mxu0 0.0
  %2105 = vmatpush1.msra.mxu0 0.0
  %2106 = vmatprep.subr.mxu0 0.0
  %2107 = vmatpush1.msra.mxu0 0.0
  %2108 = vmatprep.subr.mxu0 0.0
  %2109 = vmatpush1.msra.mxu0 0.0
  %2110 = vmatprep.subr.mxu0 0.0
  %2111 = vmatpush1.msra.mxu0 0.0
  %2112 = vmatprep.subr.mxu0 0.0
  %2113 = vmatpush1.msra.mxu0 0.0
  %2114 = vmatprep.subr.mxu0 0.0
  %2115 = vmatpush1.msra.mxu0 0.0
  %2116 = vmatprep.subr.mxu0 0.0
  %2117 = vmatpush1.msra.mxu0 0.0
  %2118 = vmatprep.subr.mxu0 0.0
  %2119 = vmatpush1.msra.mxu0 0.0
  %2120 = vmatprep.subr.mxu0 0.0
  %2121 = vmatpush1.msra.mxu0 0.0
  %2122 = vmatprep.subr.mxu0 0.0
  %2123 = vmatpush1.msra.mxu0 0.0
  %2124 = vmatprep.subr.mxu0 0.0
  %2125 = vmatpush1.msra.mxu0 0.0
  %2126 = vmatprep.subr.mxu0 0.0
  %2127 = vmatpush1.msra.mxu0 0.0
  %2128 = vmatprep.subr.mxu0 0.0
  %2129 = vmatpush1.msra.mxu0 0.0
  %2130 = vmatprep.subr.mxu0 0.0
  %2131 = vmatpush1.msra.mxu0 0.0
  %2132 = vmatprep.subr.mxu0 0.0
  %2133 = vmatpush1.msra.mxu0 0.0
  %2134 = vmatprep.subr.mxu0 0.0
  %2135 = vmatpush1.msra.mxu0 0.0
  %2136 = vmatprep.subr.mxu0 0.0
  %2137 = vmatpush1.msra.mxu0 0.0
  %2138 = vmatprep.subr.mxu0 0.0
  %2139 = vmatpush1.msra.mxu0 0.0
  %2140 = vmatprep.subr.mxu0 0.0
  %2141 = vmatpush1.msra.mxu0 0.0
  %2142 = vmatprep.subr.mxu0 0.0
  %2143 = vmatpush1.msra.mxu0 0.0
  %2144 = vmatprep.mubr.f32.mxu0 0.0
  %2145 = vmatmul.mubr.f32.gmra.mrb[0].mxu0 %v66
  %v2146 = vpop.f32.mrb[0].mxu0
  %v2147 = vadd.f32 %v2078, %v2146
  %v2148 = vpop.f32.mrb[0].mxu0
  %2149 = vmatprep.mubr.f32.mxu0 0.0
  %2150 = vmatmul.mubr.f32.gmra.mrb[0].mxu0 %v69
  %v2151 = vpop.f32.mrb[0].mxu0
  %v2152 = vadd.f32 %v2078, %v2151
  %v2153 = vpop.f32.mrb[0].mxu0
  %2154 = vdwg.mxu0
  %s2155 = scalar_lea.vmem %s2, 224
  %v2156 = vld [vmem:[%s2155] sm:$0xff]
  %v2157 = vld [vmem:[%s2155 + $0x8] sm:$0xff]
  %v2158 = vld [vmem:[%s2155 + $0x10] sm:$0xff]
  %v2159 = vld [vmem:[%s2155 + $0x18] sm:$0xff]
  %s2160 = scalar_lea.vmem %s3, 7
  %v2161 = vld [vmem:[%s2160] sm:$0x1]
  %v2163 = vlaneseq
  %v2164 = vshrl.u32 %v2163, 7
  %v2165 = vsub.s32 0, %v2164
  %v2166 = vrot.slane %v2161, %v2165
  %2168 = vmatprep.subr.mxu0 0.0
  %2169 = vmatpush1.msra.mxu0 %v2156
  %2170 = vmatprep.subr.mxu0 0.0
  %2171 = vmatpush1.msra.mxu0 %v2157
  %2172 = vmatprep.subr.mxu0 0.0
  %2173 = vmatpush1.msra.mxu0 %v2158
  %2174 = vmatprep.subr.mxu0 0.0
  %2175 = vmatpush1.msra.mxu0 %v2159
  %2176 = vmatprep.subr.mxu0 0.0
  %2177 = vmatpush1.msra.mxu0 0.0
  %2178 = vmatprep.subr.mxu0 0.0
  %2179 = vmatpush1.msra.mxu0 0.0
  %2180 = vmatprep.subr.mxu0 0.0
  %2181 = vmatpush1.msra.mxu0 0.0
  %2182 = vmatprep.subr.mxu0 0.0
  %2183 = vmatpush1.msra.mxu0 0.0
  %2184 = vmatprep.subr.mxu0 0.0
  %2185 = vmatpush1.msra.mxu0 0.0
  %2186 = vmatprep.subr.mxu0 0.0
  %2187 = vmatpush1.msra.mxu0 0.0
  %2188 = vmatprep.subr.mxu0 0.0
  %2189 = vmatpush1.msra.mxu0 0.0
  %2190 = vmatprep.subr.mxu0 0.0
  %2191 = vmatpush1.msra.mxu0 0.0
  %2192 = vmatprep.subr.mxu0 0.0
  %2193 = vmatpush1.msra.mxu0 0.0
  %2194 = vmatprep.subr.mxu0 0.0
  %2195 = vmatpush1.msra.mxu0 0.0
  %2196 = vmatprep.subr.mxu0 0.0
  %2197 = vmatpush1.msra.mxu0 0.0
  %2198 = vmatprep.subr.mxu0 0.0
  %2199 = vmatpush1.msra.mxu0 0.0
  %2200 = vmatprep.subr.mxu0 0.0
  %2201 = vmatpush1.msra.mxu0 0.0
  %2202 = vmatprep.subr.mxu0 0.0
  %2203 = vmatpush1.msra.mxu0 0.0
  %2204 = vmatprep.subr.mxu0 0.0
  %2205 = vmatpush1.msra.mxu0 0.0
  %2206 = vmatprep.subr.mxu0 0.0
  %2207 = vmatpush1.msra.mxu0 0.0
  %2208 = vmatprep.subr.mxu0 0.0
  %2209 = vmatpush1.msra.mxu0 0.0
  %2210 = vmatprep.subr.mxu0 0.0
  %2211 = vmatpush1.msra.mxu0 0.0
  %2212 = vmatprep.subr.mxu0 0.0
  %2213 = vmatpush1.msra.mxu0 0.0
  %2214 = vmatprep.subr.mxu0 0.0
  %2215 = vmatpush1.msra.mxu0 0.0
  %2216 = vmatprep.subr.mxu0 0.0
  %2217 = vmatpush1.msra.mxu0 0.0
  %2218 = vmatprep.subr.mxu0 0.0
  %2219 = vmatpush1.msra.mxu0 0.0
  %2220 = vmatprep.subr.mxu0 0.0
  %2221 = vmatpush1.msra.mxu0 0.0
  %2222 = vmatprep.subr.mxu0 0.0
  %2223 = vmatpush1.msra.mxu0 0.0
  %2224 = vmatprep.subr.mxu0 0.0
  %2225 = vmatpush1.msra.mxu0 0.0
  %2226 = vmatprep.subr.mxu0 0.0
  %2227 = vmatpush1.msra.mxu0 0.0
  %2228 = vmatprep.subr.mxu0 0.0
  %2229 = vmatpush1.msra.mxu0 0.0
  %2230 = vmatprep.subr.mxu0 0.0
  %2231 = vmatpush1.msra.mxu0 0.0
  %2232 = vmatprep.mubr.f32.mxu0 0.0
  %2233 = vmatmul.mubr.f32.gmra.mrb[0].mxu0 %v66
  %v2234 = vpop.f32.mrb[0].mxu0
  %v2235 = vadd.f32 %v2166, %v2234
  %v2236 = vpop.f32.mrb[0].mxu0
  %2237 = vmatprep.mubr.f32.mxu0 0.0
  %2238 = vmatmul.mubr.f32.gmra.mrb[0].mxu0 %v69
  %v2239 = vpop.f32.mrb[0].mxu0
  %v2240 = vadd.f32 %v2166, %v2239
  %v2241 = vpop.f32.mrb[0].mxu0
  %2242 = vdwg.mxu0
  %s2243 = scalar_lea.vmem %s2, 352
  %v2244 = vld [vmem:[%s2243] sm:$0xff]
  %v2245 = vld [vmem:[%s2243 + $0x8] sm:$0xff]
  %v2246 = vld [vmem:[%s2243 + $0x10] sm:$0xff]
  %v2247 = vld [vmem:[%s2243 + $0x18] sm:$0xff]
  %s2248 = scalar_lea.vmem %s3, 11
  %v2249 = vld [vmem:[%s2248] sm:$0x1]
  %v2251 = vlaneseq
  %v2252 = vshrl.u32 %v2251, 7
  %v2253 = vsub.s32 0, %v2252
  %v2254 = vrot.slane %v2249, %v2253
  %2256 = vmatprep.subr.mxu0 0.0
  %2257 = vmatpush1.msra.mxu0 %v2244
  %2258 = vmatprep.subr.mxu0 0.0
  %2259 = vmatpush1.msra.mxu0 %v2245
  %2260 = vmatprep.subr.mxu0 0.0
  %2261 = vmatpush1.msra.mxu0 %v2246
  %2262 = vmatprep.subr.mxu0 0.0
  %2263 = vmatpush1.msra.mxu0 %v2247
  %2264 = vmatprep.subr.mxu0 0.0
  %2265 = vmatpush1.msra.mxu0 0.0
  %2266 = vmatprep.subr.mxu0 0.0
  %2267 = vmatpush1.msra.mxu0 0.0
  %2268 = vmatprep.subr.mxu0 0.0
  %2269 = vmatpush1.msra.mxu0 0.0
  %2270 = vmatprep.subr.mxu0 0.0
  %2271 = vmatpush1.msra.mxu0 0.0
  %2272 = vmatprep.subr.mxu0 0.0
  %2273 = vmatpush1.msra.mxu0 0.0
  %2274 = vmatprep.subr.mxu0 0.0
  %2275 = vmatpush1.msra.mxu0 0.0
  %2276 = vmatprep.subr.mxu0 0.0
  %2277 = vmatpush1.msra.mxu0 0.0
  %2278 = vmatprep.subr.mxu0 0.0
  %2279 = vmatpush1.msra.mxu0 0.0
  %2280 = vmatprep.subr.mxu0 0.0
  %2281 = vmatpush1.msra.mxu0 0.0
  %2282 = vmatprep.subr.mxu0 0.0
  %2283 = vmatpush1.msra.mxu0 0.0
  %2284 = vmatprep.subr.mxu0 0.0
  %2285 = vmatpush1.msra.mxu0 0.0
  %2286 = vmatprep.subr.mxu0 0.0
  %2287 = vmatpush1.msra.mxu0 0.0
  %2288 = vmatprep.subr.mxu0 0.0
  %2289 = vmatpush1.msra.mxu0 0.0
  %2290 = vmatprep.subr.mxu0 0.0
  %2291 = vmatpush1.msra.mxu0 0.0
  %2292 = vmatprep.subr.mxu0 0.0
  %2293 = vmatpush1.msra.mxu0 0.0
  %2294 = vmatprep.subr.mxu0 0.0
  %2295 = vmatpush1.msra.mxu0 0.0
  %2296 = vmatprep.subr.mxu0 0.0
  %2297 = vmatpush1.msra.mxu0 0.0
  %2298 = vmatprep.subr.mxu0 0.0
  %2299 = vmatpush1.msra.mxu0 0.0
  %2300 = vmatprep.subr.mxu0 0.0
  %2301 = vmatpush1.msra.mxu0 0.0
  %2302 = vmatprep.subr.mxu0 0.0
  %2303 = vmatpush1.msra.mxu0 0.0
  %2304 = vmatprep.subr.mxu0 0.0
  %2305 = vmatpush1.msra.mxu0 0.0
  %2306 = vmatprep.subr.mxu0 0.0
  %2307 = vmatpush1.msra.mxu0 0.0
  %2308 = vmatprep.subr.mxu0 0.0
  %2309 = vmatpush1.msra.mxu0 0.0
  %2310 = vmatprep.subr.mxu0 0.0
  %2311 = vmatpush1.msra.mxu0 0.0
  %2312 = vmatprep.subr.mxu0 0.0
  %2313 = vmatpush1.msra.mxu0 0.0
  %2314 = vmatprep.subr.mxu0 0.0
  %2315 = vmatpush1.msra.mxu0 0.0
  %2316 = vmatprep.subr.mxu0 0.0
  %2317 = vmatpush1.msra.mxu0 0.0
  %2318 = vmatprep.subr.mxu0 0.0
  %2319 = vmatpush1.msra.mxu0 0.0
  %2320 = vmatprep.mubr.f32.mxu0 0.0
  %2321 = vmatmul.mubr.f32.gmra.mrb[0].mxu0 %v248
  %v2322 = vpop.f32.mrb[0].mxu0
  %v2323 = vadd.f32 %v2254, %v2322
  %v2324 = vpop.f32.mrb[0].mxu0
  %2325 = vmatprep.mubr.f32.mxu0 0.0
  %2326 = vmatmul.mubr.f32.gmra.mrb[0].mxu0 %v251
  %v2327 = vpop.f32.mrb[0].mxu0
  %v2328 = vadd.f32 %v2254, %v2327
  %v2329 = vpop.f32.mrb[0].mxu0
  %2330 = vdwg.mxu0
  %v2332 = vsel %vm328, %v2147, 0
  %v2335 = vsel %vm328, %v2235, 0
  %2337 = vmatprep.subr.mxu0 0.0
  %2338 = vmatpush1.xpose.msra.mxu0 %v2335
  %2339 = vmatprep.subr.mxu0 0.0
  %2340 = vmatpush1.xpose.msra.mxu0 0.0
  %2341 = vmatprep.subr.mxu0 0.0
  %2342 = vmatpush1.xpose.msra.mxu0 0.0
  %2343 = vmatprep.subr.mxu0 0.0
  %2344 = vmatpush1.xpose.msra.mxu0 0.0
  %2345 = vmatprep.subr.mxu0 0.0
  %2346 = vmatpush1.xpose.msra.mxu0 0.0
  %2347 = vmatprep.subr.mxu0 0.0
  %2348 = vmatpush1.xpose.msra.mxu0 0.0
  %2349 = vmatprep.subr.mxu0 0.0
  %2350 = vmatpush1.xpose.msra.mxu0 0.0
  %2351 = vmatprep.subr.mxu0 0.0
  %2352 = vmatpush1.xpose.msra.mxu0 0.0
  %2353 = vmatprep.subr.mxu0 0.0
  %2354 = vmatpush1.xpose.msra.mxu0 0.0
  %2355 = vmatprep.subr.mxu0 0.0
  %2356 = vmatpush1.xpose.msra.mxu0 0.0
  %2357 = vmatprep.subr.mxu0 0.0
  %2358 = vmatpush1.xpose.msra.mxu0 0.0
  %2359 = vmatprep.subr.mxu0 0.0
  %2360 = vmatpush1.xpose.msra.mxu0 0.0
  %2361 = vmatprep.subr.mxu0 0.0
  %2362 = vmatpush1.xpose.msra.mxu0 0.0
  %2363 = vmatprep.subr.mxu0 0.0
  %2364 = vmatpush1.xpose.msra.mxu0 0.0
  %2365 = vmatprep.subr.mxu0 0.0
  %2366 = vmatpush1.xpose.msra.mxu0 0.0
  %2367 = vmatprep.subr.mxu0 0.0
  %2368 = vmatpush1.xpose.msra.mxu0 0.0
  %2369 = vmatprep.subr.mxu0 0.0
  %2370 = vmatpush1.xpose.msra.mxu0 0.0
  %2371 = vmatprep.subr.mxu0 0.0
  %2372 = vmatpush1.xpose.msra.mxu0 0.0
  %2373 = vmatprep.subr.mxu0 0.0
  %2374 = vmatpush1.xpose.msra.mxu0 0.0
  %2375 = vmatprep.subr.mxu0 0.0
  %2376 = vmatpush1.xpose.msra.mxu0 0.0
  %2377 = vmatprep.subr.mxu0 0.0
  %2378 = vmatpush1.xpose.msra.mxu0 0.0
  %2379 = vmatprep.subr.mxu0 0.0
  %2380 = vmatpush1.xpose.msra.mxu0 0.0
  %2381 = vmatprep.subr.mxu0 0.0
  %2382 = vmatpush1.xpose.msra.mxu0 0.0
  %2383 = vmatprep.subr.mxu0 0.0
  %2384 = vmatpush1.xpose.msra.mxu0 0.0
  %2385 = vmatprep.subr.mxu0 0.0
  %2386 = vmatpush1.xpose.msra.mxu0 0.0
  %2387 = vmatprep.subr.mxu0 0.0
  %2388 = vmatpush1.xpose.msra.mxu0 0.0
  %2389 = vmatprep.subr.mxu0 0.0
  %2390 = vmatpush1.xpose.msra.mxu0 0.0
  %2391 = vmatprep.subr.mxu0 0.0
  %2392 = vmatpush1.xpose.msra.mxu0 0.0
  %2393 = vmatprep.subr.mxu0 0.0
  %2394 = vmatpush1.xpose.msra.mxu0 0.0
  %2395 = vmatprep.subr.mxu0 0.0
  %2396 = vmatpush1.xpose.msra.mxu0 0.0
  %2397 = vmatprep.subr.mxu0 0.0
  %2398 = vmatpush1.xpose.msra.mxu0 0.0
  %2399 = vmatprep.subr.mxu0 0.0
  %2400 = vmatpush1.xpose.msra.mxu0 0.0
  %2401 = vmatprep.mubr.f32.mxu0 0.0
  %2402 = vmatmul.mubr.f32.gmra.mrb[0].mxu0 %v2332
  %v2403 = vpop.f32.mrb[0].mxu0
  %v2404 = vadd.f32 0.0, %v2403
  %v2405 = vpop.f32.mrb[0].mxu0
  %2406 = vdwg.mxu0
  %v2408 = vsel %vm328, %v2152, 0
  %v2411 = vsel %vm328, %v2240, 0
  %2413 = vmatprep.subr.mxu0 0.0
  %2414 = vmatpush1.xpose.msra.mxu0 %v2411
  %2415 = vmatprep.subr.mxu0 0.0
  %2416 = vmatpush1.xpose.msra.mxu0 0.0
  %2417 = vmatprep.subr.mxu0 0.0
  %2418 = vmatpush1.xpose.msra.mxu0 0.0
  %2419 = vmatprep.subr.mxu0 0.0
  %2420 = vmatpush1.xpose.msra.mxu0 0.0
  %2421 = vmatprep.subr.mxu0 0.0
  %2422 = vmatpush1.xpose.msra.mxu0 0.0
  %2423 = vmatprep.subr.mxu0 0.0
  %2424 = vmatpush1.xpose.msra.mxu0 0.0
  %2425 = vmatprep.subr.mxu0 0.0
  %2426 = vmatpush1.xpose.msra.mxu0 0.0
  %2427 = vmatprep.subr.mxu0 0.0
  %2428 = vmatpush1.xpose.msra.mxu0 0.0
  %2429 = vmatprep.subr.mxu0 0.0
  %2430 = vmatpush1.xpose.msra.mxu0 0.0
  %2431 = vmatprep.subr.mxu0 0.0
  %2432 = vmatpush1.xpose.msra.mxu0 0.0
  %2433 = vmatprep.subr.mxu0 0.0
  %2434 = vmatpush1.xpose.msra.mxu0 0.0
  %2435 = vmatprep.subr.mxu0 0.0
  %2436 = vmatpush1.xpose.msra.mxu0 0.0
  %2437 = vmatprep.subr.mxu0 0.0
  %2438 = vmatpush1.xpose.msra.mxu0 0.0
  %2439 = vmatprep.subr.mxu0 0.0
  %2440 = vmatpush1.xpose.msra.mxu0 0.0
  %2441 = vmatprep.subr.mxu0 0.0
  %2442 = vmatpush1.xpose.msra.mxu0 0.0
  %2443 = vmatprep.subr.mxu0 0.0
  %2444 = vmatpush1.xpose.msra.mxu0 0.0
  %2445 = vmatprep.subr.mxu0 0.0
  %2446 = vmatpush1.xpose.msra.mxu0 0.0
  %2447 = vmatprep.subr.mxu0 0.0
  %2448 = vmatpush1.xpose.msra.mxu0 0.0
  %2449 = vmatprep.subr.mxu0 0.0
  %2450 = vmatpush1.xpose.msra.mxu0 0.0
  %2451 = vmatprep.subr.mxu0 0.0
  %2452 = vmatpush1.xpose.msra.mxu0 0.0
  %2453 = vmatprep.subr.mxu0 0.0
  %2454 = vmatpush1.xpose.msra.mxu0 0.0
  %2455 = vmatprep.subr.mxu0 0.0
  %2456 = vmatpush1.xpose.msra.mxu0 0.0
  %2457 = vmatprep.subr.mxu0 0.0
  %2458 = vmatpush1.xpose.msra.mxu0 0.0
  %2459 = vmatprep.subr.mxu0 0.0
  %2460 = vmatpush1.xpose.msra.mxu0 0.0
  %2461 = vmatprep.subr.mxu0 0.0
  %2462 = vmatpush1.xpose.msra.mxu0 0.0
  %2463 = vmatprep.subr.mxu0 0.0
  %2464 = vmatpush1.xpose.msra.mxu0 0.0
  %2465 = vmatprep.subr.mxu0 0.0
  %2466 = vmatpush1.xpose.msra.mxu0 0.0
  %2467 = vmatprep.subr.mxu0 0.0
  %2468 = vmatpush1.xpose.msra.mxu0 0.0
  %2469 = vmatprep.subr.mxu0 0.0
  %2470 = vmatpush1.xpose.msra.mxu0 0.0
  %2471 = vmatprep.subr.mxu0 0.0
  %2472 = vmatpush1.xpose.msra.mxu0 0.0
  %2473 = vmatprep.subr.mxu0 0.0
  %2474 = vmatpush1.xpose.msra.mxu0 0.0
  %2475 = vmatprep.subr.mxu0 0.0
  %2476 = vmatpush1.xpose.msra.mxu0 0.0
  %2477 = vmatprep.mubr.f32.mxu0 0.0
  %2478 = vmatmul.mubr.f32.gmra.mrb[0].mxu0 %v2408
  %v2479 = vpop.f32.mrb[0].mxu0
  %v2480 = vadd.f32 0.0, %v2479
  %v2481 = vpop.f32.mrb[0].mxu0
  %2482 = vdwg.mxu0
  %v2483 = vsel %vm328, %v2404, -inf
  %2484 = vmax.xlane.f32.xlu0 %v2483
  %v2485 = vpop.xlane.xlu0 %2484
  %v2486 = vsel %vm328, %v2480, -inf
  %2487 = vmax.xlane.f32.xlu0 %v2486
  %v2488 = vpop.xlane.xlu0 %2487
  %v2489 = vsub.f32 %v2404, %v2485
  %v2490 = vsub.f32 %v2480, %v2488
  %v2491 = vmul.f32 %v2489, 1.442695
  %v2492 = vpow.pop %v2491
  %v2493 = vmul.f32 %v2490, 1.442695
  %v2494 = vpow.pop %v2493
  %v2495 = vsel %vm328, %v2492, 0.0
  %2496 = vadd.xlane.f32.xlu0 %v2495
  %v2497 = vpop.xlane.xlu0 %2496
  %v2498 = vsel %vm328, %v2494, 0.0
  %2499 = vadd.xlane.f32.xlu0 %v2498
  %v2500 = vpop.xlane.xlu0 %2499
  %v2501 = vrcp.pop %v2497
  %v2502 = vrcp.pop %v2500
  %v2503 = vmul.f32 %v2492, %v2501
  %v2504 = vmul.f32 %v2494, %v2502
  %v2506 = vsel %vm328, %v2503, 0
  %2508 = vmatprep.subr.mxu0 0.0
  %2509 = vmatpush1.msra.mxu0 %v2323
  %2510 = vmatprep.subr.mxu0 0.0
  %2511 = vmatpush1.msra.mxu0 0.0
  %2512 = vmatprep.subr.mxu0 0.0
  %2513 = vmatpush1.msra.mxu0 0.0
  %2514 = vmatprep.subr.mxu0 0.0
  %2515 = vmatpush1.msra.mxu0 0.0
  %2516 = vmatprep.subr.mxu0 0.0
  %2517 = vmatpush1.msra.mxu0 0.0
  %2518 = vmatprep.subr.mxu0 0.0
  %2519 = vmatpush1.msra.mxu0 0.0
  %2520 = vmatprep.subr.mxu0 0.0
  %2521 = vmatpush1.msra.mxu0 0.0
  %2522 = vmatprep.subr.mxu0 0.0
  %2523 = vmatpush1.msra.mxu0 0.0
  %2524 = vmatprep.subr.mxu0 0.0
  %2525 = vmatpush1.msra.mxu0 0.0
  %2526 = vmatprep.subr.mxu0 0.0
  %2527 = vmatpush1.msra.mxu0 0.0
  %2528 = vmatprep.subr.mxu0 0.0
  %2529 = vmatpush1.msra.mxu0 0.0
  %2530 = vmatprep.subr.mxu0 0.0
  %2531 = vmatpush1.msra.mxu0 0.0
  %2532 = vmatprep.subr.mxu0 0.0
  %2533 = vmatpush1.msra.mxu0 0.0
  %2534 = vmatprep.subr.mxu0 0.0
  %2535 = vmatpush1.msra.mxu0 0.0
  %2536 = vmatprep.subr.mxu0 0.0
  %2537 = vmatpush1.msra.mxu0 0.0
  %2538 = vmatprep.subr.mxu0 0.0
  %2539 = vmatpush1.msra.mxu0 0.0
  %2540 = vmatprep.subr.mxu0 0.0
  %2541 = vmatpush1.msra.mxu0 0.0
  %2542 = vmatprep.subr.mxu0 0.0
  %2543 = vmatpush1.msra.mxu0 0.0
  %2544 = vmatprep.subr.mxu0 0.0
  %2545 = vmatpush1.msra.mxu0 0.0
  %2546 = vmatprep.subr.mxu0 0.0
  %2547 = vmatpush1.msra.mxu0 0.0
  %2548 = vmatprep.subr.mxu0 0.0
  %2549 = vmatpush1.msra.mxu0 0.0
  %2550 = vmatprep.subr.mxu0 0.0
  %2551 = vmatpush1.msra.mxu0 0.0
  %2552 = vmatprep.subr.mxu0 0.0
  %2553 = vmatpush1.msra.mxu0 0.0
  %2554 = vmatprep.subr.mxu0 0.0
  %2555 = vmatpush1.msra.mxu0 0.0
  %2556 = vmatprep.subr.mxu0 0.0
  %2557 = vmatpush1.msra.mxu0 0.0
  %2558 = vmatprep.subr.mxu0 0.0
  %2559 = vmatpush1.msra.mxu0 0.0
  %2560 = vmatprep.subr.mxu0 0.0
  %2561 = vmatpush1.msra.mxu0 0.0
  %2562 = vmatprep.subr.mxu0 0.0
  %2563 = vmatpush1.msra.mxu0 0.0
  %2564 = vmatprep.subr.mxu0 0.0
  %2565 = vmatpush1.msra.mxu0 0.0
  %2566 = vmatprep.subr.mxu0 0.0
  %2567 = vmatpush1.msra.mxu0 0.0
  %2568 = vmatprep.subr.mxu0 0.0
  %2569 = vmatpush1.msra.mxu0 0.0
  %2570 = vmatprep.subr.mxu0 0.0
  %2571 = vmatpush1.msra.mxu0 0.0
  %2572 = vmatprep.mubr.f32.mxu0 0.0
  %2573 = vmatmul.mubr.f32.gmra.mrb[0].mxu0 %v2506
  %v2574 = vpop.f32.mrb[0].mxu0
  %v2575 = vadd.f32 0.0, %v2574
  %v2576 = vpop.f32.mrb[0].mxu0
  %2577 = vdwg.mxu0
  %v2579 = vsel %vm328, %v2504, 0
  %2581 = vmatprep.subr.mxu0 0.0
  %2582 = vmatpush1.msra.mxu0 %v2328
  %2583 = vmatprep.subr.mxu0 0.0
  %2584 = vmatpush1.msra.mxu0 0.0
  %2585 = vmatprep.subr.mxu0 0.0
  %2586 = vmatpush1.msra.mxu0 0.0
  %2587 = vmatprep.subr.mxu0 0.0
  %2588 = vmatpush1.msra.mxu0 0.0
  %2589 = vmatprep.subr.mxu0 0.0
  %2590 = vmatpush1.msra.mxu0 0.0
  %2591 = vmatprep.subr.mxu0 0.0
  %2592 = vmatpush1.msra.mxu0 0.0
  %2593 = vmatprep.subr.mxu0 0.0
  %2594 = vmatpush1.msra.mxu0 0.0
  %2595 = vmatprep.subr.mxu0 0.0
  %2596 = vmatpush1.msra.mxu0 0.0
  %2597 = vmatprep.subr.mxu0 0.0
  %2598 = vmatpush1.msra.mxu0 0.0
  %2599 = vmatprep.subr.mxu0 0.0
  %2600 = vmatpush1.msra.mxu0 0.0
  %2601 = vmatprep.subr.mxu0 0.0
  %2602 = vmatpush1.msra.mxu0 0.0
  %2603 = vmatprep.subr.mxu0 0.0
  %2604 = vmatpush1.msra.mxu0 0.0
  %2605 = vmatprep.subr.mxu0 0.0
  %2606 = vmatpush1.msra.mxu0 0.0
  %2607 = vmatprep.subr.mxu0 0.0
  %2608 = vmatpush1.msra.mxu0 0.0
  %2609 = vmatprep.subr.mxu0 0.0
  %2610 = vmatpush1.msra.mxu0 0.0
  %2611 = vmatprep.subr.mxu0 0.0
  %2612 = vmatpush1.msra.mxu0 0.0
  %2613 = vmatprep.subr.mxu0 0.0
  %2614 = vmatpush1.msra.mxu0 0.0
  %2615 = vmatprep.subr.mxu0 0.0
  %2616 = vmatpush1.msra.mxu0 0.0
  %2617 = vmatprep.subr.mxu0 0.0
  %2618 = vmatpush1.msra.mxu0 0.0
  %2619 = vmatprep.subr.mxu0 0.0
  %2620 = vmatpush1.msra.mxu0 0.0
  %2621 = vmatprep.subr.mxu0 0.0
  %2622 = vmatpush1.msra.mxu0 0.0
  %2623 = vmatprep.subr.mxu0 0.0
  %2624 = vmatpush1.msra.mxu0 0.0
  %2625 = vmatprep.subr.mxu0 0.0
  %2626 = vmatpush1.msra.mxu0 0.0
  %2627 = vmatprep.subr.mxu0 0.0
  %2628 = vmatpush1.msra.mxu0 0.0
  %2629 = vmatprep.subr.mxu0 0.0
  %2630 = vmatpush1.msra.mxu0 0.0
  %2631 = vmatprep.subr.mxu0 0.0
  %2632 = vmatpush1.msra.mxu0 0.0
  %2633 = vmatprep.subr.mxu0 0.0
  %2634 = vmatpush1.msra.mxu0 0.0
  %2635 = vmatprep.subr.mxu0 0.0
  %2636 = vmatpush1.msra.mxu0 0.0
  %2637 = vmatprep.subr.mxu0 0.0
  %2638 = vmatpush1.msra.mxu0 0.0
  %2639 = vmatprep.subr.mxu0 0.0
  %2640 = vmatpush1.msra.mxu0 0.0
  %2641 = vmatprep.subr.mxu0 0.0
  %2642 = vmatpush1.msra.mxu0 0.0
  %2643 = vmatprep.subr.mxu0 0.0
  %2644 = vmatpush1.msra.mxu0 0.0
  %2645 = vmatprep.mubr.f32.mxu0 0.0
  %2646 = vmatmul.mubr.f32.gmra.mrb[0].mxu0 %v2579
  %v2647 = vpop.f32.mrb[0].mxu0
  %v2648 = vadd.f32 0.0, %v2647
  %v2649 = vpop.f32.mrb[0].mxu0
  %2650 = vdwg.mxu0
  %s2651 = scalar_lea.vmem %s4, 24
  %v2652 = vld [vmem:[%s2651] sm:$0xff]
  %v2654 = vsel %vm328, %v2575, 0
  %v2657 = vsel %vm328, %v2648, 0
  %2659 = vmatprep.subr.mxu0 0.0
  %2660 = vmatpush1.msra.mxu0 %v2652
  %2661 = vmatprep.subr.mxu0 0.0
  %2662 = vmatpush1.msra.mxu0 0.0
  %2663 = vmatprep.subr.mxu0 0.0
  %2664 = vmatpush1.msra.mxu0 0.0
  %2665 = vmatprep.subr.mxu0 0.0
  %2666 = vmatpush1.msra.mxu0 0.0
  %2667 = vmatprep.subr.mxu0 0.0
  %2668 = vmatpush1.msra.mxu0 0.0
  %2669 = vmatprep.subr.mxu0 0.0
  %2670 = vmatpush1.msra.mxu0 0.0
  %2671 = vmatprep.subr.mxu0 0.0
  %2672 = vmatpush1.msra.mxu0 0.0
  %2673 = vmatprep.subr.mxu0 0.0
  %2674 = vmatpush1.msra.mxu0 0.0
  %2675 = vmatprep.subr.mxu0 0.0
  %2676 = vmatpush1.msra.mxu0 0.0
  %2677 = vmatprep.subr.mxu0 0.0
  %2678 = vmatpush1.msra.mxu0 0.0
  %2679 = vmatprep.subr.mxu0 0.0
  %2680 = vmatpush1.msra.mxu0 0.0
  %2681 = vmatprep.subr.mxu0 0.0
  %2682 = vmatpush1.msra.mxu0 0.0
  %2683 = vmatprep.subr.mxu0 0.0
  %2684 = vmatpush1.msra.mxu0 0.0
  %2685 = vmatprep.subr.mxu0 0.0
  %2686 = vmatpush1.msra.mxu0 0.0
  %2687 = vmatprep.subr.mxu0 0.0
  %2688 = vmatpush1.msra.mxu0 0.0
  %2689 = vmatprep.subr.mxu0 0.0
  %2690 = vmatpush1.msra.mxu0 0.0
  %2691 = vmatprep.subr.mxu0 0.0
  %2692 = vmatpush1.msra.mxu0 0.0
  %2693 = vmatprep.subr.mxu0 0.0
  %2694 = vmatpush1.msra.mxu0 0.0
  %2695 = vmatprep.subr.mxu0 0.0
  %2696 = vmatpush1.msra.mxu0 0.0
  %2697 = vmatprep.subr.mxu0 0.0
  %2698 = vmatpush1.msra.mxu0 0.0
  %2699 = vmatprep.subr.mxu0 0.0
  %2700 = vmatpush1.msra.mxu0 0.0
  %2701 = vmatprep.subr.mxu0 0.0
  %2702 = vmatpush1.msra.mxu0 0.0
  %2703 = vmatprep.subr.mxu0 0.0
  %2704 = vmatpush1.msra.mxu0 0.0
  %2705 = vmatprep.subr.mxu0 0.0
  %2706 = vmatpush1.msra.mxu0 0.0
  %2707 = vmatprep.subr.mxu0 0.0
  %2708 = vmatpush1.msra.mxu0 0.0
  %2709 = vmatprep.subr.mxu0 0.0
  %2710 = vmatpush1.msra.mxu0 0.0
  %2711 = vmatprep.subr.mxu0 0.0
  %2712 = vmatpush1.msra.mxu0 0.0
  %2713 = vmatprep.subr.mxu0 0.0
  %2714 = vmatpush1.msra.mxu0 0.0
  %2715 = vmatprep.subr.mxu0 0.0
  %2716 = vmatpush1.msra.mxu0 0.0
  %2717 = vmatprep.subr.mxu0 0.0
  %2718 = vmatpush1.msra.mxu0 0.0
  %2719 = vmatprep.subr.mxu0 0.0
  %2720 = vmatpush1.msra.mxu0 0.0
  %2721 = vmatprep.subr.mxu0 0.0
  %2722 = vmatpush1.msra.mxu0 0.0
  %2723 = vmatprep.mubr.f32.mxu0 0.0
  %2724 = vmatmul.mubr.f32.gmra.mrb[0].mxu0 %v2654
  %v2725 = vpop.f32.mrb[0].mxu0
  %v2726 = vadd.f32 0.0, %v2725
  %v2727 = vpop.f32.mrb[0].mxu0
  %2728 = vmatprep.mubr.f32.mxu0 0.0
  %2729 = vmatmul.mubr.f32.gmra.mrb[0].mxu0 %v2657
  %v2730 = vpop.f32.mrb[0].mxu0
  %v2731 = vadd.f32 0.0, %v2730
  %v2732 = vpop.f32.mrb[0].mxu0
  %2733 = vdwg.mxu0
  %v2734 = vadd.f32 %v2065, %v2726
  %v2735 = vadd.f32 %v2066, %v2731
  %v2736 = vld [vmem:[%s5] sm:$0x1]
  %v2738 = vlaneseq
  %v2739 = vshrl.u32 %v2738, 7
  %v2740 = vsub.s32 0, %v2739
  %v2741 = vrot.slane %v2736, %v2740
  %v2743 = vadd.f32 %v2734, %v2741
  %v2744 = vadd.f32 %v2735, %v2741
  %v2745 = vadd.f32 %v47, %v2743
  %v2746 = vadd.f32 %v48, %v2744
  %v2747 = vld [vmem:[%s10] sm:$0x1]
  %v2748 = vld [vmem:[%s11] sm:$0x1]
  %v2749 = vsel %vm64, %v2745, 0.0
  %2750 = vadd.xlane.f32.xlu0 %v2749
  %v2751 = vpop.xlane.xlu0 %2750
  %v2752 = vsel %vm64, %v2746, 0.0
  %2753 = vadd.xlane.f32.xlu0 %v2752
  %v2754 = vpop.xlane.xlu0 %2753
  %v2755 = vrcp.pop 32.0
  %v2756 = vmul.f32 %v2751, %v2755
  %v2757 = vmul.f32 %v2754, %v2755
  %v2758 = vsub.f32 %v2745, %v2756
  %v2759 = vsub.f32 %v2746, %v2757
  %v2760 = vmul.f32 %v2758, %v2758
  %v2761 = vmul.f32 %v2759, %v2759
  %v2762 = vsel %vm64, %v2760, 0.0
  %2763 = vadd.xlane.f32.xlu0 %v2762
  %v2764 = vpop.xlane.xlu0 %2763
  %v2765 = vsel %vm64, %v2761, 0.0
  %2766 = vadd.xlane.f32.xlu0 %v2765
  %v2767 = vpop.xlane.xlu0 %2766
  %v2768 = vmul.f32 %v2764, %v2755
  %v2769 = vmul.f32 %v2767, %v2755
  %v2770 = vadd.f32 %v2768, 1e-05
  %v2771 = vadd.f32 %v2769, 1e-05
  %v2772 = vrsqrt.pop %v2770
  %v2773 = vrsqrt.pop %v2771
  %v2774 = vmul.f32 %v2758, %v2772
  %v2775 = vmul.f32 %v2759, %v2773
  %v2777 = vlaneseq
  %v2778 = vshrl.u32 %v2777, 7
  %v2779 = vsub.s32 0, %v2778
  %v2780 = vrot.slane %v2747, %v2779
  %v2782 = vmul.f32 %v2774, %v2780
  %v2783 = vmul.f32 %v2775, %v2780
  %v2785 = vlaneseq
  %v2786 = vshrl.u32 %v2785, 7
  %v2787 = vsub.s32 0, %v2786
  %v2788 = vrot.slane %v2748, %v2787
  %v2790 = vadd.f32 %v2782, %v2788
  %v2791 = vadd.f32 %v2783, %v2788
  %v2792 = vld [vmem:[%s6] sm:$0xff]
  %v2793 = vld [vmem:[%s6 + $0x8] sm:$0xff]
  %v2794 = vld [vmem:[%s6 + $0x10] sm:$0xff]
  %v2795 = vld [vmem:[%s6 + $0x18] sm:$0xff]
  %v2796 = vld [vmem:[%s7] sm:$0x1]
  %v2798 = vlaneseq
  %v2799 = vshrl.u32 %v2798, 7
  %v2800 = vsub.s32 0, %v2799
  %v2801 = vrot.slane %v2796, %v2800
  %v2804 = vsel %vm64, %v2790, 0
  %v2807 = vsel %vm64, %v2791, 0
  %2809 = vmatprep.subr.mxu0 0.0
  %2810 = vmatpush1.msra.mxu0 %v2792
  %2811 = vmatprep.subr.mxu0 0.0
  %2812 = vmatpush1.msra.mxu0 %v2793
  %2813 = vmatprep.subr.mxu0 0.0
  %2814 = vmatpush1.msra.mxu0 %v2794
  %2815 = vmatprep.subr.mxu0 0.0
  %2816 = vmatpush1.msra.mxu0 %v2795
  %2817 = vmatprep.subr.mxu0 0.0
  %2818 = vmatpush1.msra.mxu0 0.0
  %2819 = vmatprep.subr.mxu0 0.0
  %2820 = vmatpush1.msra.mxu0 0.0
  %2821 = vmatprep.subr.mxu0 0.0
  %2822 = vmatpush1.msra.mxu0 0.0
  %2823 = vmatprep.subr.mxu0 0.0
  %2824 = vmatpush1.msra.mxu0 0.0
  %2825 = vmatprep.subr.mxu0 0.0
  %2826 = vmatpush1.msra.mxu0 0.0
  %2827 = vmatprep.subr.mxu0 0.0
  %2828 = vmatpush1.msra.mxu0 0.0
  %2829 = vmatprep.subr.mxu0 0.0
  %2830 = vmatpush1.msra.mxu0 0.0
  %2831 = vmatprep.subr.mxu0 0.0
  %2832 = vmatpush1.msra.mxu0 0.0
  %2833 = vmatprep.subr.mxu0 0.0
  %2834 = vmatpush1.msra.mxu0 0.0
  %2835 = vmatprep.subr.mxu0 0.0
  %2836 = vmatpush1.msra.mxu0 0.0
  %2837 = vmatprep.subr.mxu0 0.0
  %2838 = vmatpush1.msra.mxu0 0.0
  %2839 = vmatprep.subr.mxu0 0.0
  %2840 = vmatpush1.msra.mxu0 0.0
  %2841 = vmatprep.subr.mxu0 0.0
  %2842 = vmatpush1.msra.mxu0 0.0
  %2843 = vmatprep.subr.mxu0 0.0
  %2844 = vmatpush1.msra.mxu0 0.0
  %2845 = vmatprep.subr.mxu0 0.0
  %2846 = vmatpush1.msra.mxu0 0.0
  %2847 = vmatprep.subr.mxu0 0.0
  %2848 = vmatpush1.msra.mxu0 0.0
  %2849 = vmatprep.subr.mxu0 0.0
  %2850 = vmatpush1.msra.mxu0 0.0
  %2851 = vmatprep.subr.mxu0 0.0
  %2852 = vmatpush1.msra.mxu0 0.0
  %2853 = vmatprep.subr.mxu0 0.0
  %2854 = vmatpush1.msra.mxu0 0.0
  %2855 = vmatprep.subr.mxu0 0.0
  %2856 = vmatpush1.msra.mxu0 0.0
  %2857 = vmatprep.subr.mxu0 0.0
  %2858 = vmatpush1.msra.mxu0 0.0
  %2859 = vmatprep.subr.mxu0 0.0
  %2860 = vmatpush1.msra.mxu0 0.0
  %2861 = vmatprep.subr.mxu0 0.0
  %2862 = vmatpush1.msra.mxu0 0.0
  %2863 = vmatprep.subr.mxu0 0.0
  %2864 = vmatpush1.msra.mxu0 0.0
  %2865 = vmatprep.subr.mxu0 0.0
  %2866 = vmatpush1.msra.mxu0 0.0
  %2867 = vmatprep.subr.mxu0 0.0
  %2868 = vmatpush1.msra.mxu0 0.0
  %2869 = vmatprep.subr.mxu0 0.0
  %2870 = vmatpush1.msra.mxu0 0.0
  %2871 = vmatprep.subr.mxu0 0.0
  %2872 = vmatpush1.msra.mxu0 0.0
  %2873 = vmatprep.mubr.f32.mxu0 0.0
  %2874 = vmatmul.mubr.f32.gmra.mrb[0].mxu0 %v2804
  %v2875 = vpop.f32.mrb[0].mxu0
  %v2876 = vadd.f32 %v2801, %v2875
  %v2877 = vpop.f32.mrb[0].mxu0
  %2878 = vmatprep.mubr.f32.mxu0 0.0
  %2879 = vmatmul.mubr.f32.gmra.mrb[0].mxu0 %v2807
  %v2880 = vpop.f32.mrb[0].mxu0
  %v2881 = vadd.f32 %v2801, %v2880
  %v2882 = vpop.f32.mrb[0].mxu0
  %2883 = vdwg.mxu0
  %v2884 = vmax.f32 %v2876, 0.0
  %v2885 = vmax.f32 %v2881, 0.0
  %v2886 = vld [vmem:[%s8] sm:$0xff]
  %v2887 = vld [vmem:[%s8 + $0x8] sm:$0xff]
  %v2888 = vld [vmem:[%s8 + $0x10] sm:$0xff]
  %v2889 = vld [vmem:[%s8 + $0x18] sm:$0xff]
  %v2890 = vld [vmem:[%s8 + $0x20] sm:$0xff]
  %v2891 = vld [vmem:[%s8 + $0x28] sm:$0xff]
  %v2892 = vld [vmem:[%s8 + $0x30] sm:$0xff]
  %v2893 = vld [vmem:[%s8 + $0x38] sm:$0xff]
  %v2894 = vld [vmem:[%s9] sm:$0x1]
  %v2896 = vlaneseq
  %v2897 = vshrl.u32 %v2896, 7
  %v2898 = vsub.s32 0, %v2897
  %v2899 = vrot.slane %v2894, %v2898
  %vm2901 = vcmask 523264
  %v2903 = vsel %vm2901, %v2884, 0
  %v2906 = vsel %vm2901, %v2885, 0
  %2908 = vmatprep.subr.mxu0 0.0
  %2909 = vmatpush1.msra.mxu0 %v2886
  %2910 = vmatprep.subr.mxu0 0.0
  %2911 = vmatpush1.msra.mxu0 %v2887
  %2912 = vmatprep.subr.mxu0 0.0
  %2913 = vmatpush1.msra.mxu0 %v2888
  %2914 = vmatprep.subr.mxu0 0.0
  %2915 = vmatpush1.msra.mxu0 %v2889
  %2916 = vmatprep.subr.mxu0 0.0
  %2917 = vmatpush1.msra.mxu0 %v2890
  %2918 = vmatprep.subr.mxu0 0.0
  %2919 = vmatpush1.msra.mxu0 %v2891
  %2920 = vmatprep.subr.mxu0 0.0
  %2921 = vmatpush1.msra.mxu0 %v2892
  %2922 = vmatprep.subr.mxu0 0.0
  %2923 = vmatpush1.msra.mxu0 %v2893
  %2924 = vmatprep.subr.mxu0 0.0
  %2925 = vmatpush1.msra.mxu0 0.0
  %2926 = vmatprep.subr.mxu0 0.0
  %2927 = vmatpush1.msra.mxu0 0.0
  %2928 = vmatprep.subr.mxu0 0.0
  %2929 = vmatpush1.msra.mxu0 0.0
  %2930 = vmatprep.subr.mxu0 0.0
  %2931 = vmatpush1.msra.mxu0 0.0
  %2932 = vmatprep.subr.mxu0 0.0
  %2933 = vmatpush1.msra.mxu0 0.0
  %2934 = vmatprep.subr.mxu0 0.0
  %2935 = vmatpush1.msra.mxu0 0.0
  %2936 = vmatprep.subr.mxu0 0.0
  %2937 = vmatpush1.msra.mxu0 0.0
  %2938 = vmatprep.subr.mxu0 0.0
  %2939 = vmatpush1.msra.mxu0 0.0
  %2940 = vmatprep.subr.mxu0 0.0
  %2941 = vmatpush1.msra.mxu0 0.0
  %2942 = vmatprep.subr.mxu0 0.0
  %2943 = vmatpush1.msra.mxu0 0.0
  %2944 = vmatprep.subr.mxu0 0.0
  %2945 = vmatpush1.msra.mxu0 0.0
  %2946 = vmatprep.subr.mxu0 0.0
  %2947 = vmatpush1.msra.mxu0 0.0
  %2948 = vmatprep.subr.mxu0 0.0
  %2949 = vmatpush1.msra.mxu0 0.0
  %2950 = vmatprep.subr.mxu0 0.0
  %2951 = vmatpush1.msra.mxu0 0.0
  %2952 = vmatprep.subr.mxu0 0.0
  %2953 = vmatpush1.msra.mxu0 0.0
  %2954 = vmatprep.subr.mxu0 0.0
  %2955 = vmatpush1.msra.mxu0 0.0
  %2956 = vmatprep.subr.mxu0 0.0
  %2957 = vmatpush1.msra.mxu0 0.0
  %2958 = vmatprep.subr.mxu0 0.0
  %2959 = vmatpush1.msra.mxu0 0.0
  %2960 = vmatprep.subr.mxu0 0.0
  %2961 = vmatpush1.msra.mxu0 0.0
  %2962 = vmatprep.subr.mxu0 0.0
  %2963 = vmatpush1.msra.mxu0 0.0
  %2964 = vmatprep.subr.mxu0 0.0
  %2965 = vmatpush1.msra.mxu0 0.0
  %2966 = vmatprep.subr.mxu0 0.0
  %2967 = vmatpush1.msra.mxu0 0.0
  %2968 = vmatprep.subr.mxu0 0.0
  %2969 = vmatpush1.msra.mxu0 0.0
  %2970 = vmatprep.subr.mxu0 0.0
  %2971 = vmatpush1.msra.mxu0 0.0
  %2972 = vmatprep.mubr.f32.mxu0 0.0
  %2973 = vmatmul.mubr.f32.gmra.mrb[0].mxu0 %v2903
  %v2974 = vpop.f32.mrb[0].mxu0
  %v2975 = vadd.f32 %v2899, %v2974
  %v2976 = vpop.f32.mrb[0].mxu0
  %2977 = vmatprep.mubr.f32.mxu0 0.0
  %2978 = vmatmul.mubr.f32.gmra.mrb[0].mxu0 %v2906
  %v2979 = vpop.f32.mrb[0].mxu0
  %v2980 = vadd.f32 %v2899, %v2979
  %v2981 = vpop.f32.mrb[0].mxu0
  %2982 = vdwg.mxu0
  %v2983 = vadd.f32 %v2790, %v2975
  %v2984 = vadd.f32 %v2791, %v2980
  %s2985 = scalar_lea.vmem %s10, 1
  %v2986 = vld [vmem:[%s2985] sm:$0x1]
  %s2987 = scalar_lea.vmem %s11, 1
  %v2988 = vld [vmem:[%s2987] sm:$0x1]
  %v2989 = vsel %vm64, %v2983, 0.0
  %2990 = vadd.xlane.f32.xlu0 %v2989
  %v2991 = vpop.xlane.xlu0 %2990
  %v2992 = vsel %vm64, %v2984, 0.0
  %2993 = vadd.xlane.f32.xlu0 %v2992
  %v2994 = vpop.xlane.xlu0 %2993
  %v2995 = vmul.f32 %v2991, %v2755
  %v2996 = vmul.f32 %v2994, %v2755
  %v2997 = vsub.f32 %v2983, %v2995
  %v2998 = vsub.f32 %v2984, %v2996
  %v2999 = vmul.f32 %v2997, %v2997
  %v3000 = vmul.f32 %v2998, %v2998
  %v3001 = vsel %vm64, %v2999, 0.0
  %3002 = vadd.xlane.f32.xlu0 %v3001
  %v3003 = vpop.xlane.xlu0 %3002
  %v3004 = vsel %vm64, %v3000, 0.0
  %3005 = vadd.xlane.f32.xlu0 %v3004
  %v3006 = vpop.xlane.xlu0 %3005
  %v3007 = vmul.f32 %v3003, %v2755
  %v3008 = vmul.f32 %v3006, %v2755
  %v3009 = vadd.f32 %v3007, 1e-05
  %v3010 = vadd.f32 %v3008, 1e-05
  %v3011 = vrsqrt.pop %v3009
  %v3012 = vrsqrt.pop %v3010
  %v3013 = vmul.f32 %v2997, %v3011
  %v3014 = vmul.f32 %v2998, %v3012
  %v3016 = vlaneseq
  %v3017 = vshrl.u32 %v3016, 7
  %v3018 = vsub.s32 0, %v3017
  %v3019 = vrot.slane %v2986, %v3018
  %v3021 = vmul.f32 %v3013, %v3019
  %v3022 = vmul.f32 %v3014, %v3019
  %v3024 = vlaneseq
  %v3025 = vshrl.u32 %v3024, 7
  %v3026 = vsub.s32 0, %v3025
  %v3027 = vrot.slane %v2988, %v3026
  %v3029 = vadd.f32 %v3021, %v3027
  %v3030 = vadd.f32 %v3022, %v3027
  %v3031 = vadd.f32 %v3029, %v49
  %v3032 = vadd.f32 %v3030, %v50
  %s3033 = scalar_lea.vmem %s2, 384
  %v3034 = vld [vmem:[%s3033] sm:$0xff]
  %v3035 = vld [vmem:[%s3033 + $0x8] sm:$0xff]
  %v3036 = vld [vmem:[%s3033 + $0x10] sm:$0xff]
  %v3037 = vld [vmem:[%s3033 + $0x18] sm:$0xff]
  %s3038 = scalar_lea.vmem %s3, 12
  %v3039 = vld [vmem:[%s3038] sm:$0x1]
  %v3041 = vlaneseq
  %v3042 = vshrl.u32 %v3041, 7
  %v3043 = vsub.s32 0, %v3042
  %v3044 = vrot.slane %v3039, %v3043
  %v3047 = vsel %vm64, %v3031, 0
  %v3050 = vsel %vm64, %v3032, 0
  %3052 = vmatprep.subr.mxu0 0.0
  %3053 = vmatpush1.msra.mxu0 %v3034
  %3054 = vmatprep.subr.mxu0 0.0
  %3055 = vmatpush1.msra.mxu0 %v3035
  %3056 = vmatprep.subr.mxu0 0.0
  %3057 = vmatpush1.msra.mxu0 %v3036
  %3058 = vmatprep.subr.mxu0 0.0
  %3059 = vmatpush1.msra.mxu0 %v3037
  %3060 = vmatprep.subr.mxu0 0.0
  %3061 = vmatpush1.msra.mxu0 0.0
  %3062 = vmatprep.subr.mxu0 0.0
  %3063 = vmatpush1.msra.mxu0 0.0
  %3064 = vmatprep.subr.mxu0 0.0
  %3065 = vmatpush1.msra.mxu0 0.0
  %3066 = vmatprep.subr.mxu0 0.0
  %3067 = vmatpush1.msra.mxu0 0.0
  %3068 = vmatprep.subr.mxu0 0.0
  %3069 = vmatpush1.msra.mxu0 0.0
  %3070 = vmatprep.subr.mxu0 0.0
  %3071 = vmatpush1.msra.mxu0 0.0
  %3072 = vmatprep.subr.mxu0 0.0
  %3073 = vmatpush1.msra.mxu0 0.0
  %3074 = vmatprep.subr.mxu0 0.0
  %3075 = vmatpush1.msra.mxu0 0.0
  %3076 = vmatprep.subr.mxu0 0.0
  %3077 = vmatpush1.msra.mxu0 0.0
  %3078 = vmatprep.subr.mxu0 0.0
  %3079 = vmatpush1.msra.mxu0 0.0
  %3080 = vmatprep.subr.mxu0 0.0
  %3081 = vmatpush1.msra.mxu0 0.0
  %3082 = vmatprep.subr.mxu0 0.0
  %3083 = vmatpush1.msra.mxu0 0.0
  %3084 = vmatprep.subr.mxu0 0.0
  %3085 = vmatpush1.msra.mxu0 0.0
  %3086 = vmatprep.subr.mxu0 0.0
  %3087 = vmatpush1.msra.mxu0 0.0
  %3088 = vmatprep.subr.mxu0 0.0
  %3089 = vmatpush1.msra.mxu0 0.0
  %3090 = vmatprep.subr.mxu0 0.0
  %3091 = vmatpush1.msra.mxu0 0.0
  %3092 = vmatprep.subr.mxu0 0.0
  %3093 = vmatpush1.msra.mxu0 0.0
  %3094 = vmatprep.subr.mxu0 0.0
  %3095 = vmatpush1.msra.mxu0 0.0
  %3096 = vmatprep.subr.mxu0 0.0
  %3097 = vmatpush1.msra.mxu0 0.0
  %3098 = vmatprep.subr.mxu0 0.0
  %3099 = vmatpush1.msra.mxu0 0.0
  %3100 = vmatprep.subr.mxu0 0.0
  %3101 = vmatpush1.msra.mxu0 0.0
  %3102 = vmatprep.subr.mxu0 0.0
  %3103 = vmatpush1.msra.mxu0 0.0
  %3104 = vmatprep.subr.mxu0 0.0
  %3105 = vmatpush1.msra.mxu0 0.0
  %3106 = vmatprep.subr.mxu0 0.0
  %3107 = vmatpush1.msra.mxu0 0.0
  %3108 = vmatprep.subr.mxu0 0.0
  %3109 = vmatpush1.msra.mxu0 0.0
  %3110 = vmatprep.subr.mxu0 0.0
  %3111 = vmatpush1.msra.mxu0 0.0
  %3112 = vmatprep.subr.mxu0 0.0
  %3113 = vmatpush1.msra.mxu0 0.0
  %3114 = vmatprep.subr.mxu0 0.0
  %3115 = vmatpush1.msra.mxu0 0.0
  %3116 = vmatprep.mubr.f32.mxu0 0.0
  %3117 = vmatmul.mubr.f32.gmra.mrb[0].mxu0 %v3047
  %v3118 = vpop.f32.mrb[0].mxu0
  %v3119 = vadd.f32 %v3044, %v3118
  %v3120 = vpop.f32.mrb[0].mxu0
  %3121 = vmatprep.mubr.f32.mxu0 0.0
  %3122 = vmatmul.mubr.f32.gmra.mrb[0].mxu0 %v3050
  %v3123 = vpop.f32.mrb[0].mxu0
  %v3124 = vadd.f32 %v3044, %v3123
  %v3125 = vpop.f32.mrb[0].mxu0
  %3126 = vdwg.mxu0
  %s3127 = scalar_lea.vmem %s2, 512
  %v3128 = vld [vmem:[%s3127] sm:$0xff]
  %v3129 = vld [vmem:[%s3127 + $0x8] sm:$0xff]
  %v3130 = vld [vmem:[%s3127 + $0x10] sm:$0xff]
  %v3131 = vld [vmem:[%s3127 + $0x18] sm:$0xff]
  %s3132 = scalar_lea.vmem %s3, 16
  %v3133 = vld [vmem:[%s3132] sm:$0x1]
  %v3135 = vlaneseq
  %v3136 = vshrl.u32 %v3135, 7
  %v3137 = vsub.s32 0, %v3136
  %v3138 = vrot.slane %v3133, %v3137
  %3140 = vmatprep.subr.mxu0 0.0
  %3141 = vmatpush1.msra.mxu0 %v3128
  %3142 = vmatprep.subr.mxu0 0.0
  %3143 = vmatpush1.msra.mxu0 %v3129
  %3144 = vmatprep.subr.mxu0 0.0
  %3145 = vmatpush1.msra.mxu0 %v3130
  %3146 = vmatprep.subr.mxu0 0.0
  %3147 = vmatpush1.msra.mxu0 %v3131
  %3148 = vmatprep.subr.mxu0 0.0
  %3149 = vmatpush1.msra.mxu0 0.0
  %3150 = vmatprep.subr.mxu0 0.0
  %3151 = vmatpush1.msra.mxu0 0.0
  %3152 = vmatprep.subr.mxu0 0.0
  %3153 = vmatpush1.msra.mxu0 0.0
  %3154 = vmatprep.subr.mxu0 0.0
  %3155 = vmatpush1.msra.mxu0 0.0
  %3156 = vmatprep.subr.mxu0 0.0
  %3157 = vmatpush1.msra.mxu0 0.0
  %3158 = vmatprep.subr.mxu0 0.0
  %3159 = vmatpush1.msra.mxu0 0.0
  %3160 = vmatprep.subr.mxu0 0.0
  %3161 = vmatpush1.msra.mxu0 0.0
  %3162 = vmatprep.subr.mxu0 0.0
  %3163 = vmatpush1.msra.mxu0 0.0
  %3164 = vmatprep.subr.mxu0 0.0
  %3165 = vmatpush1.msra.mxu0 0.0
  %3166 = vmatprep.subr.mxu0 0.0
  %3167 = vmatpush1.msra.mxu0 0.0
  %3168 = vmatprep.subr.mxu0 0.0
  %3169 = vmatpush1.msra.mxu0 0.0
  %3170 = vmatprep.subr.mxu0 0.0
  %3171 = vmatpush1.msra.mxu0 0.0
  %3172 = vmatprep.subr.mxu0 0.0
  %3173 = vmatpush1.msra.mxu0 0.0
  %3174 = vmatprep.subr.mxu0 0.0
  %3175 = vmatpush1.msra.mxu0 0.0
  %3176 = vmatprep.subr.mxu0 0.0
  %3177 = vmatpush1.msra.mxu0 0.0
  %3178 = vmatprep.subr.mxu0 0.0
  %3179 = vmatpush1.msra.mxu0 0.0
  %3180 = vmatprep.subr.mxu0 0.0
  %3181 = vmatpush1.msra.mxu0 0.0
  %3182 = vmatprep.subr.mxu0 0.0
  %3183 = vmatpush1.msra.mxu0 0.0
  %3184 = vmatprep.subr.mxu0 0.0
  %3185 = vmatpush1.msra.mxu0 0.0
  %3186 = vmatprep.subr.mxu0 0.0
  %3187 = vmatpush1.msra.mxu0 0.0
  %3188 = vmatprep.subr.mxu0 0.0
  %3189 = vmatpush1.msra.mxu0 0.0
  %3190 = vmatprep.subr.mxu0 0.0
  %3191 = vmatpush1.msra.mxu0 0.0
  %3192 = vmatprep.subr.mxu0 0.0
  %3193 = vmatpush1.msra.mxu0 0.0
  %3194 = vmatprep.subr.mxu0 0.0
  %3195 = vmatpush1.msra.mxu0 0.0
  %3196 = vmatprep.subr.mxu0 0.0
  %3197 = vmatpush1.msra.mxu0 0.0
  %3198 = vmatprep.subr.mxu0 0.0
  %3199 = vmatpush1.msra.mxu0 0.0
  %3200 = vmatprep.subr.mxu0 0.0
  %3201 = vmatpush1.msra.mxu0 0.0
  %3202 = vmatprep.subr.mxu0 0.0
  %3203 = vmatpush1.msra.mxu0 0.0
  %3204 = vmatprep.mubr.f32.mxu0 0.0
  %3205 = vmatmul.mubr.f32.gmra.mrb[0].mxu0 %v3047
  %v3206 = vpop.f32.mrb[0].mxu0
  %v3207 = vadd.f32 %v3138, %v3206
  %v3208 = vpop.f32.mrb[0].mxu0
  %3209 = vmatprep.mubr.f32.mxu0 0.0
  %3210 = vmatmul.mubr.f32.gmra.mrb[0].mxu0 %v3050
  %v3211 = vpop.f32.mrb[0].mxu0
  %v3212 = vadd.f32 %v3138, %v3211
  %v3213 = vpop.f32.mrb[0].mxu0
  %3214 = vdwg.mxu0
  %s3215 = scalar_lea.vmem %s2, 640
  %v3216 = vld [vmem:[%s3215] sm:$0xff]
  %v3217 = vld [vmem:[%s3215 + $0x8] sm:$0xff]
  %v3218 = vld [vmem:[%s3215 + $0x10] sm:$0xff]
  %v3219 = vld [vmem:[%s3215 + $0x18] sm:$0xff]
  %s3220 = scalar_lea.vmem %s3, 20
  %v3221 = vld [vmem:[%s3220] sm:$0x1]
  %v3223 = vlaneseq
  %v3224 = vshrl.u32 %v3223, 7
  %v3225 = vsub.s32 0, %v3224
  %v3226 = vrot.slane %v3221, %v3225
  %v3229 = vsel %vm64, %v3029, 0
  %v3232 = vsel %vm64, %v3030, 0
  %3234 = vmatprep.subr.mxu0 0.0
  %3235 = vmatpush1.msra.mxu0 %v3216
  %3236 = vmatprep.subr.mxu0 0.0
  %3237 = vmatpush1.msra.mxu0 %v3217
  %3238 = vmatprep.subr.mxu0 0.0
  %3239 = vmatpush1.msra.mxu0 %v3218
  %3240 = vmatprep.subr.mxu0 0.0
  %3241 = vmatpush1.msra.mxu0 %v3219
  %3242 = vmatprep.subr.mxu0 0.0
  %3243 = vmatpush1.msra.mxu0 0.0
  %3244 = vmatprep.subr.mxu0 0.0
  %3245 = vmatpush1.msra.mxu0 0.0
  %3246 = vmatprep.subr.mxu0 0.0
  %3247 = vmatpush1.msra.mxu0 0.0
  %3248 = vmatprep.subr.mxu0 0.0
  %3249 = vmatpush1.msra.mxu0 0.0
  %3250 = vmatprep.subr.mxu0 0.0
  %3251 = vmatpush1.msra.mxu0 0.0
  %3252 = vmatprep.subr.mxu0 0.0
  %3253 = vmatpush1.msra.mxu0 0.0
  %3254 = vmatprep.subr.mxu0 0.0
  %3255 = vmatpush1.msra.mxu0 0.0
  %3256 = vmatprep.subr.mxu0 0.0
  %3257 = vmatpush1.msra.mxu0 0.0
  %3258 = vmatprep.subr.mxu0 0.0
  %3259 = vmatpush1.msra.mxu0 0.0
  %3260 = vmatprep.subr.mxu0 0.0
  %3261 = vmatpush1.msra.mxu0 0.0
  %3262 = vmatprep.subr.mxu0 0.0
  %3263 = vmatpush1.msra.mxu0 0.0
  %3264 = vmatprep.subr.mxu0 0.0
  %3265 = vmatpush1.msra.mxu0 0.0
  %3266 = vmatprep.subr.mxu0 0.0
  %3267 = vmatpush1.msra.mxu0 0.0
  %3268 = vmatprep.subr.mxu0 0.0
  %3269 = vmatpush1.msra.mxu0 0.0
  %3270 = vmatprep.subr.mxu0 0.0
  %3271 = vmatpush1.msra.mxu0 0.0
  %3272 = vmatprep.subr.mxu0 0.0
  %3273 = vmatpush1.msra.mxu0 0.0
  %3274 = vmatprep.subr.mxu0 0.0
  %3275 = vmatpush1.msra.mxu0 0.0
  %3276 = vmatprep.subr.mxu0 0.0
  %3277 = vmatpush1.msra.mxu0 0.0
  %3278 = vmatprep.subr.mxu0 0.0
  %3279 = vmatpush1.msra.mxu0 0.0
  %3280 = vmatprep.subr.mxu0 0.0
  %3281 = vmatpush1.msra.mxu0 0.0
  %3282 = vmatprep.subr.mxu0 0.0
  %3283 = vmatpush1.msra.mxu0 0.0
  %3284 = vmatprep.subr.mxu0 0.0
  %3285 = vmatpush1.msra.mxu0 0.0
  %3286 = vmatprep.subr.mxu0 0.0
  %3287 = vmatpush1.msra.mxu0 0.0
  %3288 = vmatprep.subr.mxu0 0.0
  %3289 = vmatpush1.msra.mxu0 0.0
  %3290 = vmatprep.subr.mxu0 0.0
  %3291 = vmatpush1.msra.mxu0 0.0
  %3292 = vmatprep.subr.mxu0 0.0
  %3293 = vmatpush1.msra.mxu0 0.0
  %3294 = vmatprep.subr.mxu0 0.0
  %3295 = vmatpush1.msra.mxu0 0.0
  %3296 = vmatprep.subr.mxu0 0.0
  %3297 = vmatpush1.msra.mxu0 0.0
  %3298 = vmatprep.mubr.f32.mxu0 0.0
  %3299 = vmatmul.mubr.f32.gmra.mrb[0].mxu0 %v3229
  %v3300 = vpop.f32.mrb[0].mxu0
  %v3301 = vadd.f32 %v3226, %v3300
  %v3302 = vpop.f32.mrb[0].mxu0
  %3303 = vmatprep.mubr.f32.mxu0 0.0
  %3304 = vmatmul.mubr.f32.gmra.mrb[0].mxu0 %v3232
  %v3305 = vpop.f32.mrb[0].mxu0
  %v3306 = vadd.f32 %v3226, %v3305
  %v3307 = vpop.f32.mrb[0].mxu0
  %3308 = vdwg.mxu0
  %v3310 = vsel %vm328, %v3119, 0
  %v3313 = vsel %vm328, %v3207, 0
  %3315 = vmatprep.subr.mxu0 0.0
  %3316 = vmatpush1.xpose.msra.mxu0 %v3313
  %3317 = vmatprep.subr.mxu0 0.0
  %3318 = vmatpush1.xpose.msra.mxu0 0.0
  %3319 = vmatprep.subr.mxu0 0.0
  %3320 = vmatpush1.xpose.msra.mxu0 0.0
  %3321 = vmatprep.subr.mxu0 0.0
  %3322 = vmatpush1.xpose.msra.mxu0 0.0
  %3323 = vmatprep.subr.mxu0 0.0
  %3324 = vmatpush1.xpose.msra.mxu0 0.0
  %3325 = vmatprep.subr.mxu0 0.0
  %3326 = vmatpush1.xpose.msra.mxu0 0.0
  %3327 = vmatprep.subr.mxu0 0.0
  %3328 = vmatpush1.xpose.msra.mxu0 0.0
  %3329 = vmatprep.subr.mxu0 0.0
  %3330 = vmatpush1.xpose.msra.mxu0 0.0
  %3331 = vmatprep.subr.mxu0 0.0
  %3332 = vmatpush1.xpose.msra.mxu0 0.0
  %3333 = vmatprep.subr.mxu0 0.0
  %3334 = vmatpush1.xpose.msra.mxu0 0.0
  %3335 = vmatprep.subr.mxu0 0.0
  %3336 = vmatpush1.xpose.msra.mxu0 0.0
  %3337 = vmatprep.subr.mxu0 0.0
  %3338 = vmatpush1.xpose.msra.mxu0 0.0
  %3339 = vmatprep.subr.mxu0 0.0
  %3340 = vmatpush1.xpose.msra.mxu0 0.0
  %3341 = vmatprep.subr.mxu0 0.0
  %3342 = vmatpush1.xpose.msra.mxu0 0.0
  %3343 = vmatprep.subr.mxu0 0.0
  %3344 = vmatpush1.xpose.msra.mxu0 0.0
  %3345 = vmatprep.subr.mxu0 0.0
  %3346 = vmatpush1.xpose.msra.mxu0 0.0
  %3347 = vmatprep.subr.mxu0 0.0
  %3348 = vmatpush1.xpose.msra.mxu0 0.0
  %3349 = vmatprep.subr.mxu0 0.0
  %3350 = vmatpush1.xpose.msra.mxu0 0.0
  %3351 = vmatprep.subr.mxu0 0.0
  %3352 = vmatpush1.xpose.msra.mxu0 0.0
  %3353 = vmatprep.subr.mxu0 0.0
  %3354 = vmatpush1.xpose.msra.mxu0 0.0
  %3355 = vmatprep.subr.mxu0 0.0
  %3356 = vmatpush1.xpose.msra.mxu0 0.0
  %3357 = vmatprep.subr.mxu0 0.0
  %3358 = vmatpush1.xpose.msra.mxu0 0.0
  %3359 = vmatprep.subr.mxu0 0.0
  %3360 = vmatpush1.xpose.msra.mxu0 0.0
  %3361 = vmatprep.subr.mxu0 0.0
  %3362 = vmatpush1.xpose.msra.mxu0 0.0
  %3363 = vmatprep.subr.mxu0 0.0
  %3364 = vmatpush1.xpose.msra.mxu0 0.0
  %3365 = vmatprep.subr.mxu0 0.0
  %3366 = vmatpush1.xpose.msra.mxu0 0.0
  %3367 = vmatprep.subr.mxu0 0.0
  %3368 = vmatpush1.xpose.msra.mxu0 0.0
  %3369 = vmatprep.subr.mxu0 0.0
  %3370 = vmatpush1.xpose.msra.mxu0 0.0
  %3371 = vmatprep.subr.mxu0 0.0
  %3372 = vmatpush1.xpose.msra.mxu0 0.0
  %3373 = vmatprep.subr.mxu0 0.0
  %3374 = vmatpush1.xpose.msra.mxu0 0.0
  %3375 = vmatprep.subr.mxu0 0.0
  %3376 = vmatpush1.xpose.msra.mxu0 0.0
  %3377 = vmatprep.subr.mxu0 0.0
  %3378 = vmatpush1.xpose.msra.mxu0 0.0
  %3379 = vmatprep.mubr.f32.mxu0 0.0
  %3380 = vmatmul.mubr.f32.gmra.mrb[0].mxu0 %v3310
  %v3381 = vpop.f32.mrb[0].mxu0
  %v3382 = vadd.f32 0.0, %v3381
  %v3383 = vpop.f32.mrb[0].mxu0
  %3384 = vdwg.mxu0
  %v3386 = vsel %vm328, %v3124, 0
  %v3389 = vsel %vm328, %v3212, 0
  %3391 = vmatprep.subr.mxu0 0.0
  %3392 = vmatpush1.xpose.msra.mxu0 %v3389
  %3393 = vmatprep.subr.mxu0 0.0
  %3394 = vmatpush1.xpose.msra.mxu0 0.0
  %3395 = vmatprep.subr.mxu0 0.0
  %3396 = vmatpush1.xpose.msra.mxu0 0.0
  %3397 = vmatprep.subr.mxu0 0.0
  %3398 = vmatpush1.xpose.msra.mxu0 0.0
  %3399 = vmatprep.subr.mxu0 0.0
  %3400 = vmatpush1.xpose.msra.mxu0 0.0
  %3401 = vmatprep.subr.mxu0 0.0
  %3402 = vmatpush1.xpose.msra.mxu0 0.0
  %3403 = vmatprep.subr.mxu0 0.0
  %3404 = vmatpush1.xpose.msra.mxu0 0.0
  %3405 = vmatprep.subr.mxu0 0.0
  %3406 = vmatpush1.xpose.msra.mxu0 0.0
  %3407 = vmatprep.subr.mxu0 0.0
  %3408 = vmatpush1.xpose.msra.mxu0 0.0
  %3409 = vmatprep.subr.mxu0 0.0
  %3410 = vmatpush1.xpose.msra.mxu0 0.0
  %3411 = vmatprep.subr.mxu0 0.0
  %3412 = vmatpush1.xpose.msra.mxu0 0.0
  %3413 = vmatprep.subr.mxu0 0.0
  %3414 = vmatpush1.xpose.msra.mxu0 0.0
  %3415 = vmatprep.subr.mxu0 0.0
  %3416 = vmatpush1.xpose.msra.mxu0 0.0
  %3417 = vmatprep.subr.mxu0 0.0
  %3418 = vmatpush1.xpose.msra.mxu0 0.0
  %3419 = vmatprep.subr.mxu0 0.0
  %3420 = vmatpush1.xpose.msra.mxu0 0.0
  %3421 = vmatprep.subr.mxu0 0.0
  %3422 = vmatpush1.xpose.msra.mxu0 0.0
  %3423 = vmatprep.subr.mxu0 0.0
  %3424 = vmatpush1.xpose.msra.mxu0 0.0
  %3425 = vmatprep.subr.mxu0 0.0
  %3426 = vmatpush1.xpose.msra.mxu0 0.0
  %3427 = vmatprep.subr.mxu0 0.0
  %3428 = vmatpush1.xpose.msra.mxu0 0.0
  %3429 = vmatprep.subr.mxu0 0.0
  %3430 = vmatpush1.xpose.msra.mxu0 0.0
  %3431 = vmatprep.subr.mxu0 0.0
  %3432 = vmatpush1.xpose.msra.mxu0 0.0
  %3433 = vmatprep.subr.mxu0 0.0
  %3434 = vmatpush1.xpose.msra.mxu0 0.0
  %3435 = vmatprep.subr.mxu0 0.0
  %3436 = vmatpush1.xpose.msra.mxu0 0.0
  %3437 = vmatprep.subr.mxu0 0.0
  %3438 = vmatpush1.xpose.msra.mxu0 0.0
  %3439 = vmatprep.subr.mxu0 0.0
  %3440 = vmatpush1.xpose.msra.mxu0 0.0
  %3441 = vmatprep.subr.mxu0 0.0
  %3442 = vmatpush1.xpose.msra.mxu0 0.0
  %3443 = vmatprep.subr.mxu0 0.0
  %3444 = vmatpush1.xpose.msra.mxu0 0.0
  %3445 = vmatprep.subr.mxu0 0.0
  %3446 = vmatpush1.xpose.msra.mxu0 0.0
  %3447 = vmatprep.subr.mxu0 0.0
  %3448 = vmatpush1.xpose.msra.mxu0 0.0
  %3449 = vmatprep.subr.mxu0 0.0
  %3450 = vmatpush1.xpose.msra.mxu0 0.0
  %3451 = vmatprep.subr.mxu0 0.0
  %3452 = vmatpush1.xpose.msra.mxu0 0.0
  %3453 = vmatprep.subr.mxu0 0.0
  %3454 = vmatpush1.xpose.msra.mxu0 0.0
  %3455 = vmatprep.mubr.f32.mxu0 0.0
  %3456 = vmatmul.mubr.f32.gmra.mrb[0].mxu0 %v3386
  %v3457 = vpop.f32.mrb[0].mxu0
  %v3458 = vadd.f32 0.0, %v3457
  %v3459 = vpop.f32.mrb[0].mxu0
  %3460 = vdwg.mxu0
  %v3461 = vsel %vm328, %v3382, -inf
  %3462 = vmax.xlane.f32.xlu0 %v3461
  %v3463 = vpop.xlane.xlu0 %3462
  %v3464 = vsel %vm328, %v3458, -inf
  %3465 = vmax.xlane.f32.xlu0 %v3464
  %v3466 = vpop.xlane.xlu0 %3465
  %v3467 = vsub.f32 %v3382, %v3463
  %v3468 = vsub.f32 %v3458, %v3466
  %v3469 = vmul.f32 %v3467, 1.442695
  %v3470 = vpow.pop %v3469
  %v3471 = vmul.f32 %v3468, 1.442695
  %v3472 = vpow.pop %v3471
  %v3473 = vsel %vm328, %v3470, 0.0
  %3474 = vadd.xlane.f32.xlu0 %v3473
  %v3475 = vpop.xlane.xlu0 %3474
  %v3476 = vsel %vm328, %v3472, 0.0
  %3477 = vadd.xlane.f32.xlu0 %v3476
  %v3478 = vpop.xlane.xlu0 %3477
  %v3479 = vrcp.pop %v3475
  %v3480 = vrcp.pop %v3478
  %v3481 = vmul.f32 %v3470, %v3479
  %v3482 = vmul.f32 %v3472, %v3480
  %v3484 = vsel %vm328, %v3481, 0
  %3486 = vmatprep.subr.mxu0 0.0
  %3487 = vmatpush1.msra.mxu0 %v3301
  %3488 = vmatprep.subr.mxu0 0.0
  %3489 = vmatpush1.msra.mxu0 0.0
  %3490 = vmatprep.subr.mxu0 0.0
  %3491 = vmatpush1.msra.mxu0 0.0
  %3492 = vmatprep.subr.mxu0 0.0
  %3493 = vmatpush1.msra.mxu0 0.0
  %3494 = vmatprep.subr.mxu0 0.0
  %3495 = vmatpush1.msra.mxu0 0.0
  %3496 = vmatprep.subr.mxu0 0.0
  %3497 = vmatpush1.msra.mxu0 0.0
  %3498 = vmatprep.subr.mxu0 0.0
  %3499 = vmatpush1.msra.mxu0 0.0
  %3500 = vmatprep.subr.mxu0 0.0
  %3501 = vmatpush1.msra.mxu0 0.0
  %3502 = vmatprep.subr.mxu0 0.0
  %3503 = vmatpush1.msra.mxu0 0.0
  %3504 = vmatprep.subr.mxu0 0.0
  %3505 = vmatpush1.msra.mxu0 0.0
  %3506 = vmatprep.subr.mxu0 0.0
  %3507 = vmatpush1.msra.mxu0 0.0
  %3508 = vmatprep.subr.mxu0 0.0
  %3509 = vmatpush1.msra.mxu0 0.0
  %3510 = vmatprep.subr.mxu0 0.0
  %3511 = vmatpush1.msra.mxu0 0.0
  %3512 = vmatprep.subr.mxu0 0.0
  %3513 = vmatpush1.msra.mxu0 0.0
  %3514 = vmatprep.subr.mxu0 0.0
  %3515 = vmatpush1.msra.mxu0 0.0
  %3516 = vmatprep.subr.mxu0 0.0
  %3517 = vmatpush1.msra.mxu0 0.0
  %3518 = vmatprep.subr.mxu0 0.0
  %3519 = vmatpush1.msra.mxu0 0.0
  %3520 = vmatprep.subr.mxu0 0.0
  %3521 = vmatpush1.msra.mxu0 0.0
  %3522 = vmatprep.subr.mxu0 0.0
  %3523 = vmatpush1.msra.mxu0 0.0
  %3524 = vmatprep.subr.mxu0 0.0
  %3525 = vmatpush1.msra.mxu0 0.0
  %3526 = vmatprep.subr.mxu0 0.0
  %3527 = vmatpush1.msra.mxu0 0.0
  %3528 = vmatprep.subr.mxu0 0.0
  %3529 = vmatpush1.msra.mxu0 0.0
  %3530 = vmatprep.subr.mxu0 0.0
  %3531 = vmatpush1.msra.mxu0 0.0
  %3532 = vmatprep.subr.mxu0 0.0
  %3533 = vmatpush1.msra.mxu0 0.0
  %3534 = vmatprep.subr.mxu0 0.0
  %3535 = vmatpush1.msra.mxu0 0.0
  %3536 = vmatprep.subr.mxu0 0.0
  %3537 = vmatpush1.msra.mxu0 0.0
  %3538 = vmatprep.subr.mxu0 0.0
  %3539 = vmatpush1.msra.mxu0 0.0
  %3540 = vmatprep.subr.mxu0 0.0
  %3541 = vmatpush1.msra.mxu0 0.0
  %3542 = vmatprep.subr.mxu0 0.0
  %3543 = vmatpush1.msra.mxu0 0.0
  %3544 = vmatprep.subr.mxu0 0.0
  %3545 = vmatpush1.msra.mxu0 0.0
  %3546 = vmatprep.subr.mxu0 0.0
  %3547 = vmatpush1.msra.mxu0 0.0
  %3548 = vmatprep.subr.mxu0 0.0
  %3549 = vmatpush1.msra.mxu0 0.0
  %3550 = vmatprep.mubr.f32.mxu0 0.0
  %3551 = vmatmul.mubr.f32.gmra.mrb[0].mxu0 %v3484
  %v3552 = vpop.f32.mrb[0].mxu0
  %v3553 = vadd.f32 0.0, %v3552
  %v3554 = vpop.f32.mrb[0].mxu0
  %3555 = vdwg.mxu0
  %v3557 = vsel %vm328, %v3482, 0
  %3559 = vmatprep.subr.mxu0 0.0
  %3560 = vmatpush1.msra.mxu0 %v3306
  %3561 = vmatprep.subr.mxu0 0.0
  %3562 = vmatpush1.msra.mxu0 0.0
  %3563 = vmatprep.subr.mxu0 0.0
  %3564 = vmatpush1.msra.mxu0 0.0
  %3565 = vmatprep.subr.mxu0 0.0
  %3566 = vmatpush1.msra.mxu0 0.0
  %3567 = vmatprep.subr.mxu0 0.0
  %3568 = vmatpush1.msra.mxu0 0.0
  %3569 = vmatprep.subr.mxu0 0.0
  %3570 = vmatpush1.msra.mxu0 0.0
  %3571 = vmatprep.subr.mxu0 0.0
  %3572 = vmatpush1.msra.mxu0 0.0
  %3573 = vmatprep.subr.mxu0 0.0
  %3574 = vmatpush1.msra.mxu0 0.0
  %3575 = vmatprep.subr.mxu0 0.0
  %3576 = vmatpush1.msra.mxu0 0.0
  %3577 = vmatprep.subr.mxu0 0.0
  %3578 = vmatpush1.msra.mxu0 0.0
  %3579 = vmatprep.subr.mxu0 0.0
  %3580 = vmatpush1.msra.mxu0 0.0
  %3581 = vmatprep.subr.mxu0 0.0
  %3582 = vmatpush1.msra.mxu0 0.0
  %3583 = vmatprep.subr.mxu0 0.0
  %3584 = vmatpush1.msra.mxu0 0.0
  %3585 = vmatprep.subr.mxu0 0.0
  %3586 = vmatpush1.msra.mxu0 0.0
  %3587 = vmatprep.subr.mxu0 0.0
  %3588 = vmatpush1.msra.mxu0 0.0
  %3589 = vmatprep.subr.mxu0 0.0
  %3590 = vmatpush1.msra.mxu0 0.0
  %3591 = vmatprep.subr.mxu0 0.0
  %3592 = vmatpush1.msra.mxu0 0.0
  %3593 = vmatprep.subr.mxu0 0.0
  %3594 = vmatpush1.msra.mxu0 0.0
  %3595 = vmatprep.subr.mxu0 0.0
  %3596 = vmatpush1.msra.mxu0 0.0
  %3597 = vmatprep.subr.mxu0 0.0
  %3598 = vmatpush1.msra.mxu0 0.0
  %3599 = vmatprep.subr.mxu0 0.0
  %3600 = vmatpush1.msra.mxu0 0.0
  %3601 = vmatprep.subr.mxu0 0.0
  %3602 = vmatpush1.msra.mxu0 0.0
  %3603 = vmatprep.subr.mxu0 0.0
  %3604 = vmatpush1.msra.mxu0 0.0
  %3605 = vmatprep.subr.mxu0 0.0
  %3606 = vmatpush1.msra.mxu0 0.0
  %3607 = vmatprep.subr.mxu0 0.0
  %3608 = vmatpush1.msra.mxu0 0.0
  %3609 = vmatprep.subr.mxu0 0.0
  %3610 = vmatpush1.msra.mxu0 0.0
  %3611 = vmatprep.subr.mxu0 0.0
  %3612 = vmatpush1.msra.mxu0 0.0
  %3613 = vmatprep.subr.mxu0 0.0
  %3614 = vmatpush1.msra.mxu0 0.0
  %3615 = vmatprep.subr.mxu0 0.0
  %3616 = vmatpush1.msra.mxu0 0.0
  %3617 = vmatprep.subr.mxu0 0.0
  %3618 = vmatpush1.msra.mxu0 0.0
  %3619 = vmatprep.subr.mxu0 0.0
  %3620 = vmatpush1.msra.mxu0 0.0
  %3621 = vmatprep.subr.mxu0 0.0
  %3622 = vmatpush1.msra.mxu0 0.0
  %3623 = vmatprep.mubr.f32.mxu0 0.0
  %3624 = vmatmul.mubr.f32.gmra.mrb[0].mxu0 %v3557
  %v3625 = vpop.f32.mrb[0].mxu0
  %v3626 = vadd.f32 0.0, %v3625
  %v3627 = vpop.f32.mrb[0].mxu0
  %3628 = vdwg.mxu0
  %s3629 = scalar_lea.vmem %s4, 32
  %v3630 = vld [vmem:[%s3629] sm:$0xff]
  %s3631 = scalar_lea.vmem %s2, 416
  %v3632 = vld [vmem:[%s3631] sm:$0xff]
  %v3633 = vld [vmem:[%s3631 + $0x8] sm:$0xff]
  %v3634 = vld [vmem:[%s3631 + $0x10] sm:$0xff]
  %v3635 = vld [vmem:[%s3631 + $0x18] sm:$0xff]
  %s3636 = scalar_lea.vmem %s3, 13
  %v3637 = vld [vmem:[%s3636] sm:$0x1]
  %v3639 = vlaneseq
  %v3640 = vshrl.u32 %v3639, 7
  %v3641 = vsub.s32 0, %v3640
  %v3642 = vrot.slane %v3637, %v3641
  %3644 = vmatprep.subr.mxu0 0.0
  %3645 = vmatpush1.msra.mxu0 %v3632
  %3646 = vmatprep.subr.mxu0 0.0
  %3647 = vmatpush1.msra.mxu0 %v3633
  %3648 = vmatprep.subr.mxu0 0.0
  %3649 = vmatpush1.msra.mxu0 %v3634
  %3650 = vmatprep.subr.mxu0 0.0
  %3651 = vmatpush1.msra.mxu0 %v3635
  %3652 = vmatprep.subr.mxu0 0.0
  %3653 = vmatpush1.msra.mxu0 0.0
  %3654 = vmatprep.subr.mxu0 0.0
  %3655 = vmatpush1.msra.mxu0 0.0
  %3656 = vmatprep.subr.mxu0 0.0
  %3657 = vmatpush1.msra.mxu0 0.0
  %3658 = vmatprep.subr.mxu0 0.0
  %3659 = vmatpush1.msra.mxu0 0.0
  %3660 = vmatprep.subr.mxu0 0.0
  %3661 = vmatpush1.msra.mxu0 0.0
  %3662 = vmatprep.subr.mxu0 0.0
  %3663 = vmatpush1.msra.mxu0 0.0
  %3664 = vmatprep.subr.mxu0 0.0
  %3665 = vmatpush1.msra.mxu0 0.0
  %3666 = vmatprep.subr.mxu0 0.0
  %3667 = vmatpush1.msra.mxu0 0.0
  %3668 = vmatprep.subr.mxu0 0.0
  %3669 = vmatpush1.msra.mxu0 0.0
  %3670 = vmatprep.subr.mxu0 0.0
  %3671 = vmatpush1.msra.mxu0 0.0
  %3672 = vmatprep.subr.mxu0 0.0
  %3673 = vmatpush1.msra.mxu0 0.0
  %3674 = vmatprep.subr.mxu0 0.0
  %3675 = vmatpush1.msra.mxu0 0.0
  %3676 = vmatprep.subr.mxu0 0.0
  %3677 = vmatpush1.msra.mxu0 0.0
  %3678 = vmatprep.subr.mxu0 0.0
  %3679 = vmatpush1.msra.mxu0 0.0
  %3680 = vmatprep.subr.mxu0 0.0
  %3681 = vmatpush1.msra.mxu0 0.0
  %3682 = vmatprep.subr.mxu0 0.0
  %3683 = vmatpush1.msra.mxu0 0.0
  %3684 = vmatprep.subr.mxu0 0.0
  %3685 = vmatpush1.msra.mxu0 0.0
  %3686 = vmatprep.subr.mxu0 0.0
  %3687 = vmatpush1.msra.mxu0 0.0
  %3688 = vmatprep.subr.mxu0 0.0
  %3689 = vmatpush1.msra.mxu0 0.0
  %3690 = vmatprep.subr.mxu0 0.0
  %3691 = vmatpush1.msra.mxu0 0.0
  %3692 = vmatprep.subr.mxu0 0.0
  %3693 = vmatpush1.msra.mxu0 0.0
  %3694 = vmatprep.subr.mxu0 0.0
  %3695 = vmatpush1.msra.mxu0 0.0
  %3696 = vmatprep.subr.mxu0 0.0
  %3697 = vmatpush1.msra.mxu0 0.0
  %3698 = vmatprep.subr.mxu0 0.0
  %3699 = vmatpush1.msra.mxu0 0.0
  %3700 = vmatprep.subr.mxu0 0.0
  %3701 = vmatpush1.msra.mxu0 0.0
  %3702 = vmatprep.subr.mxu0 0.0
  %3703 = vmatpush1.msra.mxu0 0.0
  %3704 = vmatprep.subr.mxu0 0.0
  %3705 = vmatpush1.msra.mxu0 0.0
  %3706 = vmatprep.subr.mxu0 0.0
  %3707 = vmatpush1.msra.mxu0 0.0
  %3708 = vmatprep.mubr.f32.mxu0 0.0
  %3709 = vmatmul.mubr.f32.gmra.mrb[0].mxu0 %v3047
  %v3710 = vpop.f32.mrb[0].mxu0
  %v3711 = vadd.f32 %v3642, %v3710
  %v3712 = vpop.f32.mrb[0].mxu0
  %3713 = vmatprep.mubr.f32.mxu0 0.0
  %3714 = vmatmul.mubr.f32.gmra.mrb[0].mxu0 %v3050
  %v3715 = vpop.f32.mrb[0].mxu0
  %v3716 = vadd.f32 %v3642, %v3715
  %v3717 = vpop.f32.mrb[0].mxu0
  %3718 = vdwg.mxu0
  %s3719 = scalar_lea.vmem %s2, 544
  %v3720 = vld [vmem:[%s3719] sm:$0xff]
  %v3721 = vld [vmem:[%s3719 + $0x8] sm:$0xff]
  %v3722 = vld [vmem:[%s3719 + $0x10] sm:$0xff]
  %v3723 = vld [vmem:[%s3719 + $0x18] sm:$0xff]
  %s3724 = scalar_lea.vmem %s3, 17
  %v3725 = vld [vmem:[%s3724] sm:$0x1]
  %v3727 = vlaneseq
  %v3728 = vshrl.u32 %v3727, 7
  %v3729 = vsub.s32 0, %v3728
  %v3730 = vrot.slane %v3725, %v3729
  %3732 = vmatprep.subr.mxu0 0.0
  %3733 = vmatpush1.msra.mxu0 %v3720
  %3734 = vmatprep.subr.mxu0 0.0
  %3735 = vmatpush1.msra.mxu0 %v3721
  %3736 = vmatprep.subr.mxu0 0.0
  %3737 = vmatpush1.msra.mxu0 %v3722
  %3738 = vmatprep.subr.mxu0 0.0
  %3739 = vmatpush1.msra.mxu0 %v3723
  %3740 = vmatprep.subr.mxu0 0.0
  %3741 = vmatpush1.msra.mxu0 0.0
  %3742 = vmatprep.subr.mxu0 0.0
  %3743 = vmatpush1.msra.mxu0 0.0
  %3744 = vmatprep.subr.mxu0 0.0
  %3745 = vmatpush1.msra.mxu0 0.0
  %3746 = vmatprep.subr.mxu0 0.0
  %3747 = vmatpush1.msra.mxu0 0.0
  %3748 = vmatprep.subr.mxu0 0.0
  %3749 = vmatpush1.msra.mxu0 0.0
  %3750 = vmatprep.subr.mxu0 0.0
  %3751 = vmatpush1.msra.mxu0 0.0
  %3752 = vmatprep.subr.mxu0 0.0
  %3753 = vmatpush1.msra.mxu0 0.0
  %3754 = vmatprep.subr.mxu0 0.0
  %3755 = vmatpush1.msra.mxu0 0.0
  %3756 = vmatprep.subr.mxu0 0.0
  %3757 = vmatpush1.msra.mxu0 0.0
  %3758 = vmatprep.subr.mxu0 0.0
  %3759 = vmatpush1.msra.mxu0 0.0
  %3760 = vmatprep.subr.mxu0 0.0
  %3761 = vmatpush1.msra.mxu0 0.0
  %3762 = vmatprep.subr.mxu0 0.0
  %3763 = vmatpush1.msra.mxu0 0.0
  %3764 = vmatprep.subr.mxu0 0.0
  %3765 = vmatpush1.msra.mxu0 0.0
  %3766 = vmatprep.subr.mxu0 0.0
  %3767 = vmatpush1.msra.mxu0 0.0
  %3768 = vmatprep.subr.mxu0 0.0
  %3769 = vmatpush1.msra.mxu0 0.0
  %3770 = vmatprep.subr.mxu0 0.0
  %3771 = vmatpush1.msra.mxu0 0.0
  %3772 = vmatprep.subr.mxu0 0.0
  %3773 = vmatpush1.msra.mxu0 0.0
  %3774 = vmatprep.subr.mxu0 0.0
  %3775 = vmatpush1.msra.mxu0 0.0
  %3776 = vmatprep.subr.mxu0 0.0
  %3777 = vmatpush1.msra.mxu0 0.0
  %3778 = vmatprep.subr.mxu0 0.0
  %3779 = vmatpush1.msra.mxu0 0.0
  %3780 = vmatprep.subr.mxu0 0.0
  %3781 = vmatpush1.msra.mxu0 0.0
  %3782 = vmatprep.subr.mxu0 0.0
  %3783 = vmatpush1.msra.mxu0 0.0
  %3784 = vmatprep.subr.mxu0 0.0
  %3785 = vmatpush1.msra.mxu0 0.0
  %3786 = vmatprep.subr.mxu0 0.0
  %3787 = vmatpush1.msra.mxu0 0.0
  %3788 = vmatprep.subr.mxu0 0.0
  %3789 = vmatpush1.msra.mxu0 0.0
  %3790 = vmatprep.subr.mxu0 0.0
  %3791 = vmatpush1.msra.mxu0 0.0
  %3792 = vmatprep.subr.mxu0 0.0
  %3793 = vmatpush1.msra.mxu0 0.0
  %3794 = vmatprep.subr.mxu0 0.0
  %3795 = vmatpush1.msra.mxu0 0.0
  %3796 = vmatprep.mubr.f32.mxu0 0.0
  %3797 = vmatmul.mubr.f32.gmra.mrb[0].mxu0 %v3047
  %v3798 = vpop.f32.mrb[0].mxu0
  %v3799 = vadd.f32 %v3730, %v3798
  %v3800 = vpop.f32.mrb[0].mxu0
  %3801 = vmatprep.mubr.f32.mxu0 0.0
  %3802 = vmatmul.mubr.f32.gmra.mrb[0].mxu0 %v3050
  %v3803 = vpop.f32.mrb[0].mxu0
  %v3804 = vadd.f32 %v3730, %v3803
  %v3805 = vpop.f32.mrb[0].mxu0
  %3806 = vdwg.mxu0
  %s3807 = scalar_lea.vmem %s2, 672
  %v3808 = vld [vmem:[%s3807] sm:$0xff]
  %v3809 = vld [vmem:[%s3807 + $0x8] sm:$0xff]
  %v3810 = vld [vmem:[%s3807 + $0x10] sm:$0xff]
  %v3811 = vld [vmem:[%s3807 + $0x18] sm:$0xff]
  %s3812 = scalar_lea.vmem %s3, 21
  %v3813 = vld [vmem:[%s3812] sm:$0x1]
  %v3815 = vlaneseq
  %v3816 = vshrl.u32 %v3815, 7
  %v3817 = vsub.s32 0, %v3816
  %v3818 = vrot.slane %v3813, %v3817
  %3820 = vmatprep.subr.mxu0 0.0
  %3821 = vmatpush1.msra.mxu0 %v3808
  %3822 = vmatprep.subr.mxu0 0.0
  %3823 = vmatpush1.msra.mxu0 %v3809
  %3824 = vmatprep.subr.mxu0 0.0
  %3825 = vmatpush1.msra.mxu0 %v3810
  %3826 = vmatprep.subr.mxu0 0.0
  %3827 = vmatpush1.msra.mxu0 %v3811
  %3828 = vmatprep.subr.mxu0 0.0
  %3829 = vmatpush1.msra.mxu0 0.0
  %3830 = vmatprep.subr.mxu0 0.0
  %3831 = vmatpush1.msra.mxu0 0.0
  %3832 = vmatprep.subr.mxu0 0.0
  %3833 = vmatpush1.msra.mxu0 0.0
  %3834 = vmatprep.subr.mxu0 0.0
  %3835 = vmatpush1.msra.mxu0 0.0
  %3836 = vmatprep.subr.mxu0 0.0
  %3837 = vmatpush1.msra.mxu0 0.0
  %3838 = vmatprep.subr.mxu0 0.0
  %3839 = vmatpush1.msra.mxu0 0.0
  %3840 = vmatprep.subr.mxu0 0.0
  %3841 = vmatpush1.msra.mxu0 0.0
  %3842 = vmatprep.subr.mxu0 0.0
  %3843 = vmatpush1.msra.mxu0 0.0
  %3844 = vmatprep.subr.mxu0 0.0
  %3845 = vmatpush1.msra.mxu0 0.0
  %3846 = vmatprep.subr.mxu0 0.0
  %3847 = vmatpush1.msra.mxu0 0.0
  %3848 = vmatprep.subr.mxu0 0.0
  %3849 = vmatpush1.msra.mxu0 0.0
  %3850 = vmatprep.subr.mxu0 0.0
  %3851 = vmatpush1.msra.mxu0 0.0
  %3852 = vmatprep.subr.mxu0 0.0
  %3853 = vmatpush1.msra.mxu0 0.0
  %3854 = vmatprep.subr.mxu0 0.0
  %3855 = vmatpush1.msra.mxu0 0.0
  %3856 = vmatprep.subr.mxu0 0.0
  %3857 = vmatpush1.msra.mxu0 0.0
  %3858 = vmatprep.subr.mxu0 0.0
  %3859 = vmatpush1.msra.mxu0 0.0
  %3860 = vmatprep.subr.mxu0 0.0
  %3861 = vmatpush1.msra.mxu0 0.0
  %3862 = vmatprep.subr.mxu0 0.0
  %3863 = vmatpush1.msra.mxu0 0.0
  %3864 = vmatprep.subr.mxu0 0.0
  %3865 = vmatpush1.msra.mxu0 0.0
  %3866 = vmatprep.subr.mxu0 0.0
  %3867 = vmatpush1.msra.mxu0 0.0
  %3868 = vmatprep.subr.mxu0 0.0
  %3869 = vmatpush1.msra.mxu0 0.0
  %3870 = vmatprep.subr.mxu0 0.0
  %3871 = vmatpush1.msra.mxu0 0.0
  %3872 = vmatprep.subr.mxu0 0.0
  %3873 = vmatpush1.msra.mxu0 0.0
  %3874 = vmatprep.subr.mxu0 0.0
  %3875 = vmatpush1.msra.mxu0 0.0
  %3876 = vmatprep.subr.mxu0 0.0
  %3877 = vmatpush1.msra.mxu0 0.0
  %3878 = vmatprep.subr.mxu0 0.0
  %3879 = vmatpush1.msra.mxu0 0.0
  %3880 = vmatprep.subr.mxu0 0.0
  %3881 = vmatpush1.msra.mxu0 0.0
  %3882 = vmatprep.subr.mxu0 0.0
  %3883 = vmatpush1.msra.mxu0 0.0
  %3884 = vmatprep.mubr.f32.mxu0 0.0
  %3885 = vmatmul.mubr.f32.gmra.mrb[0].mxu0 %v3229
  %v3886 = vpop.f32.mrb[0].mxu0
  %v3887 = vadd.f32 %v3818, %v3886
  %v3888 = vpop.f32.mrb[0].mxu0
  %3889 = vmatprep.mubr.f32.mxu0 0.0
  %3890 = vmatmul.mubr.f32.gmra.mrb[0].mxu0 %v3232
  %v3891 = vpop.f32.mrb[0].mxu0
  %v3892 = vadd.f32 %v3818, %v3891
  %v3893 = vpop.f32.mrb[0].mxu0
  %3894 = vdwg.mxu0
  %v3896 = vsel %vm328, %v3711, 0
  %v3899 = vsel %vm328, %v3799, 0
  %3901 = vmatprep.subr.mxu0 0.0
  %3902 = vmatpush1.xpose.msra.mxu0 %v3899
  %3903 = vmatprep.subr.mxu0 0.0
  %3904 = vmatpush1.xpose.msra.mxu0 0.0
  %3905 = vmatprep.subr.mxu0 0.0
  %3906 = vmatpush1.xpose.msra.mxu0 0.0
  %3907 = vmatprep.subr.mxu0 0.0
  %3908 = vmatpush1.xpose.msra.mxu0 0.0
  %3909 = vmatprep.subr.mxu0 0.0
  %3910 = vmatpush1.xpose.msra.mxu0 0.0
  %3911 = vmatprep.subr.mxu0 0.0
  %3912 = vmatpush1.xpose.msra.mxu0 0.0
  %3913 = vmatprep.subr.mxu0 0.0
  %3914 = vmatpush1.xpose.msra.mxu0 0.0
  %3915 = vmatprep.subr.mxu0 0.0
  %3916 = vmatpush1.xpose.msra.mxu0 0.0
  %3917 = vmatprep.subr.mxu0 0.0
  %3918 = vmatpush1.xpose.msra.mxu0 0.0
  %3919 = vmatprep.subr.mxu0 0.0
  %3920 = vmatpush1.xpose.msra.mxu0 0.0
  %3921 = vmatprep.subr.mxu0 0.0
  %3922 = vmatpush1.xpose.msra.mxu0 0.0
  %3923 = vmatprep.subr.mxu0 0.0
  %3924 = vmatpush1.xpose.msra.mxu0 0.0
  %3925 = vmatprep.subr.mxu0 0.0
  %3926 = vmatpush1.xpose.msra.mxu0 0.0
  %3927 = vmatprep.subr.mxu0 0.0
  %3928 = vmatpush1.xpose.msra.mxu0 0.0
  %3929 = vmatprep.subr.mxu0 0.0
  %3930 = vmatpush1.xpose.msra.mxu0 0.0
  %3931 = vmatprep.subr.mxu0 0.0
  %3932 = vmatpush1.xpose.msra.mxu0 0.0
  %3933 = vmatprep.subr.mxu0 0.0
  %3934 = vmatpush1.xpose.msra.mxu0 0.0
  %3935 = vmatprep.subr.mxu0 0.0
  %3936 = vmatpush1.xpose.msra.mxu0 0.0
  %3937 = vmatprep.subr.mxu0 0.0
  %3938 = vmatpush1.xpose.msra.mxu0 0.0
  %3939 = vmatprep.subr.mxu0 0.0
  %3940 = vmatpush1.xpose.msra.mxu0 0.0
  %3941 = vmatprep.subr.mxu0 0.0
  %3942 = vmatpush1.xpose.msra.mxu0 0.0
  %3943 = vmatprep.subr.mxu0 0.0
  %3944 = vmatpush1.xpose.msra.mxu0 0.0
  %3945 = vmatprep.subr.mxu0 0.0
  %3946 = vmatpush1.xpose.msra.mxu0 0.0
  %3947 = vmatprep.subr.mxu0 0.0
  %3948 = vmatpush1.xpose.msra.mxu0 0.0
  %3949 = vmatprep.subr.mxu0 0.0
  %3950 = vmatpush1.xpose.msra.mxu0 0.0
  %3951 = vmatprep.subr.mxu0 0.0
  %3952 = vmatpush1.xpose.msra.mxu0 0.0
  %3953 = vmatprep.subr.mxu0 0.0
  %3954 = vmatpush1.xpose.msra.mxu0 0.0
  %3955 = vmatprep.subr.mxu0 0.0
  %3956 = vmatpush1.xpose.msra.mxu0 0.0
  %3957 = vmatprep.subr.mxu0 0.0
  %3958 = vmatpush1.xpose.msra.mxu0 0.0
  %3959 = vmatprep.subr.mxu0 0.0
  %3960 = vmatpush1.xpose.msra.mxu0 0.0
  %3961 = vmatprep.subr.mxu0 0.0
  %3962 = vmatpush1.xpose.msra.mxu0 0.0
  %3963 = vmatprep.subr.mxu0 0.0
  %3964 = vmatpush1.xpose.msra.mxu0 0.0
  %3965 = vmatprep.mubr.f32.mxu0 0.0
  %3966 = vmatmul.mubr.f32.gmra.mrb[0].mxu0 %v3896
  %v3967 = vpop.f32.mrb[0].mxu0
  %v3968 = vadd.f32 0.0, %v3967
  %v3969 = vpop.f32.mrb[0].mxu0
  %3970 = vdwg.mxu0
  %v3972 = vsel %vm328, %v3716, 0
  %v3975 = vsel %vm328, %v3804, 0
  %3977 = vmatprep.subr.mxu0 0.0
  %3978 = vmatpush1.xpose.msra.mxu0 %v3975
  %3979 = vmatprep.subr.mxu0 0.0
  %3980 = vmatpush1.xpose.msra.mxu0 0.0
  %3981 = vmatprep.subr.mxu0 0.0
  %3982 = vmatpush1.xpose.msra.mxu0 0.0
  %3983 = vmatprep.subr.mxu0 0.0
  %3984 = vmatpush1.xpose.msra.mxu0 0.0
  %3985 = vmatprep.subr.mxu0 0.0
  %3986 = vmatpush1.xpose.msra.mxu0 0.0
  %3987 = vmatprep.subr.mxu0 0.0
  %3988 = vmatpush1.xpose.msra.mxu0 0.0
  %3989 = vmatprep.subr.mxu0 0.0
  %3990 = vmatpush1.xpose.msra.mxu0 0.0
  %3991 = vmatprep.subr.mxu0 0.0
  %3992 = vmatpush1.xpose.msra.mxu0 0.0
  %3993 = vmatprep.subr.mxu0 0.0
  %3994 = vmatpush1.xpose.msra.mxu0 0.0
  %3995 = vmatprep.subr.mxu0 0.0
  %3996 = vmatpush1.xpose.msra.mxu0 0.0
  %3997 = vmatprep.subr.mxu0 0.0
  %3998 = vmatpush1.xpose.msra.mxu0 0.0
  %3999 = vmatprep.subr.mxu0 0.0
  %4000 = vmatpush1.xpose.msra.mxu0 0.0
  %4001 = vmatprep.subr.mxu0 0.0
  %4002 = vmatpush1.xpose.msra.mxu0 0.0
  %4003 = vmatprep.subr.mxu0 0.0
  %4004 = vmatpush1.xpose.msra.mxu0 0.0
  %4005 = vmatprep.subr.mxu0 0.0
  %4006 = vmatpush1.xpose.msra.mxu0 0.0
  %4007 = vmatprep.subr.mxu0 0.0
  %4008 = vmatpush1.xpose.msra.mxu0 0.0
  %4009 = vmatprep.subr.mxu0 0.0
  %4010 = vmatpush1.xpose.msra.mxu0 0.0
  %4011 = vmatprep.subr.mxu0 0.0
  %4012 = vmatpush1.xpose.msra.mxu0 0.0
  %4013 = vmatprep.subr.mxu0 0.0
  %4014 = vmatpush1.xpose.msra.mxu0 0.0
  %4015 = vmatprep.subr.mxu0 0.0
  %4016 = vmatpush1.xpose.msra.mxu0 0.0
  %4017 = vmatprep.subr.mxu0 0.0
  %4018 = vmatpush1.xpose.msra.mxu0 0.0
  %4019 = vmatprep.subr.mxu0 0.0
  %4020 = vmatpush1.xpose.msra.mxu0 0.0
  %4021 = vmatprep.subr.mxu0 0.0
  %4022 = vmatpush1.xpose.msra.mxu0 0.0
  %4023 = vmatprep.subr.mxu0 0.0
  %4024 = vmatpush1.xpose.msra.mxu0 0.0
  %4025 = vmatprep.subr.mxu0 0.0
  %4026 = vmatpush1.xpose.msra.mxu0 0.0
  %4027 = vmatprep.subr.mxu0 0.0
  %4028 = vmatpush1.xpose.msra.mxu0 0.0
  %4029 = vmatprep.subr.mxu0 0.0
  %4030 = vmatpush1.xpose.msra.mxu0 0.0
  %4031 = vmatprep.subr.mxu0 0.0
  %4032 = vmatpush1.xpose.msra.mxu0 0.0
  %4033 = vmatprep.subr.mxu0 0.0
  %4034 = vmatpush1.xpose.msra.mxu0 0.0
  %4035 = vmatprep.subr.mxu0 0.0
  %4036 = vmatpush1.xpose.msra.mxu0 0.0
  %4037 = vmatprep.subr.mxu0 0.0
  %4038 = vmatpush1.xpose.msra.mxu0 0.0
  %4039 = vmatprep.subr.mxu0 0.0
  %4040 = vmatpush1.xpose.msra.mxu0 0.0
  %4041 = vmatprep.mubr.f32.mxu0 0.0
  %4042 = vmatmul.mubr.f32.gmra.mrb[0].mxu0 %v3972
  %v4043 = vpop.f32.mrb[0].mxu0
  %v4044 = vadd.f32 0.0, %v4043
  %v4045 = vpop.f32.mrb[0].mxu0
  %4046 = vdwg.mxu0
  %v4047 = vsel %vm328, %v3968, -inf
  %4048 = vmax.xlane.f32.xlu0 %v4047
  %v4049 = vpop.xlane.xlu0 %4048
  %v4050 = vsel %vm328, %v4044, -inf
  %4051 = vmax.xlane.f32.xlu0 %v4050
  %v4052 = vpop.xlane.xlu0 %4051
  %v4053 = vsub.f32 %v3968, %v4049
  %v4054 = vsub.f32 %v4044, %v4052
  %v4055 = vmul.f32 %v4053, 1.442695
  %v4056 = vpow.pop %v4055
  %v4057 = vmul.f32 %v4054, 1.442695
  %v4058 = vpow.pop %v4057
  %v4059 = vsel %vm328, %v4056, 0.0
  %4060 = vadd.xlane.f32.xlu0 %v4059
  %v4061 = vpop.xlane.xlu0 %4060
  %v4062 = vsel %vm328, %v4058, 0.0
  %4063 = vadd.xlane.f32.xlu0 %v4062
  %v4064 = vpop.xlane.xlu0 %4063
  %v4065 = vrcp.pop %v4061
  %v4066 = vrcp.pop %v4064
  %v4067 = vmul.f32 %v4056, %v4065
  %v4068 = vmul.f32 %v4058, %v4066
  %v4070 = vsel %vm328, %v4067, 0
  %4072 = vmatprep.subr.mxu0 0.0
  %4073 = vmatpush1.msra.mxu0 %v3887
  %4074 = vmatprep.subr.mxu0 0.0
  %4075 = vmatpush1.msra.mxu0 0.0
  %4076 = vmatprep.subr.mxu0 0.0
  %4077 = vmatpush1.msra.mxu0 0.0
  %4078 = vmatprep.subr.mxu0 0.0
  %4079 = vmatpush1.msra.mxu0 0.0
  %4080 = vmatprep.subr.mxu0 0.0
  %4081 = vmatpush1.msra.mxu0 0.0
  %4082 = vmatprep.subr.mxu0 0.0
  %4083 = vmatpush1.msra.mxu0 0.0
  %4084 = vmatprep.subr.mxu0 0.0
  %4085 = vmatpush1.msra.mxu0 0.0
  %4086 = vmatprep.subr.mxu0 0.0
  %4087 = vmatpush1.msra.mxu0 0.0
  %4088 = vmatprep.subr.mxu0 0.0
  %4089 = vmatpush1.msra.mxu0 0.0
  %4090 = vmatprep.subr.mxu0 0.0
  %4091 = vmatpush1.msra.mxu0 0.0
  %4092 = vmatprep.subr.mxu0 0.0
  %4093 = vmatpush1.msra.mxu0 0.0
  %4094 = vmatprep.subr.mxu0 0.0
  %4095 = vmatpush1.msra.mxu0 0.0
  %4096 = vmatprep.subr.mxu0 0.0
  %4097 = vmatpush1.msra.mxu0 0.0
  %4098 = vmatprep.subr.mxu0 0.0
  %4099 = vmatpush1.msra.mxu0 0.0
  %4100 = vmatprep.subr.mxu0 0.0
  %4101 = vmatpush1.msra.mxu0 0.0
  %4102 = vmatprep.subr.mxu0 0.0
  %4103 = vmatpush1.msra.mxu0 0.0
  %4104 = vmatprep.subr.mxu0 0.0
  %4105 = vmatpush1.msra.mxu0 0.0
  %4106 = vmatprep.subr.mxu0 0.0
  %4107 = vmatpush1.msra.mxu0 0.0
  %4108 = vmatprep.subr.mxu0 0.0
  %4109 = vmatpush1.msra.mxu0 0.0
  %4110 = vmatprep.subr.mxu0 0.0
  %4111 = vmatpush1.msra.mxu0 0.0
  %4112 = vmatprep.subr.mxu0 0.0
  %4113 = vmatpush1.msra.mxu0 0.0
  %4114 = vmatprep.subr.mxu0 0.0
  %4115 = vmatpush1.msra.mxu0 0.0
  %4116 = vmatprep.subr.mxu0 0.0
  %4117 = vmatpush1.msra.mxu0 0.0
  %4118 = vmatprep.subr.mxu0 0.0
  %4119 = vmatpush1.msra.mxu0 0.0
  %4120 = vmatprep.subr.mxu0 0.0
  %4121 = vmatpush1.msra.mxu0 0.0
  %4122 = vmatprep.subr.mxu0 0.0
  %4123 = vmatpush1.msra.mxu0 0.0
  %4124 = vmatprep.subr.mxu0 0.0
  %4125 = vmatpush1.msra.mxu0 0.0
  %4126 = vmatprep.subr.mxu0 0.0
  %4127 = vmatpush1.msra.mxu0 0.0
  %4128 = vmatprep.subr.mxu0 0.0
  %4129 = vmatpush1.msra.mxu0 0.0
  %4130 = vmatprep.subr.mxu0 0.0
  %4131 = vmatpush1.msra.mxu0 0.0
  %4132 = vmatprep.subr.mxu0 0.0
  %4133 = vmatpush1.msra.mxu0 0.0
  %4134 = vmatprep.subr.mxu0 0.0
  %4135 = vmatpush1.msra.mxu0 0.0
  %4136 = vmatprep.mubr.f32.mxu0 0.0
  %4137 = vmatmul.mubr.f32.gmra.mrb[0].mxu0 %v4070
  %v4138 = vpop.f32.mrb[0].mxu0
  %v4139 = vadd.f32 0.0, %v4138
  %v4140 = vpop.f32.mrb[0].mxu0
  %4141 = vdwg.mxu0
  %v4143 = vsel %vm328, %v4068, 0
  %4145 = vmatprep.subr.mxu0 0.0
  %4146 = vmatpush1.msra.mxu0 %v3892
  %4147 = vmatprep.subr.mxu0 0.0
  %4148 = vmatpush1.msra.mxu0 0.0
  %4149 = vmatprep.subr.mxu0 0.0
  %4150 = vmatpush1.msra.mxu0 0.0
  %4151 = vmatprep.subr.mxu0 0.0
  %4152 = vmatpush1.msra.mxu0 0.0
  %4153 = vmatprep.subr.mxu0 0.0
  %4154 = vmatpush1.msra.mxu0 0.0
  %4155 = vmatprep.subr.mxu0 0.0
  %4156 = vmatpush1.msra.mxu0 0.0
  %4157 = vmatprep.subr.mxu0 0.0
  %4158 = vmatpush1.msra.mxu0 0.0
  %4159 = vmatprep.subr.mxu0 0.0
  %4160 = vmatpush1.msra.mxu0 0.0
  %4161 = vmatprep.subr.mxu0 0.0
  %4162 = vmatpush1.msra.mxu0 0.0
  %4163 = vmatprep.subr.mxu0 0.0
  %4164 = vmatpush1.msra.mxu0 0.0
  %4165 = vmatprep.subr.mxu0 0.0
  %4166 = vmatpush1.msra.mxu0 0.0
  %4167 = vmatprep.subr.mxu0 0.0
  %4168 = vmatpush1.msra.mxu0 0.0
  %4169 = vmatprep.subr.mxu0 0.0
  %4170 = vmatpush1.msra.mxu0 0.0
  %4171 = vmatprep.subr.mxu0 0.0
  %4172 = vmatpush1.msra.mxu0 0.0
  %4173 = vmatprep.subr.mxu0 0.0
  %4174 = vmatpush1.msra.mxu0 0.0
  %4175 = vmatprep.subr.mxu0 0.0
  %4176 = vmatpush1.msra.mxu0 0.0
  %4177 = vmatprep.subr.mxu0 0.0
  %4178 = vmatpush1.msra.mxu0 0.0
  %4179 = vmatprep.subr.mxu0 0.0
  %4180 = vmatpush1.msra.mxu0 0.0
  %4181 = vmatprep.subr.mxu0 0.0
  %4182 = vmatpush1.msra.mxu0 0.0
  %4183 = vmatprep.subr.mxu0 0.0
  %4184 = vmatpush1.msra.mxu0 0.0
  %4185 = vmatprep.subr.mxu0 0.0
  %4186 = vmatpush1.msra.mxu0 0.0
  %4187 = vmatprep.subr.mxu0 0.0
  %4188 = vmatpush1.msra.mxu0 0.0
  %4189 = vmatprep.subr.mxu0 0.0
  %4190 = vmatpush1.msra.mxu0 0.0
  %4191 = vmatprep.subr.mxu0 0.0
  %4192 = vmatpush1.msra.mxu0 0.0
  %4193 = vmatprep.subr.mxu0 0.0
  %4194 = vmatpush1.msra.mxu0 0.0
  %4195 = vmatprep.subr.mxu0 0.0
  %4196 = vmatpush1.msra.mxu0 0.0
  %4197 = vmatprep.subr.mxu0 0.0
  %4198 = vmatpush1.msra.mxu0 0.0
  %4199 = vmatprep.subr.mxu0 0.0
  %4200 = vmatpush1.msra.mxu0 0.0
  %4201 = vmatprep.subr.mxu0 0.0
  %4202 = vmatpush1.msra.mxu0 0.0
  %4203 = vmatprep.subr.mxu0 0.0
  %4204 = vmatpush1.msra.mxu0 0.0
  %4205 = vmatprep.subr.mxu0 0.0
  %4206 = vmatpush1.msra.mxu0 0.0
  %4207 = vmatprep.subr.mxu0 0.0
  %4208 = vmatpush1.msra.mxu0 0.0
  %4209 = vmatprep.mubr.f32.mxu0 0.0
  %4210 = vmatmul.mubr.f32.gmra.mrb[0].mxu0 %v4143
  %v4211 = vpop.f32.mrb[0].mxu0
  %v4212 = vadd.f32 0.0, %v4211
  %v4213 = vpop.f32.mrb[0].mxu0
  %4214 = vdwg.mxu0
  %s4215 = scalar_lea.vmem %s4, 40
  %v4216 = vld [vmem:[%s4215] sm:$0xff]
  %v4218 = vsel %vm328, %v4139, 0
  %v4221 = vsel %vm328, %v4212, 0
  %4223 = vmatprep.subr.mxu0 0.0
  %4224 = vmatpush1.msra.mxu0 %v4216
  %4225 = vmatprep.subr.mxu0 0.0
  %4226 = vmatpush1.msra.mxu0 0.0
  %4227 = vmatprep.subr.mxu0 0.0
  %4228 = vmatpush1.msra.mxu0 0.0
  %4229 = vmatprep.subr.mxu0 0.0
  %4230 = vmatpush1.msra.mxu0 0.0
  %4231 = vmatprep.subr.mxu0 0.0
  %4232 = vmatpush1.msra.mxu0 0.0
  %4233 = vmatprep.subr.mxu0 0.0
  %4234 = vmatpush1.msra.mxu0 0.0
  %4235 = vmatprep.subr.mxu0 0.0
  %4236 = vmatpush1.msra.mxu0 0.0
  %4237 = vmatprep.subr.mxu0 0.0
  %4238 = vmatpush1.msra.mxu0 0.0
  %4239 = vmatprep.subr.mxu0 0.0
  %4240 = vmatpush1.msra.mxu0 0.0
  %4241 = vmatprep.subr.mxu0 0.0
  %4242 = vmatpush1.msra.mxu0 0.0
  %4243 = vmatprep.subr.mxu0 0.0
  %4244 = vmatpush1.msra.mxu0 0.0
  %4245 = vmatprep.subr.mxu0 0.0
  %4246 = vmatpush1.msra.mxu0 0.0
  %4247 = vmatprep.subr.mxu0 0.0
  %4248 = vmatpush1.msra.mxu0 0.0
  %4249 = vmatprep.subr.mxu0 0.0
  %4250 = vmatpush1.msra.mxu0 0.0
  %4251 = vmatprep.subr.mxu0 0.0
  %4252 = vmatpush1.msra.mxu0 0.0
  %4253 = vmatprep.subr.mxu0 0.0
  %4254 = vmatpush1.msra.mxu0 0.0
  %4255 = vmatprep.subr.mxu0 0.0
  %4256 = vmatpush1.msra.mxu0 0.0
  %4257 = vmatprep.subr.mxu0 0.0
  %4258 = vmatpush1.msra.mxu0 0.0
  %4259 = vmatprep.subr.mxu0 0.0
  %4260 = vmatpush1.msra.mxu0 0.0
  %4261 = vmatprep.subr.mxu0 0.0
  %4262 = vmatpush1.msra.mxu0 0.0
  %4263 = vmatprep.subr.mxu0 0.0
  %4264 = vmatpush1.msra.mxu0 0.0
  %4265 = vmatprep.subr.mxu0 0.0
  %4266 = vmatpush1.msra.mxu0 0.0
  %4267 = vmatprep.subr.mxu0 0.0
  %4268 = vmatpush1.msra.mxu0 0.0
  %4269 = vmatprep.subr.mxu0 0.0
  %4270 = vmatpush1.msra.mxu0 0.0
  %4271 = vmatprep.subr.mxu0 0.0
  %4272 = vmatpush1.msra.mxu0 0.0
  %4273 = vmatprep.subr.mxu0 0.0
  %4274 = vmatpush1.msra.mxu0 0.0
  %4275 = vmatprep.subr.mxu0 0.0
  %4276 = vmatpush1.msra.mxu0 0.0
  %4277 = vmatprep.subr.mxu0 0.0
  %4278 = vmatpush1.msra.mxu0 0.0
  %4279 = vmatprep.subr.mxu0 0.0
  %4280 = vmatpush1.msra.mxu0 0.0
  %4281 = vmatprep.subr.mxu0 0.0
  %4282 = vmatpush1.msra.mxu0 0.0
  %4283 = vmatprep.subr.mxu0 0.0
  %4284 = vmatpush1.msra.mxu0 0.0
  %4285 = vmatprep.subr.mxu0 0.0
  %4286 = vmatpush1.msra.mxu0 0.0
  %4287 = vmatprep.mubr.f32.mxu0 0.0
  %4288 = vmatmul.mubr.f32.gmra.mrb[0].mxu0 %v4218
  %v4289 = vpop.f32.mrb[0].mxu0
  %v4290 = vadd.f32 0.0, %v4289
  %v4291 = vpop.f32.mrb[0].mxu0
  %4292 = vmatprep.mubr.f32.mxu0 0.0
  %4293 = vmatmul.mubr.f32.gmra.mrb[0].mxu0 %v4221
  %v4294 = vpop.f32.mrb[0].mxu0
  %v4295 = vadd.f32 0.0, %v4294
  %v4296 = vpop.f32.mrb[0].mxu0
  %4297 = vdwg.mxu0
  %v4299 = vsel %vm328, %v3553, 0
  %v4302 = vsel %vm328, %v3626, 0
  %4304 = vmatprep.subr.mxu0 0.0
  %4305 = vmatpush1.msra.mxu0 %v3630
  %4306 = vmatprep.subr.mxu0 0.0
  %4307 = vmatpush1.msra.mxu0 0.0
  %4308 = vmatprep.subr.mxu0 0.0
  %4309 = vmatpush1.msra.mxu0 0.0
  %4310 = vmatprep.subr.mxu0 0.0
  %4311 = vmatpush1.msra.mxu0 0.0
  %4312 = vmatprep.subr.mxu0 0.0
  %4313 = vmatpush1.msra.mxu0 0.0
  %4314 = vmatprep.subr.mxu0 0.0
  %4315 = vmatpush1.msra.mxu0 0.0
  %4316 = vmatprep.subr.mxu0 0.0
  %4317 = vmatpush1.msra.mxu0 0.0
  %4318 = vmatprep.subr.mxu0 0.0
  %4319 = vmatpush1.msra.mxu0 0.0
  %4320 = vmatprep.subr.mxu0 0.0
  %4321 = vmatpush1.msra.mxu0 0.0
  %4322 = vmatprep.subr.mxu0 0.0
  %4323 = vmatpush1.msra.mxu0 0.0
  %4324 = vmatprep.subr.mxu0 0.0
  %4325 = vmatpush1.msra.mxu0 0.0
  %4326 = vmatprep.subr.mxu0 0.0
  %4327 = vmatpush1.msra.mxu0 0.0
  %4328 = vmatprep.subr.mxu0 0.0
  %4329 = vmatpush1.msra.mxu0 0.0
  %4330 = vmatprep.subr.mxu0 0.0
  %4331 = vmatpush1.msra.mxu0 0.0
  %4332 = vmatprep.subr.mxu0 0.0
  %4333 = vmatpush1.msra.mxu0 0.0
  %4334 = vmatprep.subr.mxu0 0.0
  %4335 = vmatpush1.msra.mxu0 0.0
  %4336 = vmatprep.subr.mxu0 0.0
  %4337 = vmatpush1.msra.mxu0 0.0
  %4338 = vmatprep.subr.mxu0 0.0
  %4339 = vmatpush1.msra.mxu0 0.0
  %4340 = vmatprep.subr.mxu0 0.0
  %4341 = vmatpush1.msra.mxu0 0.0
  %4342 = vmatprep.subr.mxu0 0.0
  %4343 = vmatpush1.msra.mxu0 0.0
  %4344 = vmatprep.subr.mxu0 0.0
  %4345 = vmatpush1.msra.mxu0 0.0
  %4346 = vmatprep.subr.mxu0 0.0
  %4347 = vmatpush1.msra.mxu0 0.0
  %4348 = vmatprep.subr.mxu0 0.0
  %4349 = vmatpush1.msra.mxu0 0.0
  %4350 = vmatprep.subr.mxu0 0.0
  %4351 = vmatpush1.msra.mxu0 0.0
  %4352 = vmatprep.subr.mxu0 0.0
  %4353 = vmatpush1.msra.mxu0 0.0
  %4354 = vmatprep.subr.mxu0 0.0
  %4355 = vmatpush1.msra.mxu0 0.0
  %4356 = vmatprep.subr.mxu0 0.0
  %4357 = vmatpush1.msra.mxu0 0.0
  %4358 = vmatprep.subr.mxu0 0.0
  %4359 = vmatpush1.msra.mxu0 0.0
  %4360 = vmatprep.subr.mxu0 0.0
  %4361 = vmatpush1.msra.mxu0 0.0
  %4362 = vmatprep.subr.mxu0 0.0
  %4363 = vmatpush1.msra.mxu0 0.0
  %4364 = vmatprep.subr.mxu0 0.0
  %4365 = vmatpush1.msra.mxu0 0.0
  %4366 = vmatprep.subr.mxu0 0.0
  %4367 = vmatpush1.msra.mxu0 0.0
  %4368 = vmatprep.mubr.f32.mxu0 0.0
  %4369 = vmatmul.mubr.f32.gmra.mrb[0].mxu0 %v4299
  %v4370 = vpop.f32.mrb[0].mxu0
  %v4371 = vadd.f32 %v4290, %v4370
  %v4372 = vpop.f32.mrb[0].mxu0
  %4373 = vmatprep.mubr.f32.mxu0 0.0
  %4374 = vmatmul.mubr.f32.gmra.mrb[0].mxu0 %v4302
  %v4375 = vpop.f32.mrb[0].mxu0
  %v4376 = vadd.f32 %v4295, %v4375
  %v4377 = vpop.f32.mrb[0].mxu0
  %4378 = vdwg.mxu0
  %s4379 = scalar_lea.vmem %s2, 448
  %v4380 = vld [vmem:[%s4379] sm:$0xff]
  %v4381 = vld [vmem:[%s4379 + $0x8] sm:$0xff]
  %v4382 = vld [vmem:[%s4379 + $0x10] sm:$0xff]
  %v4383 = vld [vmem:[%s4379 + $0x18] sm:$0xff]
  %s4384 = scalar_lea.vmem %s3, 14
  %v4385 = vld [vmem:[%s4384] sm:$0x1]
  %v4387 = vlaneseq
  %v4388 = vshrl.u32 %v4387, 7
  %v4389 = vsub.s32 0, %v4388
  %v4390 = vrot.slane %v4385, %v4389
  %4392 = vmatprep.subr.mxu0 0.0
  %4393 = vmatpush1.msra.mxu0 %v4380
  %4394 = vmatprep.subr.mxu0 0.0
  %4395 = vmatpush1.msra.mxu0 %v4381
  %4396 = vmatprep.subr.mxu0 0.0
  %4397 = vmatpush1.msra.mxu0 %v4382
  %4398 = vmatprep.subr.mxu0 0.0
  %4399 = vmatpush1.msra.mxu0 %v4383
  %4400 = vmatprep.subr.mxu0 0.0
  %4401 = vmatpush1.msra.mxu0 0.0
  %4402 = vmatprep.subr.mxu0 0.0
  %4403 = vmatpush1.msra.mxu0 0.0
  %4404 = vmatprep.subr.mxu0 0.0
  %4405 = vmatpush1.msra.mxu0 0.0
  %4406 = vmatprep.subr.mxu0 0.0
  %4407 = vmatpush1.msra.mxu0 0.0
  %4408 = vmatprep.subr.mxu0 0.0
  %4409 = vmatpush1.msra.mxu0 0.0
  %4410 = vmatprep.subr.mxu0 0.0
  %4411 = vmatpush1.msra.mxu0 0.0
  %4412 = vmatprep.subr.mxu0 0.0
  %4413 = vmatpush1.msra.mxu0 0.0
  %4414 = vmatprep.subr.mxu0 0.0
  %4415 = vmatpush1.msra.mxu0 0.0
  %4416 = vmatprep.subr.mxu0 0.0
  %4417 = vmatpush1.msra.mxu0 0.0
  %4418 = vmatprep.subr.mxu0 0.0
  %4419 = vmatpush1.msra.mxu0 0.0
  %4420 = vmatprep.subr.mxu0 0.0
  %4421 = vmatpush1.msra.mxu0 0.0
  %4422 = vmatprep.subr.mxu0 0.0
  %4423 = vmatpush1.msra.mxu0 0.0
  %4424 = vmatprep.subr.mxu0 0.0
  %4425 = vmatpush1.msra.mxu0 0.0
  %4426 = vmatprep.subr.mxu0 0.0
  %4427 = vmatpush1.msra.mxu0 0.0
  %4428 = vmatprep.subr.mxu0 0.0
  %4429 = vmatpush1.msra.mxu0 0.0
  %4430 = vmatprep.subr.mxu0 0.0
  %4431 = vmatpush1.msra.mxu0 0.0
  %4432 = vmatprep.subr.mxu0 0.0
  %4433 = vmatpush1.msra.mxu0 0.0
  %4434 = vmatprep.subr.mxu0 0.0
  %4435 = vmatpush1.msra.mxu0 0.0
  %4436 = vmatprep.subr.mxu0 0.0
  %4437 = vmatpush1.msra.mxu0 0.0
  %4438 = vmatprep.subr.mxu0 0.0
  %4439 = vmatpush1.msra.mxu0 0.0
  %4440 = vmatprep.subr.mxu0 0.0
  %4441 = vmatpush1.msra.mxu0 0.0
  %4442 = vmatprep.subr.mxu0 0.0
  %4443 = vmatpush1.msra.mxu0 0.0
  %4444 = vmatprep.subr.mxu0 0.0
  %4445 = vmatpush1.msra.mxu0 0.0
  %4446 = vmatprep.subr.mxu0 0.0
  %4447 = vmatpush1.msra.mxu0 0.0
  %4448 = vmatprep.subr.mxu0 0.0
  %4449 = vmatpush1.msra.mxu0 0.0
  %4450 = vmatprep.subr.mxu0 0.0
  %4451 = vmatpush1.msra.mxu0 0.0
  %4452 = vmatprep.subr.mxu0 0.0
  %4453 = vmatpush1.msra.mxu0 0.0
  %4454 = vmatprep.subr.mxu0 0.0
  %4455 = vmatpush1.msra.mxu0 0.0
  %4456 = vmatprep.mubr.f32.mxu0 0.0
  %4457 = vmatmul.mubr.f32.gmra.mrb[0].mxu0 %v3047
  %v4458 = vpop.f32.mrb[0].mxu0
  %v4459 = vadd.f32 %v4390, %v4458
  %v4460 = vpop.f32.mrb[0].mxu0
  %4461 = vmatprep.mubr.f32.mxu0 0.0
  %4462 = vmatmul.mubr.f32.gmra.mrb[0].mxu0 %v3050
  %v4463 = vpop.f32.mrb[0].mxu0
  %v4464 = vadd.f32 %v4390, %v4463
  %v4465 = vpop.f32.mrb[0].mxu0
  %4466 = vdwg.mxu0
  %s4467 = scalar_lea.vmem %s2, 576
  %v4468 = vld [vmem:[%s4467] sm:$0xff]
  %v4469 = vld [vmem:[%s4467 + $0x8] sm:$0xff]
  %v4470 = vld [vmem:[%s4467 + $0x10] sm:$0xff]
  %v4471 = vld [vmem:[%s4467 + $0x18] sm:$0xff]
  %s4472 = scalar_lea.vmem %s3, 18
  %v4473 = vld [vmem:[%s4472] sm:$0x1]
  %v4475 = vlaneseq
  %v4476 = vshrl.u32 %v4475, 7
  %v4477 = vsub.s32 0, %v4476
  %v4478 = vrot.slane %v4473, %v4477
  %4480 = vmatprep.subr.mxu0 0.0
  %4481 = vmatpush1.msra.mxu0 %v4468
  %4482 = vmatprep.subr.mxu0 0.0
  %4483 = vmatpush1.msra.mxu0 %v4469
  %4484 = vmatprep.subr.mxu0 0.0
  %4485 = vmatpush1.msra.mxu0 %v4470
  %4486 = vmatprep.subr.mxu0 0.0
  %4487 = vmatpush1.msra.mxu0 %v4471
  %4488 = vmatprep.subr.mxu0 0.0
  %4489 = vmatpush1.msra.mxu0 0.0
  %4490 = vmatprep.subr.mxu0 0.0
  %4491 = vmatpush1.msra.mxu0 0.0
  %4492 = vmatprep.subr.mxu0 0.0
  %4493 = vmatpush1.msra.mxu0 0.0
  %4494 = vmatprep.subr.mxu0 0.0
  %4495 = vmatpush1.msra.mxu0 0.0
  %4496 = vmatprep.subr.mxu0 0.0
  %4497 = vmatpush1.msra.mxu0 0.0
  %4498 = vmatprep.subr.mxu0 0.0
  %4499 = vmatpush1.msra.mxu0 0.0
  %4500 = vmatprep.subr.mxu0 0.0
  %4501 = vmatpush1.msra.mxu0 0.0
  %4502 = vmatprep.subr.mxu0 0.0
  %4503 = vmatpush1.msra.mxu0 0.0
  %4504 = vmatprep.subr.mxu0 0.0
  %4505 = vmatpush1.msra.mxu0 0.0
  %4506 = vmatprep.subr.mxu0 0.0
  %4507 = vmatpush1.msra.mxu0 0.0
  %4508 = vmatprep.subr.mxu0 0.0
  %4509 = vmatpush1.msra.mxu0 0.0
  %4510 = vmatprep.subr.mxu0 0.0
  %4511 = vmatpush1.msra.mxu0 0.0
  %4512 = vmatprep.subr.mxu0 0.0
  %4513 = vmatpush1.msra.mxu0 0.0
  %4514 = vmatprep.subr.mxu0 0.0
  %4515 = vmatpush1.msra.mxu0 0.0
  %4516 = vmatprep.subr.mxu0 0.0
  %4517 = vmatpush1.msra.mxu0 0.0
  %4518 = vmatprep.subr.mxu0 0.0
  %4519 = vmatpush1.msra.mxu0 0.0
  %4520 = vmatprep.subr.mxu0 0.0
  %4521 = vmatpush1.msra.mxu0 0.0
  %4522 = vmatprep.subr.mxu0 0.0
  %4523 = vmatpush1.msra.mxu0 0.0
  %4524 = vmatprep.subr.mxu0 0.0
  %4525 = vmatpush1.msra.mxu0 0.0
  %4526 = vmatprep.subr.mxu0 0.0
  %4527 = vmatpush1.msra.mxu0 0.0
  %4528 = vmatprep.subr.mxu0 0.0
  %4529 = vmatpush1.msra.mxu0 0.0
  %4530 = vmatprep.subr.mxu0 0.0
  %4531 = vmatpush1.msra.mxu0 0.0
  %4532 = vmatprep.subr.mxu0 0.0
  %4533 = vmatpush1.msra.mxu0 0.0
  %4534 = vmatprep.subr.mxu0 0.0
  %4535 = vmatpush1.msra.mxu0 0.0
  %4536 = vmatprep.subr.mxu0 0.0
  %4537 = vmatpush1.msra.mxu0 0.0
  %4538 = vmatprep.subr.mxu0 0.0
  %4539 = vmatpush1.msra.mxu0 0.0
  %4540 = vmatprep.subr.mxu0 0.0
  %4541 = vmatpush1.msra.mxu0 0.0
  %4542 = vmatprep.subr.mxu0 0.0
  %4543 = vmatpush1.msra.mxu0 0.0
  %4544 = vmatprep.mubr.f32.mxu0 0.0
  %4545 = vmatmul.mubr.f32.gmra.mrb[0].mxu0 %v3047
  %v4546 = vpop.f32.mrb[0].mxu0
  %v4547 = vadd.f32 %v4478, %v4546
  %v4548 = vpop.f32.mrb[0].mxu0
  %4549 = vmatprep.mubr.f32.mxu0 0.0
  %4550 = vmatmul.mubr.f32.gmra.mrb[0].mxu0 %v3050
  %v4551 = vpop.f32.mrb[0].mxu0
  %v4552 = vadd.f32 %v4478, %v4551
  %v4553 = vpop.f32.mrb[0].mxu0
  %4554 = vdwg.mxu0
  %s4555 = scalar_lea.vmem %s2, 704
  %v4556 = vld [vmem:[%s4555] sm:$0xff]
  %v4557 = vld [vmem:[%s4555 + $0x8] sm:$0xff]
  %v4558 = vld [vmem:[%s4555 + $0x10] sm:$0xff]
  %v4559 = vld [vmem:[%s4555 + $0x18] sm:$0xff]
  %s4560 = scalar_lea.vmem %s3, 22
  %v4561 = vld [vmem:[%s4560] sm:$0x1]
  %v4563 = vlaneseq
  %v4564 = vshrl.u32 %v4563, 7
  %v4565 = vsub.s32 0, %v4564
  %v4566 = vrot.slane %v4561, %v4565
  %4568 = vmatprep.subr.mxu0 0.0
  %4569 = vmatpush1.msra.mxu0 %v4556
  %4570 = vmatprep.subr.mxu0 0.0
  %4571 = vmatpush1.msra.mxu0 %v4557
  %4572 = vmatprep.subr.mxu0 0.0
  %4573 = vmatpush1.msra.mxu0 %v4558
  %4574 = vmatprep.subr.mxu0 0.0
  %4575 = vmatpush1.msra.mxu0 %v4559
  %4576 = vmatprep.subr.mxu0 0.0
  %4577 = vmatpush1.msra.mxu0 0.0
  %4578 = vmatprep.subr.mxu0 0.0
  %4579 = vmatpush1.msra.mxu0 0.0
  %4580 = vmatprep.subr.mxu0 0.0
  %4581 = vmatpush1.msra.mxu0 0.0
  %4582 = vmatprep.subr.mxu0 0.0
  %4583 = vmatpush1.msra.mxu0 0.0
  %4584 = vmatprep.subr.mxu0 0.0
  %4585 = vmatpush1.msra.mxu0 0.0
  %4586 = vmatprep.subr.mxu0 0.0
  %4587 = vmatpush1.msra.mxu0 0.0
  %4588 = vmatprep.subr.mxu0 0.0
  %4589 = vmatpush1.msra.mxu0 0.0
  %4590 = vmatprep.subr.mxu0 0.0
  %4591 = vmatpush1.msra.mxu0 0.0
  %4592 = vmatprep.subr.mxu0 0.0
  %4593 = vmatpush1.msra.mxu0 0.0
  %4594 = vmatprep.subr.mxu0 0.0
  %4595 = vmatpush1.msra.mxu0 0.0
  %4596 = vmatprep.subr.mxu0 0.0
  %4597 = vmatpush1.msra.mxu0 0.0
  %4598 = vmatprep.subr.mxu0 0.0
  %4599 = vmatpush1.msra.mxu0 0.0
  %4600 = vmatprep.subr.mxu0 0.0
  %4601 = vmatpush1.msra.mxu0 0.0
  %4602 = vmatprep.subr.mxu0 0.0
  %4603 = vmatpush1.msra.mxu0 0.0
  %4604 = vmatprep.subr.mxu0 0.0
  %4605 = vmatpush1.msra.mxu0 0.0
  %4606 = vmatprep.subr.mxu0 0.0
  %4607 = vmatpush1.msra.mxu0 0.0
  %4608 = vmatprep.subr.mxu0 0.0
  %4609 = vmatpush1.msra.mxu0 0.0
  %4610 = vmatprep.subr.mxu0 0.0
  %4611 = vmatpush1.msra.mxu0 0.0
  %4612 = vmatprep.subr.mxu0 0.0
  %4613 = vmatpush1.msra.mxu0 0.0
  %4614 = vmatprep.subr.mxu0 0.0
  %4615 = vmatpush1.msra.mxu0 0.0
  %4616 = vmatprep.subr.mxu0 0.0
  %4617 = vmatpush1.msra.mxu0 0.0
  %4618 = vmatprep.subr.mxu0 0.0
  %4619 = vmatpush1.msra.mxu0 0.0
  %4620 = vmatprep.subr.mxu0 0.0
  %4621 = vmatpush1.msra.mxu0 0.0
  %4622 = vmatprep.subr.mxu0 0.0
  %4623 = vmatpush1.msra.mxu0 0.0
  %4624 = vmatprep.subr.mxu0 0.0
  %4625 = vmatpush1.msra.mxu0 0.0
  %4626 = vmatprep.subr.mxu0 0.0
  %4627 = vmatpush1.msra.mxu0 0.0
  %4628 = vmatprep.subr.mxu0 0.0
  %4629 = vmatpush1.msra.mxu0 0.0
  %4630 = vmatprep.subr.mxu0 0.0
  %4631 = vmatpush1.msra.mxu0 0.0
  %4632 = vmatprep.mubr.f32.mxu0 0.0
  %4633 = vmatmul.mubr.f32.gmra.mrb[0].mxu0 %v3229
  %v4634 = vpop.f32.mrb[0].mxu0
  %v4635 = vadd.f32 %v4566, %v4634
  %v4636 = vpop.f32.mrb[0].mxu0
  %4637 = vmatprep.mubr.f32.mxu0 0.0
  %4638 = vmatmul.mubr.f32.gmra.mrb[0].mxu0 %v3232
  %v4639 = vpop.f32.mrb[0].mxu0
  %v4640 = vadd.f32 %v4566, %v4639
  %v4641 = vpop.f32.mrb[0].mxu0
  %4642 = vdwg.mxu0
  %v4644 = vsel %vm328, %v4459, 0
  %v4647 = vsel %vm328, %v4547, 0
  %4649 = vmatprep.subr.mxu0 0.0
  %4650 = vmatpush1.xpose.msra.mxu0 %v4647
  %4651 = vmatprep.subr.mxu0 0.0
  %4652 = vmatpush1.xpose.msra.mxu0 0.0
  %4653 = vmatprep.subr.mxu0 0.0
  %4654 = vmatpush1.xpose.msra.mxu0 0.0
  %4655 = vmatprep.subr.mxu0 0.0
  %4656 = vmatpush1.xpose.msra.mxu0 0.0
  %4657 = vmatprep.subr.mxu0 0.0
  %4658 = vmatpush1.xpose.msra.mxu0 0.0
  %4659 = vmatprep.subr.mxu0 0.0
  %4660 = vmatpush1.xpose.msra.mxu0 0.0
  %4661 = vmatprep.subr.mxu0 0.0
  %4662 = vmatpush1.xpose.msra.mxu0 0.0
  %4663 = vmatprep.subr.mxu0 0.0
  %4664 = vmatpush1.xpose.msra.mxu0 0.0
  %4665 = vmatprep.subr.mxu0 0.0
  %4666 = vmatpush1.xpose.msra.mxu0 0.0
  %4667 = vmatprep.subr.mxu0 0.0
  %4668 = vmatpush1.xpose.msra.mxu0 0.0
  %4669 = vmatprep.subr.mxu0 0.0
  %4670 = vmatpush1.xpose.msra.mxu0 0.0
  %4671 = vmatprep.subr.mxu0 0.0
  %4672 = vmatpush1.xpose.msra.mxu0 0.0
  %4673 = vmatprep.subr.mxu0 0.0
  %4674 = vmatpush1.xpose.msra.mxu0 0.0
  %4675 = vmatprep.subr.mxu0 0.0
  %4676 = vmatpush1.xpose.msra.mxu0 0.0
  %4677 = vmatprep.subr.mxu0 0.0
  %4678 = vmatpush1.xpose.msra.mxu0 0.0
  %4679 = vmatprep.subr.mxu0 0.0
  %4680 = vmatpush1.xpose.msra.mxu0 0.0
  %4681 = vmatprep.subr.mxu0 0.0
  %4682 = vmatpush1.xpose.msra.mxu0 0.0
  %4683 = vmatprep.subr.mxu0 0.0
  %4684 = vmatpush1.xpose.msra.mxu0 0.0
  %4685 = vmatprep.subr.mxu0 0.0
  %4686 = vmatpush1.xpose.msra.mxu0 0.0
  %4687 = vmatprep.subr.mxu0 0.0
  %4688 = vmatpush1.xpose.msra.mxu0 0.0
  %4689 = vmatprep.subr.mxu0 0.0
  %4690 = vmatpush1.xpose.msra.mxu0 0.0
  %4691 = vmatprep.subr.mxu0 0.0
  %4692 = vmatpush1.xpose.msra.mxu0 0.0
  %4693 = vmatprep.subr.mxu0 0.0
  %4694 = vmatpush1.xpose.msra.mxu0 0.0
  %4695 = vmatprep.subr.mxu0 0.0
  %4696 = vmatpush1.xpose.msra.mxu0 0.0
  %4697 = vmatprep.subr.mxu0 0.0
  %4698 = vmatpush1.xpose.msra.mxu0 0.0
  %4699 = vmatprep.subr.mxu0 0.0
  %4700 = vmatpush1.xpose.msra.mxu0 0.0
  %4701 = vmatprep.subr.mxu0 0.0
  %4702 = vmatpush1.xpose.msra.mxu0 0.0
  %4703 = vmatprep.subr.mxu0 0.0
  %4704 = vmatpush1.xpose.msra.mxu0 0.0
  %4705 = vmatprep.subr.mxu0 0.0
  %4706 = vmatpush1.xpose.msra.mxu0 0.0
  %4707 = vmatprep.subr.mxu0 0.0
  %4708 = vmatpush1.xpose.msra.mxu0 0.0
  %4709 = vmatprep.subr.mxu0 0.0
  %4710 = vmatpush1.xpose.msra.mxu0 0.0
  %4711 = vmatprep.subr.mxu0 0.0
  %4712 = vmatpush1.xpose.msra.mxu0 0.0
  %4713 = vmatprep.mubr.f32.mxu0 0.0
  %4714 = vmatmul.mubr.f32.gmra.mrb[0].mxu0 %v4644
  %v4715 = vpop.f32.mrb[0].mxu0
  %v4716 = vadd.f32 0.0, %v4715
  %v4717 = vpop.f32.mrb[0].mxu0
  %4718 = vdwg.mxu0
  %v4720 = vsel %vm328, %v4464, 0
  %v4723 = vsel %vm328, %v4552, 0
  %4725 = vmatprep.subr.mxu0 0.0
  %4726 = vmatpush1.xpose.msra.mxu0 %v4723
  %4727 = vmatprep.subr.mxu0 0.0
  %4728 = vmatpush1.xpose.msra.mxu0 0.0
  %4729 = vmatprep.subr.mxu0 0.0
  %4730 = vmatpush1.xpose.msra.mxu0 0.0
  %4731 = vmatprep.subr.mxu0 0.0
  %4732 = vmatpush1.xpose.msra.mxu0 0.0
  %4733 = vmatprep.subr.mxu0 0.0
  %4734 = vmatpush1.xpose.msra.mxu0 0.0
  %4735 = vmatprep.subr.mxu0 0.0
  %4736 = vmatpush1.xpose.msra.mxu0 0.0
  %4737 = vmatprep.subr.mxu0 0.0
  %4738 = vmatpush1.xpose.msra.mxu0 0.0
  %4739 = vmatprep.subr.mxu0 0.0
  %4740 = vmatpush1.xpose.msra.mxu0 0.0
  %4741 = vmatprep.subr.mxu0 0.0
  %4742 = vmatpush1.xpose.msra.mxu0 0.0
  %4743 = vmatprep.subr.mxu0 0.0
  %4744 = vmatpush1.xpose.msra.mxu0 0.0
  %4745 = vmatprep.subr.mxu0 0.0
  %4746 = vmatpush1.xpose.msra.mxu0 0.0
  %4747 = vmatprep.subr.mxu0 0.0
  %4748 = vmatpush1.xpose.msra.mxu0 0.0
  %4749 = vmatprep.subr.mxu0 0.0
  %4750 = vmatpush1.xpose.msra.mxu0 0.0
  %4751 = vmatprep.subr.mxu0 0.0
  %4752 = vmatpush1.xpose.msra.mxu0 0.0
  %4753 = vmatprep.subr.mxu0 0.0
  %4754 = vmatpush1.xpose.msra.mxu0 0.0
  %4755 = vmatprep.subr.mxu0 0.0
  %4756 = vmatpush1.xpose.msra.mxu0 0.0
  %4757 = vmatprep.subr.mxu0 0.0
  %4758 = vmatpush1.xpose.msra.mxu0 0.0
  %4759 = vmatprep.subr.mxu0 0.0
  %4760 = vmatpush1.xpose.msra.mxu0 0.0
  %4761 = vmatprep.subr.mxu0 0.0
  %4762 = vmatpush1.xpose.msra.mxu0 0.0
  %4763 = vmatprep.subr.mxu0 0.0
  %4764 = vmatpush1.xpose.msra.mxu0 0.0
  %4765 = vmatprep.subr.mxu0 0.0
  %4766 = vmatpush1.xpose.msra.mxu0 0.0
  %4767 = vmatprep.subr.mxu0 0.0
  %4768 = vmatpush1.xpose.msra.mxu0 0.0
  %4769 = vmatprep.subr.mxu0 0.0
  %4770 = vmatpush1.xpose.msra.mxu0 0.0
  %4771 = vmatprep.subr.mxu0 0.0
  %4772 = vmatpush1.xpose.msra.mxu0 0.0
  %4773 = vmatprep.subr.mxu0 0.0
  %4774 = vmatpush1.xpose.msra.mxu0 0.0
  %4775 = vmatprep.subr.mxu0 0.0
  %4776 = vmatpush1.xpose.msra.mxu0 0.0
  %4777 = vmatprep.subr.mxu0 0.0
  %4778 = vmatpush1.xpose.msra.mxu0 0.0
  %4779 = vmatprep.subr.mxu0 0.0
  %4780 = vmatpush1.xpose.msra.mxu0 0.0
  %4781 = vmatprep.subr.mxu0 0.0
  %4782 = vmatpush1.xpose.msra.mxu0 0.0
  %4783 = vmatprep.subr.mxu0 0.0
  %4784 = vmatpush1.xpose.msra.mxu0 0.0
  %4785 = vmatprep.subr.mxu0 0.0
  %4786 = vmatpush1.xpose.msra.mxu0 0.0
  %4787 = vmatprep.subr.mxu0 0.0
  %4788 = vmatpush1.xpose.msra.mxu0 0.0
  %4789 = vmatprep.mubr.f32.mxu0 0.0
  %4790 = vmatmul.mubr.f32.gmra.mrb[0].mxu0 %v4720
  %v4791 = vpop.f32.mrb[0].mxu0
  %v4792 = vadd.f32 0.0, %v4791
  %v4793 = vpop.f32.mrb[0].mxu0
  %4794 = vdwg.mxu0
  %v4795 = vsel %vm328, %v4716, -inf
  %4796 = vmax.xlane.f32.xlu0 %v4795
  %v4797 = vpop.xlane.xlu0 %4796
  %v4798 = vsel %vm328, %v4792, -inf
  %4799 = vmax.xlane.f32.xlu0 %v4798
  %v4800 = vpop.xlane.xlu0 %4799
  %v4801 = vsub.f32 %v4716, %v4797
  %v4802 = vsub.f32 %v4792, %v4800
  %v4803 = vmul.f32 %v4801, 1.442695
  %v4804 = vpow.pop %v4803
  %v4805 = vmul.f32 %v4802, 1.442695
  %v4806 = vpow.pop %v4805
  %v4807 = vsel %vm328, %v4804, 0.0
  %4808 = vadd.xlane.f32.xlu0 %v4807
  %v4809 = vpop.xlane.xlu0 %4808
  %v4810 = vsel %vm328, %v4806, 0.0
  %4811 = vadd.xlane.f32.xlu0 %v4810
  %v4812 = vpop.xlane.xlu0 %4811
  %v4813 = vrcp.pop %v4809
  %v4814 = vrcp.pop %v4812
  %v4815 = vmul.f32 %v4804, %v4813
  %v4816 = vmul.f32 %v4806, %v4814
  %v4818 = vsel %vm328, %v4815, 0
  %4820 = vmatprep.subr.mxu0 0.0
  %4821 = vmatpush1.msra.mxu0 %v4635
  %4822 = vmatprep.subr.mxu0 0.0
  %4823 = vmatpush1.msra.mxu0 0.0
  %4824 = vmatprep.subr.mxu0 0.0
  %4825 = vmatpush1.msra.mxu0 0.0
  %4826 = vmatprep.subr.mxu0 0.0
  %4827 = vmatpush1.msra.mxu0 0.0
  %4828 = vmatprep.subr.mxu0 0.0
  %4829 = vmatpush1.msra.mxu0 0.0
  %4830 = vmatprep.subr.mxu0 0.0
  %4831 = vmatpush1.msra.mxu0 0.0
  %4832 = vmatprep.subr.mxu0 0.0
  %4833 = vmatpush1.msra.mxu0 0.0
  %4834 = vmatprep.subr.mxu0 0.0
  %4835 = vmatpush1.msra.mxu0 0.0
  %4836 = vmatprep.subr.mxu0 0.0
  %4837 = vmatpush1.msra.mxu0 0.0
  %4838 = vmatprep.subr.mxu0 0.0
  %4839 = vmatpush1.msra.mxu0 0.0
  %4840 = vmatprep.subr.mxu0 0.0
  %4841 = vmatpush1.msra.mxu0 0.0
  %4842 = vmatprep.subr.mxu0 0.0
  %4843 = vmatpush1.msra.mxu0 0.0
  %4844 = vmatprep.subr.mxu0 0.0
  %4845 = vmatpush1.msra.mxu0 0.0
  %4846 = vmatprep.subr.mxu0 0.0
  %4847 = vmatpush1.msra.mxu0 0.0
  %4848 = vmatprep.subr.mxu0 0.0
  %4849 = vmatpush1.msra.mxu0 0.0
  %4850 = vmatprep.subr.mxu0 0.0
  %4851 = vmatpush1.msra.mxu0 0.0
  %4852 = vmatprep.subr.mxu0 0.0
  %4853 = vmatpush1.msra.mxu0 0.0
  %4854 = vmatprep.subr.mxu0 0.0
  %4855 = vmatpush1.msra.mxu0 0.0
  %4856 = vmatprep.subr.mxu0 0.0
  %4857 = vmatpush1.msra.mxu0 0.0
  %4858 = vmatprep.subr.mxu0 0.0
  %4859 = vmatpush1.msra.mxu0 0.0
  %4860 = vmatprep.subr.mxu0 0.0
  %4861 = vmatpush1.msra.mxu0 0.0
  %4862 = vmatprep.subr.mxu0 0.0
  %4863 = vmatpush1.msra.mxu0 0.0
  %4864 = vmatprep.subr.mxu0 0.0
  %4865 = vmatpush1.msra.mxu0 0.0
  %4866 = vmatprep.subr.mxu0 0.0
  %4867 = vmatpush1.msra.mxu0 0.0
  %4868 = vmatprep.subr.mxu0 0.0
  %4869 = vmatpush1.msra.mxu0 0.0
  %4870 = vmatprep.subr.mxu0 0.0
  %4871 = vmatpush1.msra.mxu0 0.0
  %4872 = vmatprep.subr.mxu0 0.0
  %4873 = vmatpush1.msra.mxu0 0.0
  %4874 = vmatprep.subr.mxu0 0.0
  %4875 = vmatpush1.msra.mxu0 0.0
  %4876 = vmatprep.subr.mxu0 0.0
  %4877 = vmatpush1.msra.mxu0 0.0
  %4878 = vmatprep.subr.mxu0 0.0
  %4879 = vmatpush1.msra.mxu0 0.0
  %4880 = vmatprep.subr.mxu0 0.0
  %4881 = vmatpush1.msra.mxu0 0.0
  %4882 = vmatprep.subr.mxu0 0.0
  %4883 = vmatpush1.msra.mxu0 0.0
  %4884 = vmatprep.mubr.f32.mxu0 0.0
  %4885 = vmatmul.mubr.f32.gmra.mrb[0].mxu0 %v4818
  %v4886 = vpop.f32.mrb[0].mxu0
  %v4887 = vadd.f32 0.0, %v4886
  %v4888 = vpop.f32.mrb[0].mxu0
  %4889 = vdwg.mxu0
  %v4891 = vsel %vm328, %v4816, 0
  %4893 = vmatprep.subr.mxu0 0.0
  %4894 = vmatpush1.msra.mxu0 %v4640
  %4895 = vmatprep.subr.mxu0 0.0
  %4896 = vmatpush1.msra.mxu0 0.0
  %4897 = vmatprep.subr.mxu0 0.0
  %4898 = vmatpush1.msra.mxu0 0.0
  %4899 = vmatprep.subr.mxu0 0.0
  %4900 = vmatpush1.msra.mxu0 0.0
  %4901 = vmatprep.subr.mxu0 0.0
  %4902 = vmatpush1.msra.mxu0 0.0
  %4903 = vmatprep.subr.mxu0 0.0
  %4904 = vmatpush1.msra.mxu0 0.0
  %4905 = vmatprep.subr.mxu0 0.0
  %4906 = vmatpush1.msra.mxu0 0.0
  %4907 = vmatprep.subr.mxu0 0.0
  %4908 = vmatpush1.msra.mxu0 0.0
  %4909 = vmatprep.subr.mxu0 0.0
  %4910 = vmatpush1.msra.mxu0 0.0
  %4911 = vmatprep.subr.mxu0 0.0
  %4912 = vmatpush1.msra.mxu0 0.0
  %4913 = vmatprep.subr.mxu0 0.0
  %4914 = vmatpush1.msra.mxu0 0.0
  %4915 = vmatprep.subr.mxu0 0.0
  %4916 = vmatpush1.msra.mxu0 0.0
  %4917 = vmatprep.subr.mxu0 0.0
  %4918 = vmatpush1.msra.mxu0 0.0
  %4919 = vmatprep.subr.mxu0 0.0
  %4920 = vmatpush1.msra.mxu0 0.0
  %4921 = vmatprep.subr.mxu0 0.0
  %4922 = vmatpush1.msra.mxu0 0.0
  %4923 = vmatprep.subr.mxu0 0.0
  %4924 = vmatpush1.msra.mxu0 0.0
  %4925 = vmatprep.subr.mxu0 0.0
  %4926 = vmatpush1.msra.mxu0 0.0
  %4927 = vmatprep.subr.mxu0 0.0
  %4928 = vmatpush1.msra.mxu0 0.0
  %4929 = vmatprep.subr.mxu0 0.0
  %4930 = vmatpush1.msra.mxu0 0.0
  %4931 = vmatprep.subr.mxu0 0.0
  %4932 = vmatpush1.msra.mxu0 0.0
  %4933 = vmatprep.subr.mxu0 0.0
  %4934 = vmatpush1.msra.mxu0 0.0
  %4935 = vmatprep.subr.mxu0 0.0
  %4936 = vmatpush1.msra.mxu0 0.0
  %4937 = vmatprep.subr.mxu0 0.0
  %4938 = vmatpush1.msra.mxu0 0.0
  %4939 = vmatprep.subr.mxu0 0.0
  %4940 = vmatpush1.msra.mxu0 0.0
  %4941 = vmatprep.subr.mxu0 0.0
  %4942 = vmatpush1.msra.mxu0 0.0
  %4943 = vmatprep.subr.mxu0 0.0
  %4944 = vmatpush1.msra.mxu0 0.0
  %4945 = vmatprep.subr.mxu0 0.0
  %4946 = vmatpush1.msra.mxu0 0.0
  %4947 = vmatprep.subr.mxu0 0.0
  %4948 = vmatpush1.msra.mxu0 0.0
  %4949 = vmatprep.subr.mxu0 0.0
  %4950 = vmatpush1.msra.mxu0 0.0
  %4951 = vmatprep.subr.mxu0 0.0
  %4952 = vmatpush1.msra.mxu0 0.0
  %4953 = vmatprep.subr.mxu0 0.0
  %4954 = vmatpush1.msra.mxu0 0.0
  %4955 = vmatprep.subr.mxu0 0.0
  %4956 = vmatpush1.msra.mxu0 0.0
  %4957 = vmatprep.mubr.f32.mxu0 0.0
  %4958 = vmatmul.mubr.f32.gmra.mrb[0].mxu0 %v4891
  %v4959 = vpop.f32.mrb[0].mxu0
  %v4960 = vadd.f32 0.0, %v4959
  %v4961 = vpop.f32.mrb[0].mxu0
  %4962 = vdwg.mxu0
  %s4963 = scalar_lea.vmem %s4, 48
  %v4964 = vld [vmem:[%s4963] sm:$0xff]
  %v4966 = vsel %vm328, %v4887, 0
  %v4969 = vsel %vm328, %v4960, 0
  %4971 = vmatprep.subr.mxu0 0.0
  %4972 = vmatpush1.msra.mxu0 %v4964
  %4973 = vmatprep.subr.mxu0 0.0
  %4974 = vmatpush1.msra.mxu0 0.0
  %4975 = vmatprep.subr.mxu0 0.0
  %4976 = vmatpush1.msra.mxu0 0.0
  %4977 = vmatprep.subr.mxu0 0.0
  %4978 = vmatpush1.msra.mxu0 0.0
  %4979 = vmatprep.subr.mxu0 0.0
  %4980 = vmatpush1.msra.mxu0 0.0
  %4981 = vmatprep.subr.mxu0 0.0
  %4982 = vmatpush1.msra.mxu0 0.0
  %4983 = vmatprep.subr.mxu0 0.0
  %4984 = vmatpush1.msra.mxu0 0.0
  %4985 = vmatprep.subr.mxu0 0.0
  %4986 = vmatpush1.msra.mxu0 0.0
  %4987 = vmatprep.subr.mxu0 0.0
  %4988 = vmatpush1.msra.mxu0 0.0
  %4989 = vmatprep.subr.mxu0 0.0
  %4990 = vmatpush1.msra.mxu0 0.0
  %4991 = vmatprep.subr.mxu0 0.0
  %4992 = vmatpush1.msra.mxu0 0.0
  %4993 = vmatprep.subr.mxu0 0.0
  %4994 = vmatpush1.msra.mxu0 0.0
  %4995 = vmatprep.subr.mxu0 0.0
  %4996 = vmatpush1.msra.mxu0 0.0
  %4997 = vmatprep.subr.mxu0 0.0
  %4998 = vmatpush1.msra.mxu0 0.0
  %4999 = vmatprep.subr.mxu0 0.0
  %5000 = vmatpush1.msra.mxu0 0.0
  %5001 = vmatprep.subr.mxu0 0.0
  %5002 = vmatpush1.msra.mxu0 0.0
  %5003 = vmatprep.subr.mxu0 0.0
  %5004 = vmatpush1.msra.mxu0 0.0
  %5005 = vmatprep.subr.mxu0 0.0
  %5006 = vmatpush1.msra.mxu0 0.0
  %5007 = vmatprep.subr.mxu0 0.0
  %5008 = vmatpush1.msra.mxu0 0.0
  %5009 = vmatprep.subr.mxu0 0.0
  %5010 = vmatpush1.msra.mxu0 0.0
  %5011 = vmatprep.subr.mxu0 0.0
  %5012 = vmatpush1.msra.mxu0 0.0
  %5013 = vmatprep.subr.mxu0 0.0
  %5014 = vmatpush1.msra.mxu0 0.0
  %5015 = vmatprep.subr.mxu0 0.0
  %5016 = vmatpush1.msra.mxu0 0.0
  %5017 = vmatprep.subr.mxu0 0.0
  %5018 = vmatpush1.msra.mxu0 0.0
  %5019 = vmatprep.subr.mxu0 0.0
  %5020 = vmatpush1.msra.mxu0 0.0
  %5021 = vmatprep.subr.mxu0 0.0
  %5022 = vmatpush1.msra.mxu0 0.0
  %5023 = vmatprep.subr.mxu0 0.0
  %5024 = vmatpush1.msra.mxu0 0.0
  %5025 = vmatprep.subr.mxu0 0.0
  %5026 = vmatpush1.msra.mxu0 0.0
  %5027 = vmatprep.subr.mxu0 0.0
  %5028 = vmatpush1.msra.mxu0 0.0
  %5029 = vmatprep.subr.mxu0 0.0
  %5030 = vmatpush1.msra.mxu0 0.0
  %5031 = vmatprep.subr.mxu0 0.0
  %5032 = vmatpush1.msra.mxu0 0.0
  %5033 = vmatprep.subr.mxu0 0.0
  %5034 = vmatpush1.msra.mxu0 0.0
  %5035 = vmatprep.mubr.f32.mxu0 0.0
  %5036 = vmatmul.mubr.f32.gmra.mrb[0].mxu0 %v4966
  %v5037 = vpop.f32.mrb[0].mxu0
  %v5038 = vadd.f32 0.0, %v5037
  %v5039 = vpop.f32.mrb[0].mxu0
  %5040 = vmatprep.mubr.f32.mxu0 0.0
  %5041 = vmatmul.mubr.f32.gmra.mrb[0].mxu0 %v4969
  %v5042 = vpop.f32.mrb[0].mxu0
  %v5043 = vadd.f32 0.0, %v5042
  %v5044 = vpop.f32.mrb[0].mxu0
  %5045 = vdwg.mxu0
  %v5046 = vadd.f32 %v4371, %v5038
  %v5047 = vadd.f32 %v4376, %v5043
  %s5048 = scalar_lea.vmem %s2, 480
  %v5049 = vld [vmem:[%s5048] sm:$0xff]
  %v5050 = vld [vmem:[%s5048 + $0x8] sm:$0xff]
  %v5051 = vld [vmem:[%s5048 + $0x10] sm:$0xff]
  %v5052 = vld [vmem:[%s5048 + $0x18] sm:$0xff]
  %s5053 = scalar_lea.vmem %s3, 15
  %v5054 = vld [vmem:[%s5053] sm:$0x1]
  %v5056 = vlaneseq
  %v5057 = vshrl.u32 %v5056, 7
  %v5058 = vsub.s32 0, %v5057
  %v5059 = vrot.slane %v5054, %v5058
  %5061 = vmatprep.subr.mxu0 0.0
  %5062 = vmatpush1.msra.mxu0 %v5049
  %5063 = vmatprep.subr.mxu0 0.0
  %5064 = vmatpush1.msra.mxu0 %v5050
  %5065 = vmatprep.subr.mxu0 0.0
  %5066 = vmatpush1.msra.mxu0 %v5051
  %5067 = vmatprep.subr.mxu0 0.0
  %5068 = vmatpush1.msra.mxu0 %v5052
  %5069 = vmatprep.subr.mxu0 0.0
  %5070 = vmatpush1.msra.mxu0 0.0
  %5071 = vmatprep.subr.mxu0 0.0
  %5072 = vmatpush1.msra.mxu0 0.0
  %5073 = vmatprep.subr.mxu0 0.0
  %5074 = vmatpush1.msra.mxu0 0.0
  %5075 = vmatprep.subr.mxu0 0.0
  %5076 = vmatpush1.msra.mxu0 0.0
  %5077 = vmatprep.subr.mxu0 0.0
  %5078 = vmatpush1.msra.mxu0 0.0
  %5079 = vmatprep.subr.mxu0 0.0
  %5080 = vmatpush1.msra.mxu0 0.0
  %5081 = vmatprep.subr.mxu0 0.0
  %5082 = vmatpush1.msra.mxu0 0.0
  %5083 = vmatprep.subr.mxu0 0.0
  %5084 = vmatpush1.msra.mxu0 0.0
  %5085 = vmatprep.subr.mxu0 0.0
  %5086 = vmatpush1.msra.mxu0 0.0
  %5087 = vmatprep.subr.mxu0 0.0
  %5088 = vmatpush1.msra.mxu0 0.0
  %5089 = vmatprep.subr.mxu0 0.0
  %5090 = vmatpush1.msra.mxu0 0.0
  %5091 = vmatprep.subr.mxu0 0.0
  %5092 = vmatpush1.msra.mxu0 0.0
  %5093 = vmatprep.subr.mxu0 0.0
  %5094 = vmatpush1.msra.mxu0 0.0
  %5095 = vmatprep.subr.mxu0 0.0
  %5096 = vmatpush1.msra.mxu0 0.0
  %5097 = vmatprep.subr.mxu0 0.0
  %5098 = vmatpush1.msra.mxu0 0.0
  %5099 = vmatprep.subr.mxu0 0.0
  %5100 = vmatpush1.msra.mxu0 0.0
  %5101 = vmatprep.subr.mxu0 0.0
  %5102 = vmatpush1.msra.mxu0 0.0
  %5103 = vmatprep.subr.mxu0 0.0
  %5104 = vmatpush1.msra.mxu0 0.0
  %5105 = vmatprep.subr.mxu0 0.0
  %5106 = vmatpush1.msra.mxu0 0.0
  %5107 = vmatprep.subr.mxu0 0.0
  %5108 = vmatpush1.msra.mxu0 0.0
  %5109 = vmatprep.subr.mxu0 0.0
  %5110 = vmatpush1.msra.mxu0 0.0
  %5111 = vmatprep.subr.mxu0 0.0
  %5112 = vmatpush1.msra.mxu0 0.0
  %5113 = vmatprep.subr.mxu0 0.0
  %5114 = vmatpush1.msra.mxu0 0.0
  %5115 = vmatprep.subr.mxu0 0.0
  %5116 = vmatpush1.msra.mxu0 0.0
  %5117 = vmatprep.subr.mxu0 0.0
  %5118 = vmatpush1.msra.mxu0 0.0
  %5119 = vmatprep.subr.mxu0 0.0
  %5120 = vmatpush1.msra.mxu0 0.0
  %5121 = vmatprep.subr.mxu0 0.0
  %5122 = vmatpush1.msra.mxu0 0.0
  %5123 = vmatprep.subr.mxu0 0.0
  %5124 = vmatpush1.msra.mxu0 0.0
  %5125 = vmatprep.mubr.f32.mxu0 0.0
  %5126 = vmatmul.mubr.f32.gmra.mrb[0].mxu0 %v3047
  %v5127 = vpop.f32.mrb[0].mxu0
  %v5128 = vadd.f32 %v5059, %v5127
  %v5129 = vpop.f32.mrb[0].mxu0
  %5130 = vmatprep.mubr.f32.mxu0 0.0
  %5131 = vmatmul.mubr.f32.gmra.mrb[0].mxu0 %v3050
  %v5132 = vpop.f32.mrb[0].mxu0
  %v5133 = vadd.f32 %v5059, %v5132
  %v5134 = vpop.f32.mrb[0].mxu0
  %5135 = vdwg.mxu0
  %s5136 = scalar_lea.vmem %s2, 608
  %v5137 = vld [vmem:[%s5136] sm:$0xff]
  %v5138 = vld [vmem:[%s5136 + $0x8] sm:$0xff]
  %v5139 = vld [vmem:[%s5136 + $0x10] sm:$0xff]
  %v5140 = vld [vmem:[%s5136 + $0x18] sm:$0xff]
  %s5141 = scalar_lea.vmem %s3, 19
  %v5142 = vld [vmem:[%s5141] sm:$0x1]
  %v5144 = vlaneseq
  %v5145 = vshrl.u32 %v5144, 7
  %v5146 = vsub.s32 0, %v5145
  %v5147 = vrot.slane %v5142, %v5146
  %5149 = vmatprep.subr.mxu0 0.0
  %5150 = vmatpush1.msra.mxu0 %v5137
  %5151 = vmatprep.subr.mxu0 0.0
  %5152 = vmatpush1.msra.mxu0 %v5138
  %5153 = vmatprep.subr.mxu0 0.0
  %5154 = vmatpush1.msra.mxu0 %v5139
  %5155 = vmatprep.subr.mxu0 0.0
  %5156 = vmatpush1.msra.mxu0 %v5140
  %5157 = vmatprep.subr.mxu0 0.0
  %5158 = vmatpush1.msra.mxu0 0.0
  %5159 = vmatprep.subr.mxu0 0.0
  %5160 = vmatpush1.msra.mxu0 0.0
  %5161 = vmatprep.subr.mxu0 0.0
  %5162 = vmatpush1.msra.mxu0 0.0
  %5163 = vmatprep.subr.mxu0 0.0
  %5164 = vmatpush1.msra.mxu0 0.0
  %5165 = vmatprep.subr.mxu0 0.0
  %5166 = vmatpush1.msra.mxu0 0.0
  %5167 = vmatprep.subr.mxu0 0.0
  %5168 = vmatpush1.msra.mxu0 0.0
  %5169 = vmatprep.subr.mxu0 0.0
  %5170 = vmatpush1.msra.mxu0 0.0
  %5171 = vmatprep.subr.mxu0 0.0
  %5172 = vmatpush1.msra.mxu0 0.0
  %5173 = vmatprep.subr.mxu0 0.0
  %5174 = vmatpush1.msra.mxu0 0.0
  %5175 = vmatprep.subr.mxu0 0.0
  %5176 = vmatpush1.msra.mxu0 0.0
  %5177 = vmatprep.subr.mxu0 0.0
  %5178 = vmatpush1.msra.mxu0 0.0
  %5179 = vmatprep.subr.mxu0 0.0
  %5180 = vmatpush1.msra.mxu0 0.0
  %5181 = vmatprep.subr.mxu0 0.0
  %5182 = vmatpush1.msra.mxu0 0.0
  %5183 = vmatprep.subr.mxu0 0.0
  %5184 = vmatpush1.msra.mxu0 0.0
  %5185 = vmatprep.subr.mxu0 0.0
  %5186 = vmatpush1.msra.mxu0 0.0
  %5187 = vmatprep.subr.mxu0 0.0
  %5188 = vmatpush1.msra.mxu0 0.0
  %5189 = vmatprep.subr.mxu0 0.0
  %5190 = vmatpush1.msra.mxu0 0.0
  %5191 = vmatprep.subr.mxu0 0.0
  %5192 = vmatpush1.msra.mxu0 0.0
  %5193 = vmatprep.subr.mxu0 0.0
  %5194 = vmatpush1.msra.mxu0 0.0
  %5195 = vmatprep.subr.mxu0 0.0
  %5196 = vmatpush1.msra.mxu0 0.0
  %5197 = vmatprep.subr.mxu0 0.0
  %5198 = vmatpush1.msra.mxu0 0.0
  %5199 = vmatprep.subr.mxu0 0.0
  %5200 = vmatpush1.msra.mxu0 0.0
  %5201 = vmatprep.subr.mxu0 0.0
  %5202 = vmatpush1.msra.mxu0 0.0
  %5203 = vmatprep.subr.mxu0 0.0
  %5204 = vmatpush1.msra.mxu0 0.0
  %5205 = vmatprep.subr.mxu0 0.0
  %5206 = vmatpush1.msra.mxu0 0.0
  %5207 = vmatprep.subr.mxu0 0.0
  %5208 = vmatpush1.msra.mxu0 0.0
  %5209 = vmatprep.subr.mxu0 0.0
  %5210 = vmatpush1.msra.mxu0 0.0
  %5211 = vmatprep.subr.mxu0 0.0
  %5212 = vmatpush1.msra.mxu0 0.0
  %5213 = vmatprep.mubr.f32.mxu0 0.0
  %5214 = vmatmul.mubr.f32.gmra.mrb[0].mxu0 %v3047
  %v5215 = vpop.f32.mrb[0].mxu0
  %v5216 = vadd.f32 %v5147, %v5215
  %v5217 = vpop.f32.mrb[0].mxu0
  %5218 = vmatprep.mubr.f32.mxu0 0.0
  %5219 = vmatmul.mubr.f32.gmra.mrb[0].mxu0 %v3050
  %v5220 = vpop.f32.mrb[0].mxu0
  %v5221 = vadd.f32 %v5147, %v5220
  %v5222 = vpop.f32.mrb[0].mxu0
  %5223 = vdwg.mxu0
  %s5224 = scalar_lea.vmem %s2, 736
  %v5225 = vld [vmem:[%s5224] sm:$0xff]
  %v5226 = vld [vmem:[%s5224 + $0x8] sm:$0xff]
  %v5227 = vld [vmem:[%s5224 + $0x10] sm:$0xff]
  %v5228 = vld [vmem:[%s5224 + $0x18] sm:$0xff]
  %s5229 = scalar_lea.vmem %s3, 23
  %v5230 = vld [vmem:[%s5229] sm:$0x1]
  %v5232 = vlaneseq
  %v5233 = vshrl.u32 %v5232, 7
  %v5234 = vsub.s32 0, %v5233
  %v5235 = vrot.slane %v5230, %v5234
  %5237 = vmatprep.subr.mxu0 0.0
  %5238 = vmatpush1.msra.mxu0 %v5225
  %5239 = vmatprep.subr.mxu0 0.0
  %5240 = vmatpush1.msra.mxu0 %v5226
  %5241 = vmatprep.subr.mxu0 0.0
  %5242 = vmatpush1.msra.mxu0 %v5227
  %5243 = vmatprep.subr.mxu0 0.0
  %5244 = vmatpush1.msra.mxu0 %v5228
  %5245 = vmatprep.subr.mxu0 0.0
  %5246 = vmatpush1.msra.mxu0 0.0
  %5247 = vmatprep.subr.mxu0 0.0
  %5248 = vmatpush1.msra.mxu0 0.0
  %5249 = vmatprep.subr.mxu0 0.0
  %5250 = vmatpush1.msra.mxu0 0.0
  %5251 = vmatprep.subr.mxu0 0.0
  %5252 = vmatpush1.msra.mxu0 0.0
  %5253 = vmatprep.subr.mxu0 0.0
  %5254 = vmatpush1.msra.mxu0 0.0
  %5255 = vmatprep.subr.mxu0 0.0
  %5256 = vmatpush1.msra.mxu0 0.0
  %5257 = vmatprep.subr.mxu0 0.0
  %5258 = vmatpush1.msra.mxu0 0.0
  %5259 = vmatprep.subr.mxu0 0.0
  %5260 = vmatpush1.msra.mxu0 0.0
  %5261 = vmatprep.subr.mxu0 0.0
  %5262 = vmatpush1.msra.mxu0 0.0
  %5263 = vmatprep.subr.mxu0 0.0
  %5264 = vmatpush1.msra.mxu0 0.0
  %5265 = vmatprep.subr.mxu0 0.0
  %5266 = vmatpush1.msra.mxu0 0.0
  %5267 = vmatprep.subr.mxu0 0.0
  %5268 = vmatpush1.msra.mxu0 0.0
  %5269 = vmatprep.subr.mxu0 0.0
  %5270 = vmatpush1.msra.mxu0 0.0
  %5271 = vmatprep.subr.mxu0 0.0
  %5272 = vmatpush1.msra.mxu0 0.0
  %5273 = vmatprep.subr.mxu0 0.0
  %5274 = vmatpush1.msra.mxu0 0.0
  %5275 = vmatprep.subr.mxu0 0.0
  %5276 = vmatpush1.msra.mxu0 0.0
  %5277 = vmatprep.subr.mxu0 0.0
  %5278 = vmatpush1.msra.mxu0 0.0
  %5279 = vmatprep.subr.mxu0 0.0
  %5280 = vmatpush1.msra.mxu0 0.0
  %5281 = vmatprep.subr.mxu0 0.0
  %5282 = vmatpush1.msra.mxu0 0.0
  %5283 = vmatprep.subr.mxu0 0.0
  %5284 = vmatpush1.msra.mxu0 0.0
  %5285 = vmatprep.subr.mxu0 0.0
  %5286 = vmatpush1.msra.mxu0 0.0
  %5287 = vmatprep.subr.mxu0 0.0
  %5288 = vmatpush1.msra.mxu0 0.0
  %5289 = vmatprep.subr.mxu0 0.0
  %5290 = vmatpush1.msra.mxu0 0.0
  %5291 = vmatprep.subr.mxu0 0.0
  %5292 = vmatpush1.msra.mxu0 0.0
  %5293 = vmatprep.subr.mxu0 0.0
  %5294 = vmatpush1.msra.mxu0 0.0
  %5295 = vmatprep.subr.mxu0 0.0
  %5296 = vmatpush1.msra.mxu0 0.0
  %5297 = vmatprep.subr.mxu0 0.0
  %5298 = vmatpush1.msra.mxu0 0.0
  %5299 = vmatprep.subr.mxu0 0.0
  %5300 = vmatpush1.msra.mxu0 0.0
  %5301 = vmatprep.mubr.f32.mxu0 0.0
  %5302 = vmatmul.mubr.f32.gmra.mrb[0].mxu0 %v3229
  %v5303 = vpop.f32.mrb[0].mxu0
  %v5304 = vadd.f32 %v5235, %v5303
  %v5305 = vpop.f32.mrb[0].mxu0
  %5306 = vmatprep.mubr.f32.mxu0 0.0
  %5307 = vmatmul.mubr.f32.gmra.mrb[0].mxu0 %v3232
  %v5308 = vpop.f32.mrb[0].mxu0
  %v5309 = vadd.f32 %v5235, %v5308
  %v5310 = vpop.f32.mrb[0].mxu0
  %5311 = vdwg.mxu0
  %v5313 = vsel %vm328, %v5128, 0
  %v5316 = vsel %vm328, %v5216, 0
  %5318 = vmatprep.subr.mxu0 0.0
  %5319 = vmatpush1.xpose.msra.mxu0 %v5316
  %5320 = vmatprep.subr.mxu0 0.0
  %5321 = vmatpush1.xpose.msra.mxu0 0.0
  %5322 = vmatprep.subr.mxu0 0.0
  %5323 = vmatpush1.xpose.msra.mxu0 0.0
  %5324 = vmatprep.subr.mxu0 0.0
  %5325 = vmatpush1.xpose.msra.mxu0 0.0
  %5326 = vmatprep.subr.mxu0 0.0
  %5327 = vmatpush1.xpose.msra.mxu0 0.0
  %5328 = vmatprep.subr.mxu0 0.0
  %5329 = vmatpush1.xpose.msra.mxu0 0.0
  %5330 = vmatprep.subr.mxu0 0.0
  %5331 = vmatpush1.xpose.msra.mxu0 0.0
  %5332 = vmatprep.subr.mxu0 0.0
  %5333 = vmatpush1.xpose.msra.mxu0 0.0
  %5334 = vmatprep.subr.mxu0 0.0
  %5335 = vmatpush1.xpose.msra.mxu0 0.0
  %5336 = vmatprep.subr.mxu0 0.0
  %5337 = vmatpush1.xpose.msra.mxu0 0.0
  %5338 = vmatprep.subr.mxu0 0.0
  %5339 = vmatpush1.xpose.msra.mxu0 0.0
  %5340 = vmatprep.subr.mxu0 0.0
  %5341 = vmatpush1.xpose.msra.mxu0 0.0
  %5342 = vmatprep.subr.mxu0 0.0
  %5343 = vmatpush1.xpose.msra.mxu0 0.0
  %5344 = vmatprep.subr.mxu0 0.0
  %5345 = vmatpush1.xpose.msra.mxu0 0.0
  %5346 = vmatprep.subr.mxu0 0.0
  %5347 = vmatpush1.xpose.msra.mxu0 0.0
  %5348 = vmatprep.subr.mxu0 0.0
  %5349 = vmatpush1.xpose.msra.mxu0 0.0
  %5350 = vmatprep.subr.mxu0 0.0
  %5351 = vmatpush1.xpose.msra.mxu0 0.0
  %5352 = vmatprep.subr.mxu0 0.0
  %5353 = vmatpush1.xpose.msra.mxu0 0.0
  %5354 = vmatprep.subr.mxu0 0.0
  %5355 = vmatpush1.xpose.msra.mxu0 0.0
  %5356 = vmatprep.subr.mxu0 0.0
  %5357 = vmatpush1.xpose.msra.mxu0 0.0
  %5358 = vmatprep.subr.mxu0 0.0
  %5359 = vmatpush1.xpose.msra.mxu0 0.0
  %5360 = vmatprep.subr.mxu0 0.0
  %5361 = vmatpush1.xpose.msra.mxu0 0.0
  %5362 = vmatprep.subr.mxu0 0.0
  %5363 = vmatpush1.xpose.msra.mxu0 0.0
  %5364 = vmatprep.subr.mxu0 0.0
  %5365 = vmatpush1.xpose.msra.mxu0 0.0
  %5366 = vmatprep.subr.mxu0 0.0
  %5367 = vmatpush1.xpose.msra.mxu0 0.0
  %5368 = vmatprep.subr.mxu0 0.0
  %5369 = vmatpush1.xpose.msra.mxu0 0.0
  %5370 = vmatprep.subr.mxu0 0.0
  %5371 = vmatpush1.xpose.msra.mxu0 0.0
  %5372 = vmatprep.subr.mxu0 0.0
  %5373 = vmatpush1.xpose.msra.mxu0 0.0
  %5374 = vmatprep.subr.mxu0 0.0
  %5375 = vmatpush1.xpose.msra.mxu0 0.0
  %5376 = vmatprep.subr.mxu0 0.0
  %5377 = vmatpush1.xpose.msra.mxu0 0.0
  %5378 = vmatprep.subr.mxu0 0.0
  %5379 = vmatpush1.xpose.msra.mxu0 0.0
  %5380 = vmatprep.subr.mxu0 0.0
  %5381 = vmatpush1.xpose.msra.mxu0 0.0
  %5382 = vmatprep.mubr.f32.mxu0 0.0
  %5383 = vmatmul.mubr.f32.gmra.mrb[0].mxu0 %v5313
  %v5384 = vpop.f32.mrb[0].mxu0
  %v5385 = vadd.f32 0.0, %v5384
  %v5386 = vpop.f32.mrb[0].mxu0
  %5387 = vdwg.mxu0
  %v5389 = vsel %vm328, %v5133, 0
  %v5392 = vsel %vm328, %v5221, 0
  %5394 = vmatprep.subr.mxu0 0.0
  %5395 = vmatpush1.xpose.msra.mxu0 %v5392
  %5396 = vmatprep.subr.mxu0 0.0
  %5397 = vmatpush1.xpose.msra.mxu0 0.0
  %5398 = vmatprep.subr.mxu0 0.0
  %5399 = vmatpush1.xpose.msra.mxu0 0.0
  %5400 = vmatprep.subr.mxu0 0.0
  %5401 = vmatpush1.xpose.msra.mxu0 0.0
  %5402 = vmatprep.subr.mxu0 0.0
  %5403 = vmatpush1.xpose.msra.mxu0 0.0
  %5404 = vmatprep.subr.mxu0 0.0
  %5405 = vmatpush1.xpose.msra.mxu0 0.0
  %5406 = vmatprep.subr.mxu0 0.0
  %5407 = vmatpush1.xpose.msra.mxu0 0.0
  %5408 = vmatprep.subr.mxu0 0.0
  %5409 = vmatpush1.xpose.msra.mxu0 0.0
  %5410 = vmatprep.subr.mxu0 0.0
  %5411 = vmatpush1.xpose.msra.mxu0 0.0
  %5412 = vmatprep.subr.mxu0 0.0
  %5413 = vmatpush1.xpose.msra.mxu0 0.0
  %5414 = vmatprep.subr.mxu0 0.0
  %5415 = vmatpush1.xpose.msra.mxu0 0.0
  %5416 = vmatprep.subr.mxu0 0.0
  %5417 = vmatpush1.xpose.msra.mxu0 0.0
  %5418 = vmatprep.subr.mxu0 0.0
  %5419 = vmatpush1.xpose.msra.mxu0 0.0
  %5420 = vmatprep.subr.mxu0 0.0
  %5421 = vmatpush1.xpose.msra.mxu0 0.0
  %5422 = vmatprep.subr.mxu0 0.0
  %5423 = vmatpush1.xpose.msra.mxu0 0.0
  %5424 = vmatprep.subr.mxu0 0.0
  %5425 = vmatpush1.xpose.msra.mxu0 0.0
  %5426 = vmatprep.subr.mxu0 0.0
  %5427 = vmatpush1.xpose.msra.mxu0 0.0
  %5428 = vmatprep.subr.mxu0 0.0
  %5429 = vmatpush1.xpose.msra.mxu0 0.0
  %5430 = vmatprep.subr.mxu0 0.0
  %5431 = vmatpush1.xpose.msra.mxu0 0.0
  %5432 = vmatprep.subr.mxu0 0.0
  %5433 = vmatpush1.xpose.msra.mxu0 0.0
  %5434 = vmatprep.subr.mxu0 0.0
  %5435 = vmatpush1.xpose.msra.mxu0 0.0
  %5436 = vmatprep.subr.mxu0 0.0
  %5437 = vmatpush1.xpose.msra.mxu0 0.0
  %5438 = vmatprep.subr.mxu0 0.0
  %5439 = vmatpush1.xpose.msra.mxu0 0.0
  %5440 = vmatprep.subr.mxu0 0.0
  %5441 = vmatpush1.xpose.msra.mxu0 0.0
  %5442 = vmatprep.subr.mxu0 0.0
  %5443 = vmatpush1.xpose.msra.mxu0 0.0
  %5444 = vmatprep.subr.mxu0 0.0
  %5445 = vmatpush1.xpose.msra.mxu0 0.0
  %5446 = vmatprep.subr.mxu0 0.0
  %5447 = vmatpush1.xpose.msra.mxu0 0.0
  %5448 = vmatprep.subr.mxu0 0.0
  %5449 = vmatpush1.xpose.msra.mxu0 0.0
  %5450 = vmatprep.subr.mxu0 0.0
  %5451 = vmatpush1.xpose.msra.mxu0 0.0
  %5452 = vmatprep.subr.mxu0 0.0
  %5453 = vmatpush1.xpose.msra.mxu0 0.0
  %5454 = vmatprep.subr.mxu0 0.0
  %5455 = vmatpush1.xpose.msra.mxu0 0.0
  %5456 = vmatprep.subr.mxu0 0.0
  %5457 = vmatpush1.xpose.msra.mxu0 0.0
  %5458 = vmatprep.mubr.f32.mxu0 0.0
  %5459 = vmatmul.mubr.f32.gmra.mrb[0].mxu0 %v5389
  %v5460 = vpop.f32.mrb[0].mxu0
  %v5461 = vadd.f32 0.0, %v5460
  %v5462 = vpop.f32.mrb[0].mxu0
  %5463 = vdwg.mxu0
  %v5464 = vsel %vm328, %v5385, -inf
  %5465 = vmax.xlane.f32.xlu0 %v5464
  %v5466 = vpop.xlane.xlu0 %5465
  %v5467 = vsel %vm328, %v5461, -inf
  %5468 = vmax.xlane.f32.xlu0 %v5467
  %v5469 = vpop.xlane.xlu0 %5468
  %v5470 = vsub.f32 %v5385, %v5466
  %v5471 = vsub.f32 %v5461, %v5469
  %v5472 = vmul.f32 %v5470, 1.442695
  %v5473 = vpow.pop %v5472
  %v5474 = vmul.f32 %v5471, 1.442695
  %v5475 = vpow.pop %v5474
  %v5476 = vsel %vm328, %v5473, 0.0
  %5477 = vadd.xlane.f32.xlu0 %v5476
  %v5478 = vpop.xlane.xlu0 %5477
  %v5479 = vsel %vm328, %v5475, 0.0
  %5480 = vadd.xlane.f32.xlu0 %v5479
  %v5481 = vpop.xlane.xlu0 %5480
  %v5482 = vrcp.pop %v5478
  %v5483 = vrcp.pop %v5481
  %v5484 = vmul.f32 %v5473, %v5482
  %v5485 = vmul.f32 %v5475, %v5483
  %v5487 = vsel %vm328, %v5484, 0
  %5489 = vmatprep.subr.mxu0 0.0
  %5490 = vmatpush1.msra.mxu0 %v5304
  %5491 = vmatprep.subr.mxu0 0.0
  %5492 = vmatpush1.msra.mxu0 0.0
  %5493 = vmatprep.subr.mxu0 0.0
  %5494 = vmatpush1.msra.mxu0 0.0
  %5495 = vmatprep.subr.mxu0 0.0
  %5496 = vmatpush1.msra.mxu0 0.0
  %5497 = vmatprep.subr.mxu0 0.0
  %5498 = vmatpush1.msra.mxu0 0.0
  %5499 = vmatprep.subr.mxu0 0.0
  %5500 = vmatpush1.msra.mxu0 0.0
  %5501 = vmatprep.subr.mxu0 0.0
  %5502 = vmatpush1.msra.mxu0 0.0
  %5503 = vmatprep.subr.mxu0 0.0
  %5504 = vmatpush1.msra.mxu0 0.0
  %5505 = vmatprep.subr.mxu0 0.0
  %5506 = vmatpush1.msra.mxu0 0.0
  %5507 = vmatprep.subr.mxu0 0.0
  %5508 = vmatpush1.msra.mxu0 0.0
  %5509 = vmatprep.subr.mxu0 0.0
  %5510 = vmatpush1.msra.mxu0 0.0
  %5511 = vmatprep.subr.mxu0 0.0
  %5512 = vmatpush1.msra.mxu0 0.0
  %5513 = vmatprep.subr.mxu0 0.0
  %5514 = vmatpush1.msra.mxu0 0.0
  %5515 = vmatprep.subr.mxu0 0.0
  %5516 = vmatpush1.msra.mxu0 0.0
  %5517 = vmatprep.subr.mxu0 0.0
  %5518 = vmatpush1.msra.mxu0 0.0
  %5519 = vmatprep.subr.mxu0 0.0
  %5520 = vmatpush1.msra.mxu0 0.0
  %5521 = vmatprep.subr.mxu0 0.0
  %5522 = vmatpush1.msra.mxu0 0.0
  %5523 = vmatprep.subr.mxu0 0.0
  %5524 = vmatpush1.msra.mxu0 0.0
  %5525 = vmatprep.subr.mxu0 0.0
  %5526 = vmatpush1.msra.mxu0 0.0
  %5527 = vmatprep.subr.mxu0 0.0
  %5528 = vmatpush1.msra.mxu0 0.0
  %5529 = vmatprep.subr.mxu0 0.0
  %5530 = vmatpush1.msra.mxu0 0.0
  %5531 = vmatprep.subr.mxu0 0.0
  %5532 = vmatpush1.msra.mxu0 0.0
  %5533 = vmatprep.subr.mxu0 0.0
  %5534 = vmatpush1.msra.mxu0 0.0
  %5535 = vmatprep.subr.mxu0 0.0
  %5536 = vmatpush1.msra.mxu0 0.0
  %5537 = vmatprep.subr.mxu0 0.0
  %5538 = vmatpush1.msra.mxu0 0.0
  %5539 = vmatprep.subr.mxu0 0.0
  %5540 = vmatpush1.msra.mxu0 0.0
  %5541 = vmatprep.subr.mxu0 0.0
  %5542 = vmatpush1.msra.mxu0 0.0
  %5543 = vmatprep.subr.mxu0 0.0
  %5544 = vmatpush1.msra.mxu0 0.0
  %5545 = vmatprep.subr.mxu0 0.0
  %5546 = vmatpush1.msra.mxu0 0.0
  %5547 = vmatprep.subr.mxu0 0.0
  %5548 = vmatpush1.msra.mxu0 0.0
  %5549 = vmatprep.subr.mxu0 0.0
  %5550 = vmatpush1.msra.mxu0 0.0
  %5551 = vmatprep.subr.mxu0 0.0
  %5552 = vmatpush1.msra.mxu0 0.0
  %5553 = vmatprep.mubr.f32.mxu0 0.0
  %5554 = vmatmul.mubr.f32.gmra.mrb[0].mxu0 %v5487
  %v5555 = vpop.f32.mrb[0].mxu0
  %v5556 = vadd.f32 0.0, %v5555
  %v5557 = vpop.f32.mrb[0].mxu0
  %5558 = vdwg.mxu0
  %v5560 = vsel %vm328, %v5485, 0
  %5562 = vmatprep.subr.mxu0 0.0
  %5563 = vmatpush1.msra.mxu0 %v5309
  %5564 = vmatprep.subr.mxu0 0.0
  %5565 = vmatpush1.msra.mxu0 0.0
  %5566 = vmatprep.subr.mxu0 0.0
  %5567 = vmatpush1.msra.mxu0 0.0
  %5568 = vmatprep.subr.mxu0 0.0
  %5569 = vmatpush1.msra.mxu0 0.0
  %5570 = vmatprep.subr.mxu0 0.0
  %5571 = vmatpush1.msra.mxu0 0.0
  %5572 = vmatprep.subr.mxu0 0.0
  %5573 = vmatpush1.msra.mxu0 0.0
  %5574 = vmatprep.subr.mxu0 0.0
  %5575 = vmatpush1.msra.mxu0 0.0
  %5576 = vmatprep.subr.mxu0 0.0
  %5577 = vmatpush1.msra.mxu0 0.0
  %5578 = vmatprep.subr.mxu0 0.0
  %5579 = vmatpush1.msra.mxu0 0.0
  %5580 = vmatprep.subr.mxu0 0.0
  %5581 = vmatpush1.msra.mxu0 0.0
  %5582 = vmatprep.subr.mxu0 0.0
  %5583 = vmatpush1.msra.mxu0 0.0
  %5584 = vmatprep.subr.mxu0 0.0
  %5585 = vmatpush1.msra.mxu0 0.0
  %5586 = vmatprep.subr.mxu0 0.0
  %5587 = vmatpush1.msra.mxu0 0.0
  %5588 = vmatprep.subr.mxu0 0.0
  %5589 = vmatpush1.msra.mxu0 0.0
  %5590 = vmatprep.subr.mxu0 0.0
  %5591 = vmatpush1.msra.mxu0 0.0
  %5592 = vmatprep.subr.mxu0 0.0
  %5593 = vmatpush1.msra.mxu0 0.0
  %5594 = vmatprep.subr.mxu0 0.0
  %5595 = vmatpush1.msra.mxu0 0.0
  %5596 = vmatprep.subr.mxu0 0.0
  %5597 = vmatpush1.msra.mxu0 0.0
  %5598 = vmatprep.subr.mxu0 0.0
  %5599 = vmatpush1.msra.mxu0 0.0
  %5600 = vmatprep.subr.mxu0 0.0
  %5601 = vmatpush1.msra.mxu0 0.0
  %5602 = vmatprep.subr.mxu0 0.0
  %5603 = vmatpush1.msra.mxu0 0.0
  %5604 = vmatprep.subr.mxu0 0.0
  %5605 = vmatpush1.msra.mxu0 0.0
  %5606 = vmatprep.subr.mxu0 0.0
  %5607 = vmatpush1.msra.mxu0 0.0
  %5608 = vmatprep.subr.mxu0 0.0
  %5609 = vmatpush1.msra.mxu0 0.0
  %5610 = vmatprep.subr.mxu0 0.0
  %5611 = vmatpush1.msra.mxu0 0.0
  %5612 = vmatprep.subr.mxu0 0.0
  %5613 = vmatpush1.msra.mxu0 0.0
  %5614 = vmatprep.subr.mxu0 0.0
  %5615 = vmatpush1.msra.mxu0 0.0
  %5616 = vmatprep.subr.mxu0 0.0
  %5617 = vmatpush1.msra.mxu0 0.0
  %5618 = vmatprep.subr.mxu0 0.0
  %5619 = vmatpush1.msra.mxu0 0.0
  %5620 = vmatprep.subr.mxu0 0.0
  %5621 = vmatpush1.msra.mxu0 0.0
  %5622 = vmatprep.subr.mxu0 0.0
  %5623 = vmatpush1.msra.mxu0 0.0
  %5624 = vmatprep.subr.mxu0 0.0
  %5625 = vmatpush1.msra.mxu0 0.0
  %5626 = vmatprep.mubr.f32.mxu0 0.0
  %5627 = vmatmul.mubr.f32.gmra.mrb[0].mxu0 %v5560
  %v5628 = vpop.f32.mrb[0].mxu0
  %v5629 = vadd.f32 0.0, %v5628
  %v5630 = vpop.f32.mrb[0].mxu0
  %5631 = vdwg.mxu0
  %s5632 = scalar_lea.vmem %s4, 56
  %v5633 = vld [vmem:[%s5632] sm:$0xff]
  %v5635 = vsel %vm328, %v5556, 0
  %v5638 = vsel %vm328, %v5629, 0
  %5640 = vmatprep.subr.mxu0 0.0
  %5641 = vmatpush1.msra.mxu0 %v5633
  %5642 = vmatprep.subr.mxu0 0.0
  %5643 = vmatpush1.msra.mxu0 0.0
  %5644 = vmatprep.subr.mxu0 0.0
  %5645 = vmatpush1.msra.mxu0 0.0
  %5646 = vmatprep.subr.mxu0 0.0
  %5647 = vmatpush1.msra.mxu0 0.0
  %5648 = vmatprep.subr.mxu0 0.0
  %5649 = vmatpush1.msra.mxu0 0.0
  %5650 = vmatprep.subr.mxu0 0.0
  %5651 = vmatpush1.msra.mxu0 0.0
  %5652 = vmatprep.subr.mxu0 0.0
  %5653 = vmatpush1.msra.mxu0 0.0
  %5654 = vmatprep.subr.mxu0 0.0
  %5655 = vmatpush1.msra.mxu0 0.0
  %5656 = vmatprep.subr.mxu0 0.0
  %5657 = vmatpush1.msra.mxu0 0.0
  %5658 = vmatprep.subr.mxu0 0.0
  %5659 = vmatpush1.msra.mxu0 0.0
  %5660 = vmatprep.subr.mxu0 0.0
  %5661 = vmatpush1.msra.mxu0 0.0
  %5662 = vmatprep.subr.mxu0 0.0
  %5663 = vmatpush1.msra.mxu0 0.0
  %5664 = vmatprep.subr.mxu0 0.0
  %5665 = vmatpush1.msra.mxu0 0.0
  %5666 = vmatprep.subr.mxu0 0.0
  %5667 = vmatpush1.msra.mxu0 0.0
  %5668 = vmatprep.subr.mxu0 0.0
  %5669 = vmatpush1.msra.mxu0 0.0
  %5670 = vmatprep.subr.mxu0 0.0
  %5671 = vmatpush1.msra.mxu0 0.0
  %5672 = vmatprep.subr.mxu0 0.0
  %5673 = vmatpush1.msra.mxu0 0.0
  %5674 = vmatprep.subr.mxu0 0.0
  %5675 = vmatpush1.msra.mxu0 0.0
  %5676 = vmatprep.subr.mxu0 0.0
  %5677 = vmatpush1.msra.mxu0 0.0
  %5678 = vmatprep.subr.mxu0 0.0
  %5679 = vmatpush1.msra.mxu0 0.0
  %5680 = vmatprep.subr.mxu0 0.0
  %5681 = vmatpush1.msra.mxu0 0.0
  %5682 = vmatprep.subr.mxu0 0.0
  %5683 = vmatpush1.msra.mxu0 0.0
  %5684 = vmatprep.subr.mxu0 0.0
  %5685 = vmatpush1.msra.mxu0 0.0
  %5686 = vmatprep.subr.mxu0 0.0
  %5687 = vmatpush1.msra.mxu0 0.0
  %5688 = vmatprep.subr.mxu0 0.0
  %5689 = vmatpush1.msra.mxu0 0.0
  %5690 = vmatprep.subr.mxu0 0.0
  %5691 = vmatpush1.msra.mxu0 0.0
  %5692 = vmatprep.subr.mxu0 0.0
  %5693 = vmatpush1.msra.mxu0 0.0
  %5694 = vmatprep.subr.mxu0 0.0
  %5695 = vmatpush1.msra.mxu0 0.0
  %5696 = vmatprep.subr.mxu0 0.0
  %5697 = vmatpush1.msra.mxu0 0.0
  %5698 = vmatprep.subr.mxu0 0.0
  %5699 = vmatpush1.msra.mxu0 0.0
  %5700 = vmatprep.subr.mxu0 0.0
  %5701 = vmatpush1.msra.mxu0 0.0
  %5702 = vmatprep.subr.mxu0 0.0
  %5703 = vmatpush1.msra.mxu0 0.0
  %5704 = vmatprep.mubr.f32.mxu0 0.0
  %5705 = vmatmul.mubr.f32.gmra.mrb[0].mxu0 %v5635
  %v5706 = vpop.f32.mrb[0].mxu0
  %v5707 = vadd.f32 0.0, %v5706
  %v5708 = vpop.f32.mrb[0].mxu0
  %5709 = vmatprep.mubr.f32.mxu0 0.0
  %5710 = vmatmul.mubr.f32.gmra.mrb[0].mxu0 %v5638
  %v5711 = vpop.f32.mrb[0].mxu0
  %v5712 = vadd.f32 0.0, %v5711
  %v5713 = vpop.f32.mrb[0].mxu0
  %5714 = vdwg.mxu0
  %v5715 = vadd.f32 %v5046, %v5707
  %v5716 = vadd.f32 %v5047, %v5712
  %s5717 = scalar_lea.vmem %s5, 1
  %v5718 = vld [vmem:[%s5717] sm:$0x1]
  %v5720 = vlaneseq
  %v5721 = vshrl.u32 %v5720, 7
  %v5722 = vsub.s32 0, %v5721
  %v5723 = vrot.slane %v5718, %v5722
  %v5725 = vadd.f32 %v5715, %v5723
  %v5726 = vadd.f32 %v5716, %v5723
  %v5727 = vadd.f32 %v3029, %v5725
  %v5728 = vadd.f32 %v3030, %v5726
  %s5729 = scalar_lea.vmem %s10, 2
  %v5730 = vld [vmem:[%s5729] sm:$0x1]
  %s5731 = scalar_lea.vmem %s11, 2
  %v5732 = vld [vmem:[%s5731] sm:$0x1]
  %v5733 = vsel %vm64, %v5727, 0.0
  %5734 = vadd.xlane.f32.xlu0 %v5733
  %v5735 = vpop.xlane.xlu0 %5734
  %v5736 = vsel %vm64, %v5728, 0.0
  %5737 = vadd.xlane.f32.xlu0 %v5736
  %v5738 = vpop.xlane.xlu0 %5737
  %v5739 = vmul.f32 %v5735, %v2755
  %v5740 = vmul.f32 %v5738, %v2755
  %v5741 = vsub.f32 %v5727, %v5739
  %v5742 = vsub.f32 %v5728, %v5740
  %v5743 = vmul.f32 %v5741, %v5741
  %v5744 = vmul.f32 %v5742, %v5742
  %v5745 = vsel %vm64, %v5743, 0.0
  %5746 = vadd.xlane.f32.xlu0 %v5745
  %v5747 = vpop.xlane.xlu0 %5746
  %v5748 = vsel %vm64, %v5744, 0.0
  %5749 = vadd.xlane.f32.xlu0 %v5748
  %v5750 = vpop.xlane.xlu0 %5749
  %v5751 = vmul.f32 %v5747, %v2755
  %v5752 = vmul.f32 %v5750, %v2755
  %v5753 = vadd.f32 %v5751, 1e-05
  %v5754 = vadd.f32 %v5752, 1e-05
  %v5755 = vrsqrt.pop %v5753
  %v5756 = vrsqrt.pop %v5754
  %v5757 = vmul.f32 %v5741, %v5755
  %v5758 = vmul.f32 %v5742, %v5756
  %v5760 = vlaneseq
  %v5761 = vshrl.u32 %v5760, 7
  %v5762 = vsub.s32 0, %v5761
  %v5763 = vrot.slane %v5730, %v5762
  %v5765 = vmul.f32 %v5757, %v5763
  %v5766 = vmul.f32 %v5758, %v5763
  %v5768 = vlaneseq
  %v5769 = vshrl.u32 %v5768, 7
  %v5770 = vsub.s32 0, %v5769
  %v5771 = vrot.slane %v5732, %v5770
  %v5773 = vadd.f32 %v5765, %v5771
  %v5774 = vadd.f32 %v5766, %v5771
  %s5775 = scalar_lea.vmem %s6, 32
  %v5776 = vld [vmem:[%s5775] sm:$0xff]
  %v5777 = vld [vmem:[%s5775 + $0x8] sm:$0xff]
  %v5778 = vld [vmem:[%s5775 + $0x10] sm:$0xff]
  %v5779 = vld [vmem:[%s5775 + $0x18] sm:$0xff]
  %s5780 = scalar_lea.vmem %s7, 1
  %v5781 = vld [vmem:[%s5780] sm:$0x1]
  %v5783 = vlaneseq
  %v5784 = vshrl.u32 %v5783, 7
  %v5785 = vsub.s32 0, %v5784
  %v5786 = vrot.slane %v5781, %v5785
  %v5789 = vsel %vm64, %v5773, 0
  %v5792 = vsel %vm64, %v5774, 0
  %5794 = vmatprep.subr.mxu0 0.0
  %5795 = vmatpush1.msra.mxu0 %v5776
  %5796 = vmatprep.subr.mxu0 0.0
  %5797 = vmatpush1.msra.mxu0 %v5777
  %5798 = vmatprep.subr.mxu0 0.0
  %5799 = vmatpush1.msra.mxu0 %v5778
  %5800 = vmatprep.subr.mxu0 0.0
  %5801 = vmatpush1.msra.mxu0 %v5779
  %5802 = vmatprep.subr.mxu0 0.0
  %5803 = vmatpush1.msra.mxu0 0.0
  %5804 = vmatprep.subr.mxu0 0.0
  %5805 = vmatpush1.msra.mxu0 0.0
  %5806 = vmatprep.subr.mxu0 0.0
  %5807 = vmatpush1.msra.mxu0 0.0
  %5808 = vmatprep.subr.mxu0 0.0
  %5809 = vmatpush1.msra.mxu0 0.0
  %5810 = vmatprep.subr.mxu0 0.0
  %5811 = vmatpush1.msra.mxu0 0.0
  %5812 = vmatprep.subr.mxu0 0.0
  %5813 = vmatpush1.msra.mxu0 0.0
  %5814 = vmatprep.subr.mxu0 0.0
  %5815 = vmatpush1.msra.mxu0 0.0
  %5816 = vmatprep.subr.mxu0 0.0
  %5817 = vmatpush1.msra.mxu0 0.0
  %5818 = vmatprep.subr.mxu0 0.0
  %5819 = vmatpush1.msra.mxu0 0.0
  %5820 = vmatprep.subr.mxu0 0.0
  %5821 = vmatpush1.msra.mxu0 0.0
  %5822 = vmatprep.subr.mxu0 0.0
  %5823 = vmatpush1.msra.mxu0 0.0
  %5824 = vmatprep.subr.mxu0 0.0
  %5825 = vmatpush1.msra.mxu0 0.0
  %5826 = vmatprep.subr.mxu0 0.0
  %5827 = vmatpush1.msra.mxu0 0.0
  %5828 = vmatprep.subr.mxu0 0.0
  %5829 = vmatpush1.msra.mxu0 0.0
  %5830 = vmatprep.subr.mxu0 0.0
  %5831 = vmatpush1.msra.mxu0 0.0
  %5832 = vmatprep.subr.mxu0 0.0
  %5833 = vmatpush1.msra.mxu0 0.0
  %5834 = vmatprep.subr.mxu0 0.0
  %5835 = vmatpush1.msra.mxu0 0.0
  %5836 = vmatprep.subr.mxu0 0.0
  %5837 = vmatpush1.msra.mxu0 0.0
  %5838 = vmatprep.subr.mxu0 0.0
  %5839 = vmatpush1.msra.mxu0 0.0
  %5840 = vmatprep.subr.mxu0 0.0
  %5841 = vmatpush1.msra.mxu0 0.0
  %5842 = vmatprep.subr.mxu0 0.0
  %5843 = vmatpush1.msra.mxu0 0.0
  %5844 = vmatprep.subr.mxu0 0.0
  %5845 = vmatpush1.msra.mxu0 0.0
  %5846 = vmatprep.subr.mxu0 0.0
  %5847 = vmatpush1.msra.mxu0 0.0
  %5848 = vmatprep.subr.mxu0 0.0
  %5849 = vmatpush1.msra.mxu0 0.0
  %5850 = vmatprep.subr.mxu0 0.0
  %5851 = vmatpush1.msra.mxu0 0.0
  %5852 = vmatprep.subr.mxu0 0.0
  %5853 = vmatpush1.msra.mxu0 0.0
  %5854 = vmatprep.subr.mxu0 0.0
  %5855 = vmatpush1.msra.mxu0 0.0
  %5856 = vmatprep.subr.mxu0 0.0
  %5857 = vmatpush1.msra.mxu0 0.0
  %5858 = vmatprep.mubr.f32.mxu0 0.0
  %5859 = vmatmul.mubr.f32.gmra.mrb[0].mxu0 %v5789
  %v5860 = vpop.f32.mrb[0].mxu0
  %v5861 = vadd.f32 %v5786, %v5860
  %v5862 = vpop.f32.mrb[0].mxu0
  %5863 = vmatprep.mubr.f32.mxu0 0.0
  %5864 = vmatmul.mubr.f32.gmra.mrb[0].mxu0 %v5792
  %v5865 = vpop.f32.mrb[0].mxu0
  %v5866 = vadd.f32 %v5786, %v5865
  %v5867 = vpop.f32.mrb[0].mxu0
  %5868 = vdwg.mxu0
  %v5869 = vmax.f32 %v5861, 0.0
  %v5870 = vmax.f32 %v5866, 0.0
  %s5871 = scalar_lea.vmem %s8, 64
  %v5872 = vld [vmem:[%s5871] sm:$0xff]
  %v5873 = vld [vmem:[%s5871 + $0x8] sm:$0xff]
  %v5874 = vld [vmem:[%s5871 + $0x10] sm:$0xff]
  %v5875 = vld [vmem:[%s5871 + $0x18] sm:$0xff]
  %v5876 = vld [vmem:[%s5871 + $0x20] sm:$0xff]
  %v5877 = vld [vmem:[%s5871 + $0x28] sm:$0xff]
  %v5878 = vld [vmem:[%s5871 + $0x30] sm:$0xff]
  %v5879 = vld [vmem:[%s5871 + $0x38] sm:$0xff]
  %s5880 = scalar_lea.vmem %s9, 1
  %v5881 = vld [vmem:[%s5880] sm:$0x1]
  %v5883 = vlaneseq
  %v5884 = vshrl.u32 %v5883, 7
  %v5885 = vsub.s32 0, %v5884
  %v5886 = vrot.slane %v5881, %v5885
  %v5889 = vsel %vm2901, %v5869, 0
  %v5892 = vsel %vm2901, %v5870, 0
  %5894 = vmatprep.subr.mxu0 0.0
  %5895 = vmatpush1.msra.mxu0 %v5872
  %5896 = vmatprep.subr.mxu0 0.0
  %5897 = vmatpush1.msra.mxu0 %v5873
  %5898 = vmatprep.subr.mxu0 0.0
  %5899 = vmatpush1.msra.mxu0 %v5874
  %5900 = vmatprep.subr.mxu0 0.0
  %5901 = vmatpush1.msra.mxu0 %v5875
  %5902 = vmatprep.subr.mxu0 0.0
  %5903 = vmatpush1.msra.mxu0 %v5876
  %5904 = vmatprep.subr.mxu0 0.0
  %5905 = vmatpush1.msra.mxu0 %v5877
  %5906 = vmatprep.subr.mxu0 0.0
  %5907 = vmatpush1.msra.mxu0 %v5878
  %5908 = vmatprep.subr.mxu0 0.0
  %5909 = vmatpush1.msra.mxu0 %v5879
  %5910 = vmatprep.subr.mxu0 0.0
  %5911 = vmatpush1.msra.mxu0 0.0
  %5912 = vmatprep.subr.mxu0 0.0
  %5913 = vmatpush1.msra.mxu0 0.0
  %5914 = vmatprep.subr.mxu0 0.0
  %5915 = vmatpush1.msra.mxu0 0.0
  %5916 = vmatprep.subr.mxu0 0.0
  %5917 = vmatpush1.msra.mxu0 0.0
  %5918 = vmatprep.subr.mxu0 0.0
  %5919 = vmatpush1.msra.mxu0 0.0
  %5920 = vmatprep.subr.mxu0 0.0
  %5921 = vmatpush1.msra.mxu0 0.0
  %5922 = vmatprep.subr.mxu0 0.0
  %5923 = vmatpush1.msra.mxu0 0.0
  %5924 = vmatprep.subr.mxu0 0.0
  %5925 = vmatpush1.msra.mxu0 0.0
  %5926 = vmatprep.subr.mxu0 0.0
  %5927 = vmatpush1.msra.mxu0 0.0
  %5928 = vmatprep.subr.mxu0 0.0
  %5929 = vmatpush1.msra.mxu0 0.0
  %5930 = vmatprep.subr.mxu0 0.0
  %5931 = vmatpush1.msra.mxu0 0.0
  %5932 = vmatprep.subr.mxu0 0.0
  %5933 = vmatpush1.msra.mxu0 0.0
  %5934 = vmatprep.subr.mxu0 0.0
  %5935 = vmatpush1.msra.mxu0 0.0
  %5936 = vmatprep.subr.mxu0 0.0
  %5937 = vmatpush1.msra.mxu0 0.0
  %5938 = vmatprep.subr.mxu0 0.0
  %5939 = vmatpush1.msra.mxu0 0.0
  %5940 = vmatprep.subr.mxu0 0.0
  %5941 = vmatpush1.msra.mxu0 0.0
  %5942 = vmatprep.subr.mxu0 0.0
  %5943 = vmatpush1.msra.mxu0 0.0
  %5944 = vmatprep.subr.mxu0 0.0
  %5945 = vmatpush1.msra.mxu0 0.0
  %5946 = vmatprep.subr.mxu0 0.0
  %5947 = vmatpush1.msra.mxu0 0.0
  %5948 = vmatprep.subr.mxu0 0.0
  %5949 = vmatpush1.msra.mxu0 0.0
  %5950 = vmatprep.subr.mxu0 0.0
  %5951 = vmatpush1.msra.mxu0 0.0
  %5952 = vmatprep.subr.mxu0 0.0
  %5953 = vmatpush1.msra.mxu0 0.0
  %5954 = vmatprep.subr.mxu0 0.0
  %5955 = vmatpush1.msra.mxu0 0.0
  %5956 = vmatprep.subr.mxu0 0.0
  %5957 = vmatpush1.msra.mxu0 0.0
  %5958 = vmatprep.mubr.f32.mxu0 0.0
  %5959 = vmatmul.mubr.f32.gmra.mrb[0].mxu0 %v5889
  %v5960 = vpop.f32.mrb[0].mxu0
  %v5961 = vadd.f32 %v5886, %v5960
  %v5962 = vpop.f32.mrb[0].mxu0
  %5963 = vmatprep.mubr.f32.mxu0 0.0
  %5964 = vmatmul.mubr.f32.gmra.mrb[0].mxu0 %v5892
  %v5965 = vpop.f32.mrb[0].mxu0
  %v5966 = vadd.f32 %v5886, %v5965
  %v5967 = vpop.f32.mrb[0].mxu0
  %5968 = vdwg.mxu0
  %v5969 = vadd.f32 %v5773, %v5961
  %v5970 = vadd.f32 %v5774, %v5966
  %s5971 = scalar_lea.vmem %s10, 3
  %v5972 = vld [vmem:[%s5971] sm:$0x1]
  %s5973 = scalar_lea.vmem %s11, 3
  %v5974 = vld [vmem:[%s5973] sm:$0x1]
  %v5975 = vsel %vm64, %v5969, 0.0
  %5976 = vadd.xlane.f32.xlu0 %v5975
  %v5977 = vpop.xlane.xlu0 %5976
  %v5978 = vsel %vm64, %v5970, 0.0
  %5979 = vadd.xlane.f32.xlu0 %v5978
  %v5980 = vpop.xlane.xlu0 %5979
  %v5981 = vmul.f32 %v5977, %v2755
  %v5982 = vmul.f32 %v5980, %v2755
  %v5983 = vsub.f32 %v5969, %v5981
  %v5984 = vsub.f32 %v5970, %v5982
  %v5985 = vmul.f32 %v5983, %v5983
  %v5986 = vmul.f32 %v5984, %v5984
  %v5987 = vsel %vm64, %v5985, 0.0
  %5988 = vadd.xlane.f32.xlu0 %v5987
  %v5989 = vpop.xlane.xlu0 %5988
  %v5990 = vsel %vm64, %v5986, 0.0
  %5991 = vadd.xlane.f32.xlu0 %v5990
  %v5992 = vpop.xlane.xlu0 %5991
  %v5993 = vmul.f32 %v5989, %v2755
  %v5994 = vmul.f32 %v5992, %v2755
  %v5995 = vadd.f32 %v5993, 1e-05
  %v5996 = vadd.f32 %v5994, 1e-05
  %v5997 = vrsqrt.pop %v5995
  %v5998 = vrsqrt.pop %v5996
  %v5999 = vmul.f32 %v5983, %v5997
  %v6000 = vmul.f32 %v5984, %v5998
  %v6002 = vlaneseq
  %v6003 = vshrl.u32 %v6002, 7
  %v6004 = vsub.s32 0, %v6003
  %v6005 = vrot.slane %v5972, %v6004
  %v6007 = vmul.f32 %v5999, %v6005
  %v6008 = vmul.f32 %v6000, %v6005
  %v6010 = vlaneseq
  %v6011 = vshrl.u32 %v6010, 7
  %v6012 = vsub.s32 0, %v6011
  %v6013 = vrot.slane %v5974, %v6012
  %v6015 = vadd.f32 %v6007, %v6013
  %v6016 = vadd.f32 %v6008, %v6013
  %v6017 = vld [vmem:[%s12] sm:$0x1]
  %v6018 = vld [vmem:[%s13] sm:$0x1]
  %v6019 = vsel %vm64, %v6015, 0.0
  %6020 = vadd.xlane.f32.xlu0 %v6019
  %v6021 = vpop.xlane.xlu0 %6020
  %v6022 = vsel %vm64, %v6016, 0.0
  %6023 = vadd.xlane.f32.xlu0 %v6022
  %v6024 = vpop.xlane.xlu0 %6023
  %v6025 = vmul.f32 %v6021, %v2755
  %v6026 = vmul.f32 %v6024, %v2755
  %v6027 = vsub.f32 %v6015, %v6025
  %v6028 = vsub.f32 %v6016, %v6026
  %v6029 = vmul.f32 %v6027, %v6027
  %v6030 = vmul.f32 %v6028, %v6028
  %v6031 = vsel %vm64, %v6029, 0.0
  %6032 = vadd.xlane.f32.xlu0 %v6031
  %v6033 = vpop.xlane.xlu0 %6032
  %v6034 = vsel %vm64, %v6030, 0.0
  %6035 = vadd.xlane.f32.xlu0 %v6034
  %v6036 = vpop.xlane.xlu0 %6035
  %v6037 = vmul.f32 %v6033, %v2755
  %v6038 = vmul.f32 %v6036, %v2755
  %v6039 = vadd.f32 %v6037, 1e-05
  %v6040 = vadd.f32 %v6038, 1e-05
  %v6041 = vrsqrt.pop %v6039
  %v6042 = vrsqrt.pop %v6040
  %v6043 = vmul.f32 %v6027, %v6041
  %v6044 = vmul.f32 %v6028, %v6042
  %v6046 = vlaneseq
  %v6047 = vshrl.u32 %v6046, 7
  %v6048 = vsub.s32 0, %v6047
  %v6049 = vrot.slane %v6017, %v6048
  %v6051 = vmul.f32 %v6043, %v6049
  %v6052 = vmul.f32 %v6044, %v6049
  %v6054 = vlaneseq
  %v6055 = vshrl.u32 %v6054, 7
  %v6056 = vsub.s32 0, %v6055
  %v6057 = vrot.slane %v6018, %v6056
  %v6059 = vadd.f32 %v6051, %v6057
  %v6060 = vadd.f32 %v6052, %v6057
  %6061 = vst.msk [vmem:[%s14] sm:$0xff] %vm64, %v6059
  %6062 = vst.msk [vmem:[%s14 + $0x8] sm:$0xff] %vm64, %v6060
  // Predicated region
  $region58: #{transformer_encoder_forward.1} parent=0 // pred_check
    _
  $region59: #{transformer_encoder_forward.1} parent=0 // pred_check_branch
    %6064 = sbr.rel (0) target = $region61
  $region60: #{transformer_encoder_forward.1} parent=0 // pred_region
    _
  $region61: #{transformer_encoder_forward.1} parent=0 // pred_fallthru
    _
  // Predicated region
  $region62: #{transformer_encoder_forward.1} parent=0 // pred_check
    _
  $region63: #{transformer_encoder_forward.1} parent=0 // pred_check_branch
    %6066 = sbr.rel (0) target = $region65
  $region64: #{transformer_encoder_forward.1} parent=0 // pred_region
    _
  $region65: #{transformer_encoder_forward.1} parent=0 // pred_fallthru
    _

</llo_original>
